<compile_context>
chip_gen: v6e
topology: v6e:2x2x1
jax: 0.10.0
libtpu: 0.0.40
codegen_flags: <defaults>
</compile_context>

<pallas_src>
import functools

import jax
import jax.numpy as jnp
from jax import lax
from jax.experimental import pallas as pl
from jax.experimental.pallas import tpu as pltpu


def _round_up(x, m):
    return ((x + m - 1) // m) * m


# ----------------------------- kernel ---------------------------------------

def gru_full_kernel(src_ids_ref, tgt0_ids_ref,
                    e_in_ref, e_whh_ref, e_bhh_n_ref,
                    w_in_ref, w_hh_lin_ref, d_bhh_n_ref, lin_b_ref,
                    out_ref, gi_scr,
                    *, dp, src_len, tgt_len, vip, vp, batch):
    f32 = jnp.float32

    def gru_step(gi, gh, bhh_n, h):
        # gate order (r, z, n); every slice lane-aligned at multiples of dp=128.
        r = jax.nn.sigmoid(gi[:, 0:dp] + gh[:, 0:dp])
        z = jax.nn.sigmoid(gi[:, dp:2 * dp] + gh[:, dp:2 * dp])
        n = jnp.tanh(gi[:, 2 * dp:3 * dp] + r * (gh[:, 2 * dp:3 * dp] + bhh_n))
        return (1.0 - z) * n + z * h

    # ---------------- encoder ----------------
    # Build the (S*B, Vin_p) one-hot in-kernel from the int32 ids and compute
    # every timestep's input gates in ONE prologue matmul:
    #   gi_scr[s*B+b] = enc_emb[src[s,b]] @ W_ih + b_ih + [b_hh_r, b_hh_z, 0]
    src_ids = src_ids_ref[...]                                   # (S*B, 1) int32
    src_oh = (src_ids == lax.broadcasted_iota(
        jnp.int32, (src_len * batch, vip), 1)).astype(f32)
    gi_scr[...] = jnp.dot(src_oh, e_in_ref[...], preferred_element_type=f32)

    e_bhh_n = e_bhh_n_ref[...]          # (B, dp), pre-broadcast in the wrapper

    def enc_body(s, h):
        start = pl.multiple_of(s * batch, batch)
        gi = gi_scr[pl.ds(start, batch), :]                      # (B, 3dp)
        # read the 192 KiB W_hh table at the point of use (bounded vreg pressure)
        gh = jnp.dot(h, e_whh_ref[...], preferred_element_type=f32)
        return gru_step(gi, gh, e_bhh_n, h)

    h = lax.fori_loop(0, src_len, enc_body,
                      jnp.zeros((batch, dp), f32), unroll=True)

    # ---------------- decoder ----------------
    # Per step, ONE fused matmul shares the LHS h_t:
    #   h_t @ [W_hh | lin_w]  ->  [gh_{t+1} | logits_t]   (K=dp, N=3dp+vp)
    # and, after the greedy argmax,
    #   gi_{t+1} = onehot_t @ (dec_emb @ W_ih + biases)   (K=vp, N=3dp)
    d_bhh_n = d_bhh_n_ref[...]          # (B, dp), pre-broadcast
    lin_b = lin_b_ref[...]              # (B, vp), padded lanes = -1e30
    # index-proportional bias -> single-reduction argmax with deterministic
    # smallest-index tie-break (matches jnp.argmax unless logits tie within
    # ~1e-5, which never happens for real-valued logits here).
    iota_eps = lax.broadcasted_iota(
        jnp.int32, (batch, vp), 1).astype(f32) * jnp.float32(1e-7)

    # step-0 inputs: one-hot of tgt[0] and the recurrent projection of h_enc.
    oh0 = (tgt0_ids_ref[...] == lax.broadcasted_iota(
        jnp.int32, (batch, vp), 1)).astype(f32)
    gi0 = jnp.dot(oh0, w_in_ref[...], preferred_element_type=f32)
    gh0 = jnp.dot(h, w_hh_lin_ref[:, 0:3 * dp], preferred_element_type=f32)

    def dec_body(t, carry):
        h_prev, gi, gh = carry
        h_t = gru_step(gi, gh, d_bhh_n, h_prev)
        fused = jnp.dot(h_t, w_hh_lin_ref[...],
                        preferred_element_type=f32)              # (B, 3dp+vp)
        gh_next = fused[:, 0:3 * dp]
        logits = fused[:, 3 * dp:3 * dp + vp] + lin_b
        out_ref[t] = logits                                      # lane-dense store
        # greedy argmax -> one-hot feedback, single XLU reduction; padded lanes
        # hold -1e30 so they can never be selected.
        tb = logits - iota_eps
        m = jnp.max(tb, axis=-1, keepdims=True)
        oh = (tb == m).astype(f32)
        gi_next = jnp.dot(oh, w_in_ref[...], preferred_element_type=f32)
        return (h_t, gi_next, gh_next)

    lax.fori_loop(0, tgt_len, dec_body, (h, gi0, gh0), unroll=True)


# ----------------------------- wrapper ---------------------------------------

def _prep_params(p, d, v_in, v_out, dp, vip, vp, batch):
    """One-time weight transforms: pad to 128-lane slabs, fold biases, fuse emb."""
    f32 = jnp.float32
    hp = jax.lax.Precision.HIGHEST

    def pad2(x, rows, cols):
        return jnp.zeros((rows, cols), f32).at[:x.shape[0], :x.shape[1]].set(
            x.astype(f32))

    def pad_gates(w):  # (D, 3D) -> (Dp, 3Dp) with gate g at cols [g*Dp, g*Dp+D)
        out = jnp.zeros((dp, 3 * dp), f32)
        for g in range(3):
            out = out.at[:d, g * dp:g * dp + d].set(w[:, g * d:(g + 1) * d])
        return out

    def fold_bias(bih, bhh):  # (1,3D)x2 -> (1,3Dp): bih+bhh for r,z; bih for n
        out = jnp.zeros((1, 3 * dp), f32)
        out = out.at[:, 0:d].set(bih[:, 0:d] + bhh[:, 0:d])
        out = out.at[:, dp:dp + d].set(bih[:, d:2 * d] + bhh[:, d:2 * d])
        out = out.at[:, 2 * dp:2 * dp + d].set(bih[:, 2 * d:3 * d])
        return out

    def bhh_n_rows(bhh):  # (1,3D) -> (batch, Dp) n-gate hidden bias, pre-broadcast
        row = jnp.zeros((1, dp), f32).at[:, :d].set(bhh[:, 2 * d:3 * d])
        return jnp.broadcast_to(row, (batch, dp))

    # encoder: fuse embedding gather into the input projection table
    e_wih = pad_gates(p["e_wih_t"])
    e_whh = pad_gates(p["e_whh_t"])
    enc_emb = pad2(p["enc_emb"], vip, dp)
    e_in = jnp.dot(enc_emb, e_wih, precision=hp) + fold_bias(p["e_bih"], p["e_bhh"])

    # decoder: two separate fused tables (no block-diagonal K=2*128 matrix):
    #   w_in     (Vp, 3Dp)   : one-hot -> emb @ W_ih + b_ih + [b_hh_r, b_hh_z, 0]
    #   w_hh_lin (Dp, 3Dp+Vp): h       -> [h @ W_hh | h @ lin_w]
    d_wih = pad_gates(p["d_wih_t"])
    d_whh = pad_gates(p["d_whh_t"])
    dec_emb = pad2(p["dec_emb"], vp, dp)
    w_in = jnp.dot(dec_emb, d_wih, precision=hp) + fold_bias(p["d_bih"], p["d_bhh"])
    lin_w = pad2(p["lin_w_t"], dp, vp)
    w_hh_lin = jnp.concatenate([d_whh, lin_w], axis=1)

    # output bias: pre-broadcast to (batch, Vp); padded logit lanes = -1e30 so
    # the greedy argmax can never pick them (sliced off in the wrapper anyway).
    lin_b = jnp.full((1, vp), -1e30, f32).at[:, :v_out].set(p["lin_b"].astype(f32))
    lin_b = jnp.broadcast_to(lin_b, (batch, vp))

    return dict(e_in=e_in, e_whh=e_whh, e_bhh_n=bhh_n_rows(p["e_bhh"]),
                w_in=w_in, w_hh_lin=w_hh_lin, d_bhh_n=bhh_n_rows(p["d_bhh"]),
                lin_b=lin_b)


def gru_full_forward(src, tgt, params):
    """src: (S, B) int32, tgt: (T, B) int32 -> logits (T, B, V_out) f32."""
    S, B = src.shape
    T, _ = tgt.shape
    D = params["enc_emb"].shape[1]
    V_in = params["enc_emb"].shape[0]
    V_out = params["dec_emb"].shape[0]
    DP = _round_up(D, 128)
    VIP = _round_up(V_in, 128)
    VP = _round_up(V_out, 128)

    prep = _prep_params(params, D, V_in, V_out, DP, VIP, VP, B)

    # token ids only (one-hots are built in-kernel; embedding gathers are folded
    # into the weight tables).
    src_ids = src.reshape(S * B, 1).astype(jnp.int32)     # row s*B+b = src[s,b]
    tgt0_ids = tgt[0].reshape(B, 1).astype(jnp.int32)

    kernel = functools.partial(
        gru_full_kernel, dp=DP, src_len=S, tgt_len=T, vip=VIP, vp=VP, batch=B)

    vmem = pl.BlockSpec(memory_space=pltpu.MemorySpace.VMEM)
    args = (src_ids, tgt0_ids,
            prep["e_in"], prep["e_whh"], prep["e_bhh_n"],
            prep["w_in"], prep["w_hh_lin"], prep["d_bhh_n"], prep["lin_b"])

    out_padded = pl.pallas_call(
        kernel,
        out_shape=jax.ShapeDtypeStruct((T, B, VP), jnp.float32),
        in_specs=[vmem] * len(args),
        out_specs=vmem,
        scratch_shapes=[pltpu.VMEM((S * B, 3 * DP), jnp.float32)],
        compiler_params=pltpu.CompilerParams(
            vmem_limit_bytes=32 * 1024 * 1024),
    )(*args)
    return out_padded[..., :V_out]


# ----------------------------- reference (pure JAX) --------------------------

def _gru_cell_ref(x, h, wih_t, whh_t, bih, bhh, d):
    hp = jax.lax.Precision.HIGHEST
    gi = jnp.dot(x, wih_t, precision=hp) + bih
    gh = jnp.dot(h, whh_t, precision=hp) + bhh
    r = jax.nn.sigmoid(gi[:, :d] + gh[:, :d])
    z = jax.nn.sigmoid(gi[:, d:2 * d] + gh[:, d:2 * d])
    n = jnp.tanh(gi[:, 2 * d:] + r * gh[:, 2 * d:])
    return (1.0 - z) * n + z * h


def gru_full_reference(src, tgt, p):
    hp = jax.lax.Precision.HIGHEST
    S, B = src.shape
    T, _ = tgt.shape
    D = p["enc_emb"].shape[1]
    h = jnp.zeros((B, D), jnp.float32)
    src_emb = p["enc_emb"][src]
    for s in range(S):
        h = _gru_cell_ref(src_emb[s], h, p["e_wih_t"], p["e_whh_t"],
                          p["e_bih"], p["e_bhh"], D)
    dec_in = tgt[0]
    outs = []
    for _ in range(T):
        x = p["dec_emb"][dec_in]
        h = _gru_cell_ref(x, h, p["d_wih_t"], p["d_whh_t"], p["d_bih"], p["d_bhh"], D)
        logits = jnp.dot(h, p["lin_w_t"], precision=hp) + p["lin_b"]
        outs.append(logits)
        dec_in = jnp.argmax(logits, axis=-1)
    return jnp.stack(outs, axis=0)


# ----------------------------- main ------------------------------------------

if __name__ == "__main__":
    # small, module-consistent shapes
    D = 32           # d_model
    V_IN = 48        # input_size  (~ len(eng_vocab))
    V_OUT = 40       # output_size (~ len(parsed_vocab))
    S = 8            # source length
    T = 8            # target length
    B = 8            # batch

    key = jax.random.PRNGKey(0)
    ks = jax.random.split(key, 16)
    k_gru = 1.0 / jnp.sqrt(jnp.float32(D))

    def u(k, shape, scale):
        return jax.random.uniform(k, shape, jnp.float32, -scale, scale)

    params = {
        # embeddings
        "enc_emb": 0.1 * jax.random.normal(ks[0], (V_IN, D), jnp.float32),
        "dec_emb": 0.1 * jax.random.normal(ks[1], (V_OUT, D), jnp.float32),
        # encoder GRU (stored transposed: (D, 3D), gate order r,z,n)
        "e_wih_t": u(ks[2], (D, 3 * D), k_gru),
        "e_whh_t": u(ks[3], (D, 3 * D), k_gru),
        "e_bih":   u(ks[4], (1, 3 * D), k_gru),
        "e_bhh":   u(ks[5], (1, 3 * D), k_gru),
        # decoder GRU
        "d_wih_t": u(ks[6], (D, 3 * D), k_gru),
        "d_whh_t": u(ks[7], (D, 3 * D), k_gru),
        "d_bih":   u(ks[8], (1, 3 * D), k_gru),
        "d_bhh":   u(ks[9], (1, 3 * D), k_gru),
        # output linear (stored transposed: (D, V_out))
        "lin_w_t": u(ks[10], (D, V_OUT), k_gru),
        "lin_b":   u(ks[11], (1, V_OUT), k_gru),
    }

    src = jax.random.randint(ks[12], (S, B), 0, V_IN, dtype=jnp.int32)
    tgt = jax.random.randint(ks[13], (T, B), 0, V_OUT, dtype=jnp.int32)

    out = gru_full_forward(src, tgt, params)
    out = jax.block_until_ready(out)

    ref = gru_full_reference(src, tgt, params)
    assert out.shape == (T, B, V_OUT), out.shape
    assert jnp.allclose(out, ref, rtol=1e-3, atol=1e-3), (
        float(jnp.max(jnp.abs(out - ref))))

    print("KERNEL_OK")
</pallas_src>

<mosaic_0001>
module attributes {stable_mosaic.version = 11 : i64} {
  func.func @gru_full_kernel(%arg0: memref<64x1xi32, #tpu.memory_space<vmem>>, %arg1: memref<8x1xi32, #tpu.memory_space<vmem>>, %arg2: memref<128x384xf32, #tpu.memory_space<vmem>>, %arg3: memref<128x384xf32, #tpu.memory_space<vmem>>, %arg4: memref<8x128xf32, #tpu.memory_space<vmem>>, %arg5: memref<128x384xf32, #tpu.memory_space<vmem>>, %arg6: memref<128x512xf32, #tpu.memory_space<vmem>>, %arg7: memref<8x128xf32, #tpu.memory_space<vmem>>, %arg8: memref<8x128xf32, #tpu.memory_space<vmem>>, %arg9: memref<8x8x128xf32, #tpu.memory_space<vmem>>, %arg10: memref<64x384xf32, #tpu.memory_space<vmem>>) attributes {dimension_semantics = [], scalar_prefetch = 0 : i64, scratch_operands = 1 : i64, tpu.core_type = #tpu.core_type<tc>} {
    %c0 = arith.constant 0 : index
    %c0_0 = arith.constant 0 : index
    %0 = vector.load %arg0[%c0, %c0_0] : memref<64x1xi32, #tpu.memory_space<vmem>>, vector<64x1xi32>
    %1 = tpu.iota {dimensions = array<i32: 1>} : vector<64x128xi32>
    %2 = vector.broadcast %0 : vector<64x1xi32> to vector<64x128xi32>
    %3 = arith.cmpi eq, %2, %1 : vector<64x128xi32>
    %4 = arith.extui %3 : vector<64x128xi1> to vector<64x128xi32>
    %5 = arith.sitofp %4 : vector<64x128xi32> to vector<64x128xf32>
    %c0_1 = arith.constant 0 : index
    %c0_2 = arith.constant 0 : index
    %6 = vector.load %arg2[%c0_1, %c0_2] : memref<128x384xf32, #tpu.memory_space<vmem>>, vector<128x384xf32>
    %cst = arith.constant dense<0.000000e+00> : vector<64x384xf32>
    %7 = tpu.matmul %5, %6, %cst {dimension_numbers = #tpu.dot_dimension_numbers<[1], [0], [0], [1], [0, 0, 1, 1], [], []>} : vector<64x128xf32>, vector<128x384xf32>, vector<64x384xf32> -> vector<64x384xf32>
    %c0_3 = arith.constant 0 : index
    %c0_4 = arith.constant 0 : index
    %8 = vector.load %arg10[%c0_3, %c0_4] : memref<64x384xf32, #tpu.memory_space<vmem>>, vector<64x384xf32>
    tpu.vector_store %arg10[%c0_3, %c0_4], %7 {strides = array<i32>} : memref<64x384xf32, #tpu.memory_space<vmem>>, vector<64x384xf32>,
    %c0_5 = arith.constant 0 : index
    %c0_6 = arith.constant 0 : index
    %9 = vector.load %arg4[%c0_5, %c0_6] : memref<8x128xf32, #tpu.memory_space<vmem>>, vector<8x128xf32>
    %cst_7 = arith.constant 0.000000e+00 : f32
    %10 = vector.broadcast %cst_7 : f32 to vector<8x128xf32>
    %c0_i32 = arith.constant 0 : i32
    %c8_i32 = arith.constant 8 : i32
    %11 = arith.muli %c0_i32, %c8_i32 : i32
    %12 = tpu.assume_multiple %11, 8 : i32
    %13 = arith.index_cast %12 : i32 to index
    %c0_8 = arith.constant 0 : index
    %14 = vector.load %arg10[%13, %c0_8] : memref<64x384xf32, #tpu.memory_space<vmem>>, vector<8x384xf32>
    %c0_9 = arith.constant 0 : index
    %c0_10 = arith.constant 0 : index
    %15 = vector.load %arg3[%c0_9, %c0_10] : memref<128x384xf32, #tpu.memory_space<vmem>>, vector<128x384xf32>
    %cst_11 = arith.constant dense<0.000000e+00> : vector<8x384xf32>
    %16 = tpu.matmul %10, %15, %cst_11 {dimension_numbers = #tpu.dot_dimension_numbers<[1], [0], [0], [1], [0, 0, 1, 1], [], []>} : vector<8x128xf32>, vector<128x384xf32>, vector<8x384xf32> -> vector<8x384xf32>
    %17 = vector.extract_strided_slice %14 {offsets = [0, 0], sizes = [8, 128], strides = [1, 1]} : vector<8x384xf32> to vector<8x128xf32>
    %18 = vector.extract_strided_slice %16 {offsets = [0, 0], sizes = [8, 128], strides = [1, 1]} : vector<8x384xf32> to vector<8x128xf32>
    %19 = arith.addf %17, %18 : vector<8x128xf32>
    %20 = arith.negf %19 : vector<8x128xf32>
    %21 = math.exp %20 : vector<8x128xf32>
    %cst_12 = arith.constant 1.000000e+00 : f32
    %22 = vector.broadcast %cst_12 : f32 to vector<8x128xf32>
    %23 = arith.addf %22, %21 : vector<8x128xf32>
    %24 = arith.divf %22, %23 : vector<8x128xf32>
    %25 = vector.extract_strided_slice %14 {offsets = [0, 128], sizes = [8, 128], strides = [1, 1]} : vector<8x384xf32> to vector<8x128xf32>
    %26 = vector.extract_strided_slice %16 {offsets = [0, 128], sizes = [8, 128], strides = [1, 1]} : vector<8x384xf32> to vector<8x128xf32>
    %27 = arith.addf %25, %26 : vector<8x128xf32>
    %28 = arith.negf %27 : vector<8x128xf32>
    %29 = math.exp %28 : vector<8x128xf32>
    %cst_13 = arith.constant 1.000000e+00 : f32
    %30 = vector.broadcast %cst_13 : f32 to vector<8x128xf32>
    %31 = arith.addf %30, %29 : vector<8x128xf32>
    %32 = arith.divf %30, %31 : vector<8x128xf32>
    %33 = vector.extract_strided_slice %14 {offsets = [0, 256], sizes = [8, 128], strides = [1, 1]} : vector<8x384xf32> to vector<8x128xf32>
    %34 = vector.extract_strided_slice %16 {offsets = [0, 256], sizes = [8, 128], strides = [1, 1]} : vector<8x384xf32> to vector<8x128xf32>
    %35 = arith.addf %34, %9 : vector<8x128xf32>
    %36 = arith.mulf %24, %35 : vector<8x128xf32>
    %37 = arith.addf %33, %36 : vector<8x128xf32>
    %38 = math.tanh %37 : vector<8x128xf32>
    %cst_14 = arith.constant 1.000000e+00 : f32
    %39 = vector.broadcast %cst_14 : f32 to vector<8x128xf32>
    %40 = arith.subf %39, %32 : vector<8x128xf32>
    %41 = arith.mulf %40, %38 : vector<8x128xf32>
    %42 = arith.mulf %32, %10 : vector<8x128xf32>
    %43 = arith.addf %41, %42 : vector<8x128xf32>
    %c1_i32 = arith.constant 1 : i32
    %c8_i32_15 = arith.constant 8 : i32
    %44 = arith.muli %c1_i32, %c8_i32_15 : i32
    %45 = tpu.assume_multiple %44, 8 : i32
    %46 = arith.index_cast %45 : i32 to index
    %c0_16 = arith.constant 0 : index
    %47 = vector.load %arg10[%46, %c0_16] : memref<64x384xf32, #tpu.memory_space<vmem>>, vector<8x384xf32>
    %c0_17 = arith.constant 0 : index
    %c0_18 = arith.constant 0 : index
    %48 = vector.load %arg3[%c0_17, %c0_18] : memref<128x384xf32, #tpu.memory_space<vmem>>, vector<128x384xf32>
    %cst_19 = arith.constant dense<0.000000e+00> : vector<8x384xf32>
    %49 = tpu.matmul %43, %48, %cst_19 {dimension_numbers = #tpu.dot_dimension_numbers<[1], [0], [0], [1], [0, 0, 1, 1], [], []>} : vector<8x128xf32>, vector<128x384xf32>, vector<8x384xf32> -> vector<8x384xf32>
    %50 = vector.extract_strided_slice %47 {offsets = [0, 0], sizes = [8, 128], strides = [1, 1]} : vector<8x384xf32> to vector<8x128xf32>
    %51 = vector.extract_strided_slice %49 {offsets = [0, 0], sizes = [8, 128], strides = [1, 1]} : vector<8x384xf32> to vector<8x128xf32>
    %52 = arith.addf %50, %51 : vector<8x128xf32>
    %53 = arith.negf %52 : vector<8x128xf32>
    %54 = math.exp %53 : vector<8x128xf32>
    %cst_20 = arith.constant 1.000000e+00 : f32
    %55 = vector.broadcast %cst_20 : f32 to vector<8x128xf32>
    %56 = arith.addf %55, %54 : vector<8x128xf32>
    %57 = arith.divf %55, %56 : vector<8x128xf32>
    %58 = vector.extract_strided_slice %47 {offsets = [0, 128], sizes = [8, 128], strides = [1, 1]} : vector<8x384xf32> to vector<8x128xf32>
    %59 = vector.extract_strided_slice %49 {offsets = [0, 128], sizes = [8, 128], strides = [1, 1]} : vector<8x384xf32> to vector<8x128xf32>
    %60 = arith.addf %58, %59 : vector<8x128xf32>
    %61 = arith.negf %60 : vector<8x128xf32>
    %62 = math.exp %61 : vector<8x128xf32>
    %cst_21 = arith.constant 1.000000e+00 : f32
    %63 = vector.broadcast %cst_21 : f32 to vector<8x128xf32>
    %64 = arith.addf %63, %62 : vector<8x128xf32>
    %65 = arith.divf %63, %64 : vector<8x128xf32>
    %66 = vector.extract_strided_slice %47 {offsets = [0, 256], sizes = [8, 128], strides = [1, 1]} : vector<8x384xf32> to vector<8x128xf32>
    %67 = vector.extract_strided_slice %49 {offsets = [0, 256], sizes = [8, 128], strides = [1, 1]} : vector<8x384xf32> to vector<8x128xf32>
    %68 = arith.addf %67, %9 : vector<8x128xf32>
    %69 = arith.mulf %57, %68 : vector<8x128xf32>
    %70 = arith.addf %66, %69 : vector<8x128xf32>
    %71 = math.tanh %70 : vector<8x128xf32>
    %cst_22 = arith.constant 1.000000e+00 : f32
    %72 = vector.broadcast %cst_22 : f32 to vector<8x128xf32>
    %73 = arith.subf %72, %65 : vector<8x128xf32>
    %74 = arith.mulf %73, %71 : vector<8x128xf32>
    %75 = arith.mulf %65, %43 : vector<8x128xf32>
    %76 = arith.addf %74, %75 : vector<8x128xf32>
    %c2_i32 = arith.constant 2 : i32
    %c8_i32_23 = arith.constant 8 : i32
    %77 = arith.muli %c2_i32, %c8_i32_23 : i32
    %78 = tpu.assume_multiple %77, 8 : i32
    %79 = arith.index_cast %78 : i32 to index
    %c0_24 = arith.constant 0 : index
    %80 = vector.load %arg10[%79, %c0_24] : memref<64x384xf32, #tpu.memory_space<vmem>>, vector<8x384xf32>
    %c0_25 = arith.constant 0 : index
    %c0_26 = arith.constant 0 : index
    %81 = vector.load %arg3[%c0_25, %c0_26] : memref<128x384xf32, #tpu.memory_space<vmem>>, vector<128x384xf32>
    %cst_27 = arith.constant dense<0.000000e+00> : vector<8x384xf32>
    %82 = tpu.matmul %76, %81, %cst_27 {dimension_numbers = #tpu.dot_dimension_numbers<[1], [0], [0], [1], [0, 0, 1, 1], [], []>} : vector<8x128xf32>, vector<128x384xf32>, vector<8x384xf32> -> vector<8x384xf32>
    %83 = vector.extract_strided_slice %80 {offsets = [0, 0], sizes = [8, 128], strides = [1, 1]} : vector<8x384xf32> to vector<8x128xf32>
    %84 = vector.extract_strided_slice %82 {offsets = [0, 0], sizes = [8, 128], strides = [1, 1]} : vector<8x384xf32> to vector<8x128xf32>
    %85 = arith.addf %83, %84 : vector<8x128xf32>
    %86 = arith.negf %85 : vector<8x128xf32>
    %87 = math.exp %86 : vector<8x128xf32>
    %cst_28 = arith.constant 1.000000e+00 : f32
    %88 = vector.broadcast %cst_28 : f32 to vector<8x128xf32>
    %89 = arith.addf %88, %87 : vector<8x128xf32>
    %90 = arith.divf %88, %89 : vector<8x128xf32>
    %91 = vector.extract_strided_slice %80 {offsets = [0, 128], sizes = [8, 128], strides = [1, 1]} : vector<8x384xf32> to vector<8x128xf32>
    %92 = vector.extract_strided_slice %82 {offsets = [0, 128], sizes = [8, 128], strides = [1, 1]} : vector<8x384xf32> to vector<8x128xf32>
    %93 = arith.addf %91, %92 : vector<8x128xf32>
    %94 = arith.negf %93 : vector<8x128xf32>
    %95 = math.exp %94 : vector<8x128xf32>
    %cst_29 = arith.constant 1.000000e+00 : f32
    %96 = vector.broadcast %cst_29 : f32 to vector<8x128xf32>
    %97 = arith.addf %96, %95 : vector<8x128xf32>
    %98 = arith.divf %96, %97 : vector<8x128xf32>
    %99 = vector.extract_strided_slice %80 {offsets = [0, 256], sizes = [8, 128], strides = [1, 1]} : vector<8x384xf32> to vector<8x128xf32>
    %100 = vector.extract_strided_slice %82 {offsets = [0, 256], sizes = [8, 128], strides = [1, 1]} : vector<8x384xf32> to vector<8x128xf32>
    %101 = arith.addf %100, %9 : vector<8x128xf32>
    %102 = arith.mulf %90, %101 : vector<8x128xf32>
    %103 = arith.addf %99, %102 : vector<8x128xf32>
    %104 = math.tanh %103 : vector<8x128xf32>
    %cst_30 = arith.constant 1.000000e+00 : f32
    %105 = vector.broadcast %cst_30 : f32 to vector<8x128xf32>
    %106 = arith.subf %105, %98 : vector<8x128xf32>
    %107 = arith.mulf %106, %104 : vector<8x128xf32>
    %108 = arith.mulf %98, %76 : vector<8x128xf32>
    %109 = arith.addf %107, %108 : vector<8x128xf32>
    %c3_i32 = arith.constant 3 : i32
    %c8_i32_31 = arith.constant 8 : i32
    %110 = arith.muli %c3_i32, %c8_i32_31 : i32
    %111 = tpu.assume_multiple %110, 8 : i32
    %112 = arith.index_cast %111 : i32 to index
    %c0_32 = arith.constant 0 : index
    %113 = vector.load %arg10[%112, %c0_32] : memref<64x384xf32, #tpu.memory_space<vmem>>, vector<8x384xf32>
    %c0_33 = arith.constant 0 : index
    %c0_34 = arith.constant 0 : index
    %114 = vector.load %arg3[%c0_33, %c0_34] : memref<128x384xf32, #tpu.memory_space<vmem>>, vector<128x384xf32>
    %cst_35 = arith.constant dense<0.000000e+00> : vector<8x384xf32>
    %115 = tpu.matmul %109, %114, %cst_35 {dimension_numbers = #tpu.dot_dimension_numbers<[1], [0], [0], [1], [0, 0, 1, 1], [], []>} : vector<8x128xf32>, vector<128x384xf32>, vector<8x384xf32> -> vector<8x384xf32>
    %116 = vector.extract_strided_slice %113 {offsets = [0, 0], sizes = [8, 128], strides = [1, 1]} : vector<8x384xf32> to vector<8x128xf32>
    %117 = vector.extract_strided_slice %115 {offsets = [0, 0], sizes = [8, 128], strides = [1, 1]} : vector<8x384xf32> to vector<8x128xf32>
    %118 = arith.addf %116, %117 : vector<8x128xf32>
    %119 = arith.negf %118 : vector<8x128xf32>
    %120 = math.exp %119 : vector<8x128xf32>
    %cst_36 = arith.constant 1.000000e+00 : f32
    %121 = vector.broadcast %cst_36 : f32 to vector<8x128xf32>
    %122 = arith.addf %121, %120 : vector<8x128xf32>
    %123 = arith.divf %121, %122 : vector<8x128xf32>
    %124 = vector.extract_strided_slice %113 {offsets = [0, 128], sizes = [8, 128], strides = [1, 1]} : vector<8x384xf32> to vector<8x128xf32>
    %125 = vector.extract_strided_slice %115 {offsets = [0, 128], sizes = [8, 128], strides = [1, 1]} : vector<8x384xf32> to vector<8x128xf32>
    %126 = arith.addf %124, %125 : vector<8x128xf32>
    %127 = arith.negf %126 : vector<8x128xf32>
    %128 = math.exp %127 : vector<8x128xf32>
    %cst_37 = arith.constant 1.000000e+00 : f32
    %129 = vector.broadcast %cst_37 : f32 to vector<8x128xf32>
    %130 = arith.addf %129, %128 : vector<8x128xf32>
    %131 = arith.divf %129, %130 : vector<8x128xf32>
    %132 = vector.extract_strided_slice %113 {offsets = [0, 256], sizes = [8, 128], strides = [1, 1]} : vector<8x384xf32> to vector<8x128xf32>
    %133 = vector.extract_strided_slice %115 {offsets = [0, 256], sizes = [8, 128], strides = [1, 1]} : vector<8x384xf32> to vector<8x128xf32>
    %134 = arith.addf %133, %9 : vector<8x128xf32>
    %135 = arith.mulf %123, %134 : vector<8x128xf32>
    %136 = arith.addf %132, %135 : vector<8x128xf32>
    %137 = math.tanh %136 : vector<8x128xf32>
    %cst_38 = arith.constant 1.000000e+00 : f32
    %138 = vector.broadcast %cst_38 : f32 to vector<8x128xf32>
    %139 = arith.subf %138, %131 : vector<8x128xf32>
    %140 = arith.mulf %139, %137 : vector<8x128xf32>
    %141 = arith.mulf %131, %109 : vector<8x128xf32>
    %142 = arith.addf %140, %141 : vector<8x128xf32>
    %c4_i32 = arith.constant 4 : i32
    %c8_i32_39 = arith.constant 8 : i32
    %143 = arith.muli %c4_i32, %c8_i32_39 : i32
    %144 = tpu.assume_multiple %143, 8 : i32
    %145 = arith.index_cast %144 : i32 to index
    %c0_40 = arith.constant 0 : index
    %146 = vector.load %arg10[%145, %c0_40] : memref<64x384xf32, #tpu.memory_space<vmem>>, vector<8x384xf32>
    %c0_41 = arith.constant 0 : index
    %c0_42 = arith.constant 0 : index
    %147 = vector.load %arg3[%c0_41, %c0_42] : memref<128x384xf32, #tpu.memory_space<vmem>>, vector<128x384xf32>
    %cst_43 = arith.constant dense<0.000000e+00> : vector<8x384xf32>
    %148 = tpu.matmul %142, %147, %cst_43 {dimension_numbers = #tpu.dot_dimension_numbers<[1], [0], [0], [1], [0, 0, 1, 1], [], []>} : vector<8x128xf32>, vector<128x384xf32>, vector<8x384xf32> -> vector<8x384xf32>
    %149 = vector.extract_strided_slice %146 {offsets = [0, 0], sizes = [8, 128], strides = [1, 1]} : vector<8x384xf32> to vector<8x128xf32>
    %150 = vector.extract_strided_slice %148 {offsets = [0, 0], sizes = [8, 128], strides = [1, 1]} : vector<8x384xf32> to vector<8x128xf32>
    %151 = arith.addf %149, %150 : vector<8x128xf32>
    %152 = arith.negf %151 : vector<8x128xf32>
    %153 = math.exp %152 : vector<8x128xf32>
    %cst_44 = arith.constant 1.000000e+00 : f32
    %154 = vector.broadcast %cst_44 : f32 to vector<8x128xf32>
    %155 = arith.addf %154, %153 : vector<8x128xf32>
    %156 = arith.divf %154, %155 : vector<8x128xf32>
    %157 = vector.extract_strided_slice %146 {offsets = [0, 128], sizes = [8, 128], strides = [1, 1]} : vector<8x384xf32> to vector<8x128xf32>
    %158 = vector.extract_strided_slice %148 {offsets = [0, 128], sizes = [8, 128], strides = [1, 1]} : vector<8x384xf32> to vector<8x128xf32>
    %159 = arith.addf %157, %158 : vector<8x128xf32>
    %160 = arith.negf %159 : vector<8x128xf32>
    %161 = math.exp %160 : vector<8x128xf32>
    %cst_45 = arith.constant 1.000000e+00 : f32
    %162 = vector.broadcast %cst_45 : f32 to vector<8x128xf32>
    %163 = arith.addf %162, %161 : vector<8x128xf32>
    %164 = arith.divf %162, %163 : vector<8x128xf32>
    %165 = vector.extract_strided_slice %146 {offsets = [0, 256], sizes = [8, 128], strides = [1, 1]} : vector<8x384xf32> to vector<8x128xf32>
    %166 = vector.extract_strided_slice %148 {offsets = [0, 256], sizes = [8, 128], strides = [1, 1]} : vector<8x384xf32> to vector<8x128xf32>
    %167 = arith.addf %166, %9 : vector<8x128xf32>
    %168 = arith.mulf %156, %167 : vector<8x128xf32>
    %169 = arith.addf %165, %168 : vector<8x128xf32>
    %170 = math.tanh %169 : vector<8x128xf32>
    %cst_46 = arith.constant 1.000000e+00 : f32
    %171 = vector.broadcast %cst_46 : f32 to vector<8x128xf32>
    %172 = arith.subf %171, %164 : vector<8x128xf32>
    %173 = arith.mulf %172, %170 : vector<8x128xf32>
    %174 = arith.mulf %164, %142 : vector<8x128xf32>
    %175 = arith.addf %173, %174 : vector<8x128xf32>
    %c5_i32 = arith.constant 5 : i32
    %c8_i32_47 = arith.constant 8 : i32
    %176 = arith.muli %c5_i32, %c8_i32_47 : i32
    %177 = tpu.assume_multiple %176, 8 : i32
    %178 = arith.index_cast %177 : i32 to index
    %c0_48 = arith.constant 0 : index
    %179 = vector.load %arg10[%178, %c0_48] : memref<64x384xf32, #tpu.memory_space<vmem>>, vector<8x384xf32>
    %c0_49 = arith.constant 0 : index
    %c0_50 = arith.constant 0 : index
    %180 = vector.load %arg3[%c0_49, %c0_50] : memref<128x384xf32, #tpu.memory_space<vmem>>, vector<128x384xf32>
    %cst_51 = arith.constant dense<0.000000e+00> : vector<8x384xf32>
    %181 = tpu.matmul %175, %180, %cst_51 {dimension_numbers = #tpu.dot_dimension_numbers<[1], [0], [0], [1], [0, 0, 1, 1], [], []>} : vector<8x128xf32>, vector<128x384xf32>, vector<8x384xf32> -> vector<8x384xf32>
    %182 = vector.extract_strided_slice %179 {offsets = [0, 0], sizes = [8, 128], strides = [1, 1]} : vector<8x384xf32> to vector<8x128xf32>
    %183 = vector.extract_strided_slice %181 {offsets = [0, 0], sizes = [8, 128], strides = [1, 1]} : vector<8x384xf32> to vector<8x128xf32>
    %184 = arith.addf %182, %183 : vector<8x128xf32>
    %185 = arith.negf %184 : vector<8x128xf32>
    %186 = math.exp %185 : vector<8x128xf32>
    %cst_52 = arith.constant 1.000000e+00 : f32
    %187 = vector.broadcast %cst_52 : f32 to vector<8x128xf32>
    %188 = arith.addf %187, %186 : vector<8x128xf32>
    %189 = arith.divf %187, %188 : vector<8x128xf32>
    %190 = vector.extract_strided_slice %179 {offsets = [0, 128], sizes = [8, 128], strides = [1, 1]} : vector<8x384xf32> to vector<8x128xf32>
    %191 = vector.extract_strided_slice %181 {offsets = [0, 128], sizes = [8, 128], strides = [1, 1]} : vector<8x384xf32> to vector<8x128xf32>
    %192 = arith.addf %190, %191 : vector<8x128xf32>
    %193 = arith.negf %192 : vector<8x128xf32>
    %194 = math.exp %193 : vector<8x128xf32>
    %cst_53 = arith.constant 1.000000e+00 : f32
    %195 = vector.broadcast %cst_53 : f32 to vector<8x128xf32>
    %196 = arith.addf %195, %194 : vector<8x128xf32>
    %197 = arith.divf %195, %196 : vector<8x128xf32>
    %198 = vector.extract_strided_slice %179 {offsets = [0, 256], sizes = [8, 128], strides = [1, 1]} : vector<8x384xf32> to vector<8x128xf32>
    %199 = vector.extract_strided_slice %181 {offsets = [0, 256], sizes = [8, 128], strides = [1, 1]} : vector<8x384xf32> to vector<8x128xf32>
    %200 = arith.addf %199, %9 : vector<8x128xf32>
    %201 = arith.mulf %189, %200 : vector<8x128xf32>
    %202 = arith.addf %198, %201 : vector<8x128xf32>
    %203 = math.tanh %202 : vector<8x128xf32>
    %cst_54 = arith.constant 1.000000e+00 : f32
    %204 = vector.broadcast %cst_54 : f32 to vector<8x128xf32>
    %205 = arith.subf %204, %197 : vector<8x128xf32>
    %206 = arith.mulf %205, %203 : vector<8x128xf32>
    %207 = arith.mulf %197, %175 : vector<8x128xf32>
    %208 = arith.addf %206, %207 : vector<8x128xf32>
    %c6_i32 = arith.constant 6 : i32
    %c8_i32_55 = arith.constant 8 : i32
    %209 = arith.muli %c6_i32, %c8_i32_55 : i32
    %210 = tpu.assume_multiple %209, 8 : i32
    %211 = arith.index_cast %210 : i32 to index
    %c0_56 = arith.constant 0 : index
    %212 = vector.load %arg10[%211, %c0_56] : memref<64x384xf32, #tpu.memory_space<vmem>>, vector<8x384xf32>
    %c0_57 = arith.constant 0 : index
    %c0_58 = arith.constant 0 : index
    %213 = vector.load %arg3[%c0_57, %c0_58] : memref<128x384xf32, #tpu.memory_space<vmem>>, vector<128x384xf32>
    %cst_59 = arith.constant dense<0.000000e+00> : vector<8x384xf32>
    %214 = tpu.matmul %208, %213, %cst_59 {dimension_numbers = #tpu.dot_dimension_numbers<[1], [0], [0], [1], [0, 0, 1, 1], [], []>} : vector<8x128xf32>, vector<128x384xf32>, vector<8x384xf32> -> vector<8x384xf32>
    %215 = vector.extract_strided_slice %212 {offsets = [0, 0], sizes = [8, 128], strides = [1, 1]} : vector<8x384xf32> to vector<8x128xf32>
    %216 = vector.extract_strided_slice %214 {offsets = [0, 0], sizes = [8, 128], strides = [1, 1]} : vector<8x384xf32> to vector<8x128xf32>
    %217 = arith.addf %215, %216 : vector<8x128xf32>
    %218 = arith.negf %217 : vector<8x128xf32>
    %219 = math.exp %218 : vector<8x128xf32>
    %cst_60 = arith.constant 1.000000e+00 : f32
    %220 = vector.broadcast %cst_60 : f32 to vector<8x128xf32>
    %221 = arith.addf %220, %219 : vector<8x128xf32>
    %222 = arith.divf %220, %221 : vector<8x128xf32>
    %223 = vector.extract_strided_slice %212 {offsets = [0, 128], sizes = [8, 128], strides = [1, 1]} : vector<8x384xf32> to vector<8x128xf32>
    %224 = vector.extract_strided_slice %214 {offsets = [0, 128], sizes = [8, 128], strides = [1, 1]} : vector<8x384xf32> to vector<8x128xf32>
    %225 = arith.addf %223, %224 : vector<8x128xf32>
    %226 = arith.negf %225 : vector<8x128xf32>
    %227 = math.exp %226 : vector<8x128xf32>
    %cst_61 = arith.constant 1.000000e+00 : f32
    %228 = vector.broadcast %cst_61 : f32 to vector<8x128xf32>
    %229 = arith.addf %228, %227 : vector<8x128xf32>
    %230 = arith.divf %228, %229 : vector<8x128xf32>
    %231 = vector.extract_strided_slice %212 {offsets = [0, 256], sizes = [8, 128], strides = [1, 1]} : vector<8x384xf32> to vector<8x128xf32>
    %232 = vector.extract_strided_slice %214 {offsets = [0, 256], sizes = [8, 128], strides = [1, 1]} : vector<8x384xf32> to vector<8x128xf32>
    %233 = arith.addf %232, %9 : vector<8x128xf32>
    %234 = arith.mulf %222, %233 : vector<8x128xf32>
    %235 = arith.addf %231, %234 : vector<8x128xf32>
    %236 = math.tanh %235 : vector<8x128xf32>
    %cst_62 = arith.constant 1.000000e+00 : f32
    %237 = vector.broadcast %cst_62 : f32 to vector<8x128xf32>
    %238 = arith.subf %237, %230 : vector<8x128xf32>
    %239 = arith.mulf %238, %236 : vector<8x128xf32>
    %240 = arith.mulf %230, %208 : vector<8x128xf32>
    %241 = arith.addf %239, %240 : vector<8x128xf32>
    %c7_i32 = arith.constant 7 : i32
    %c8_i32_63 = arith.constant 8 : i32
    %242 = arith.muli %c7_i32, %c8_i32_63 : i32
    %243 = tpu.assume_multiple %242, 8 : i32
    %244 = arith.index_cast %243 : i32 to index
    %c0_64 = arith.constant 0 : index
    %245 = vector.load %arg10[%244, %c0_64] : memref<64x384xf32, #tpu.memory_space<vmem>>, vector<8x384xf32>
    %c0_65 = arith.constant 0 : index
    %c0_66 = arith.constant 0 : index
    %246 = vector.load %arg3[%c0_65, %c0_66] : memref<128x384xf32, #tpu.memory_space<vmem>>, vector<128x384xf32>
    %cst_67 = arith.constant dense<0.000000e+00> : vector<8x384xf32>
    %247 = tpu.matmul %241, %246, %cst_67 {dimension_numbers = #tpu.dot_dimension_numbers<[1], [0], [0], [1], [0, 0, 1, 1], [], []>} : vector<8x128xf32>, vector<128x384xf32>, vector<8x384xf32> -> vector<8x384xf32>
    %248 = vector.extract_strided_slice %245 {offsets = [0, 0], sizes = [8, 128], strides = [1, 1]} : vector<8x384xf32> to vector<8x128xf32>
    %249 = vector.extract_strided_slice %247 {offsets = [0, 0], sizes = [8, 128], strides = [1, 1]} : vector<8x384xf32> to vector<8x128xf32>
    %250 = arith.addf %248, %249 : vector<8x128xf32>
    %251 = arith.negf %250 : vector<8x128xf32>
    %252 = math.exp %251 : vector<8x128xf32>
    %cst_68 = arith.constant 1.000000e+00 : f32
    %253 = vector.broadcast %cst_68 : f32 to vector<8x128xf32>
    %254 = arith.addf %253, %252 : vector<8x128xf32>
    %255 = arith.divf %253, %254 : vector<8x128xf32>
    %256 = vector.extract_strided_slice %245 {offsets = [0, 128], sizes = [8, 128], strides = [1, 1]} : vector<8x384xf32> to vector<8x128xf32>
    %257 = vector.extract_strided_slice %247 {offsets = [0, 128], sizes = [8, 128], strides = [1, 1]} : vector<8x384xf32> to vector<8x128xf32>
    %258 = arith.addf %256, %257 : vector<8x128xf32>
    %259 = arith.negf %258 : vector<8x128xf32>
    %260 = math.exp %259 : vector<8x128xf32>
    %cst_69 = arith.constant 1.000000e+00 : f32
    %261 = vector.broadcast %cst_69 : f32 to vector<8x128xf32>
    %262 = arith.addf %261, %260 : vector<8x128xf32>
    %263 = arith.divf %261, %262 : vector<8x128xf32>
    %264 = vector.extract_strided_slice %245 {offsets = [0, 256], sizes = [8, 128], strides = [1, 1]} : vector<8x384xf32> to vector<8x128xf32>
    %265 = vector.extract_strided_slice %247 {offsets = [0, 256], sizes = [8, 128], strides = [1, 1]} : vector<8x384xf32> to vector<8x128xf32>
    %266 = arith.addf %265, %9 : vector<8x128xf32>
    %267 = arith.mulf %255, %266 : vector<8x128xf32>
    %268 = arith.addf %264, %267 : vector<8x128xf32>
    %269 = math.tanh %268 : vector<8x128xf32>
    %cst_70 = arith.constant 1.000000e+00 : f32
    %270 = vector.broadcast %cst_70 : f32 to vector<8x128xf32>
    %271 = arith.subf %270, %263 : vector<8x128xf32>
    %272 = arith.mulf %271, %269 : vector<8x128xf32>
    %273 = arith.mulf %263, %241 : vector<8x128xf32>
    %274 = arith.addf %272, %273 : vector<8x128xf32>
    %c8_i32_71 = arith.constant 8 : i32
    %c0_72 = arith.constant 0 : index
    %c0_73 = arith.constant 0 : index
    %275 = vector.load %arg7[%c0_72, %c0_73] : memref<8x128xf32, #tpu.memory_space<vmem>>, vector<8x128xf32>
    %c0_74 = arith.constant 0 : index
    %c0_75 = arith.constant 0 : index
    %276 = vector.load %arg8[%c0_74, %c0_75] : memref<8x128xf32, #tpu.memory_space<vmem>>, vector<8x128xf32>
    %277 = tpu.iota {dimensions = array<i32: 1>} : vector<8x128xi32>
    %278 = arith.sitofp %277 : vector<8x128xi32> to vector<8x128xf32>
    %cst_76 = arith.constant 1.000000e-07 : f32
    %279 = vector.broadcast %cst_76 : f32 to vector<8x128xf32>
    %280 = arith.mulf %278, %279 : vector<8x128xf32>
    %c0_77 = arith.constant 0 : index
    %c0_78 = arith.constant 0 : index
    %281 = vector.load %arg1[%c0_77, %c0_78] : memref<8x1xi32, #tpu.memory_space<vmem>>, vector<8x1xi32>
    %282 = tpu.iota {dimensions = array<i32: 1>} : vector<8x128xi32>
    %283 = vector.broadcast %281 : vector<8x1xi32> to vector<8x128xi32>
    %284 = arith.cmpi eq, %283, %282 : vector<8x128xi32>
    %285 = arith.extui %284 : vector<8x128xi1> to vector<8x128xi32>
    %286 = arith.sitofp %285 : vector<8x128xi32> to vector<8x128xf32>
    %c0_79 = arith.constant 0 : index
    %c0_80 = arith.constant 0 : index
    %287 = vector.load %arg5[%c0_79, %c0_80] : memref<128x384xf32, #tpu.memory_space<vmem>>, vector<128x384xf32>
    %cst_81 = arith.constant dense<0.000000e+00> : vector<8x384xf32>
    %288 = tpu.matmul %286, %287, %cst_81 {dimension_numbers = #tpu.dot_dimension_numbers<[1], [0], [0], [1], [0, 0, 1, 1], [], []>} : vector<8x128xf32>, vector<128x384xf32>, vector<8x384xf32> -> vector<8x384xf32>
    %c0_82 = arith.constant 0 : index
    %c0_83 = arith.constant 0 : index
    %289 = vector.load %arg6[%c0_82, %c0_83] : memref<128x512xf32, #tpu.memory_space<vmem>>, vector<128x384xf32>
    %cst_84 = arith.constant dense<0.000000e+00> : vector<8x384xf32>
    %290 = tpu.matmul %274, %289, %cst_84 {dimension_numbers = #tpu.dot_dimension_numbers<[1], [0], [0], [1], [0, 0, 1, 1], [], []>} : vector<8x128xf32>, vector<128x384xf32>, vector<8x384xf32> -> vector<8x384xf32>
    %c0_i32_85 = arith.constant 0 : i32
    %291 = vector.extract_strided_slice %288 {offsets = [0, 0], sizes = [8, 128], strides = [1, 1]} : vector<8x384xf32> to vector<8x128xf32>
    %292 = vector.extract_strided_slice %290 {offsets = [0, 0], sizes = [8, 128], strides = [1, 1]} : vector<8x384xf32> to vector<8x128xf32>
    %293 = arith.addf %291, %292 : vector<8x128xf32>
    %294 = arith.negf %293 : vector<8x128xf32>
    %295 = math.exp %294 : vector<8x128xf32>
    %cst_86 = arith.constant 1.000000e+00 : f32
    %296 = vector.broadcast %cst_86 : f32 to vector<8x128xf32>
    %297 = arith.addf %296, %295 : vector<8x128xf32>
    %298 = arith.divf %296, %297 : vector<8x128xf32>
    %299 = vector.extract_strided_slice %288 {offsets = [0, 128], sizes = [8, 128], strides = [1, 1]} : vector<8x384xf32> to vector<8x128xf32>
    %300 = vector.extract_strided_slice %290 {offsets = [0, 128], sizes = [8, 128], strides = [1, 1]} : vector<8x384xf32> to vector<8x128xf32>
    %301 = arith.addf %299, %300 : vector<8x128xf32>
    %302 = arith.negf %301 : vector<8x128xf32>
    %303 = math.exp %302 : vector<8x128xf32>
    %cst_87 = arith.constant 1.000000e+00 : f32
    %304 = vector.broadcast %cst_87 : f32 to vector<8x128xf32>
    %305 = arith.addf %304, %303 : vector<8x128xf32>
    %306 = arith.divf %304, %305 : vector<8x128xf32>
    %307 = vector.extract_strided_slice %288 {offsets = [0, 256], sizes = [8, 128], strides = [1, 1]} : vector<8x384xf32> to vector<8x128xf32>
    %308 = vector.extract_strided_slice %290 {offsets = [0, 256], sizes = [8, 128], strides = [1, 1]} : vector<8x384xf32> to vector<8x128xf32>
    %309 = arith.addf %308, %275 : vector<8x128xf32>
    %310 = arith.mulf %298, %309 : vector<8x128xf32>
    %311 = arith.addf %307, %310 : vector<8x128xf32>
    %312 = math.tanh %311 : vector<8x128xf32>
    %cst_88 = arith.constant 1.000000e+00 : f32
    %313 = vector.broadcast %cst_88 : f32 to vector<8x128xf32>
    %314 = arith.subf %313, %306 : vector<8x128xf32>
    %315 = arith.mulf %314, %312 : vector<8x128xf32>
    %316 = arith.mulf %306, %274 : vector<8x128xf32>
    %317 = arith.addf %315, %316 : vector<8x128xf32>
    %c0_89 = arith.constant 0 : index
    %c0_90 = arith.constant 0 : index
    %318 = vector.load %arg6[%c0_89, %c0_90] : memref<128x512xf32, #tpu.memory_space<vmem>>, vector<128x512xf32>
    %cst_91 = arith.constant dense<0.000000e+00> : vector<8x512xf32>
    %319 = tpu.matmul %317, %318, %cst_91 {dimension_numbers = #tpu.dot_dimension_numbers<[1], [0], [0], [1], [0, 0, 1, 1], [], []>} : vector<8x128xf32>, vector<128x512xf32>, vector<8x512xf32> -> vector<8x512xf32>
    %320 = vector.extract_strided_slice %319 {offsets = [0, 0], sizes = [8, 384], strides = [1, 1]} : vector<8x512xf32> to vector<8x384xf32>
    %321 = vector.extract_strided_slice %319 {offsets = [0, 384], sizes = [8, 128], strides = [1, 1]} : vector<8x512xf32> to vector<8x128xf32>
    %322 = arith.addf %321, %276 : vector<8x128xf32>
    %323 = arith.index_cast %c0_i32_85 : i32 to index
    %c0_92 = arith.constant 0 : index
    %c0_93 = arith.constant 0 : index
    %324 = vector.load %arg9[%323, %c0_92, %c0_93] : memref<8x8x128xf32, #tpu.memory_space<vmem>>, vector<1x8x128xf32>
    %325 = vector.shape_cast %324 : vector<1x8x128xf32> to vector<8x128xf32>
    %326 = vector.shape_cast %322 : vector<8x128xf32> to vector<1x8x128xf32>
    tpu.vector_store %arg9[%323, %c0_92, %c0_93], %326 {strides = array<i32>} : memref<8x8x128xf32, #tpu.memory_space<vmem>>, vector<1x8x128xf32>,
    %327 = arith.subf %322, %280 : vector<8x128xf32>
    %cst_94 = arith.constant dense<0xFF800000> : vector<8xf32>
    %328 = vector.multi_reduction <maximumf>, %327, %cst_94 [1] : vector<8x128xf32> to vector<8xf32>
    %329 = vector.shape_cast %328 : vector<8xf32> to vector<8x1xf32>
    %330 = vector.broadcast %329 : vector<8x1xf32> to vector<8x128xf32>
    %331 = arith.cmpf oeq, %327, %330 : vector<8x128xf32>
    %332 = arith.extui %331 : vector<8x128xi1> to vector<8x128xi32>
    %333 = arith.sitofp %332 : vector<8x128xi32> to vector<8x128xf32>
    %c0_95 = arith.constant 0 : index
    %c0_96 = arith.constant 0 : index
    %334 = vector.load %arg5[%c0_95, %c0_96] : memref<128x384xf32, #tpu.memory_space<vmem>>, vector<128x384xf32>
    %cst_97 = arith.constant dense<0.000000e+00> : vector<8x384xf32>
    %335 = tpu.matmul %333, %334, %cst_97 {dimension_numbers = #tpu.dot_dimension_numbers<[1], [0], [0], [1], [0, 0, 1, 1], [], []>} : vector<8x128xf32>, vector<128x384xf32>, vector<8x384xf32> -> vector<8x384xf32>
    %c1_i32_98 = arith.constant 1 : i32
    %336 = vector.extract_strided_slice %335 {offsets = [0, 0], sizes = [8, 128], strides = [1, 1]} : vector<8x384xf32> to vector<8x128xf32>
    %337 = vector.extract_strided_slice %320 {offsets = [0, 0], sizes = [8, 128], strides = [1, 1]} : vector<8x384xf32> to vector<8x128xf32>
    %338 = arith.addf %336, %337 : vector<8x128xf32>
    %339 = arith.negf %338 : vector<8x128xf32>
    %340 = math.exp %339 : vector<8x128xf32>
    %cst_99 = arith.constant 1.000000e+00 : f32
    %341 = vector.broadcast %cst_99 : f32 to vector<8x128xf32>
    %342 = arith.addf %341, %340 : vector<8x128xf32>
    %343 = arith.divf %341, %342 : vector<8x128xf32>
    %344 = vector.extract_strided_slice %335 {offsets = [0, 128], sizes = [8, 128], strides = [1, 1]} : vector<8x384xf32> to vector<8x128xf32>
    %345 = vector.extract_strided_slice %320 {offsets = [0, 128], sizes = [8, 128], strides = [1, 1]} : vector<8x384xf32> to vector<8x128xf32>
    %346 = arith.addf %344, %345 : vector<8x128xf32>
    %347 = arith.negf %346 : vector<8x128xf32>
    %348 = math.exp %347 : vector<8x128xf32>
    %cst_100 = arith.constant 1.000000e+00 : f32
    %349 = vector.broadcast %cst_100 : f32 to vector<8x128xf32>
    %350 = arith.addf %349, %348 : vector<8x128xf32>
    %351 = arith.divf %349, %350 : vector<8x128xf32>
    %352 = vector.extract_strided_slice %335 {offsets = [0, 256], sizes = [8, 128], strides = [1, 1]} : vector<8x384xf32> to vector<8x128xf32>
    %353 = vector.extract_strided_slice %320 {offsets = [0, 256], sizes = [8, 128], strides = [1, 1]} : vector<8x384xf32> to vector<8x128xf32>
    %354 = arith.addf %353, %275 : vector<8x128xf32>
    %355 = arith.mulf %343, %354 : vector<8x128xf32>
    %356 = arith.addf %352, %355 : vector<8x128xf32>
    %357 = math.tanh %356 : vector<8x128xf32>
    %cst_101 = arith.constant 1.000000e+00 : f32
    %358 = vector.broadcast %cst_101 : f32 to vector<8x128xf32>
    %359 = arith.subf %358, %351 : vector<8x128xf32>
    %360 = arith.mulf %359, %357 : vector<8x128xf32>
    %361 = arith.mulf %351, %317 : vector<8x128xf32>
    %362 = arith.addf %360, %361 : vector<8x128xf32>
    %c0_102 = arith.constant 0 : index
    %c0_103 = arith.constant 0 : index
    %363 = vector.load %arg6[%c0_102, %c0_103] : memref<128x512xf32, #tpu.memory_space<vmem>>, vector<128x512xf32>
    %cst_104 = arith.constant dense<0.000000e+00> : vector<8x512xf32>
    %364 = tpu.matmul %362, %363, %cst_104 {dimension_numbers = #tpu.dot_dimension_numbers<[1], [0], [0], [1], [0, 0, 1, 1], [], []>} : vector<8x128xf32>, vector<128x512xf32>, vector<8x512xf32> -> vector<8x512xf32>
    %365 = vector.extract_strided_slice %364 {offsets = [0, 0], sizes = [8, 384], strides = [1, 1]} : vector<8x512xf32> to vector<8x384xf32>
    %366 = vector.extract_strided_slice %364 {offsets = [0, 384], sizes = [8, 128], strides = [1, 1]} : vector<8x512xf32> to vector<8x128xf32>
    %367 = arith.addf %366, %276 : vector<8x128xf32>
    %368 = arith.index_cast %c1_i32_98 : i32 to index
    %c0_105 = arith.constant 0 : index
    %c0_106 = arith.constant 0 : index
    %369 = vector.load %arg9[%368, %c0_105, %c0_106] : memref<8x8x128xf32, #tpu.memory_space<vmem>>, vector<1x8x128xf32>
    %370 = vector.shape_cast %369 : vector<1x8x128xf32> to vector<8x128xf32>
    %371 = vector.shape_cast %367 : vector<8x128xf32> to vector<1x8x128xf32>
    tpu.vector_store %arg9[%368, %c0_105, %c0_106], %371 {strides = array<i32>} : memref<8x8x128xf32, #tpu.memory_space<vmem>>, vector<1x8x128xf32>,
    %372 = arith.subf %367, %280 : vector<8x128xf32>
    %cst_107 = arith.constant dense<0xFF800000> : vector<8xf32>
    %373 = vector.multi_reduction <maximumf>, %372, %cst_107 [1] : vector<8x128xf32> to vector<8xf32>
    %374 = vector.shape_cast %373 : vector<8xf32> to vector<8x1xf32>
    %375 = vector.broadcast %374 : vector<8x1xf32> to vector<8x128xf32>
    %376 = arith.cmpf oeq, %372, %375 : vector<8x128xf32>
    %377 = arith.extui %376 : vector<8x128xi1> to vector<8x128xi32>
    %378 = arith.sitofp %377 : vector<8x128xi32> to vector<8x128xf32>
    %c0_108 = arith.constant 0 : index
    %c0_109 = arith.constant 0 : index
    %379 = vector.load %arg5[%c0_108, %c0_109] : memref<128x384xf32, #tpu.memory_space<vmem>>, vector<128x384xf32>
    %cst_110 = arith.constant dense<0.000000e+00> : vector<8x384xf32>
    %380 = tpu.matmul %378, %379, %cst_110 {dimension_numbers = #tpu.dot_dimension_numbers<[1], [0], [0], [1], [0, 0, 1, 1], [], []>} : vector<8x128xf32>, vector<128x384xf32>, vector<8x384xf32> -> vector<8x384xf32>
    %c2_i32_111 = arith.constant 2 : i32
    %381 = vector.extract_strided_slice %380 {offsets = [0, 0], sizes = [8, 128], strides = [1, 1]} : vector<8x384xf32> to vector<8x128xf32>
    %382 = vector.extract_strided_slice %365 {offsets = [0, 0], sizes = [8, 128], strides = [1, 1]} : vector<8x384xf32> to vector<8x128xf32>
    %383 = arith.addf %381, %382 : vector<8x128xf32>
    %384 = arith.negf %383 : vector<8x128xf32>
    %385 = math.exp %384 : vector<8x128xf32>
    %cst_112 = arith.constant 1.000000e+00 : f32
    %386 = vector.broadcast %cst_112 : f32 to vector<8x128xf32>
    %387 = arith.addf %386, %385 : vector<8x128xf32>
    %388 = arith.divf %386, %387 : vector<8x128xf32>
    %389 = vector.extract_strided_slice %380 {offsets = [0, 128], sizes = [8, 128], strides = [1, 1]} : vector<8x384xf32> to vector<8x128xf32>
    %390 = vector.extract_strided_slice %365 {offsets = [0, 128], sizes = [8, 128], strides = [1, 1]} : vector<8x384xf32> to vector<8x128xf32>
    %391 = arith.addf %389, %390 : vector<8x128xf32>
    %392 = arith.negf %391 : vector<8x128xf32>
    %393 = math.exp %392 : vector<8x128xf32>
    %cst_113 = arith.constant 1.000000e+00 : f32
    %394 = vector.broadcast %cst_113 : f32 to vector<8x128xf32>
    %395 = arith.addf %394, %393 : vector<8x128xf32>
    %396 = arith.divf %394, %395 : vector<8x128xf32>
    %397 = vector.extract_strided_slice %380 {offsets = [0, 256], sizes = [8, 128], strides = [1, 1]} : vector<8x384xf32> to vector<8x128xf32>
    %398 = vector.extract_strided_slice %365 {offsets = [0, 256], sizes = [8, 128], strides = [1, 1]} : vector<8x384xf32> to vector<8x128xf32>
    %399 = arith.addf %398, %275 : vector<8x128xf32>
    %400 = arith.mulf %388, %399 : vector<8x128xf32>
    %401 = arith.addf %397, %400 : vector<8x128xf32>
    %402 = math.tanh %401 : vector<8x128xf32>
    %cst_114 = arith.constant 1.000000e+00 : f32
    %403 = vector.broadcast %cst_114 : f32 to vector<8x128xf32>
    %404 = arith.subf %403, %396 : vector<8x128xf32>
    %405 = arith.mulf %404, %402 : vector<8x128xf32>
    %406 = arith.mulf %396, %362 : vector<8x128xf32>
    %407 = arith.addf %405, %406 : vector<8x128xf32>
    %c0_115 = arith.constant 0 : index
    %c0_116 = arith.constant 0 : index
    %408 = vector.load %arg6[%c0_115, %c0_116] : memref<128x512xf32, #tpu.memory_space<vmem>>, vector<128x512xf32>
    %cst_117 = arith.constant dense<0.000000e+00> : vector<8x512xf32>
    %409 = tpu.matmul %407, %408, %cst_117 {dimension_numbers = #tpu.dot_dimension_numbers<[1], [0], [0], [1], [0, 0, 1, 1], [], []>} : vector<8x128xf32>, vector<128x512xf32>, vector<8x512xf32> -> vector<8x512xf32>
    %410 = vector.extract_strided_slice %409 {offsets = [0, 0], sizes = [8, 384], strides = [1, 1]} : vector<8x512xf32> to vector<8x384xf32>
    %411 = vector.extract_strided_slice %409 {offsets = [0, 384], sizes = [8, 128], strides = [1, 1]} : vector<8x512xf32> to vector<8x128xf32>
    %412 = arith.addf %411, %276 : vector<8x128xf32>
    %413 = arith.index_cast %c2_i32_111 : i32 to index
    %c0_118 = arith.constant 0 : index
    %c0_119 = arith.constant 0 : index
    %414 = vector.load %arg9[%413, %c0_118, %c0_119] : memref<8x8x128xf32, #tpu.memory_space<vmem>>, vector<1x8x128xf32>
    %415 = vector.shape_cast %414 : vector<1x8x128xf32> to vector<8x128xf32>
    %416 = vector.shape_cast %412 : vector<8x128xf32> to vector<1x8x128xf32>
    tpu.vector_store %arg9[%413, %c0_118, %c0_119], %416 {strides = array<i32>} : memref<8x8x128xf32, #tpu.memory_space<vmem>>, vector<1x8x128xf32>,
    %417 = arith.subf %412, %280 : vector<8x128xf32>
    %cst_120 = arith.constant dense<0xFF800000> : vector<8xf32>
    %418 = vector.multi_reduction <maximumf>, %417, %cst_120 [1] : vector<8x128xf32> to vector<8xf32>
    %419 = vector.shape_cast %418 : vector<8xf32> to vector<8x1xf32>
    %420 = vector.broadcast %419 : vector<8x1xf32> to vector<8x128xf32>
    %421 = arith.cmpf oeq, %417, %420 : vector<8x128xf32>
    %422 = arith.extui %421 : vector<8x128xi1> to vector<8x128xi32>
    %423 = arith.sitofp %422 : vector<8x128xi32> to vector<8x128xf32>
    %c0_121 = arith.constant 0 : index
    %c0_122 = arith.constant 0 : index
    %424 = vector.load %arg5[%c0_121, %c0_122] : memref<128x384xf32, #tpu.memory_space<vmem>>, vector<128x384xf32>
    %cst_123 = arith.constant dense<0.000000e+00> : vector<8x384xf32>
    %425 = tpu.matmul %423, %424, %cst_123 {dimension_numbers = #tpu.dot_dimension_numbers<[1], [0], [0], [1], [0, 0, 1, 1], [], []>} : vector<8x128xf32>, vector<128x384xf32>, vector<8x384xf32> -> vector<8x384xf32>
    %c3_i32_124 = arith.constant 3 : i32
    %426 = vector.extract_strided_slice %425 {offsets = [0, 0], sizes = [8, 128], strides = [1, 1]} : vector<8x384xf32> to vector<8x128xf32>
    %427 = vector.extract_strided_slice %410 {offsets = [0, 0], sizes = [8, 128], strides = [1, 1]} : vector<8x384xf32> to vector<8x128xf32>
    %428 = arith.addf %426, %427 : vector<8x128xf32>
    %429 = arith.negf %428 : vector<8x128xf32>
    %430 = math.exp %429 : vector<8x128xf32>
    %cst_125 = arith.constant 1.000000e+00 : f32
    %431 = vector.broadcast %cst_125 : f32 to vector<8x128xf32>
    %432 = arith.addf %431, %430 : vector<8x128xf32>
    %433 = arith.divf %431, %432 : vector<8x128xf32>
    %434 = vector.extract_strided_slice %425 {offsets = [0, 128], sizes = [8, 128], strides = [1, 1]} : vector<8x384xf32> to vector<8x128xf32>
    %435 = vector.extract_strided_slice %410 {offsets = [0, 128], sizes = [8, 128], strides = [1, 1]} : vector<8x384xf32> to vector<8x128xf32>
    %436 = arith.addf %434, %435 : vector<8x128xf32>
    %437 = arith.negf %436 : vector<8x128xf32>
    %438 = math.exp %437 : vector<8x128xf32>
    %cst_126 = arith.constant 1.000000e+00 : f32
    %439 = vector.broadcast %cst_126 : f32 to vector<8x128xf32>
    %440 = arith.addf %439, %438 : vector<8x128xf32>
    %441 = arith.divf %439, %440 : vector<8x128xf32>
    %442 = vector.extract_strided_slice %425 {offsets = [0, 256], sizes = [8, 128], strides = [1, 1]} : vector<8x384xf32> to vector<8x128xf32>
    %443 = vector.extract_strided_slice %410 {offsets = [0, 256], sizes = [8, 128], strides = [1, 1]} : vector<8x384xf32> to vector<8x128xf32>
    %444 = arith.addf %443, %275 : vector<8x128xf32>
    %445 = arith.mulf %433, %444 : vector<8x128xf32>
    %446 = arith.addf %442, %445 : vector<8x128xf32>
    %447 = math.tanh %446 : vector<8x128xf32>
    %cst_127 = arith.constant 1.000000e+00 : f32
    %448 = vector.broadcast %cst_127 : f32 to vector<8x128xf32>
    %449 = arith.subf %448, %441 : vector<8x128xf32>
    %450 = arith.mulf %449, %447 : vector<8x128xf32>
    %451 = arith.mulf %441, %407 : vector<8x128xf32>
    %452 = arith.addf %450, %451 : vector<8x128xf32>
    %c0_128 = arith.constant 0 : index
    %c0_129 = arith.constant 0 : index
    %453 = vector.load %arg6[%c0_128, %c0_129] : memref<128x512xf32, #tpu.memory_space<vmem>>, vector<128x512xf32>
    %cst_130 = arith.constant dense<0.000000e+00> : vector<8x512xf32>
    %454 = tpu.matmul %452, %453, %cst_130 {dimension_numbers = #tpu.dot_dimension_numbers<[1], [0], [0], [1], [0, 0, 1, 1], [], []>} : vector<8x128xf32>, vector<128x512xf32>, vector<8x512xf32> -> vector<8x512xf32>
    %455 = vector.extract_strided_slice %454 {offsets = [0, 0], sizes = [8, 384], strides = [1, 1]} : vector<8x512xf32> to vector<8x384xf32>
    %456 = vector.extract_strided_slice %454 {offsets = [0, 384], sizes = [8, 128], strides = [1, 1]} : vector<8x512xf32> to vector<8x128xf32>
    %457 = arith.addf %456, %276 : vector<8x128xf32>
    %458 = arith.index_cast %c3_i32_124 : i32 to index
    %c0_131 = arith.constant 0 : index
    %c0_132 = arith.constant 0 : index
    %459 = vector.load %arg9[%458, %c0_131, %c0_132] : memref<8x8x128xf32, #tpu.memory_space<vmem>>, vector<1x8x128xf32>
    %460 = vector.shape_cast %459 : vector<1x8x128xf32> to vector<8x128xf32>
    %461 = vector.shape_cast %457 : vector<8x128xf32> to vector<1x8x128xf32>
    tpu.vector_store %arg9[%458, %c0_131, %c0_132], %461 {strides = array<i32>} : memref<8x8x128xf32, #tpu.memory_space<vmem>>, vector<1x8x128xf32>,
    %462 = arith.subf %457, %280 : vector<8x128xf32>
    %cst_133 = arith.constant dense<0xFF800000> : vector<8xf32>
    %463 = vector.multi_reduction <maximumf>, %462, %cst_133 [1] : vector<8x128xf32> to vector<8xf32>
    %464 = vector.shape_cast %463 : vector<8xf32> to vector<8x1xf32>
    %465 = vector.broadcast %464 : vector<8x1xf32> to vector<8x128xf32>
    %466 = arith.cmpf oeq, %462, %465 : vector<8x128xf32>
    %467 = arith.extui %466 : vector<8x128xi1> to vector<8x128xi32>
    %468 = arith.sitofp %467 : vector<8x128xi32> to vector<8x128xf32>
    %c0_134 = arith.constant 0 : index
    %c0_135 = arith.constant 0 : index
    %469 = vector.load %arg5[%c0_134, %c0_135] : memref<128x384xf32, #tpu.memory_space<vmem>>, vector<128x384xf32>
    %cst_136 = arith.constant dense<0.000000e+00> : vector<8x384xf32>
    %470 = tpu.matmul %468, %469, %cst_136 {dimension_numbers = #tpu.dot_dimension_numbers<[1], [0], [0], [1], [0, 0, 1, 1], [], []>} : vector<8x128xf32>, vector<128x384xf32>, vector<8x384xf32> -> vector<8x384xf32>
    %c4_i32_137 = arith.constant 4 : i32
    %471 = vector.extract_strided_slice %470 {offsets = [0, 0], sizes = [8, 128], strides = [1, 1]} : vector<8x384xf32> to vector<8x128xf32>
    %472 = vector.extract_strided_slice %455 {offsets = [0, 0], sizes = [8, 128], strides = [1, 1]} : vector<8x384xf32> to vector<8x128xf32>
    %473 = arith.addf %471, %472 : vector<8x128xf32>
    %474 = arith.negf %473 : vector<8x128xf32>
    %475 = math.exp %474 : vector<8x128xf32>
    %cst_138 = arith.constant 1.000000e+00 : f32
    %476 = vector.broadcast %cst_138 : f32 to vector<8x128xf32>
    %477 = arith.addf %476, %475 : vector<8x128xf32>
    %478 = arith.divf %476, %477 : vector<8x128xf32>
    %479 = vector.extract_strided_slice %470 {offsets = [0, 128], sizes = [8, 128], strides = [1, 1]} : vector<8x384xf32> to vector<8x128xf32>
    %480 = vector.extract_strided_slice %455 {offsets = [0, 128], sizes = [8, 128], strides = [1, 1]} : vector<8x384xf32> to vector<8x128xf32>
    %481 = arith.addf %479, %480 : vector<8x128xf32>
    %482 = arith.negf %481 : vector<8x128xf32>
    %483 = math.exp %482 : vector<8x128xf32>
    %cst_139 = arith.constant 1.000000e+00 : f32
    %484 = vector.broadcast %cst_139 : f32 to vector<8x128xf32>
    %485 = arith.addf %484, %483 : vector<8x128xf32>
    %486 = arith.divf %484, %485 : vector<8x128xf32>
    %487 = vector.extract_strided_slice %470 {offsets = [0, 256], sizes = [8, 128], strides = [1, 1]} : vector<8x384xf32> to vector<8x128xf32>
    %488 = vector.extract_strided_slice %455 {offsets = [0, 256], sizes = [8, 128], strides = [1, 1]} : vector<8x384xf32> to vector<8x128xf32>
    %489 = arith.addf %488, %275 : vector<8x128xf32>
    %490 = arith.mulf %478, %489 : vector<8x128xf32>
    %491 = arith.addf %487, %490 : vector<8x128xf32>
    %492 = math.tanh %491 : vector<8x128xf32>
    %cst_140 = arith.constant 1.000000e+00 : f32
    %493 = vector.broadcast %cst_140 : f32 to vector<8x128xf32>
    %494 = arith.subf %493, %486 : vector<8x128xf32>
    %495 = arith.mulf %494, %492 : vector<8x128xf32>
    %496 = arith.mulf %486, %452 : vector<8x128xf32>
    %497 = arith.addf %495, %496 : vector<8x128xf32>
    %c0_141 = arith.constant 0 : index
    %c0_142 = arith.constant 0 : index
    %498 = vector.load %arg6[%c0_141, %c0_142] : memref<128x512xf32, #tpu.memory_space<vmem>>, vector<128x512xf32>
    %cst_143 = arith.constant dense<0.000000e+00> : vector<8x512xf32>
    %499 = tpu.matmul %497, %498, %cst_143 {dimension_numbers = #tpu.dot_dimension_numbers<[1], [0], [0], [1], [0, 0, 1, 1], [], []>} : vector<8x128xf32>, vector<128x512xf32>, vector<8x512xf32> -> vector<8x512xf32>
    %500 = vector.extract_strided_slice %499 {offsets = [0, 0], sizes = [8, 384], strides = [1, 1]} : vector<8x512xf32> to vector<8x384xf32>
    %501 = vector.extract_strided_slice %499 {offsets = [0, 384], sizes = [8, 128], strides = [1, 1]} : vector<8x512xf32> to vector<8x128xf32>
    %502 = arith.addf %501, %276 : vector<8x128xf32>
    %503 = arith.index_cast %c4_i32_137 : i32 to index
    %c0_144 = arith.constant 0 : index
    %c0_145 = arith.constant 0 : index
    %504 = vector.load %arg9[%503, %c0_144, %c0_145] : memref<8x8x128xf32, #tpu.memory_space<vmem>>, vector<1x8x128xf32>
    %505 = vector.shape_cast %504 : vector<1x8x128xf32> to vector<8x128xf32>
    %506 = vector.shape_cast %502 : vector<8x128xf32> to vector<1x8x128xf32>
    tpu.vector_store %arg9[%503, %c0_144, %c0_145], %506 {strides = array<i32>} : memref<8x8x128xf32, #tpu.memory_space<vmem>>, vector<1x8x128xf32>,
    %507 = arith.subf %502, %280 : vector<8x128xf32>
    %cst_146 = arith.constant dense<0xFF800000> : vector<8xf32>
    %508 = vector.multi_reduction <maximumf>, %507, %cst_146 [1] : vector<8x128xf32> to vector<8xf32>
    %509 = vector.shape_cast %508 : vector<8xf32> to vector<8x1xf32>
    %510 = vector.broadcast %509 : vector<8x1xf32> to vector<8x128xf32>
    %511 = arith.cmpf oeq, %507, %510 : vector<8x128xf32>
    %512 = arith.extui %511 : vector<8x128xi1> to vector<8x128xi32>
    %513 = arith.sitofp %512 : vector<8x128xi32> to vector<8x128xf32>
    %c0_147 = arith.constant 0 : index
    %c0_148 = arith.constant 0 : index
    %514 = vector.load %arg5[%c0_147, %c0_148] : memref<128x384xf32, #tpu.memory_space<vmem>>, vector<128x384xf32>
    %cst_149 = arith.constant dense<0.000000e+00> : vector<8x384xf32>
    %515 = tpu.matmul %513, %514, %cst_149 {dimension_numbers = #tpu.dot_dimension_numbers<[1], [0], [0], [1], [0, 0, 1, 1], [], []>} : vector<8x128xf32>, vector<128x384xf32>, vector<8x384xf32> -> vector<8x384xf32>
    %c5_i32_150 = arith.constant 5 : i32
    %516 = vector.extract_strided_slice %515 {offsets = [0, 0], sizes = [8, 128], strides = [1, 1]} : vector<8x384xf32> to vector<8x128xf32>
    %517 = vector.extract_strided_slice %500 {offsets = [0, 0], sizes = [8, 128], strides = [1, 1]} : vector<8x384xf32> to vector<8x128xf32>
    %518 = arith.addf %516, %517 : vector<8x128xf32>
    %519 = arith.negf %518 : vector<8x128xf32>
    %520 = math.exp %519 : vector<8x128xf32>
    %cst_151 = arith.constant 1.000000e+00 : f32
    %521 = vector.broadcast %cst_151 : f32 to vector<8x128xf32>
    %522 = arith.addf %521, %520 : vector<8x128xf32>
    %523 = arith.divf %521, %522 : vector<8x128xf32>
    %524 = vector.extract_strided_slice %515 {offsets = [0, 128], sizes = [8, 128], strides = [1, 1]} : vector<8x384xf32> to vector<8x128xf32>
    %525 = vector.extract_strided_slice %500 {offsets = [0, 128], sizes = [8, 128], strides = [1, 1]} : vector<8x384xf32> to vector<8x128xf32>
    %526 = arith.addf %524, %525 : vector<8x128xf32>
    %527 = arith.negf %526 : vector<8x128xf32>
    %528 = math.exp %527 : vector<8x128xf32>
    %cst_152 = arith.constant 1.000000e+00 : f32
    %529 = vector.broadcast %cst_152 : f32 to vector<8x128xf32>
    %530 = arith.addf %529, %528 : vector<8x128xf32>
    %531 = arith.divf %529, %530 : vector<8x128xf32>
    %532 = vector.extract_strided_slice %515 {offsets = [0, 256], sizes = [8, 128], strides = [1, 1]} : vector<8x384xf32> to vector<8x128xf32>
    %533 = vector.extract_strided_slice %500 {offsets = [0, 256], sizes = [8, 128], strides = [1, 1]} : vector<8x384xf32> to vector<8x128xf32>
    %534 = arith.addf %533, %275 : vector<8x128xf32>
    %535 = arith.mulf %523, %534 : vector<8x128xf32>
    %536 = arith.addf %532, %535 : vector<8x128xf32>
    %537 = math.tanh %536 : vector<8x128xf32>
    %cst_153 = arith.constant 1.000000e+00 : f32
    %538 = vector.broadcast %cst_153 : f32 to vector<8x128xf32>
    %539 = arith.subf %538, %531 : vector<8x128xf32>
    %540 = arith.mulf %539, %537 : vector<8x128xf32>
    %541 = arith.mulf %531, %497 : vector<8x128xf32>
    %542 = arith.addf %540, %541 : vector<8x128xf32>
    %c0_154 = arith.constant 0 : index
    %c0_155 = arith.constant 0 : index
    %543 = vector.load %arg6[%c0_154, %c0_155] : memref<128x512xf32, #tpu.memory_space<vmem>>, vector<128x512xf32>
    %cst_156 = arith.constant dense<0.000000e+00> : vector<8x512xf32>
    %544 = tpu.matmul %542, %543, %cst_156 {dimension_numbers = #tpu.dot_dimension_numbers<[1], [0], [0], [1], [0, 0, 1, 1], [], []>} : vector<8x128xf32>, vector<128x512xf32>, vector<8x512xf32> -> vector<8x512xf32>
    %545 = vector.extract_strided_slice %544 {offsets = [0, 0], sizes = [8, 384], strides = [1, 1]} : vector<8x512xf32> to vector<8x384xf32>
    %546 = vector.extract_strided_slice %544 {offsets = [0, 384], sizes = [8, 128], strides = [1, 1]} : vector<8x512xf32> to vector<8x128xf32>
    %547 = arith.addf %546, %276 : vector<8x128xf32>
    %548 = arith.index_cast %c5_i32_150 : i32 to index
    %c0_157 = arith.constant 0 : index
    %c0_158 = arith.constant 0 : index
    %549 = vector.load %arg9[%548, %c0_157, %c0_158] : memref<8x8x128xf32, #tpu.memory_space<vmem>>, vector<1x8x128xf32>
    %550 = vector.shape_cast %549 : vector<1x8x128xf32> to vector<8x128xf32>
    %551 = vector.shape_cast %547 : vector<8x128xf32> to vector<1x8x128xf32>
    tpu.vector_store %arg9[%548, %c0_157, %c0_158], %551 {strides = array<i32>} : memref<8x8x128xf32, #tpu.memory_space<vmem>>, vector<1x8x128xf32>,
    %552 = arith.subf %547, %280 : vector<8x128xf32>
    %cst_159 = arith.constant dense<0xFF800000> : vector<8xf32>
    %553 = vector.multi_reduction <maximumf>, %552, %cst_159 [1] : vector<8x128xf32> to vector<8xf32>
    %554 = vector.shape_cast %553 : vector<8xf32> to vector<8x1xf32>
    %555 = vector.broadcast %554 : vector<8x1xf32> to vector<8x128xf32>
    %556 = arith.cmpf oeq, %552, %555 : vector<8x128xf32>
    %557 = arith.extui %556 : vector<8x128xi1> to vector<8x128xi32>
    %558 = arith.sitofp %557 : vector<8x128xi32> to vector<8x128xf32>
    %c0_160 = arith.constant 0 : index
    %c0_161 = arith.constant 0 : index
    %559 = vector.load %arg5[%c0_160, %c0_161] : memref<128x384xf32, #tpu.memory_space<vmem>>, vector<128x384xf32>
    %cst_162 = arith.constant dense<0.000000e+00> : vector<8x384xf32>
    %560 = tpu.matmul %558, %559, %cst_162 {dimension_numbers = #tpu.dot_dimension_numbers<[1], [0], [0], [1], [0, 0, 1, 1], [], []>} : vector<8x128xf32>, vector<128x384xf32>, vector<8x384xf32> -> vector<8x384xf32>
    %c6_i32_163 = arith.constant 6 : i32
    %561 = vector.extract_strided_slice %560 {offsets = [0, 0], sizes = [8, 128], strides = [1, 1]} : vector<8x384xf32> to vector<8x128xf32>
    %562 = vector.extract_strided_slice %545 {offsets = [0, 0], sizes = [8, 128], strides = [1, 1]} : vector<8x384xf32> to vector<8x128xf32>
    %563 = arith.addf %561, %562 : vector<8x128xf32>
    %564 = arith.negf %563 : vector<8x128xf32>
    %565 = math.exp %564 : vector<8x128xf32>
    %cst_164 = arith.constant 1.000000e+00 : f32
    %566 = vector.broadcast %cst_164 : f32 to vector<8x128xf32>
    %567 = arith.addf %566, %565 : vector<8x128xf32>
    %568 = arith.divf %566, %567 : vector<8x128xf32>
    %569 = vector.extract_strided_slice %560 {offsets = [0, 128], sizes = [8, 128], strides = [1, 1]} : vector<8x384xf32> to vector<8x128xf32>
    %570 = vector.extract_strided_slice %545 {offsets = [0, 128], sizes = [8, 128], strides = [1, 1]} : vector<8x384xf32> to vector<8x128xf32>
    %571 = arith.addf %569, %570 : vector<8x128xf32>
    %572 = arith.negf %571 : vector<8x128xf32>
    %573 = math.exp %572 : vector<8x128xf32>
    %cst_165 = arith.constant 1.000000e+00 : f32
    %574 = vector.broadcast %cst_165 : f32 to vector<8x128xf32>
    %575 = arith.addf %574, %573 : vector<8x128xf32>
    %576 = arith.divf %574, %575 : vector<8x128xf32>
    %577 = vector.extract_strided_slice %560 {offsets = [0, 256], sizes = [8, 128], strides = [1, 1]} : vector<8x384xf32> to vector<8x128xf32>
    %578 = vector.extract_strided_slice %545 {offsets = [0, 256], sizes = [8, 128], strides = [1, 1]} : vector<8x384xf32> to vector<8x128xf32>
    %579 = arith.addf %578, %275 : vector<8x128xf32>
    %580 = arith.mulf %568, %579 : vector<8x128xf32>
    %581 = arith.addf %577, %580 : vector<8x128xf32>
    %582 = math.tanh %581 : vector<8x128xf32>
    %cst_166 = arith.constant 1.000000e+00 : f32
    %583 = vector.broadcast %cst_166 : f32 to vector<8x128xf32>
    %584 = arith.subf %583, %576 : vector<8x128xf32>
    %585 = arith.mulf %584, %582 : vector<8x128xf32>
    %586 = arith.mulf %576, %542 : vector<8x128xf32>
    %587 = arith.addf %585, %586 : vector<8x128xf32>
    %c0_167 = arith.constant 0 : index
    %c0_168 = arith.constant 0 : index
    %588 = vector.load %arg6[%c0_167, %c0_168] : memref<128x512xf32, #tpu.memory_space<vmem>>, vector<128x512xf32>
    %cst_169 = arith.constant dense<0.000000e+00> : vector<8x512xf32>
    %589 = tpu.matmul %587, %588, %cst_169 {dimension_numbers = #tpu.dot_dimension_numbers<[1], [0], [0], [1], [0, 0, 1, 1], [], []>} : vector<8x128xf32>, vector<128x512xf32>, vector<8x512xf32> -> vector<8x512xf32>
    %590 = vector.extract_strided_slice %589 {offsets = [0, 0], sizes = [8, 384], strides = [1, 1]} : vector<8x512xf32> to vector<8x384xf32>
    %591 = vector.extract_strided_slice %589 {offsets = [0, 384], sizes = [8, 128], strides = [1, 1]} : vector<8x512xf32> to vector<8x128xf32>
    %592 = arith.addf %591, %276 : vector<8x128xf32>
    %593 = arith.index_cast %c6_i32_163 : i32 to index
    %c0_170 = arith.constant 0 : index
    %c0_171 = arith.constant 0 : index
    %594 = vector.load %arg9[%593, %c0_170, %c0_171] : memref<8x8x128xf32, #tpu.memory_space<vmem>>, vector<1x8x128xf32>
    %595 = vector.shape_cast %594 : vector<1x8x128xf32> to vector<8x128xf32>
    %596 = vector.shape_cast %592 : vector<8x128xf32> to vector<1x8x128xf32>
    tpu.vector_store %arg9[%593, %c0_170, %c0_171], %596 {strides = array<i32>} : memref<8x8x128xf32, #tpu.memory_space<vmem>>, vector<1x8x128xf32>,
    %597 = arith.subf %592, %280 : vector<8x128xf32>
    %cst_172 = arith.constant dense<0xFF800000> : vector<8xf32>
    %598 = vector.multi_reduction <maximumf>, %597, %cst_172 [1] : vector<8x128xf32> to vector<8xf32>
    %599 = vector.shape_cast %598 : vector<8xf32> to vector<8x1xf32>
    %600 = vector.broadcast %599 : vector<8x1xf32> to vector<8x128xf32>
    %601 = arith.cmpf oeq, %597, %600 : vector<8x128xf32>
    %602 = arith.extui %601 : vector<8x128xi1> to vector<8x128xi32>
    %603 = arith.sitofp %602 : vector<8x128xi32> to vector<8x128xf32>
    %c0_173 = arith.constant 0 : index
    %c0_174 = arith.constant 0 : index
    %604 = vector.load %arg5[%c0_173, %c0_174] : memref<128x384xf32, #tpu.memory_space<vmem>>, vector<128x384xf32>
    %cst_175 = arith.constant dense<0.000000e+00> : vector<8x384xf32>
    %605 = tpu.matmul %603, %604, %cst_175 {dimension_numbers = #tpu.dot_dimension_numbers<[1], [0], [0], [1], [0, 0, 1, 1], [], []>} : vector<8x128xf32>, vector<128x384xf32>, vector<8x384xf32> -> vector<8x384xf32>
    %c7_i32_176 = arith.constant 7 : i32
    %606 = vector.extract_strided_slice %605 {offsets = [0, 0], sizes = [8, 128], strides = [1, 1]} : vector<8x384xf32> to vector<8x128xf32>
    %607 = vector.extract_strided_slice %590 {offsets = [0, 0], sizes = [8, 128], strides = [1, 1]} : vector<8x384xf32> to vector<8x128xf32>
    %608 = arith.addf %606, %607 : vector<8x128xf32>
    %609 = arith.negf %608 : vector<8x128xf32>
    %610 = math.exp %609 : vector<8x128xf32>
    %cst_177 = arith.constant 1.000000e+00 : f32
    %611 = vector.broadcast %cst_177 : f32 to vector<8x128xf32>
    %612 = arith.addf %611, %610 : vector<8x128xf32>
    %613 = arith.divf %611, %612 : vector<8x128xf32>
    %614 = vector.extract_strided_slice %605 {offsets = [0, 128], sizes = [8, 128], strides = [1, 1]} : vector<8x384xf32> to vector<8x128xf32>
    %615 = vector.extract_strided_slice %590 {offsets = [0, 128], sizes = [8, 128], strides = [1, 1]} : vector<8x384xf32> to vector<8x128xf32>
    %616 = arith.addf %614, %615 : vector<8x128xf32>
    %617 = arith.negf %616 : vector<8x128xf32>
    %618 = math.exp %617 : vector<8x128xf32>
    %cst_178 = arith.constant 1.000000e+00 : f32
    %619 = vector.broadcast %cst_178 : f32 to vector<8x128xf32>
    %620 = arith.addf %619, %618 : vector<8x128xf32>
    %621 = arith.divf %619, %620 : vector<8x128xf32>
    %622 = vector.extract_strided_slice %605 {offsets = [0, 256], sizes = [8, 128], strides = [1, 1]} : vector<8x384xf32> to vector<8x128xf32>
    %623 = vector.extract_strided_slice %590 {offsets = [0, 256], sizes = [8, 128], strides = [1, 1]} : vector<8x384xf32> to vector<8x128xf32>
    %624 = arith.addf %623, %275 : vector<8x128xf32>
    %625 = arith.mulf %613, %624 : vector<8x128xf32>
    %626 = arith.addf %622, %625 : vector<8x128xf32>
    %627 = math.tanh %626 : vector<8x128xf32>
    %cst_179 = arith.constant 1.000000e+00 : f32
    %628 = vector.broadcast %cst_179 : f32 to vector<8x128xf32>
    %629 = arith.subf %628, %621 : vector<8x128xf32>
    %630 = arith.mulf %629, %627 : vector<8x128xf32>
    %631 = arith.mulf %621, %587 : vector<8x128xf32>
    %632 = arith.addf %630, %631 : vector<8x128xf32>
    %c0_180 = arith.constant 0 : index
    %c0_181 = arith.constant 0 : index
    %633 = vector.load %arg6[%c0_180, %c0_181] : memref<128x512xf32, #tpu.memory_space<vmem>>, vector<128x512xf32>
    %cst_182 = arith.constant dense<0.000000e+00> : vector<8x512xf32>
    %634 = tpu.matmul %632, %633, %cst_182 {dimension_numbers = #tpu.dot_dimension_numbers<[1], [0], [0], [1], [0, 0, 1, 1], [], []>} : vector<8x128xf32>, vector<128x512xf32>, vector<8x512xf32> -> vector<8x512xf32>
    %635 = vector.extract_strided_slice %634 {offsets = [0, 0], sizes = [8, 384], strides = [1, 1]} : vector<8x512xf32> to vector<8x384xf32>
    %636 = vector.extract_strided_slice %634 {offsets = [0, 384], sizes = [8, 128], strides = [1, 1]} : vector<8x512xf32> to vector<8x128xf32>
    %637 = arith.addf %636, %276 : vector<8x128xf32>
    %638 = arith.index_cast %c7_i32_176 : i32 to index
    %c0_183 = arith.constant 0 : index
    %c0_184 = arith.constant 0 : index
    %639 = vector.load %arg9[%638, %c0_183, %c0_184] : memref<8x8x128xf32, #tpu.memory_space<vmem>>, vector<1x8x128xf32>
    %640 = vector.shape_cast %639 : vector<1x8x128xf32> to vector<8x128xf32>
    %641 = vector.shape_cast %637 : vector<8x128xf32> to vector<1x8x128xf32>
    tpu.vector_store %arg9[%638, %c0_183, %c0_184], %641 {strides = array<i32>} : memref<8x8x128xf32, #tpu.memory_space<vmem>>, vector<1x8x128xf32>,
    %642 = arith.subf %637, %280 : vector<8x128xf32>
    %cst_185 = arith.constant dense<0xFF800000> : vector<8xf32>
    %643 = vector.multi_reduction <maximumf>, %642, %cst_185 [1] : vector<8x128xf32> to vector<8xf32>
    %644 = vector.shape_cast %643 : vector<8xf32> to vector<8x1xf32>
    %645 = vector.broadcast %644 : vector<8x1xf32> to vector<8x128xf32>
    %646 = arith.cmpf oeq, %642, %645 : vector<8x128xf32>
    %647 = arith.extui %646 : vector<8x128xi1> to vector<8x128xi32>
    %648 = arith.sitofp %647 : vector<8x128xi32> to vector<8x128xf32>
    %c0_186 = arith.constant 0 : index
    %c0_187 = arith.constant 0 : index
    %649 = vector.load %arg5[%c0_186, %c0_187] : memref<128x384xf32, #tpu.memory_space<vmem>>, vector<128x384xf32>
    %cst_188 = arith.constant dense<0.000000e+00> : vector<8x384xf32>
    %650 = tpu.matmul %648, %649, %cst_188 {dimension_numbers = #tpu.dot_dimension_numbers<[1], [0], [0], [1], [0, 0, 1, 1], [], []>} : vector<8x128xf32>, vector<128x384xf32>, vector<8x384xf32> -> vector<8x384xf32>
    %c8_i32_189 = arith.constant 8 : i32
    return
  }
}

</mosaic_0001>

<llo_original>
// kernel: tpu_custom_call.1
$region0: #{tpu_custom_call.1}
  #allocation0 [shape = 'u32[]', space=smem, size = 0x4, offset = 0x4, fixed_abs, tag = 'smem constant byte address 0x4 - core index']
  #allocation1 [shape = 'u32[144,128]{1,0:T(1,128)}', space=vmem, size = 0x12000, scoped, tag = 'internal scratch']
  #allocation2 [shape = 'f32[64,384]{1,0:T(8,128)}', space=vmem, size = 0x18000, scoped, tag = 'scratch operand']
  %s0 = inlined_call_operand.vmem [shape: s32[64,1], index: 0, kind: input, shape index: {}]
  %s1 = inlined_call_operand.vmem [shape: s32[8,1], index: 1, kind: input, shape index: {}]
  %s2 = inlined_call_operand.hbm [shape: f32[128,384], index: 2, kind: input, shape index: {}]
  %s3 = inlined_call_operand.hbm [shape: f32[128,384], index: 3, kind: input, shape index: {}]
  %s4 = inlined_call_operand.vmem [shape: f32[8,128], index: 4, kind: input, shape index: {}]
  %s5 = inlined_call_operand.hbm [shape: f32[128,384], index: 5, kind: input, shape index: {}]
  %s6 = inlined_call_operand.hbm [shape: f32[128,512], index: 6, kind: input, shape index: {}]
  %s7 = inlined_call_operand.vmem [shape: f32[8,128], index: 7, kind: input, shape index: {}]
  %s8 = inlined_call_operand.vmem [shape: f32[8,128], index: 8, kind: input, shape index: {}]
  %s9 = inlined_call_operand.hbm [shape: f32[8,8,128], index: 9, kind: output, shape index: {}]
  %s10 = sld [smem:[#allocation0]]
  $region62: #{tpu_custom_call.1} parent=0
    _
  %s12 = ssub.s32 1, %s10
  %s13 = scalar_select 0, %s12, %s10
  $region1: #{tpu_custom_call.1} parent=0
    #allocation3 [shape = 'u8[196608]{0}', space=vmem, size = 0x30000, scoped, tag = 'input window, operand 2, single buffered']
    #allocation4 [shape = 's32[1]{0}', space=sflag, size = 0x4, scoped, tag = 'scoped memory for tpu_custom_call.1']
    #allocation5 [shape = 's32[1]{0}', space=sflag, size = 0x4, scoped, tag = 'scoped memory for tpu_custom_call.1']
    #allocation6 [shape = 'u8[196608]{0}', space=vmem, size = 0x30000, scoped, tag = 'input window, operand 3, single buffered']
    #allocation7 [shape = 's32[1]{0}', space=sflag, size = 0x4, scoped, tag = 'scoped memory for tpu_custom_call.1']
    #allocation8 [shape = 'u8[196608]{0}', space=vmem, size = 0x30000, scoped, tag = 'input window, operand 5, single buffered']
    #allocation9 [shape = 'u8[262144]{0}', space=vmem, size = 0x40000, scoped, tag = 'input window, operand 6, single buffered']
    #allocation10 [shape = 's32[1]{0}', space=sflag, size = 0x4, scoped, tag = 'scoped memory for tpu_custom_call.1']
    #allocation11 [shape = 'u8[32768]{0}', space=vmem, size = 0x8000, scoped, tag = 'output window, operand 0, single buffered']
    %14 = vsyncpa [#allocation4], 0
    %15 = vsyncpa [#allocation7], 0
    %16 = vsyncpa [#allocation10], 0
    %17 = vsyncpa [#allocation5], 0
    // Predicated region
    $region2: #{tpu_custom_call.1} parent=1 // pred_check
      _
    $region3: #{tpu_custom_call.1} parent=1 // pred_check_branch
      %19 = sbr.rel (0) target = $region5
    $region4: #{tpu_custom_call.1} parent=1 // pred_region
      _
    $region5: #{tpu_custom_call.1} parent=1 // pred_fallthru
      _
    // Predicated region
    $region6: #{tpu_custom_call.1} parent=1 // pred_check
      _
    $region7: #{tpu_custom_call.1} parent=1 // pred_check_branch
      %21 = sbr.rel (0) target = $region9
    $region8: #{tpu_custom_call.1} parent=1 // pred_region
      _
    $region9: #{tpu_custom_call.1} parent=1 // pred_fallthru
      _
    // Predicated region
    $region10: #{tpu_custom_call.1} parent=1 // pred_check
      _
    $region11: #{tpu_custom_call.1} parent=1 // pred_check_branch
      %23 = sbr.rel (0) target = $region13
    $region12: #{tpu_custom_call.1} parent=1 // pred_region
      %s25 = ssub.s32 6144, 6144
      %26 = vsyncadd [#allocation4], %s25
      %s27 = sshll.u32 [#allocation3], 4
      %s28 = int_to_ptr.vmem [resolvable:$true] %s27
      %33 = dma.hbm_to_vmem [thread:$0]  %s2, 6144, %s28, [#allocation4], 384, 384, 24
    $region13: #{tpu_custom_call.1} parent=1 // pred_fallthru
      _
    // Predicated region
    $region14: #{tpu_custom_call.1} parent=1 // pred_check
      _
    $region15: #{tpu_custom_call.1} parent=1 // pred_check_branch
      %35 = sbr.rel (0) target = $region17
    $region16: #{tpu_custom_call.1} parent=1 // pred_region
      %s37 = ssub.s32 6144, 6144
      %38 = vsyncadd [#allocation7], %s37
      %s39 = sshll.u32 [#allocation6], 4
      %s40 = int_to_ptr.vmem [resolvable:$true] %s39
      %45 = dma.hbm_to_vmem [thread:$0]  %s3, 6144, %s40, [#allocation7], 384, 384, 24
    $region17: #{tpu_custom_call.1} parent=1 // pred_fallthru
      _
    // Predicated region
    $region18: #{tpu_custom_call.1} parent=1 // pred_check
      _
    $region19: #{tpu_custom_call.1} parent=1 // pred_check_branch
      %47 = sbr.rel (0) target = $region21
    $region20: #{tpu_custom_call.1} parent=1 // pred_region
      _
    $region21: #{tpu_custom_call.1} parent=1 // pred_fallthru
      _
    // Predicated region
    $region22: #{tpu_custom_call.1} parent=1 // pred_check
      _
    $region23: #{tpu_custom_call.1} parent=1 // pred_check_branch
      %49 = sbr.rel (0) target = $region25
    $region24: #{tpu_custom_call.1} parent=1 // pred_region
      %s51 = ssub.s32 6144, 6144
      %52 = vsyncadd [#allocation7], %s51
      %s53 = sshll.u32 [#allocation8], 4
      %s54 = int_to_ptr.vmem [resolvable:$true] %s53
      %59 = dma.hbm_to_vmem [thread:$0]  %s5, 6144, %s54, [#allocation7], 384, 384, 24
    $region25: #{tpu_custom_call.1} parent=1 // pred_fallthru
      _
    // Predicated region
    $region26: #{tpu_custom_call.1} parent=1 // pred_check
      _
    $region27: #{tpu_custom_call.1} parent=1 // pred_check_branch
      %61 = sbr.rel (0) target = $region29
    $region28: #{tpu_custom_call.1} parent=1 // pred_region
      %s63 = ssub.s32 8192, 8192
      %64 = vsyncadd [#allocation10], %s63
      %s65 = sshll.u32 [#allocation9], 4
      %s66 = int_to_ptr.vmem [resolvable:$true] %s65
      %71 = dma.hbm_to_vmem [thread:$0]  %s6, 8192, %s66, [#allocation10], 512, 512, 32
    $region29: #{tpu_custom_call.1} parent=1 // pred_fallthru
      _
    // Predicated region
    $region30: #{tpu_custom_call.1} parent=1 // pred_check
      _
    $region31: #{tpu_custom_call.1} parent=1 // pred_check_branch
      %73 = sbr.rel (0) target = $region33
    $region32: #{tpu_custom_call.1} parent=1 // pred_region
      _
    $region33: #{tpu_custom_call.1} parent=1 // pred_fallthru
      _
    // Predicated region
    $region34: #{tpu_custom_call.1} parent=1 // pred_check
      _
    $region35: #{tpu_custom_call.1} parent=1 // pred_check_branch
      %75 = sbr.rel (0) target = $region37
    $region36: #{tpu_custom_call.1} parent=1 // pred_region
      _
    $region37: #{tpu_custom_call.1} parent=1 // pred_fallthru
      _
    // Predicated region
    $region38: #{tpu_custom_call.1} parent=1 // pred_check
      _
    $region39: #{tpu_custom_call.1} parent=1 // pred_check_branch
      %77 = sbr.rel (0) target = $region41
    $region40: #{tpu_custom_call.1} parent=1 // pred_region
      %78 = dma.done [#allocation4], 6144
    $region41: #{tpu_custom_call.1} parent=1 // pred_fallthru
      _
    // Predicated region
    $region42: #{tpu_custom_call.1} parent=1 // pred_check
      _
    $region43: #{tpu_custom_call.1} parent=1 // pred_check_branch
      %80 = sbr.rel (0) target = $region45
    $region44: #{tpu_custom_call.1} parent=1 // pred_region
      %81 = dma.done [#allocation7], 6144
    $region45: #{tpu_custom_call.1} parent=1 // pred_fallthru
      _
    // Predicated region
    $region46: #{tpu_custom_call.1} parent=1 // pred_check
      _
    $region47: #{tpu_custom_call.1} parent=1 // pred_check_branch
      %83 = sbr.rel (0) target = $region49
    $region48: #{tpu_custom_call.1} parent=1 // pred_region
      %84 = dma.done [#allocation7], 6144
    $region49: #{tpu_custom_call.1} parent=1 // pred_fallthru
      _
    // Predicated region
    $region50: #{tpu_custom_call.1} parent=1 // pred_check
      _
    $region51: #{tpu_custom_call.1} parent=1 // pred_check_branch
      %86 = sbr.rel (0) target = $region53
    $region52: #{tpu_custom_call.1} parent=1 // pred_region
      %87 = dma.done [#allocation10], 8192
    $region53: #{tpu_custom_call.1} parent=1 // pred_fallthru
      _
    %v88 = vld [vmem:[%s0] sm:$0xff]
    %v89 = vld [vmem:[%s0 + $0x8] sm:$0xff]
    %v90 = vld [vmem:[%s0 + $0x10] sm:$0xff]
    %v91 = vld [vmem:[%s0 + $0x18] sm:$0xff]
    %v92 = vld [vmem:[%s0 + $0x20] sm:$0xff]
    %v93 = vld [vmem:[%s0 + $0x28] sm:$0xff]
    %v94 = vld [vmem:[%s0 + $0x30] sm:$0xff]
    %v95 = vld [vmem:[%s0 + $0x38] sm:$0xff]
    %v96 = vlaneseq
    %v97 = vand.u32 %v96, 127
    %98 = vset.pattern.permute.xlu0 0
    %99 = vperm.xlu0 %98, %v88
    %v100 = vpop.permute.xlu0 %99
    %101 = vset.pattern.permute.xlu0 0
    %102 = vperm.xlu0 %101, %v89
    %v103 = vpop.permute.xlu0 %102
    %104 = vset.pattern.permute.xlu0 0
    %105 = vperm.xlu0 %104, %v90
    %v106 = vpop.permute.xlu0 %105
    %107 = vset.pattern.permute.xlu0 0
    %108 = vperm.xlu0 %107, %v91
    %v109 = vpop.permute.xlu0 %108
    %110 = vset.pattern.permute.xlu0 0
    %111 = vperm.xlu0 %110, %v92
    %v112 = vpop.permute.xlu0 %111
    %113 = vset.pattern.permute.xlu0 0
    %114 = vperm.xlu0 %113, %v93
    %v115 = vpop.permute.xlu0 %114
    %116 = vset.pattern.permute.xlu0 0
    %117 = vperm.xlu0 %116, %v94
    %v118 = vpop.permute.xlu0 %117
    %119 = vset.pattern.permute.xlu0 0
    %120 = vperm.xlu0 %119, %v95
    %v121 = vpop.permute.xlu0 %120
    %vm122 = vcmp.eq.s32.totalorder %v100, %v97
    %vm123 = vcmp.eq.s32.totalorder %v103, %v97
    %vm124 = vcmp.eq.s32.totalorder %v106, %v97
    %vm125 = vcmp.eq.s32.totalorder %v109, %v97
    %vm126 = vcmp.eq.s32.totalorder %v112, %v97
    %vm127 = vcmp.eq.s32.totalorder %v115, %v97
    %vm128 = vcmp.eq.s32.totalorder %v118, %v97
    %vm129 = vcmp.eq.s32.totalorder %v121, %v97
    %v130 = vsel %vm122, 1, 0
    %v131 = vsel %vm123, 1, 0
    %v132 = vsel %vm124, 1, 0
    %v133 = vsel %vm125, 1, 0
    %v134 = vsel %vm126, 1, 0
    %v135 = vsel %vm127, 1, 0
    %v136 = vsel %vm128, 1, 0
    %v137 = vsel %vm129, 1, 0
    %v138 = vcvt.s32.f32 %v130
    %v139 = vcvt.s32.f32 %v131
    %v140 = vcvt.s32.f32 %v132
    %v141 = vcvt.s32.f32 %v133
    %v142 = vcvt.s32.f32 %v134
    %v143 = vcvt.s32.f32 %v135
    %v144 = vcvt.s32.f32 %v136
    %v145 = vcvt.s32.f32 %v137
    %v146 = vld [vmem:[#allocation3] sm:$0xff]
    %v147 = vld [vmem:[#allocation3 + $0x8] sm:$0xff]
    %v148 = vld [vmem:[#allocation3 + $0x10] sm:$0xff]
    %v149 = vld [vmem:[#allocation3 + $0x18] sm:$0xff]
    %v150 = vld [vmem:[#allocation3 + $0x20] sm:$0xff]
    %v151 = vld [vmem:[#allocation3 + $0x28] sm:$0xff]
    %v152 = vld [vmem:[#allocation3 + $0x30] sm:$0xff]
    %v153 = vld [vmem:[#allocation3 + $0x38] sm:$0xff]
    %v154 = vld [vmem:[#allocation3 + $0x40] sm:$0xff]
    %v155 = vld [vmem:[#allocation3 + $0x48] sm:$0xff]
    %v156 = vld [vmem:[#allocation3 + $0x50] sm:$0xff]
    %v157 = vld [vmem:[#allocation3 + $0x58] sm:$0xff]
    %v158 = vld [vmem:[#allocation3 + $0x60] sm:$0xff]
    %v159 = vld [vmem:[#allocation3 + $0x68] sm:$0xff]
    %v160 = vld [vmem:[#allocation3 + $0x70] sm:$0xff]
    %v161 = vld [vmem:[#allocation3 + $0x78] sm:$0xff]
    %v162 = vld [vmem:[#allocation3 + $0x80] sm:$0xff]
    %v163 = vld [vmem:[#allocation3 + $0x88] sm:$0xff]
    %v164 = vld [vmem:[#allocation3 + $0x90] sm:$0xff]
    %v165 = vld [vmem:[#allocation3 + $0x98] sm:$0xff]
    %v166 = vld [vmem:[#allocation3 + $0xa0] sm:$0xff]
    %v167 = vld [vmem:[#allocation3 + $0xa8] sm:$0xff]
    %v168 = vld [vmem:[#allocation3 + $0xb0] sm:$0xff]
    %v169 = vld [vmem:[#allocation3 + $0xb8] sm:$0xff]
    %v170 = vld [vmem:[#allocation3 + $0xc0] sm:$0xff]
    %v171 = vld [vmem:[#allocation3 + $0xc8] sm:$0xff]
    %v172 = vld [vmem:[#allocation3 + $0xd0] sm:$0xff]
    %v173 = vld [vmem:[#allocation3 + $0xd8] sm:$0xff]
    %v174 = vld [vmem:[#allocation3 + $0xe0] sm:$0xff]
    %v175 = vld [vmem:[#allocation3 + $0xe8] sm:$0xff]
    %v176 = vld [vmem:[#allocation3 + $0xf0] sm:$0xff]
    %v177 = vld [vmem:[#allocation3 + $0xf8] sm:$0xff]
    %v178 = vld [vmem:[#allocation3 + $0x100] sm:$0xff]
    %v179 = vld [vmem:[#allocation3 + $0x108] sm:$0xff]
    %v180 = vld [vmem:[#allocation3 + $0x110] sm:$0xff]
    %v181 = vld [vmem:[#allocation3 + $0x118] sm:$0xff]
    %v182 = vld [vmem:[#allocation3 + $0x120] sm:$0xff]
    %v183 = vld [vmem:[#allocation3 + $0x128] sm:$0xff]
    %v184 = vld [vmem:[#allocation3 + $0x130] sm:$0xff]
    %v185 = vld [vmem:[#allocation3 + $0x138] sm:$0xff]
    %v186 = vld [vmem:[#allocation3 + $0x140] sm:$0xff]
    %v187 = vld [vmem:[#allocation3 + $0x148] sm:$0xff]
    %v188 = vld [vmem:[#allocation3 + $0x150] sm:$0xff]
    %v189 = vld [vmem:[#allocation3 + $0x158] sm:$0xff]
    %v190 = vld [vmem:[#allocation3 + $0x160] sm:$0xff]
    %v191 = vld [vmem:[#allocation3 + $0x168] sm:$0xff]
    %v192 = vld [vmem:[#allocation3 + $0x170] sm:$0xff]
    %v193 = vld [vmem:[#allocation3 + $0x178] sm:$0xff]
    %194 = vmatprep.subr.mxu0 %v192
    %195 = vmatpush1.msra.mxu0 %v191
    %196 = vmatprep.subr.mxu0 %v189
    %197 = vmatpush1.msra.mxu0 %v188
    %198 = vmatprep.subr.mxu0 %v186
    %199 = vmatpush1.msra.mxu0 %v185
    %200 = vmatprep.subr.mxu0 %v183
    %201 = vmatpush1.msra.mxu0 %v182
    %202 = vmatprep.subr.mxu0 %v180
    %203 = vmatpush1.msra.mxu0 %v179
    %204 = vmatprep.subr.mxu0 %v177
    %205 = vmatpush1.msra.mxu0 %v176
    %206 = vmatprep.subr.mxu0 %v174
    %207 = vmatpush1.msra.mxu0 %v173
    %208 = vmatprep.subr.mxu0 %v171
    %209 = vmatpush1.msra.mxu0 %v170
    %210 = vmatprep.subr.mxu0 %v168
    %211 = vmatpush1.msra.mxu0 %v167
    %212 = vmatprep.subr.mxu0 %v165
    %213 = vmatpush1.msra.mxu0 %v164
    %214 = vmatprep.subr.mxu0 %v162
    %215 = vmatpush1.msra.mxu0 %v161
    %216 = vmatprep.subr.mxu0 %v159
    %217 = vmatpush1.msra.mxu0 %v158
    %218 = vmatprep.subr.mxu0 %v156
    %219 = vmatpush1.msra.mxu0 %v155
    %220 = vmatprep.subr.mxu0 %v153
    %221 = vmatpush1.msra.mxu0 %v152
    %222 = vmatprep.subr.mxu0 %v150
    %223 = vmatpush1.msra.mxu0 %v149
    %224 = vmatprep.subr.mxu0 %v147
    %225 = vmatpush1.msra.mxu0 %v146
    %226 = vmatprep.subr.mxu0 0.0
    %227 = vmatpush2.msra.mxu0 0.0
    %228 = vmatprep.subr.mxu0 0.0
    %229 = vmatpush2.msra.mxu0 0.0
    %230 = vmatprep.subr.mxu0 0.0
    %231 = vmatpush2.msra.mxu0 0.0
    %232 = vmatprep.subr.mxu0 0.0
    %233 = vmatpush2.msra.mxu0 0.0
    %234 = vmatprep.subr.mxu0 0.0
    %235 = vmatpush2.msra.mxu0 0.0
    %236 = vmatprep.subr.mxu0 0.0
    %237 = vmatpush2.msra.mxu0 0.0
    %238 = vmatprep.subr.mxu0 0.0
    %239 = vmatpush2.msra.mxu0 0.0
    %240 = vmatprep.subr.mxu0 0.0
    %241 = vmatpush2.msra.mxu0 0.0
    %242 = vmatprep.subr.mxu0 0.0
    %243 = vmatpush2.msra.mxu0 0.0
    %244 = vmatprep.subr.mxu0 0.0
    %245 = vmatpush2.msra.mxu0 0.0
    %246 = vmatprep.subr.mxu0 0.0
    %247 = vmatpush2.msra.mxu0 0.0
    %248 = vmatprep.subr.mxu0 0.0
    %249 = vmatpush2.msra.mxu0 0.0
    %250 = vmatprep.subr.mxu0 0.0
    %251 = vmatpush2.msra.mxu0 0.0
    %252 = vmatprep.subr.mxu0 0.0
    %253 = vmatpush2.msra.mxu0 0.0
    %254 = vmatprep.subr.mxu0 0.0
    %255 = vmatpush2.msra.mxu0 0.0
    %256 = vmatprep.subr.mxu0 0.0
    %257 = vmatpush2.msra.mxu0 0.0
    %258 = vmatprep.mubr.f32.mxu0 0.0
    %259 = vmatmul.mubr.f32.gmra.mxu0 %v138
    %v260 = vpop.f32.mrf.mxu0
    %v261 = vadd.f32 0.0, %v260
    %v262 = vpop.f32.mrf.mxu0
    %v263 = vadd.f32 0.0, %v262
    %264 = vmatprep.mubr.f32.mxu0 0.0
    %265 = vmatmul.mubr.f32.gmra.mxu0 %v139
    %v266 = vpop.f32.mrf.mxu0
    %v267 = vadd.f32 0.0, %v266
    %v268 = vpop.f32.mrf.mxu0
    %v269 = vadd.f32 0.0, %v268
    %270 = vmatprep.mubr.f32.mxu0 0.0
    %271 = vmatmul.mubr.f32.gmra.mxu0 %v140
    %v272 = vpop.f32.mrf.mxu0
    %v273 = vadd.f32 0.0, %v272
    %v274 = vpop.f32.mrf.mxu0
    %v275 = vadd.f32 0.0, %v274
    %276 = vmatprep.mubr.f32.mxu0 0.0
    %277 = vmatmul.mubr.f32.gmra.mxu0 %v141
    %v278 = vpop.f32.mrf.mxu0
    %v279 = vadd.f32 0.0, %v278
    %v280 = vpop.f32.mrf.mxu0
    %v281 = vadd.f32 0.0, %v280
    %282 = vmatprep.mubr.f32.mxu0 0.0
    %283 = vmatmul.mubr.f32.gmra.mxu0 %v142
    %v284 = vpop.f32.mrf.mxu0
    %v285 = vadd.f32 0.0, %v284
    %v286 = vpop.f32.mrf.mxu0
    %v287 = vadd.f32 0.0, %v286
    %288 = vmatprep.mubr.f32.mxu0 0.0
    %289 = vmatmul.mubr.f32.gmra.mxu0 %v143
    %v290 = vpop.f32.mrf.mxu0
    %v291 = vadd.f32 0.0, %v290
    %v292 = vpop.f32.mrf.mxu0
    %v293 = vadd.f32 0.0, %v292
    %294 = vmatprep.mubr.f32.mxu0 0.0
    %295 = vmatmul.mubr.f32.gmra.mxu0 %v144
    %v296 = vpop.f32.mrf.mxu0
    %v297 = vadd.f32 0.0, %v296
    %v298 = vpop.f32.mrf.mxu0
    %v299 = vadd.f32 0.0, %v298
    %300 = vmatprep.mubr.f32.mxu0 0.0
    %301 = vmatmul.mubr.f32.gmra.mxu0 %v145
    %v302 = vpop.f32.mrf.mxu0
    %v303 = vadd.f32 0.0, %v302
    %v304 = vpop.f32.mrf.mxu0
    %v305 = vadd.f32 0.0, %v304
    %306 = vdwg.mxu0
    %307 = vmatprep.subr.mxu0 0.0
    %308 = vmatpush1.msra.mxu0 %v193
    %309 = vmatprep.subr.mxu0 0.0
    %310 = vmatpush1.msra.mxu0 %v190
    %311 = vmatprep.subr.mxu0 0.0
    %312 = vmatpush1.msra.mxu0 %v187
    %313 = vmatprep.subr.mxu0 0.0
    %314 = vmatpush1.msra.mxu0 %v184
    %315 = vmatprep.subr.mxu0 0.0
    %316 = vmatpush1.msra.mxu0 %v181
    %317 = vmatprep.subr.mxu0 0.0
    %318 = vmatpush1.msra.mxu0 %v178
    %319 = vmatprep.subr.mxu0 0.0
    %320 = vmatpush1.msra.mxu0 %v175
    %321 = vmatprep.subr.mxu0 0.0
    %322 = vmatpush1.msra.mxu0 %v172
    %323 = vmatprep.subr.mxu0 0.0
    %324 = vmatpush1.msra.mxu0 %v169
    %325 = vmatprep.subr.mxu0 0.0
    %326 = vmatpush1.msra.mxu0 %v166
    %327 = vmatprep.subr.mxu0 0.0
    %328 = vmatpush1.msra.mxu0 %v163
    %329 = vmatprep.subr.mxu0 0.0
    %330 = vmatpush1.msra.mxu0 %v160
    %331 = vmatprep.subr.mxu0 0.0
    %332 = vmatpush1.msra.mxu0 %v157
    %333 = vmatprep.subr.mxu0 0.0
    %334 = vmatpush1.msra.mxu0 %v154
    %335 = vmatprep.subr.mxu0 0.0
    %336 = vmatpush1.msra.mxu0 %v151
    %337 = vmatprep.subr.mxu0 0.0
    %338 = vmatpush1.msra.mxu0 %v148
    %339 = vmatprep.subr.mxu0 0.0
    %340 = vmatpush2.msra.mxu0 0.0
    %341 = vmatprep.subr.mxu0 0.0
    %342 = vmatpush2.msra.mxu0 0.0
    %343 = vmatprep.subr.mxu0 0.0
    %344 = vmatpush2.msra.mxu0 0.0
    %345 = vmatprep.subr.mxu0 0.0
    %346 = vmatpush2.msra.mxu0 0.0
    %347 = vmatprep.subr.mxu0 0.0
    %348 = vmatpush2.msra.mxu0 0.0
    %349 = vmatprep.subr.mxu0 0.0
    %350 = vmatpush2.msra.mxu0 0.0
    %351 = vmatprep.subr.mxu0 0.0
    %352 = vmatpush2.msra.mxu0 0.0
    %353 = vmatprep.subr.mxu0 0.0
    %354 = vmatpush2.msra.mxu0 0.0
    %355 = vmatprep.subr.mxu0 0.0
    %356 = vmatpush2.msra.mxu0 0.0
    %357 = vmatprep.subr.mxu0 0.0
    %358 = vmatpush2.msra.mxu0 0.0
    %359 = vmatprep.subr.mxu0 0.0
    %360 = vmatpush2.msra.mxu0 0.0
    %361 = vmatprep.subr.mxu0 0.0
    %362 = vmatpush2.msra.mxu0 0.0
    %363 = vmatprep.subr.mxu0 0.0
    %364 = vmatpush2.msra.mxu0 0.0
    %365 = vmatprep.subr.mxu0 0.0
    %366 = vmatpush2.msra.mxu0 0.0
    %367 = vmatprep.subr.mxu0 0.0
    %368 = vmatpush2.msra.mxu0 0.0
    %369 = vmatprep.subr.mxu0 0.0
    %370 = vmatpush2.msra.mxu0 0.0
    %371 = vmatprep.mubr.f32.mxu0 0.0
    %372 = vmatmul.mubr.f32.gmra.mxu0 %v138
    %v373 = vpop.f32.mrf.mxu0
    %v374 = vadd.f32 0.0, %v373
    %v375 = vpop.f32.mrf.mxu0
    %376 = vmatprep.mubr.f32.mxu0 0.0
    %377 = vmatmul.mubr.f32.gmra.mxu0 %v139
    %v378 = vpop.f32.mrf.mxu0
    %v379 = vadd.f32 0.0, %v378
    %v380 = vpop.f32.mrf.mxu0
    %381 = vmatprep.mubr.f32.mxu0 0.0
    %382 = vmatmul.mubr.f32.gmra.mxu0 %v140
    %v383 = vpop.f32.mrf.mxu0
    %v384 = vadd.f32 0.0, %v383
    %v385 = vpop.f32.mrf.mxu0
    %386 = vmatprep.mubr.f32.mxu0 0.0
    %387 = vmatmul.mubr.f32.gmra.mxu0 %v141
    %v388 = vpop.f32.mrf.mxu0
    %v389 = vadd.f32 0.0, %v388
    %v390 = vpop.f32.mrf.mxu0
    %391 = vmatprep.mubr.f32.mxu0 0.0
    %392 = vmatmul.mubr.f32.gmra.mxu0 %v142
    %v393 = vpop.f32.mrf.mxu0
    %v394 = vadd.f32 0.0, %v393
    %v395 = vpop.f32.mrf.mxu0
    %396 = vmatprep.mubr.f32.mxu0 0.0
    %397 = vmatmul.mubr.f32.gmra.mxu0 %v143
    %v398 = vpop.f32.mrf.mxu0
    %v399 = vadd.f32 0.0, %v398
    %v400 = vpop.f32.mrf.mxu0
    %401 = vmatprep.mubr.f32.mxu0 0.0
    %402 = vmatmul.mubr.f32.gmra.mxu0 %v144
    %v403 = vpop.f32.mrf.mxu0
    %v404 = vadd.f32 0.0, %v403
    %v405 = vpop.f32.mrf.mxu0
    %406 = vmatprep.mubr.f32.mxu0 0.0
    %407 = vmatmul.mubr.f32.gmra.mxu0 %v145
    %v408 = vpop.f32.mrf.mxu0
    %v409 = vadd.f32 0.0, %v408
    %v410 = vpop.f32.mrf.mxu0
    %411 = vdwg.mxu0
    %412 = vst [vmem:[#allocation2] sm:$0xff] %v261
    %413 = vst [vmem:[#allocation2 + $0x8] sm:$0xff] %v263
    %414 = vst [vmem:[#allocation2 + $0x10] sm:$0xff] %v374
    %415 = vst [vmem:[#allocation2 + $0x18] sm:$0xff] %v267
    %416 = vst [vmem:[#allocation2 + $0x20] sm:$0xff] %v269
    %417 = vst [vmem:[#allocation2 + $0x28] sm:$0xff] %v379
    %418 = vst [vmem:[#allocation2 + $0x30] sm:$0xff] %v273
    %419 = vst [vmem:[#allocation2 + $0x38] sm:$0xff] %v275
    %420 = vst [vmem:[#allocation2 + $0x40] sm:$0xff] %v384
    %421 = vst [vmem:[#allocation2 + $0x48] sm:$0xff] %v279
    %422 = vst [vmem:[#allocation2 + $0x50] sm:$0xff] %v281
    %423 = vst [vmem:[#allocation2 + $0x58] sm:$0xff] %v389
    %424 = vst [vmem:[#allocation2 + $0x60] sm:$0xff] %v285
    %425 = vst [vmem:[#allocation2 + $0x68] sm:$0xff] %v287
    %426 = vst [vmem:[#allocation2 + $0x70] sm:$0xff] %v394
    %427 = vst [vmem:[#allocation2 + $0x78] sm:$0xff] %v291
    %428 = vst [vmem:[#allocation2 + $0x80] sm:$0xff] %v293
    %429 = vst [vmem:[#allocation2 + $0x88] sm:$0xff] %v399
    %430 = vst [vmem:[#allocation2 + $0x90] sm:$0xff] %v297
    %431 = vst [vmem:[#allocation2 + $0x98] sm:$0xff] %v299
    %432 = vst [vmem:[#allocation2 + $0xa0] sm:$0xff] %v404
    %433 = vst [vmem:[#allocation2 + $0xa8] sm:$0xff] %v303
    %434 = vst [vmem:[#allocation2 + $0xb0] sm:$0xff] %v305
    %435 = vst [vmem:[#allocation2 + $0xb8] sm:$0xff] %v409
    %v436 = vld [vmem:[%s4] sm:$0xff]
    %s437 = smul.u32 0, 3
    %s438 = smul.addr %s437, 8
    %s439 = scalar_lea.vmem [#allocation2], %s438
    %v440 = vld [vmem:[%s439] sm:$0xff]
    %v441 = vld [vmem:[%s439 + $0x8] sm:$0xff]
    %v442 = vld [vmem:[%s439 + $0x10] sm:$0xff]
    %v443 = vld [vmem:[#allocation6] sm:$0xff]
    %v444 = vld [vmem:[#allocation6 + $0x8] sm:$0xff]
    %v445 = vld [vmem:[#allocation6 + $0x10] sm:$0xff]
    %v446 = vld [vmem:[#allocation6 + $0x18] sm:$0xff]
    %v447 = vld [vmem:[#allocation6 + $0x20] sm:$0xff]
    %v448 = vld [vmem:[#allocation6 + $0x28] sm:$0xff]
    %v449 = vld [vmem:[#allocation6 + $0x30] sm:$0xff]
    %v450 = vld [vmem:[#allocation6 + $0x38] sm:$0xff]
    %v451 = vld [vmem:[#allocation6 + $0x40] sm:$0xff]
    %v452 = vld [vmem:[#allocation6 + $0x48] sm:$0xff]
    %v453 = vld [vmem:[#allocation6 + $0x50] sm:$0xff]
    %v454 = vld [vmem:[#allocation6 + $0x58] sm:$0xff]
    %v455 = vld [vmem:[#allocation6 + $0x60] sm:$0xff]
    %v456 = vld [vmem:[#allocation6 + $0x68] sm:$0xff]
    %v457 = vld [vmem:[#allocation6 + $0x70] sm:$0xff]
    %v458 = vld [vmem:[#allocation6 + $0x78] sm:$0xff]
    %v459 = vld [vmem:[#allocation6 + $0x80] sm:$0xff]
    %v460 = vld [vmem:[#allocation6 + $0x88] sm:$0xff]
    %v461 = vld [vmem:[#allocation6 + $0x90] sm:$0xff]
    %v462 = vld [vmem:[#allocation6 + $0x98] sm:$0xff]
    %v463 = vld [vmem:[#allocation6 + $0xa0] sm:$0xff]
    %v464 = vld [vmem:[#allocation6 + $0xa8] sm:$0xff]
    %v465 = vld [vmem:[#allocation6 + $0xb0] sm:$0xff]
    %v466 = vld [vmem:[#allocation6 + $0xb8] sm:$0xff]
    %v467 = vld [vmem:[#allocation6 + $0xc0] sm:$0xff]
    %v468 = vld [vmem:[#allocation6 + $0xc8] sm:$0xff]
    %v469 = vld [vmem:[#allocation6 + $0xd0] sm:$0xff]
    %v470 = vld [vmem:[#allocation6 + $0xd8] sm:$0xff]
    %v471 = vld [vmem:[#allocation6 + $0xe0] sm:$0xff]
    %v472 = vld [vmem:[#allocation6 + $0xe8] sm:$0xff]
    %v473 = vld [vmem:[#allocation6 + $0xf0] sm:$0xff]
    %v474 = vld [vmem:[#allocation6 + $0xf8] sm:$0xff]
    %v475 = vld [vmem:[#allocation6 + $0x100] sm:$0xff]
    %v476 = vld [vmem:[#allocation6 + $0x108] sm:$0xff]
    %v477 = vld [vmem:[#allocation6 + $0x110] sm:$0xff]
    %v478 = vld [vmem:[#allocation6 + $0x118] sm:$0xff]
    %v479 = vld [vmem:[#allocation6 + $0x120] sm:$0xff]
    %v480 = vld [vmem:[#allocation6 + $0x128] sm:$0xff]
    %v481 = vld [vmem:[#allocation6 + $0x130] sm:$0xff]
    %v482 = vld [vmem:[#allocation6 + $0x138] sm:$0xff]
    %v483 = vld [vmem:[#allocation6 + $0x140] sm:$0xff]
    %v484 = vld [vmem:[#allocation6 + $0x148] sm:$0xff]
    %v485 = vld [vmem:[#allocation6 + $0x150] sm:$0xff]
    %v486 = vld [vmem:[#allocation6 + $0x158] sm:$0xff]
    %v487 = vld [vmem:[#allocation6 + $0x160] sm:$0xff]
    %v488 = vld [vmem:[#allocation6 + $0x168] sm:$0xff]
    %v489 = vld [vmem:[#allocation6 + $0x170] sm:$0xff]
    %v490 = vld [vmem:[#allocation6 + $0x178] sm:$0xff]
    %491 = vmatprep.subr.mxu0 %v489
    %492 = vmatpush1.msra.mxu0 %v488
    %493 = vmatprep.subr.mxu0 %v486
    %494 = vmatpush1.msra.mxu0 %v485
    %495 = vmatprep.subr.mxu0 %v483
    %496 = vmatpush1.msra.mxu0 %v482
    %497 = vmatprep.subr.mxu0 %v480
    %498 = vmatpush1.msra.mxu0 %v479
    %499 = vmatprep.subr.mxu0 %v477
    %500 = vmatpush1.msra.mxu0 %v476
    %501 = vmatprep.subr.mxu0 %v474
    %502 = vmatpush1.msra.mxu0 %v473
    %503 = vmatprep.subr.mxu0 %v471
    %504 = vmatpush1.msra.mxu0 %v470
    %505 = vmatprep.subr.mxu0 %v468
    %506 = vmatpush1.msra.mxu0 %v467
    %507 = vmatprep.subr.mxu0 %v465
    %508 = vmatpush1.msra.mxu0 %v464
    %509 = vmatprep.subr.mxu0 %v462
    %510 = vmatpush1.msra.mxu0 %v461
    %511 = vmatprep.subr.mxu0 %v459
    %512 = vmatpush1.msra.mxu0 %v458
    %513 = vmatprep.subr.mxu0 %v456
    %514 = vmatpush1.msra.mxu0 %v455
    %515 = vmatprep.subr.mxu0 %v453
    %516 = vmatpush1.msra.mxu0 %v452
    %517 = vmatprep.subr.mxu0 %v450
    %518 = vmatpush1.msra.mxu0 %v449
    %519 = vmatprep.subr.mxu0 %v447
    %520 = vmatpush1.msra.mxu0 %v446
    %521 = vmatprep.subr.mxu0 %v444
    %522 = vmatpush1.msra.mxu0 %v443
    %523 = vmatprep.subr.mxu0 0.0
    %524 = vmatpush2.msra.mxu0 0.0
    %525 = vmatprep.subr.mxu0 0.0
    %526 = vmatpush2.msra.mxu0 0.0
    %527 = vmatprep.subr.mxu0 0.0
    %528 = vmatpush2.msra.mxu0 0.0
    %529 = vmatprep.subr.mxu0 0.0
    %530 = vmatpush2.msra.mxu0 0.0
    %531 = vmatprep.subr.mxu0 0.0
    %532 = vmatpush2.msra.mxu0 0.0
    %533 = vmatprep.subr.mxu0 0.0
    %534 = vmatpush2.msra.mxu0 0.0
    %535 = vmatprep.subr.mxu0 0.0
    %536 = vmatpush2.msra.mxu0 0.0
    %537 = vmatprep.subr.mxu0 0.0
    %538 = vmatpush2.msra.mxu0 0.0
    %539 = vmatprep.subr.mxu0 0.0
    %540 = vmatpush2.msra.mxu0 0.0
    %541 = vmatprep.subr.mxu0 0.0
    %542 = vmatpush2.msra.mxu0 0.0
    %543 = vmatprep.subr.mxu0 0.0
    %544 = vmatpush2.msra.mxu0 0.0
    %545 = vmatprep.subr.mxu0 0.0
    %546 = vmatpush2.msra.mxu0 0.0
    %547 = vmatprep.subr.mxu0 0.0
    %548 = vmatpush2.msra.mxu0 0.0
    %549 = vmatprep.subr.mxu0 0.0
    %550 = vmatpush2.msra.mxu0 0.0
    %551 = vmatprep.subr.mxu0 0.0
    %552 = vmatpush2.msra.mxu0 0.0
    %553 = vmatprep.subr.mxu0 0.0
    %554 = vmatpush2.msra.mxu0 0.0
    %555 = vmatprep.mubr.f32.mxu0 0.0
    %556 = vmatmul.mubr.f32.gmra.mxu0 0.0
    %v557 = vpop.f32.mrf.mxu0
    %v558 = vadd.f32 0.0, %v557
    %v559 = vpop.f32.mrf.mxu0
    %v560 = vadd.f32 0.0, %v559
    %561 = vdwg.mxu0
    %562 = vmatprep.subr.mxu0 0.0
    %563 = vmatpush1.msra.mxu0 %v490
    %564 = vmatprep.subr.mxu0 0.0
    %565 = vmatpush1.msra.mxu0 %v487
    %566 = vmatprep.subr.mxu0 0.0
    %567 = vmatpush1.msra.mxu0 %v484
    %568 = vmatprep.subr.mxu0 0.0
    %569 = vmatpush1.msra.mxu0 %v481
    %570 = vmatprep.subr.mxu0 0.0
    %571 = vmatpush1.msra.mxu0 %v478
    %572 = vmatprep.subr.mxu0 0.0
    %573 = vmatpush1.msra.mxu0 %v475
    %574 = vmatprep.subr.mxu0 0.0
    %575 = vmatpush1.msra.mxu0 %v472
    %576 = vmatprep.subr.mxu0 0.0
    %577 = vmatpush1.msra.mxu0 %v469
    %578 = vmatprep.subr.mxu0 0.0
    %579 = vmatpush1.msra.mxu0 %v466
    %580 = vmatprep.subr.mxu0 0.0
    %581 = vmatpush1.msra.mxu0 %v463
    %582 = vmatprep.subr.mxu0 0.0
    %583 = vmatpush1.msra.mxu0 %v460
    %584 = vmatprep.subr.mxu0 0.0
    %585 = vmatpush1.msra.mxu0 %v457
    %586 = vmatprep.subr.mxu0 0.0
    %587 = vmatpush1.msra.mxu0 %v454
    %588 = vmatprep.subr.mxu0 0.0
    %589 = vmatpush1.msra.mxu0 %v451
    %590 = vmatprep.subr.mxu0 0.0
    %591 = vmatpush1.msra.mxu0 %v448
    %592 = vmatprep.subr.mxu0 0.0
    %593 = vmatpush1.msra.mxu0 %v445
    %594 = vmatprep.subr.mxu0 0.0
    %595 = vmatpush2.msra.mxu0 0.0
    %596 = vmatprep.subr.mxu0 0.0
    %597 = vmatpush2.msra.mxu0 0.0
    %598 = vmatprep.subr.mxu0 0.0
    %599 = vmatpush2.msra.mxu0 0.0
    %600 = vmatprep.subr.mxu0 0.0
    %601 = vmatpush2.msra.mxu0 0.0
    %602 = vmatprep.subr.mxu0 0.0
    %603 = vmatpush2.msra.mxu0 0.0
    %604 = vmatprep.subr.mxu0 0.0
    %605 = vmatpush2.msra.mxu0 0.0
    %606 = vmatprep.subr.mxu0 0.0
    %607 = vmatpush2.msra.mxu0 0.0
    %608 = vmatprep.subr.mxu0 0.0
    %609 = vmatpush2.msra.mxu0 0.0
    %610 = vmatprep.subr.mxu0 0.0
    %611 = vmatpush2.msra.mxu0 0.0
    %612 = vmatprep.subr.mxu0 0.0
    %613 = vmatpush2.msra.mxu0 0.0
    %614 = vmatprep.subr.mxu0 0.0
    %615 = vmatpush2.msra.mxu0 0.0
    %616 = vmatprep.subr.mxu0 0.0
    %617 = vmatpush2.msra.mxu0 0.0
    %618 = vmatprep.subr.mxu0 0.0
    %619 = vmatpush2.msra.mxu0 0.0
    %620 = vmatprep.subr.mxu0 0.0
    %621 = vmatpush2.msra.mxu0 0.0
    %622 = vmatprep.subr.mxu0 0.0
    %623 = vmatpush2.msra.mxu0 0.0
    %624 = vmatprep.subr.mxu0 0.0
    %625 = vmatpush2.msra.mxu0 0.0
    %626 = vmatprep.mubr.f32.mxu0 0.0
    %627 = vmatmul.mubr.f32.gmra.mxu0 0.0
    %v628 = vpop.f32.mrf.mxu0
    %v629 = vadd.f32 0.0, %v628
    %v630 = vpop.f32.mrf.mxu0
    %631 = vdwg.mxu0
    %v632 = vadd.f32 %v440, %v558
    %v633 = vxor.u32 %v632, 2147483648
    %v634 = vmul.f32 %v633, 1.442695
    %v635 = vpow.pop %v634
    %v636 = vadd.f32 %v635, 1.0
    %v637 = vrcp.pop %v636
    %v638 = vmul.f32 1.0, %v637
    %v639 = vadd.f32 %v441, %v560
    %v640 = vxor.u32 %v639, 2147483648
    %v641 = vmul.f32 %v640, 1.442695
    %v642 = vpow.pop %v641
    %v643 = vadd.f32 %v642, 1.0
    %v644 = vrcp.pop %v643
    %v645 = vmul.f32 1.0, %v644
    %v646 = vadd.f32 %v629, %v436
    %v647 = vmul.f32 %v638, %v646
    %v648 = vadd.f32 %v442, %v647
    %v649 = vtanh.pop %v648
    %v650 = vsub.f32 1.0, %v645
    %v651 = vmul.f32 %v650, %v649
    %v652 = vmul.f32 %v645, 0.0
    %v653 = vadd.f32 %v651, %v652
    %s654 = smul.u32 1, 3
    %s655 = smul.addr %s654, 8
    %s656 = scalar_lea.vmem [#allocation2], %s655
    %v657 = vld [vmem:[%s656] sm:$0xff]
    %v658 = vld [vmem:[%s656 + $0x8] sm:$0xff]
    %v659 = vld [vmem:[%s656 + $0x10] sm:$0xff]
    %660 = vmatprep.subr.mxu0 %v489
    %661 = vmatpush1.msra.mxu0 %v488
    %662 = vmatprep.subr.mxu0 %v486
    %663 = vmatpush1.msra.mxu0 %v485
    %664 = vmatprep.subr.mxu0 %v483
    %665 = vmatpush1.msra.mxu0 %v482
    %666 = vmatprep.subr.mxu0 %v480
    %667 = vmatpush1.msra.mxu0 %v479
    %668 = vmatprep.subr.mxu0 %v477
    %669 = vmatpush1.msra.mxu0 %v476
    %670 = vmatprep.subr.mxu0 %v474
    %671 = vmatpush1.msra.mxu0 %v473
    %672 = vmatprep.subr.mxu0 %v471
    %673 = vmatpush1.msra.mxu0 %v470
    %674 = vmatprep.subr.mxu0 %v468
    %675 = vmatpush1.msra.mxu0 %v467
    %676 = vmatprep.subr.mxu0 %v465
    %677 = vmatpush1.msra.mxu0 %v464
    %678 = vmatprep.subr.mxu0 %v462
    %679 = vmatpush1.msra.mxu0 %v461
    %680 = vmatprep.subr.mxu0 %v459
    %681 = vmatpush1.msra.mxu0 %v458
    %682 = vmatprep.subr.mxu0 %v456
    %683 = vmatpush1.msra.mxu0 %v455
    %684 = vmatprep.subr.mxu0 %v453
    %685 = vmatpush1.msra.mxu0 %v452
    %686 = vmatprep.subr.mxu0 %v450
    %687 = vmatpush1.msra.mxu0 %v449
    %688 = vmatprep.subr.mxu0 %v447
    %689 = vmatpush1.msra.mxu0 %v446
    %690 = vmatprep.subr.mxu0 %v444
    %691 = vmatpush1.msra.mxu0 %v443
    %692 = vmatprep.subr.mxu0 0.0
    %693 = vmatpush2.msra.mxu0 0.0
    %694 = vmatprep.subr.mxu0 0.0
    %695 = vmatpush2.msra.mxu0 0.0
    %696 = vmatprep.subr.mxu0 0.0
    %697 = vmatpush2.msra.mxu0 0.0
    %698 = vmatprep.subr.mxu0 0.0
    %699 = vmatpush2.msra.mxu0 0.0
    %700 = vmatprep.subr.mxu0 0.0
    %701 = vmatpush2.msra.mxu0 0.0
    %702 = vmatprep.subr.mxu0 0.0
    %703 = vmatpush2.msra.mxu0 0.0
    %704 = vmatprep.subr.mxu0 0.0
    %705 = vmatpush2.msra.mxu0 0.0
    %706 = vmatprep.subr.mxu0 0.0
    %707 = vmatpush2.msra.mxu0 0.0
    %708 = vmatprep.subr.mxu0 0.0
    %709 = vmatpush2.msra.mxu0 0.0
    %710 = vmatprep.subr.mxu0 0.0
    %711 = vmatpush2.msra.mxu0 0.0
    %712 = vmatprep.subr.mxu0 0.0
    %713 = vmatpush2.msra.mxu0 0.0
    %714 = vmatprep.subr.mxu0 0.0
    %715 = vmatpush2.msra.mxu0 0.0
    %716 = vmatprep.subr.mxu0 0.0
    %717 = vmatpush2.msra.mxu0 0.0
    %718 = vmatprep.subr.mxu0 0.0
    %719 = vmatpush2.msra.mxu0 0.0
    %720 = vmatprep.subr.mxu0 0.0
    %721 = vmatpush2.msra.mxu0 0.0
    %722 = vmatprep.subr.mxu0 0.0
    %723 = vmatpush2.msra.mxu0 0.0
    %724 = vmatprep.mubr.f32.mxu0 0.0
    %725 = vmatmul.mubr.f32.gmra.mxu0 %v653
    %v726 = vpop.f32.mrf.mxu0
    %v727 = vadd.f32 0.0, %v726
    %v728 = vpop.f32.mrf.mxu0
    %v729 = vadd.f32 0.0, %v728
    %730 = vdwg.mxu0
    %731 = vmatprep.subr.mxu0 0.0
    %732 = vmatpush1.msra.mxu0 %v490
    %733 = vmatprep.subr.mxu0 0.0
    %734 = vmatpush1.msra.mxu0 %v487
    %735 = vmatprep.subr.mxu0 0.0
    %736 = vmatpush1.msra.mxu0 %v484
    %737 = vmatprep.subr.mxu0 0.0
    %738 = vmatpush1.msra.mxu0 %v481
    %739 = vmatprep.subr.mxu0 0.0
    %740 = vmatpush1.msra.mxu0 %v478
    %741 = vmatprep.subr.mxu0 0.0
    %742 = vmatpush1.msra.mxu0 %v475
    %743 = vmatprep.subr.mxu0 0.0
    %744 = vmatpush1.msra.mxu0 %v472
    %745 = vmatprep.subr.mxu0 0.0
    %746 = vmatpush1.msra.mxu0 %v469
    %747 = vmatprep.subr.mxu0 0.0
    %748 = vmatpush1.msra.mxu0 %v466
    %749 = vmatprep.subr.mxu0 0.0
    %750 = vmatpush1.msra.mxu0 %v463
    %751 = vmatprep.subr.mxu0 0.0
    %752 = vmatpush1.msra.mxu0 %v460
    %753 = vmatprep.subr.mxu0 0.0
    %754 = vmatpush1.msra.mxu0 %v457
    %755 = vmatprep.subr.mxu0 0.0
    %756 = vmatpush1.msra.mxu0 %v454
    %757 = vmatprep.subr.mxu0 0.0
    %758 = vmatpush1.msra.mxu0 %v451
    %759 = vmatprep.subr.mxu0 0.0
    %760 = vmatpush1.msra.mxu0 %v448
    %761 = vmatprep.subr.mxu0 0.0
    %762 = vmatpush1.msra.mxu0 %v445
    %763 = vmatprep.subr.mxu0 0.0
    %764 = vmatpush2.msra.mxu0 0.0
    %765 = vmatprep.subr.mxu0 0.0
    %766 = vmatpush2.msra.mxu0 0.0
    %767 = vmatprep.subr.mxu0 0.0
    %768 = vmatpush2.msra.mxu0 0.0
    %769 = vmatprep.subr.mxu0 0.0
    %770 = vmatpush2.msra.mxu0 0.0
    %771 = vmatprep.subr.mxu0 0.0
    %772 = vmatpush2.msra.mxu0 0.0
    %773 = vmatprep.subr.mxu0 0.0
    %774 = vmatpush2.msra.mxu0 0.0
    %775 = vmatprep.subr.mxu0 0.0
    %776 = vmatpush2.msra.mxu0 0.0
    %777 = vmatprep.subr.mxu0 0.0
    %778 = vmatpush2.msra.mxu0 0.0
    %779 = vmatprep.subr.mxu0 0.0
    %780 = vmatpush2.msra.mxu0 0.0
    %781 = vmatprep.subr.mxu0 0.0
    %782 = vmatpush2.msra.mxu0 0.0
    %783 = vmatprep.subr.mxu0 0.0
    %784 = vmatpush2.msra.mxu0 0.0
    %785 = vmatprep.subr.mxu0 0.0
    %786 = vmatpush2.msra.mxu0 0.0
    %787 = vmatprep.subr.mxu0 0.0
    %788 = vmatpush2.msra.mxu0 0.0
    %789 = vmatprep.subr.mxu0 0.0
    %790 = vmatpush2.msra.mxu0 0.0
    %791 = vmatprep.subr.mxu0 0.0
    %792 = vmatpush2.msra.mxu0 0.0
    %793 = vmatprep.subr.mxu0 0.0
    %794 = vmatpush2.msra.mxu0 0.0
    %795 = vmatprep.mubr.f32.mxu0 0.0
    %796 = vmatmul.mubr.f32.gmra.mxu0 %v653
    %v797 = vpop.f32.mrf.mxu0
    %v798 = vadd.f32 0.0, %v797
    %v799 = vpop.f32.mrf.mxu0
    %800 = vdwg.mxu0
    %v801 = vadd.f32 %v657, %v727
    %v802 = vxor.u32 %v801, 2147483648
    %v803 = vmul.f32 %v802, 1.442695
    %v804 = vpow.pop %v803
    %v805 = vadd.f32 %v804, 1.0
    %v806 = vrcp.pop %v805
    %v807 = vmul.f32 1.0, %v806
    %v808 = vadd.f32 %v658, %v729
    %v809 = vxor.u32 %v808, 2147483648
    %v810 = vmul.f32 %v809, 1.442695
    %v811 = vpow.pop %v810
    %v812 = vadd.f32 %v811, 1.0
    %v813 = vrcp.pop %v812
    %v814 = vmul.f32 1.0, %v813
    %v815 = vadd.f32 %v798, %v436
    %v816 = vmul.f32 %v807, %v815
    %v817 = vadd.f32 %v659, %v816
    %v818 = vtanh.pop %v817
    %v819 = vsub.f32 1.0, %v814
    %v820 = vmul.f32 %v819, %v818
    %v821 = vmul.f32 %v814, %v653
    %v822 = vadd.f32 %v820, %v821
    %s823 = smul.u32 2, 3
    %s824 = smul.addr %s823, 8
    %s825 = scalar_lea.vmem [#allocation2], %s824
    %v826 = vld [vmem:[%s825] sm:$0xff]
    %v827 = vld [vmem:[%s825 + $0x8] sm:$0xff]
    %v828 = vld [vmem:[%s825 + $0x10] sm:$0xff]
    %829 = vmatprep.subr.mxu0 %v489
    %830 = vmatpush1.msra.mxu0 %v488
    %831 = vmatprep.subr.mxu0 %v486
    %832 = vmatpush1.msra.mxu0 %v485
    %833 = vmatprep.subr.mxu0 %v483
    %834 = vmatpush1.msra.mxu0 %v482
    %835 = vmatprep.subr.mxu0 %v480
    %836 = vmatpush1.msra.mxu0 %v479
    %837 = vmatprep.subr.mxu0 %v477
    %838 = vmatpush1.msra.mxu0 %v476
    %839 = vmatprep.subr.mxu0 %v474
    %840 = vmatpush1.msra.mxu0 %v473
    %841 = vmatprep.subr.mxu0 %v471
    %842 = vmatpush1.msra.mxu0 %v470
    %843 = vmatprep.subr.mxu0 %v468
    %844 = vmatpush1.msra.mxu0 %v467
    %845 = vmatprep.subr.mxu0 %v465
    %846 = vmatpush1.msra.mxu0 %v464
    %847 = vmatprep.subr.mxu0 %v462
    %848 = vmatpush1.msra.mxu0 %v461
    %849 = vmatprep.subr.mxu0 %v459
    %850 = vmatpush1.msra.mxu0 %v458
    %851 = vmatprep.subr.mxu0 %v456
    %852 = vmatpush1.msra.mxu0 %v455
    %853 = vmatprep.subr.mxu0 %v453
    %854 = vmatpush1.msra.mxu0 %v452
    %855 = vmatprep.subr.mxu0 %v450
    %856 = vmatpush1.msra.mxu0 %v449
    %857 = vmatprep.subr.mxu0 %v447
    %858 = vmatpush1.msra.mxu0 %v446
    %859 = vmatprep.subr.mxu0 %v444
    %860 = vmatpush1.msra.mxu0 %v443
    %861 = vmatprep.subr.mxu0 0.0
    %862 = vmatpush2.msra.mxu0 0.0
    %863 = vmatprep.subr.mxu0 0.0
    %864 = vmatpush2.msra.mxu0 0.0
    %865 = vmatprep.subr.mxu0 0.0
    %866 = vmatpush2.msra.mxu0 0.0
    %867 = vmatprep.subr.mxu0 0.0
    %868 = vmatpush2.msra.mxu0 0.0
    %869 = vmatprep.subr.mxu0 0.0
    %870 = vmatpush2.msra.mxu0 0.0
    %871 = vmatprep.subr.mxu0 0.0
    %872 = vmatpush2.msra.mxu0 0.0
    %873 = vmatprep.subr.mxu0 0.0
    %874 = vmatpush2.msra.mxu0 0.0
    %875 = vmatprep.subr.mxu0 0.0
    %876 = vmatpush2.msra.mxu0 0.0
    %877 = vmatprep.subr.mxu0 0.0
    %878 = vmatpush2.msra.mxu0 0.0
    %879 = vmatprep.subr.mxu0 0.0
    %880 = vmatpush2.msra.mxu0 0.0
    %881 = vmatprep.subr.mxu0 0.0
    %882 = vmatpush2.msra.mxu0 0.0
    %883 = vmatprep.subr.mxu0 0.0
    %884 = vmatpush2.msra.mxu0 0.0
    %885 = vmatprep.subr.mxu0 0.0
    %886 = vmatpush2.msra.mxu0 0.0
    %887 = vmatprep.subr.mxu0 0.0
    %888 = vmatpush2.msra.mxu0 0.0
    %889 = vmatprep.subr.mxu0 0.0
    %890 = vmatpush2.msra.mxu0 0.0
    %891 = vmatprep.subr.mxu0 0.0
    %892 = vmatpush2.msra.mxu0 0.0
    %893 = vmatprep.mubr.f32.mxu0 0.0
    %894 = vmatmul.mubr.f32.gmra.mxu0 %v822
    %v895 = vpop.f32.mrf.mxu0
    %v896 = vadd.f32 0.0, %v895
    %v897 = vpop.f32.mrf.mxu0
    %v898 = vadd.f32 0.0, %v897
    %899 = vdwg.mxu0
    %900 = vmatprep.subr.mxu0 0.0
    %901 = vmatpush1.msra.mxu0 %v490
    %902 = vmatprep.subr.mxu0 0.0
    %903 = vmatpush1.msra.mxu0 %v487
    %904 = vmatprep.subr.mxu0 0.0
    %905 = vmatpush1.msra.mxu0 %v484
    %906 = vmatprep.subr.mxu0 0.0
    %907 = vmatpush1.msra.mxu0 %v481
    %908 = vmatprep.subr.mxu0 0.0
    %909 = vmatpush1.msra.mxu0 %v478
    %910 = vmatprep.subr.mxu0 0.0
    %911 = vmatpush1.msra.mxu0 %v475
    %912 = vmatprep.subr.mxu0 0.0
    %913 = vmatpush1.msra.mxu0 %v472
    %914 = vmatprep.subr.mxu0 0.0
    %915 = vmatpush1.msra.mxu0 %v469
    %916 = vmatprep.subr.mxu0 0.0
    %917 = vmatpush1.msra.mxu0 %v466
    %918 = vmatprep.subr.mxu0 0.0
    %919 = vmatpush1.msra.mxu0 %v463
    %920 = vmatprep.subr.mxu0 0.0
    %921 = vmatpush1.msra.mxu0 %v460
    %922 = vmatprep.subr.mxu0 0.0
    %923 = vmatpush1.msra.mxu0 %v457
    %924 = vmatprep.subr.mxu0 0.0
    %925 = vmatpush1.msra.mxu0 %v454
    %926 = vmatprep.subr.mxu0 0.0
    %927 = vmatpush1.msra.mxu0 %v451
    %928 = vmatprep.subr.mxu0 0.0
    %929 = vmatpush1.msra.mxu0 %v448
    %930 = vmatprep.subr.mxu0 0.0
    %931 = vmatpush1.msra.mxu0 %v445
    %932 = vmatprep.subr.mxu0 0.0
    %933 = vmatpush2.msra.mxu0 0.0
    %934 = vmatprep.subr.mxu0 0.0
    %935 = vmatpush2.msra.mxu0 0.0
    %936 = vmatprep.subr.mxu0 0.0
    %937 = vmatpush2.msra.mxu0 0.0
    %938 = vmatprep.subr.mxu0 0.0
    %939 = vmatpush2.msra.mxu0 0.0
    %940 = vmatprep.subr.mxu0 0.0
    %941 = vmatpush2.msra.mxu0 0.0
    %942 = vmatprep.subr.mxu0 0.0
    %943 = vmatpush2.msra.mxu0 0.0
    %944 = vmatprep.subr.mxu0 0.0
    %945 = vmatpush2.msra.mxu0 0.0
    %946 = vmatprep.subr.mxu0 0.0
    %947 = vmatpush2.msra.mxu0 0.0
    %948 = vmatprep.subr.mxu0 0.0
    %949 = vmatpush2.msra.mxu0 0.0
    %950 = vmatprep.subr.mxu0 0.0
    %951 = vmatpush2.msra.mxu0 0.0
    %952 = vmatprep.subr.mxu0 0.0
    %953 = vmatpush2.msra.mxu0 0.0
    %954 = vmatprep.subr.mxu0 0.0
    %955 = vmatpush2.msra.mxu0 0.0
    %956 = vmatprep.subr.mxu0 0.0
    %957 = vmatpush2.msra.mxu0 0.0
    %958 = vmatprep.subr.mxu0 0.0
    %959 = vmatpush2.msra.mxu0 0.0
    %960 = vmatprep.subr.mxu0 0.0
    %961 = vmatpush2.msra.mxu0 0.0
    %962 = vmatprep.subr.mxu0 0.0
    %963 = vmatpush2.msra.mxu0 0.0
    %964 = vmatprep.mubr.f32.mxu0 0.0
    %965 = vmatmul.mubr.f32.gmra.mxu0 %v822
    %v966 = vpop.f32.mrf.mxu0
    %v967 = vadd.f32 0.0, %v966
    %v968 = vpop.f32.mrf.mxu0
    %969 = vdwg.mxu0
    %v970 = vadd.f32 %v826, %v896
    %v971 = vxor.u32 %v970, 2147483648
    %v972 = vmul.f32 %v971, 1.442695
    %v973 = vpow.pop %v972
    %v974 = vadd.f32 %v973, 1.0
    %v975 = vrcp.pop %v974
    %v976 = vmul.f32 1.0, %v975
    %v977 = vadd.f32 %v827, %v898
    %v978 = vxor.u32 %v977, 2147483648
    %v979 = vmul.f32 %v978, 1.442695
    %v980 = vpow.pop %v979
    %v981 = vadd.f32 %v980, 1.0
    %v982 = vrcp.pop %v981
    %v983 = vmul.f32 1.0, %v982
    %v984 = vadd.f32 %v967, %v436
    %v985 = vmul.f32 %v976, %v984
    %v986 = vadd.f32 %v828, %v985
    %v987 = vtanh.pop %v986
    %v988 = vsub.f32 1.0, %v983
    %v989 = vmul.f32 %v988, %v987
    %v990 = vmul.f32 %v983, %v822
    %v991 = vadd.f32 %v989, %v990
    %s992 = smul.u32 3, 3
    %s993 = smul.addr %s992, 8
    %s994 = scalar_lea.vmem [#allocation2], %s993
    %v995 = vld [vmem:[%s994] sm:$0xff]
    %v996 = vld [vmem:[%s994 + $0x8] sm:$0xff]
    %v997 = vld [vmem:[%s994 + $0x10] sm:$0xff]
    %998 = vmatprep.subr.mxu0 %v489
    %999 = vmatpush1.msra.mxu0 %v488
    %1000 = vmatprep.subr.mxu0 %v486
    %1001 = vmatpush1.msra.mxu0 %v485
    %1002 = vmatprep.subr.mxu0 %v483
    %1003 = vmatpush1.msra.mxu0 %v482
    %1004 = vmatprep.subr.mxu0 %v480
    %1005 = vmatpush1.msra.mxu0 %v479
    %1006 = vmatprep.subr.mxu0 %v477
    %1007 = vmatpush1.msra.mxu0 %v476
    %1008 = vmatprep.subr.mxu0 %v474
    %1009 = vmatpush1.msra.mxu0 %v473
    %1010 = vmatprep.subr.mxu0 %v471
    %1011 = vmatpush1.msra.mxu0 %v470
    %1012 = vmatprep.subr.mxu0 %v468
    %1013 = vmatpush1.msra.mxu0 %v467
    %1014 = vmatprep.subr.mxu0 %v465
    %1015 = vmatpush1.msra.mxu0 %v464
    %1016 = vmatprep.subr.mxu0 %v462
    %1017 = vmatpush1.msra.mxu0 %v461
    %1018 = vmatprep.subr.mxu0 %v459
    %1019 = vmatpush1.msra.mxu0 %v458
    %1020 = vmatprep.subr.mxu0 %v456
    %1021 = vmatpush1.msra.mxu0 %v455
    %1022 = vmatprep.subr.mxu0 %v453
    %1023 = vmatpush1.msra.mxu0 %v452
    %1024 = vmatprep.subr.mxu0 %v450
    %1025 = vmatpush1.msra.mxu0 %v449
    %1026 = vmatprep.subr.mxu0 %v447
    %1027 = vmatpush1.msra.mxu0 %v446
    %1028 = vmatprep.subr.mxu0 %v444
    %1029 = vmatpush1.msra.mxu0 %v443
    %1030 = vmatprep.subr.mxu0 0.0
    %1031 = vmatpush2.msra.mxu0 0.0
    %1032 = vmatprep.subr.mxu0 0.0
    %1033 = vmatpush2.msra.mxu0 0.0
    %1034 = vmatprep.subr.mxu0 0.0
    %1035 = vmatpush2.msra.mxu0 0.0
    %1036 = vmatprep.subr.mxu0 0.0
    %1037 = vmatpush2.msra.mxu0 0.0
    %1038 = vmatprep.subr.mxu0 0.0
    %1039 = vmatpush2.msra.mxu0 0.0
    %1040 = vmatprep.subr.mxu0 0.0
    %1041 = vmatpush2.msra.mxu0 0.0
    %1042 = vmatprep.subr.mxu0 0.0
    %1043 = vmatpush2.msra.mxu0 0.0
    %1044 = vmatprep.subr.mxu0 0.0
    %1045 = vmatpush2.msra.mxu0 0.0
    %1046 = vmatprep.subr.mxu0 0.0
    %1047 = vmatpush2.msra.mxu0 0.0
    %1048 = vmatprep.subr.mxu0 0.0
    %1049 = vmatpush2.msra.mxu0 0.0
    %1050 = vmatprep.subr.mxu0 0.0
    %1051 = vmatpush2.msra.mxu0 0.0
    %1052 = vmatprep.subr.mxu0 0.0
    %1053 = vmatpush2.msra.mxu0 0.0
    %1054 = vmatprep.subr.mxu0 0.0
    %1055 = vmatpush2.msra.mxu0 0.0
    %1056 = vmatprep.subr.mxu0 0.0
    %1057 = vmatpush2.msra.mxu0 0.0
    %1058 = vmatprep.subr.mxu0 0.0
    %1059 = vmatpush2.msra.mxu0 0.0
    %1060 = vmatprep.subr.mxu0 0.0
    %1061 = vmatpush2.msra.mxu0 0.0
    %1062 = vmatprep.mubr.f32.mxu0 0.0
    %1063 = vmatmul.mubr.f32.gmra.mxu0 %v991
    %v1064 = vpop.f32.mrf.mxu0
    %v1065 = vadd.f32 0.0, %v1064
    %v1066 = vpop.f32.mrf.mxu0
    %v1067 = vadd.f32 0.0, %v1066
    %1068 = vdwg.mxu0
    %1069 = vmatprep.subr.mxu0 0.0
    %1070 = vmatpush1.msra.mxu0 %v490
    %1071 = vmatprep.subr.mxu0 0.0
    %1072 = vmatpush1.msra.mxu0 %v487
    %1073 = vmatprep.subr.mxu0 0.0
    %1074 = vmatpush1.msra.mxu0 %v484
    %1075 = vmatprep.subr.mxu0 0.0
    %1076 = vmatpush1.msra.mxu0 %v481
    %1077 = vmatprep.subr.mxu0 0.0
    %1078 = vmatpush1.msra.mxu0 %v478
    %1079 = vmatprep.subr.mxu0 0.0
    %1080 = vmatpush1.msra.mxu0 %v475
    %1081 = vmatprep.subr.mxu0 0.0
    %1082 = vmatpush1.msra.mxu0 %v472
    %1083 = vmatprep.subr.mxu0 0.0
    %1084 = vmatpush1.msra.mxu0 %v469
    %1085 = vmatprep.subr.mxu0 0.0
    %1086 = vmatpush1.msra.mxu0 %v466
    %1087 = vmatprep.subr.mxu0 0.0
    %1088 = vmatpush1.msra.mxu0 %v463
    %1089 = vmatprep.subr.mxu0 0.0
    %1090 = vmatpush1.msra.mxu0 %v460
    %1091 = vmatprep.subr.mxu0 0.0
    %1092 = vmatpush1.msra.mxu0 %v457
    %1093 = vmatprep.subr.mxu0 0.0
    %1094 = vmatpush1.msra.mxu0 %v454
    %1095 = vmatprep.subr.mxu0 0.0
    %1096 = vmatpush1.msra.mxu0 %v451
    %1097 = vmatprep.subr.mxu0 0.0
    %1098 = vmatpush1.msra.mxu0 %v448
    %1099 = vmatprep.subr.mxu0 0.0
    %1100 = vmatpush1.msra.mxu0 %v445
    %1101 = vmatprep.subr.mxu0 0.0
    %1102 = vmatpush2.msra.mxu0 0.0
    %1103 = vmatprep.subr.mxu0 0.0
    %1104 = vmatpush2.msra.mxu0 0.0
    %1105 = vmatprep.subr.mxu0 0.0
    %1106 = vmatpush2.msra.mxu0 0.0
    %1107 = vmatprep.subr.mxu0 0.0
    %1108 = vmatpush2.msra.mxu0 0.0
    %1109 = vmatprep.subr.mxu0 0.0
    %1110 = vmatpush2.msra.mxu0 0.0
    %1111 = vmatprep.subr.mxu0 0.0
    %1112 = vmatpush2.msra.mxu0 0.0
    %1113 = vmatprep.subr.mxu0 0.0
    %1114 = vmatpush2.msra.mxu0 0.0
    %1115 = vmatprep.subr.mxu0 0.0
    %1116 = vmatpush2.msra.mxu0 0.0
    %1117 = vmatprep.subr.mxu0 0.0
    %1118 = vmatpush2.msra.mxu0 0.0
    %1119 = vmatprep.subr.mxu0 0.0
    %1120 = vmatpush2.msra.mxu0 0.0
    %1121 = vmatprep.subr.mxu0 0.0
    %1122 = vmatpush2.msra.mxu0 0.0
    %1123 = vmatprep.subr.mxu0 0.0
    %1124 = vmatpush2.msra.mxu0 0.0
    %1125 = vmatprep.subr.mxu0 0.0
    %1126 = vmatpush2.msra.mxu0 0.0
    %1127 = vmatprep.subr.mxu0 0.0
    %1128 = vmatpush2.msra.mxu0 0.0
    %1129 = vmatprep.subr.mxu0 0.0
    %1130 = vmatpush2.msra.mxu0 0.0
    %1131 = vmatprep.subr.mxu0 0.0
    %1132 = vmatpush2.msra.mxu0 0.0
    %1133 = vmatprep.mubr.f32.mxu0 0.0
    %1134 = vmatmul.mubr.f32.gmra.mxu0 %v991
    %v1135 = vpop.f32.mrf.mxu0
    %v1136 = vadd.f32 0.0, %v1135
    %v1137 = vpop.f32.mrf.mxu0
    %1138 = vdwg.mxu0
    %v1139 = vadd.f32 %v995, %v1065
    %v1140 = vxor.u32 %v1139, 2147483648
    %v1141 = vmul.f32 %v1140, 1.442695
    %v1142 = vpow.pop %v1141
    %v1143 = vadd.f32 %v1142, 1.0
    %v1144 = vrcp.pop %v1143
    %v1145 = vmul.f32 1.0, %v1144
    %v1146 = vadd.f32 %v996, %v1067
    %v1147 = vxor.u32 %v1146, 2147483648
    %v1148 = vmul.f32 %v1147, 1.442695
    %v1149 = vpow.pop %v1148
    %v1150 = vadd.f32 %v1149, 1.0
    %v1151 = vrcp.pop %v1150
    %v1152 = vmul.f32 1.0, %v1151
    %v1153 = vadd.f32 %v1136, %v436
    %v1154 = vmul.f32 %v1145, %v1153
    %v1155 = vadd.f32 %v997, %v1154
    %v1156 = vtanh.pop %v1155
    %v1157 = vsub.f32 1.0, %v1152
    %v1158 = vmul.f32 %v1157, %v1156
    %v1159 = vmul.f32 %v1152, %v991
    %v1160 = vadd.f32 %v1158, %v1159
    %s1161 = smul.u32 4, 3
    %s1162 = smul.addr %s1161, 8
    %s1163 = scalar_lea.vmem [#allocation2], %s1162
    %v1164 = vld [vmem:[%s1163] sm:$0xff]
    %v1165 = vld [vmem:[%s1163 + $0x8] sm:$0xff]
    %v1166 = vld [vmem:[%s1163 + $0x10] sm:$0xff]
    %1167 = vmatprep.subr.mxu0 %v489
    %1168 = vmatpush1.msra.mxu0 %v488
    %1169 = vmatprep.subr.mxu0 %v486
    %1170 = vmatpush1.msra.mxu0 %v485
    %1171 = vmatprep.subr.mxu0 %v483
    %1172 = vmatpush1.msra.mxu0 %v482
    %1173 = vmatprep.subr.mxu0 %v480
    %1174 = vmatpush1.msra.mxu0 %v479
    %1175 = vmatprep.subr.mxu0 %v477
    %1176 = vmatpush1.msra.mxu0 %v476
    %1177 = vmatprep.subr.mxu0 %v474
    %1178 = vmatpush1.msra.mxu0 %v473
    %1179 = vmatprep.subr.mxu0 %v471
    %1180 = vmatpush1.msra.mxu0 %v470
    %1181 = vmatprep.subr.mxu0 %v468
    %1182 = vmatpush1.msra.mxu0 %v467
    %1183 = vmatprep.subr.mxu0 %v465
    %1184 = vmatpush1.msra.mxu0 %v464
    %1185 = vmatprep.subr.mxu0 %v462
    %1186 = vmatpush1.msra.mxu0 %v461
    %1187 = vmatprep.subr.mxu0 %v459
    %1188 = vmatpush1.msra.mxu0 %v458
    %1189 = vmatprep.subr.mxu0 %v456
    %1190 = vmatpush1.msra.mxu0 %v455
    %1191 = vmatprep.subr.mxu0 %v453
    %1192 = vmatpush1.msra.mxu0 %v452
    %1193 = vmatprep.subr.mxu0 %v450
    %1194 = vmatpush1.msra.mxu0 %v449
    %1195 = vmatprep.subr.mxu0 %v447
    %1196 = vmatpush1.msra.mxu0 %v446
    %1197 = vmatprep.subr.mxu0 %v444
    %1198 = vmatpush1.msra.mxu0 %v443
    %1199 = vmatprep.subr.mxu0 0.0
    %1200 = vmatpush2.msra.mxu0 0.0
    %1201 = vmatprep.subr.mxu0 0.0
    %1202 = vmatpush2.msra.mxu0 0.0
    %1203 = vmatprep.subr.mxu0 0.0
    %1204 = vmatpush2.msra.mxu0 0.0
    %1205 = vmatprep.subr.mxu0 0.0
    %1206 = vmatpush2.msra.mxu0 0.0
    %1207 = vmatprep.subr.mxu0 0.0
    %1208 = vmatpush2.msra.mxu0 0.0
    %1209 = vmatprep.subr.mxu0 0.0
    %1210 = vmatpush2.msra.mxu0 0.0
    %1211 = vmatprep.subr.mxu0 0.0
    %1212 = vmatpush2.msra.mxu0 0.0
    %1213 = vmatprep.subr.mxu0 0.0
    %1214 = vmatpush2.msra.mxu0 0.0
    %1215 = vmatprep.subr.mxu0 0.0
    %1216 = vmatpush2.msra.mxu0 0.0
    %1217 = vmatprep.subr.mxu0 0.0
    %1218 = vmatpush2.msra.mxu0 0.0
    %1219 = vmatprep.subr.mxu0 0.0
    %1220 = vmatpush2.msra.mxu0 0.0
    %1221 = vmatprep.subr.mxu0 0.0
    %1222 = vmatpush2.msra.mxu0 0.0
    %1223 = vmatprep.subr.mxu0 0.0
    %1224 = vmatpush2.msra.mxu0 0.0
    %1225 = vmatprep.subr.mxu0 0.0
    %1226 = vmatpush2.msra.mxu0 0.0
    %1227 = vmatprep.subr.mxu0 0.0
    %1228 = vmatpush2.msra.mxu0 0.0
    %1229 = vmatprep.subr.mxu0 0.0
    %1230 = vmatpush2.msra.mxu0 0.0
    %1231 = vmatprep.mubr.f32.mxu0 0.0
    %1232 = vmatmul.mubr.f32.gmra.mxu0 %v1160
    %v1233 = vpop.f32.mrf.mxu0
    %v1234 = vadd.f32 0.0, %v1233
    %v1235 = vpop.f32.mrf.mxu0
    %v1236 = vadd.f32 0.0, %v1235
    %1237 = vdwg.mxu0
    %1238 = vmatprep.subr.mxu0 0.0
    %1239 = vmatpush1.msra.mxu0 %v490
    %1240 = vmatprep.subr.mxu0 0.0
    %1241 = vmatpush1.msra.mxu0 %v487
    %1242 = vmatprep.subr.mxu0 0.0
    %1243 = vmatpush1.msra.mxu0 %v484
    %1244 = vmatprep.subr.mxu0 0.0
    %1245 = vmatpush1.msra.mxu0 %v481
    %1246 = vmatprep.subr.mxu0 0.0
    %1247 = vmatpush1.msra.mxu0 %v478
    %1248 = vmatprep.subr.mxu0 0.0
    %1249 = vmatpush1.msra.mxu0 %v475
    %1250 = vmatprep.subr.mxu0 0.0
    %1251 = vmatpush1.msra.mxu0 %v472
    %1252 = vmatprep.subr.mxu0 0.0
    %1253 = vmatpush1.msra.mxu0 %v469
    %1254 = vmatprep.subr.mxu0 0.0
    %1255 = vmatpush1.msra.mxu0 %v466
    %1256 = vmatprep.subr.mxu0 0.0
    %1257 = vmatpush1.msra.mxu0 %v463
    %1258 = vmatprep.subr.mxu0 0.0
    %1259 = vmatpush1.msra.mxu0 %v460
    %1260 = vmatprep.subr.mxu0 0.0
    %1261 = vmatpush1.msra.mxu0 %v457
    %1262 = vmatprep.subr.mxu0 0.0
    %1263 = vmatpush1.msra.mxu0 %v454
    %1264 = vmatprep.subr.mxu0 0.0
    %1265 = vmatpush1.msra.mxu0 %v451
    %1266 = vmatprep.subr.mxu0 0.0
    %1267 = vmatpush1.msra.mxu0 %v448
    %1268 = vmatprep.subr.mxu0 0.0
    %1269 = vmatpush1.msra.mxu0 %v445
    %1270 = vmatprep.subr.mxu0 0.0
    %1271 = vmatpush2.msra.mxu0 0.0
    %1272 = vmatprep.subr.mxu0 0.0
    %1273 = vmatpush2.msra.mxu0 0.0
    %1274 = vmatprep.subr.mxu0 0.0
    %1275 = vmatpush2.msra.mxu0 0.0
    %1276 = vmatprep.subr.mxu0 0.0
    %1277 = vmatpush2.msra.mxu0 0.0
    %1278 = vmatprep.subr.mxu0 0.0
    %1279 = vmatpush2.msra.mxu0 0.0
    %1280 = vmatprep.subr.mxu0 0.0
    %1281 = vmatpush2.msra.mxu0 0.0
    %1282 = vmatprep.subr.mxu0 0.0
    %1283 = vmatpush2.msra.mxu0 0.0
    %1284 = vmatprep.subr.mxu0 0.0
    %1285 = vmatpush2.msra.mxu0 0.0
    %1286 = vmatprep.subr.mxu0 0.0
    %1287 = vmatpush2.msra.mxu0 0.0
    %1288 = vmatprep.subr.mxu0 0.0
    %1289 = vmatpush2.msra.mxu0 0.0
    %1290 = vmatprep.subr.mxu0 0.0
    %1291 = vmatpush2.msra.mxu0 0.0
    %1292 = vmatprep.subr.mxu0 0.0
    %1293 = vmatpush2.msra.mxu0 0.0
    %1294 = vmatprep.subr.mxu0 0.0
    %1295 = vmatpush2.msra.mxu0 0.0
    %1296 = vmatprep.subr.mxu0 0.0
    %1297 = vmatpush2.msra.mxu0 0.0
    %1298 = vmatprep.subr.mxu0 0.0
    %1299 = vmatpush2.msra.mxu0 0.0
    %1300 = vmatprep.subr.mxu0 0.0
    %1301 = vmatpush2.msra.mxu0 0.0
    %1302 = vmatprep.mubr.f32.mxu0 0.0
    %1303 = vmatmul.mubr.f32.gmra.mxu0 %v1160
    %v1304 = vpop.f32.mrf.mxu0
    %v1305 = vadd.f32 0.0, %v1304
    %v1306 = vpop.f32.mrf.mxu0
    %1307 = vdwg.mxu0
    %v1308 = vadd.f32 %v1164, %v1234
    %v1309 = vxor.u32 %v1308, 2147483648
    %v1310 = vmul.f32 %v1309, 1.442695
    %v1311 = vpow.pop %v1310
    %v1312 = vadd.f32 %v1311, 1.0
    %v1313 = vrcp.pop %v1312
    %v1314 = vmul.f32 1.0, %v1313
    %v1315 = vadd.f32 %v1165, %v1236
    %v1316 = vxor.u32 %v1315, 2147483648
    %v1317 = vmul.f32 %v1316, 1.442695
    %v1318 = vpow.pop %v1317
    %v1319 = vadd.f32 %v1318, 1.0
    %v1320 = vrcp.pop %v1319
    %v1321 = vmul.f32 1.0, %v1320
    %v1322 = vadd.f32 %v1305, %v436
    %v1323 = vmul.f32 %v1314, %v1322
    %v1324 = vadd.f32 %v1166, %v1323
    %v1325 = vtanh.pop %v1324
    %v1326 = vsub.f32 1.0, %v1321
    %v1327 = vmul.f32 %v1326, %v1325
    %v1328 = vmul.f32 %v1321, %v1160
    %v1329 = vadd.f32 %v1327, %v1328
    %s1330 = smul.u32 5, 3
    %s1331 = smul.addr %s1330, 8
    %s1332 = scalar_lea.vmem [#allocation2], %s1331
    %v1333 = vld [vmem:[%s1332] sm:$0xff]
    %v1334 = vld [vmem:[%s1332 + $0x8] sm:$0xff]
    %v1335 = vld [vmem:[%s1332 + $0x10] sm:$0xff]
    %1336 = vmatprep.subr.mxu0 %v489
    %1337 = vmatpush1.msra.mxu0 %v488
    %1338 = vmatprep.subr.mxu0 %v486
    %1339 = vmatpush1.msra.mxu0 %v485
    %1340 = vmatprep.subr.mxu0 %v483
    %1341 = vmatpush1.msra.mxu0 %v482
    %1342 = vmatprep.subr.mxu0 %v480
    %1343 = vmatpush1.msra.mxu0 %v479
    %1344 = vmatprep.subr.mxu0 %v477
    %1345 = vmatpush1.msra.mxu0 %v476
    %1346 = vmatprep.subr.mxu0 %v474
    %1347 = vmatpush1.msra.mxu0 %v473
    %1348 = vmatprep.subr.mxu0 %v471
    %1349 = vmatpush1.msra.mxu0 %v470
    %1350 = vmatprep.subr.mxu0 %v468
    %1351 = vmatpush1.msra.mxu0 %v467
    %1352 = vmatprep.subr.mxu0 %v465
    %1353 = vmatpush1.msra.mxu0 %v464
    %1354 = vmatprep.subr.mxu0 %v462
    %1355 = vmatpush1.msra.mxu0 %v461
    %1356 = vmatprep.subr.mxu0 %v459
    %1357 = vmatpush1.msra.mxu0 %v458
    %1358 = vmatprep.subr.mxu0 %v456
    %1359 = vmatpush1.msra.mxu0 %v455
    %1360 = vmatprep.subr.mxu0 %v453
    %1361 = vmatpush1.msra.mxu0 %v452
    %1362 = vmatprep.subr.mxu0 %v450
    %1363 = vmatpush1.msra.mxu0 %v449
    %1364 = vmatprep.subr.mxu0 %v447
    %1365 = vmatpush1.msra.mxu0 %v446
    %1366 = vmatprep.subr.mxu0 %v444
    %1367 = vmatpush1.msra.mxu0 %v443
    %1368 = vmatprep.subr.mxu0 0.0
    %1369 = vmatpush2.msra.mxu0 0.0
    %1370 = vmatprep.subr.mxu0 0.0
    %1371 = vmatpush2.msra.mxu0 0.0
    %1372 = vmatprep.subr.mxu0 0.0
    %1373 = vmatpush2.msra.mxu0 0.0
    %1374 = vmatprep.subr.mxu0 0.0
    %1375 = vmatpush2.msra.mxu0 0.0
    %1376 = vmatprep.subr.mxu0 0.0
    %1377 = vmatpush2.msra.mxu0 0.0
    %1378 = vmatprep.subr.mxu0 0.0
    %1379 = vmatpush2.msra.mxu0 0.0
    %1380 = vmatprep.subr.mxu0 0.0
    %1381 = vmatpush2.msra.mxu0 0.0
    %1382 = vmatprep.subr.mxu0 0.0
    %1383 = vmatpush2.msra.mxu0 0.0
    %1384 = vmatprep.subr.mxu0 0.0
    %1385 = vmatpush2.msra.mxu0 0.0
    %1386 = vmatprep.subr.mxu0 0.0
    %1387 = vmatpush2.msra.mxu0 0.0
    %1388 = vmatprep.subr.mxu0 0.0
    %1389 = vmatpush2.msra.mxu0 0.0
    %1390 = vmatprep.subr.mxu0 0.0
    %1391 = vmatpush2.msra.mxu0 0.0
    %1392 = vmatprep.subr.mxu0 0.0
    %1393 = vmatpush2.msra.mxu0 0.0
    %1394 = vmatprep.subr.mxu0 0.0
    %1395 = vmatpush2.msra.mxu0 0.0
    %1396 = vmatprep.subr.mxu0 0.0
    %1397 = vmatpush2.msra.mxu0 0.0
    %1398 = vmatprep.subr.mxu0 0.0
    %1399 = vmatpush2.msra.mxu0 0.0
    %1400 = vmatprep.mubr.f32.mxu0 0.0
    %1401 = vmatmul.mubr.f32.gmra.mxu0 %v1329
    %v1402 = vpop.f32.mrf.mxu0
    %v1403 = vadd.f32 0.0, %v1402
    %v1404 = vpop.f32.mrf.mxu0
    %v1405 = vadd.f32 0.0, %v1404
    %1406 = vdwg.mxu0
    %1407 = vmatprep.subr.mxu0 0.0
    %1408 = vmatpush1.msra.mxu0 %v490
    %1409 = vmatprep.subr.mxu0 0.0
    %1410 = vmatpush1.msra.mxu0 %v487
    %1411 = vmatprep.subr.mxu0 0.0
    %1412 = vmatpush1.msra.mxu0 %v484
    %1413 = vmatprep.subr.mxu0 0.0
    %1414 = vmatpush1.msra.mxu0 %v481
    %1415 = vmatprep.subr.mxu0 0.0
    %1416 = vmatpush1.msra.mxu0 %v478
    %1417 = vmatprep.subr.mxu0 0.0
    %1418 = vmatpush1.msra.mxu0 %v475
    %1419 = vmatprep.subr.mxu0 0.0
    %1420 = vmatpush1.msra.mxu0 %v472
    %1421 = vmatprep.subr.mxu0 0.0
    %1422 = vmatpush1.msra.mxu0 %v469
    %1423 = vmatprep.subr.mxu0 0.0
    %1424 = vmatpush1.msra.mxu0 %v466
    %1425 = vmatprep.subr.mxu0 0.0
    %1426 = vmatpush1.msra.mxu0 %v463
    %1427 = vmatprep.subr.mxu0 0.0
    %1428 = vmatpush1.msra.mxu0 %v460
    %1429 = vmatprep.subr.mxu0 0.0
    %1430 = vmatpush1.msra.mxu0 %v457
    %1431 = vmatprep.subr.mxu0 0.0
    %1432 = vmatpush1.msra.mxu0 %v454
    %1433 = vmatprep.subr.mxu0 0.0
    %1434 = vmatpush1.msra.mxu0 %v451
    %1435 = vmatprep.subr.mxu0 0.0
    %1436 = vmatpush1.msra.mxu0 %v448
    %1437 = vmatprep.subr.mxu0 0.0
    %1438 = vmatpush1.msra.mxu0 %v445
    %1439 = vmatprep.subr.mxu0 0.0
    %1440 = vmatpush2.msra.mxu0 0.0
    %1441 = vmatprep.subr.mxu0 0.0
    %1442 = vmatpush2.msra.mxu0 0.0
    %1443 = vmatprep.subr.mxu0 0.0
    %1444 = vmatpush2.msra.mxu0 0.0
    %1445 = vmatprep.subr.mxu0 0.0
    %1446 = vmatpush2.msra.mxu0 0.0
    %1447 = vmatprep.subr.mxu0 0.0
    %1448 = vmatpush2.msra.mxu0 0.0
    %1449 = vmatprep.subr.mxu0 0.0
    %1450 = vmatpush2.msra.mxu0 0.0
    %1451 = vmatprep.subr.mxu0 0.0
    %1452 = vmatpush2.msra.mxu0 0.0
    %1453 = vmatprep.subr.mxu0 0.0
    %1454 = vmatpush2.msra.mxu0 0.0
    %1455 = vmatprep.subr.mxu0 0.0
    %1456 = vmatpush2.msra.mxu0 0.0
    %1457 = vmatprep.subr.mxu0 0.0
    %1458 = vmatpush2.msra.mxu0 0.0
    %1459 = vmatprep.subr.mxu0 0.0
    %1460 = vmatpush2.msra.mxu0 0.0
    %1461 = vmatprep.subr.mxu0 0.0
    %1462 = vmatpush2.msra.mxu0 0.0
    %1463 = vmatprep.subr.mxu0 0.0
    %1464 = vmatpush2.msra.mxu0 0.0
    %1465 = vmatprep.subr.mxu0 0.0
    %1466 = vmatpush2.msra.mxu0 0.0
    %1467 = vmatprep.subr.mxu0 0.0
    %1468 = vmatpush2.msra.mxu0 0.0
    %1469 = vmatprep.subr.mxu0 0.0
    %1470 = vmatpush2.msra.mxu0 0.0
    %1471 = vmatprep.mubr.f32.mxu0 0.0
    %1472 = vmatmul.mubr.f32.gmra.mxu0 %v1329
    %v1473 = vpop.f32.mrf.mxu0
    %v1474 = vadd.f32 0.0, %v1473
    %v1475 = vpop.f32.mrf.mxu0
    %1476 = vdwg.mxu0
    %v1477 = vadd.f32 %v1333, %v1403
    %v1478 = vxor.u32 %v1477, 2147483648
    %v1479 = vmul.f32 %v1478, 1.442695
    %v1480 = vpow.pop %v1479
    %v1481 = vadd.f32 %v1480, 1.0
    %v1482 = vrcp.pop %v1481
    %v1483 = vmul.f32 1.0, %v1482
    %v1484 = vadd.f32 %v1334, %v1405
    %v1485 = vxor.u32 %v1484, 2147483648
    %v1486 = vmul.f32 %v1485, 1.442695
    %v1487 = vpow.pop %v1486
    %v1488 = vadd.f32 %v1487, 1.0
    %v1489 = vrcp.pop %v1488
    %v1490 = vmul.f32 1.0, %v1489
    %v1491 = vadd.f32 %v1474, %v436
    %v1492 = vmul.f32 %v1483, %v1491
    %v1493 = vadd.f32 %v1335, %v1492
    %v1494 = vtanh.pop %v1493
    %v1495 = vsub.f32 1.0, %v1490
    %v1496 = vmul.f32 %v1495, %v1494
    %v1497 = vmul.f32 %v1490, %v1329
    %v1498 = vadd.f32 %v1496, %v1497
    %s1499 = smul.u32 6, 3
    %s1500 = smul.addr %s1499, 8
    %s1501 = scalar_lea.vmem [#allocation2], %s1500
    %v1502 = vld [vmem:[%s1501] sm:$0xff]
    %v1503 = vld [vmem:[%s1501 + $0x8] sm:$0xff]
    %v1504 = vld [vmem:[%s1501 + $0x10] sm:$0xff]
    %1505 = vmatprep.subr.mxu0 %v489
    %1506 = vmatpush1.msra.mxu0 %v488
    %1507 = vmatprep.subr.mxu0 %v486
    %1508 = vmatpush1.msra.mxu0 %v485
    %1509 = vmatprep.subr.mxu0 %v483
    %1510 = vmatpush1.msra.mxu0 %v482
    %1511 = vmatprep.subr.mxu0 %v480
    %1512 = vmatpush1.msra.mxu0 %v479
    %1513 = vmatprep.subr.mxu0 %v477
    %1514 = vmatpush1.msra.mxu0 %v476
    %1515 = vmatprep.subr.mxu0 %v474
    %1516 = vmatpush1.msra.mxu0 %v473
    %1517 = vmatprep.subr.mxu0 %v471
    %1518 = vmatpush1.msra.mxu0 %v470
    %1519 = vmatprep.subr.mxu0 %v468
    %1520 = vmatpush1.msra.mxu0 %v467
    %1521 = vmatprep.subr.mxu0 %v465
    %1522 = vmatpush1.msra.mxu0 %v464
    %1523 = vmatprep.subr.mxu0 %v462
    %1524 = vmatpush1.msra.mxu0 %v461
    %1525 = vmatprep.subr.mxu0 %v459
    %1526 = vmatpush1.msra.mxu0 %v458
    %1527 = vmatprep.subr.mxu0 %v456
    %1528 = vmatpush1.msra.mxu0 %v455
    %1529 = vmatprep.subr.mxu0 %v453
    %1530 = vmatpush1.msra.mxu0 %v452
    %1531 = vmatprep.subr.mxu0 %v450
    %1532 = vmatpush1.msra.mxu0 %v449
    %1533 = vmatprep.subr.mxu0 %v447
    %1534 = vmatpush1.msra.mxu0 %v446
    %1535 = vmatprep.subr.mxu0 %v444
    %1536 = vmatpush1.msra.mxu0 %v443
    %1537 = vmatprep.subr.mxu0 0.0
    %1538 = vmatpush2.msra.mxu0 0.0
    %1539 = vmatprep.subr.mxu0 0.0
    %1540 = vmatpush2.msra.mxu0 0.0
    %1541 = vmatprep.subr.mxu0 0.0
    %1542 = vmatpush2.msra.mxu0 0.0
    %1543 = vmatprep.subr.mxu0 0.0
    %1544 = vmatpush2.msra.mxu0 0.0
    %1545 = vmatprep.subr.mxu0 0.0
    %1546 = vmatpush2.msra.mxu0 0.0
    %1547 = vmatprep.subr.mxu0 0.0
    %1548 = vmatpush2.msra.mxu0 0.0
    %1549 = vmatprep.subr.mxu0 0.0
    %1550 = vmatpush2.msra.mxu0 0.0
    %1551 = vmatprep.subr.mxu0 0.0
    %1552 = vmatpush2.msra.mxu0 0.0
    %1553 = vmatprep.subr.mxu0 0.0
    %1554 = vmatpush2.msra.mxu0 0.0
    %1555 = vmatprep.subr.mxu0 0.0
    %1556 = vmatpush2.msra.mxu0 0.0
    %1557 = vmatprep.subr.mxu0 0.0
    %1558 = vmatpush2.msra.mxu0 0.0
    %1559 = vmatprep.subr.mxu0 0.0
    %1560 = vmatpush2.msra.mxu0 0.0
    %1561 = vmatprep.subr.mxu0 0.0
    %1562 = vmatpush2.msra.mxu0 0.0
    %1563 = vmatprep.subr.mxu0 0.0
    %1564 = vmatpush2.msra.mxu0 0.0
    %1565 = vmatprep.subr.mxu0 0.0
    %1566 = vmatpush2.msra.mxu0 0.0
    %1567 = vmatprep.subr.mxu0 0.0
    %1568 = vmatpush2.msra.mxu0 0.0
    %1569 = vmatprep.mubr.f32.mxu0 0.0
    %1570 = vmatmul.mubr.f32.gmra.mxu0 %v1498
    %v1571 = vpop.f32.mrf.mxu0
    %v1572 = vadd.f32 0.0, %v1571
    %v1573 = vpop.f32.mrf.mxu0
    %v1574 = vadd.f32 0.0, %v1573
    %1575 = vdwg.mxu0
    %1576 = vmatprep.subr.mxu0 0.0
    %1577 = vmatpush1.msra.mxu0 %v490
    %1578 = vmatprep.subr.mxu0 0.0
    %1579 = vmatpush1.msra.mxu0 %v487
    %1580 = vmatprep.subr.mxu0 0.0
    %1581 = vmatpush1.msra.mxu0 %v484
    %1582 = vmatprep.subr.mxu0 0.0
    %1583 = vmatpush1.msra.mxu0 %v481
    %1584 = vmatprep.subr.mxu0 0.0
    %1585 = vmatpush1.msra.mxu0 %v478
    %1586 = vmatprep.subr.mxu0 0.0
    %1587 = vmatpush1.msra.mxu0 %v475
    %1588 = vmatprep.subr.mxu0 0.0
    %1589 = vmatpush1.msra.mxu0 %v472
    %1590 = vmatprep.subr.mxu0 0.0
    %1591 = vmatpush1.msra.mxu0 %v469
    %1592 = vmatprep.subr.mxu0 0.0
    %1593 = vmatpush1.msra.mxu0 %v466
    %1594 = vmatprep.subr.mxu0 0.0
    %1595 = vmatpush1.msra.mxu0 %v463
    %1596 = vmatprep.subr.mxu0 0.0
    %1597 = vmatpush1.msra.mxu0 %v460
    %1598 = vmatprep.subr.mxu0 0.0
    %1599 = vmatpush1.msra.mxu0 %v457
    %1600 = vmatprep.subr.mxu0 0.0
    %1601 = vmatpush1.msra.mxu0 %v454
    %1602 = vmatprep.subr.mxu0 0.0
    %1603 = vmatpush1.msra.mxu0 %v451
    %1604 = vmatprep.subr.mxu0 0.0
    %1605 = vmatpush1.msra.mxu0 %v448
    %1606 = vmatprep.subr.mxu0 0.0
    %1607 = vmatpush1.msra.mxu0 %v445
    %1608 = vmatprep.subr.mxu0 0.0
    %1609 = vmatpush2.msra.mxu0 0.0
    %1610 = vmatprep.subr.mxu0 0.0
    %1611 = vmatpush2.msra.mxu0 0.0
    %1612 = vmatprep.subr.mxu0 0.0
    %1613 = vmatpush2.msra.mxu0 0.0
    %1614 = vmatprep.subr.mxu0 0.0
    %1615 = vmatpush2.msra.mxu0 0.0
    %1616 = vmatprep.subr.mxu0 0.0
    %1617 = vmatpush2.msra.mxu0 0.0
    %1618 = vmatprep.subr.mxu0 0.0
    %1619 = vmatpush2.msra.mxu0 0.0
    %1620 = vmatprep.subr.mxu0 0.0
    %1621 = vmatpush2.msra.mxu0 0.0
    %1622 = vmatprep.subr.mxu0 0.0
    %1623 = vmatpush2.msra.mxu0 0.0
    %1624 = vmatprep.subr.mxu0 0.0
    %1625 = vmatpush2.msra.mxu0 0.0
    %1626 = vmatprep.subr.mxu0 0.0
    %1627 = vmatpush2.msra.mxu0 0.0
    %1628 = vmatprep.subr.mxu0 0.0
    %1629 = vmatpush2.msra.mxu0 0.0
    %1630 = vmatprep.subr.mxu0 0.0
    %1631 = vmatpush2.msra.mxu0 0.0
    %1632 = vmatprep.subr.mxu0 0.0
    %1633 = vmatpush2.msra.mxu0 0.0
    %1634 = vmatprep.subr.mxu0 0.0
    %1635 = vmatpush2.msra.mxu0 0.0
    %1636 = vmatprep.subr.mxu0 0.0
    %1637 = vmatpush2.msra.mxu0 0.0
    %1638 = vmatprep.subr.mxu0 0.0
    %1639 = vmatpush2.msra.mxu0 0.0
    %1640 = vmatprep.mubr.f32.mxu0 0.0
    %1641 = vmatmul.mubr.f32.gmra.mxu0 %v1498
    %v1642 = vpop.f32.mrf.mxu0
    %v1643 = vadd.f32 0.0, %v1642
    %v1644 = vpop.f32.mrf.mxu0
    %1645 = vdwg.mxu0
    %v1646 = vadd.f32 %v1502, %v1572
    %v1647 = vxor.u32 %v1646, 2147483648
    %v1648 = vmul.f32 %v1647, 1.442695
    %v1649 = vpow.pop %v1648
    %v1650 = vadd.f32 %v1649, 1.0
    %v1651 = vrcp.pop %v1650
    %v1652 = vmul.f32 1.0, %v1651
    %v1653 = vadd.f32 %v1503, %v1574
    %v1654 = vxor.u32 %v1653, 2147483648
    %v1655 = vmul.f32 %v1654, 1.442695
    %v1656 = vpow.pop %v1655
    %v1657 = vadd.f32 %v1656, 1.0
    %v1658 = vrcp.pop %v1657
    %v1659 = vmul.f32 1.0, %v1658
    %v1660 = vadd.f32 %v1643, %v436
    %v1661 = vmul.f32 %v1652, %v1660
    %v1662 = vadd.f32 %v1504, %v1661
    %v1663 = vtanh.pop %v1662
    %v1664 = vsub.f32 1.0, %v1659
    %v1665 = vmul.f32 %v1664, %v1663
    %v1666 = vmul.f32 %v1659, %v1498
    %v1667 = vadd.f32 %v1665, %v1666
    %s1668 = smul.u32 7, 3
    %s1669 = smul.addr %s1668, 8
    %s1670 = scalar_lea.vmem [#allocation2], %s1669
    %v1671 = vld [vmem:[%s1670] sm:$0xff]
    %v1672 = vld [vmem:[%s1670 + $0x8] sm:$0xff]
    %v1673 = vld [vmem:[%s1670 + $0x10] sm:$0xff]
    %1674 = vmatprep.subr.mxu0 %v489
    %1675 = vmatpush1.msra.mxu0 %v488
    %1676 = vmatprep.subr.mxu0 %v486
    %1677 = vmatpush1.msra.mxu0 %v485
    %1678 = vmatprep.subr.mxu0 %v483
    %1679 = vmatpush1.msra.mxu0 %v482
    %1680 = vmatprep.subr.mxu0 %v480
    %1681 = vmatpush1.msra.mxu0 %v479
    %1682 = vmatprep.subr.mxu0 %v477
    %1683 = vmatpush1.msra.mxu0 %v476
    %1684 = vmatprep.subr.mxu0 %v474
    %1685 = vmatpush1.msra.mxu0 %v473
    %1686 = vmatprep.subr.mxu0 %v471
    %1687 = vmatpush1.msra.mxu0 %v470
    %1688 = vmatprep.subr.mxu0 %v468
    %1689 = vmatpush1.msra.mxu0 %v467
    %1690 = vmatprep.subr.mxu0 %v465
    %1691 = vmatpush1.msra.mxu0 %v464
    %1692 = vmatprep.subr.mxu0 %v462
    %1693 = vmatpush1.msra.mxu0 %v461
    %1694 = vmatprep.subr.mxu0 %v459
    %1695 = vmatpush1.msra.mxu0 %v458
    %1696 = vmatprep.subr.mxu0 %v456
    %1697 = vmatpush1.msra.mxu0 %v455
    %1698 = vmatprep.subr.mxu0 %v453
    %1699 = vmatpush1.msra.mxu0 %v452
    %1700 = vmatprep.subr.mxu0 %v450
    %1701 = vmatpush1.msra.mxu0 %v449
    %1702 = vmatprep.subr.mxu0 %v447
    %1703 = vmatpush1.msra.mxu0 %v446
    %1704 = vmatprep.subr.mxu0 %v444
    %1705 = vmatpush1.msra.mxu0 %v443
    %1706 = vmatprep.subr.mxu0 0.0
    %1707 = vmatpush2.msra.mxu0 0.0
    %1708 = vmatprep.subr.mxu0 0.0
    %1709 = vmatpush2.msra.mxu0 0.0
    %1710 = vmatprep.subr.mxu0 0.0
    %1711 = vmatpush2.msra.mxu0 0.0
    %1712 = vmatprep.subr.mxu0 0.0
    %1713 = vmatpush2.msra.mxu0 0.0
    %1714 = vmatprep.subr.mxu0 0.0
    %1715 = vmatpush2.msra.mxu0 0.0
    %1716 = vmatprep.subr.mxu0 0.0
    %1717 = vmatpush2.msra.mxu0 0.0
    %1718 = vmatprep.subr.mxu0 0.0
    %1719 = vmatpush2.msra.mxu0 0.0
    %1720 = vmatprep.subr.mxu0 0.0
    %1721 = vmatpush2.msra.mxu0 0.0
    %1722 = vmatprep.subr.mxu0 0.0
    %1723 = vmatpush2.msra.mxu0 0.0
    %1724 = vmatprep.subr.mxu0 0.0
    %1725 = vmatpush2.msra.mxu0 0.0
    %1726 = vmatprep.subr.mxu0 0.0
    %1727 = vmatpush2.msra.mxu0 0.0
    %1728 = vmatprep.subr.mxu0 0.0
    %1729 = vmatpush2.msra.mxu0 0.0
    %1730 = vmatprep.subr.mxu0 0.0
    %1731 = vmatpush2.msra.mxu0 0.0
    %1732 = vmatprep.subr.mxu0 0.0
    %1733 = vmatpush2.msra.mxu0 0.0
    %1734 = vmatprep.subr.mxu0 0.0
    %1735 = vmatpush2.msra.mxu0 0.0
    %1736 = vmatprep.subr.mxu0 0.0
    %1737 = vmatpush2.msra.mxu0 0.0
    %1738 = vmatprep.mubr.f32.mxu0 0.0
    %1739 = vmatmul.mubr.f32.gmra.mxu0 %v1667
    %v1740 = vpop.f32.mrf.mxu0
    %v1741 = vadd.f32 0.0, %v1740
    %v1742 = vpop.f32.mrf.mxu0
    %v1743 = vadd.f32 0.0, %v1742
    %1744 = vdwg.mxu0
    %1745 = vmatprep.subr.mxu0 0.0
    %1746 = vmatpush1.msra.mxu0 %v490
    %1747 = vmatprep.subr.mxu0 0.0
    %1748 = vmatpush1.msra.mxu0 %v487
    %1749 = vmatprep.subr.mxu0 0.0
    %1750 = vmatpush1.msra.mxu0 %v484
    %1751 = vmatprep.subr.mxu0 0.0
    %1752 = vmatpush1.msra.mxu0 %v481
    %1753 = vmatprep.subr.mxu0 0.0
    %1754 = vmatpush1.msra.mxu0 %v478
    %1755 = vmatprep.subr.mxu0 0.0
    %1756 = vmatpush1.msra.mxu0 %v475
    %1757 = vmatprep.subr.mxu0 0.0
    %1758 = vmatpush1.msra.mxu0 %v472
    %1759 = vmatprep.subr.mxu0 0.0
    %1760 = vmatpush1.msra.mxu0 %v469
    %1761 = vmatprep.subr.mxu0 0.0
    %1762 = vmatpush1.msra.mxu0 %v466
    %1763 = vmatprep.subr.mxu0 0.0
    %1764 = vmatpush1.msra.mxu0 %v463
    %1765 = vmatprep.subr.mxu0 0.0
    %1766 = vmatpush1.msra.mxu0 %v460
    %1767 = vmatprep.subr.mxu0 0.0
    %1768 = vmatpush1.msra.mxu0 %v457
    %1769 = vmatprep.subr.mxu0 0.0
    %1770 = vmatpush1.msra.mxu0 %v454
    %1771 = vmatprep.subr.mxu0 0.0
    %1772 = vmatpush1.msra.mxu0 %v451
    %1773 = vmatprep.subr.mxu0 0.0
    %1774 = vmatpush1.msra.mxu0 %v448
    %1775 = vmatprep.subr.mxu0 0.0
    %1776 = vmatpush1.msra.mxu0 %v445
    %1777 = vmatprep.subr.mxu0 0.0
    %1778 = vmatpush2.msra.mxu0 0.0
    %1779 = vmatprep.subr.mxu0 0.0
    %1780 = vmatpush2.msra.mxu0 0.0
    %1781 = vmatprep.subr.mxu0 0.0
    %1782 = vmatpush2.msra.mxu0 0.0
    %1783 = vmatprep.subr.mxu0 0.0
    %1784 = vmatpush2.msra.mxu0 0.0
    %1785 = vmatprep.subr.mxu0 0.0
    %1786 = vmatpush2.msra.mxu0 0.0
    %1787 = vmatprep.subr.mxu0 0.0
    %1788 = vmatpush2.msra.mxu0 0.0
    %1789 = vmatprep.subr.mxu0 0.0
    %1790 = vmatpush2.msra.mxu0 0.0
    %1791 = vmatprep.subr.mxu0 0.0
    %1792 = vmatpush2.msra.mxu0 0.0
    %1793 = vmatprep.subr.mxu0 0.0
    %1794 = vmatpush2.msra.mxu0 0.0
    %1795 = vmatprep.subr.mxu0 0.0
    %1796 = vmatpush2.msra.mxu0 0.0
    %1797 = vmatprep.subr.mxu0 0.0
    %1798 = vmatpush2.msra.mxu0 0.0
    %1799 = vmatprep.subr.mxu0 0.0
    %1800 = vmatpush2.msra.mxu0 0.0
    %1801 = vmatprep.subr.mxu0 0.0
    %1802 = vmatpush2.msra.mxu0 0.0
    %1803 = vmatprep.subr.mxu0 0.0
    %1804 = vmatpush2.msra.mxu0 0.0
    %1805 = vmatprep.subr.mxu0 0.0
    %1806 = vmatpush2.msra.mxu0 0.0
    %1807 = vmatprep.subr.mxu0 0.0
    %1808 = vmatpush2.msra.mxu0 0.0
    %1809 = vmatprep.mubr.f32.mxu0 0.0
    %1810 = vmatmul.mubr.f32.gmra.mxu0 %v1667
    %v1811 = vpop.f32.mrf.mxu0
    %v1812 = vadd.f32 0.0, %v1811
    %v1813 = vpop.f32.mrf.mxu0
    %1814 = vdwg.mxu0
    %v1815 = vadd.f32 %v1671, %v1741
    %v1816 = vxor.u32 %v1815, 2147483648
    %v1817 = vmul.f32 %v1816, 1.442695
    %v1818 = vpow.pop %v1817
    %v1819 = vadd.f32 %v1818, 1.0
    %v1820 = vrcp.pop %v1819
    %v1821 = vmul.f32 1.0, %v1820
    %v1822 = vadd.f32 %v1672, %v1743
    %v1823 = vxor.u32 %v1822, 2147483648
    %v1824 = vmul.f32 %v1823, 1.442695
    %v1825 = vpow.pop %v1824
    %v1826 = vadd.f32 %v1825, 1.0
    %v1827 = vrcp.pop %v1826
    %v1828 = vmul.f32 1.0, %v1827
    %v1829 = vadd.f32 %v1812, %v436
    %v1830 = vmul.f32 %v1821, %v1829
    %v1831 = vadd.f32 %v1673, %v1830
    %v1832 = vtanh.pop %v1831
    %v1833 = vsub.f32 1.0, %v1828
    %v1834 = vmul.f32 %v1833, %v1832
    %v1835 = vmul.f32 %v1828, %v1667
    %v1836 = vadd.f32 %v1834, %v1835
    %v1837 = vld [vmem:[%s7] sm:$0xff]
    %v1838 = vld [vmem:[%s8] sm:$0xff]
    %v1839 = vcvt.s32.f32 %v97
    %v1840 = vmul.f32 %v1839, 1e-07
    %v1841 = vld [vmem:[%s1] sm:$0xff]
    %1842 = vset.pattern.permute.xlu0 0
    %1843 = vperm.xlu0 %1842, %v1841
    %v1844 = vpop.permute.xlu0 %1843
    %vm1845 = vcmp.eq.s32.totalorder %v1844, %v97
    %v1846 = vsel %vm1845, 1, 0
    %v1847 = vcvt.s32.f32 %v1846
    %v1848 = vld [vmem:[#allocation8] sm:$0xff]
    %v1849 = vld [vmem:[#allocation8 + $0x8] sm:$0xff]
    %v1850 = vld [vmem:[#allocation8 + $0x10] sm:$0xff]
    %v1851 = vld [vmem:[#allocation8 + $0x18] sm:$0xff]
    %v1852 = vld [vmem:[#allocation8 + $0x20] sm:$0xff]
    %v1853 = vld [vmem:[#allocation8 + $0x28] sm:$0xff]
    %v1854 = vld [vmem:[#allocation8 + $0x30] sm:$0xff]
    %v1855 = vld [vmem:[#allocation8 + $0x38] sm:$0xff]
    %v1856 = vld [vmem:[#allocation8 + $0x40] sm:$0xff]
    %v1857 = vld [vmem:[#allocation8 + $0x48] sm:$0xff]
    %v1858 = vld [vmem:[#allocation8 + $0x50] sm:$0xff]
    %v1859 = vld [vmem:[#allocation8 + $0x58] sm:$0xff]
    %v1860 = vld [vmem:[#allocation8 + $0x60] sm:$0xff]
    %v1861 = vld [vmem:[#allocation8 + $0x68] sm:$0xff]
    %v1862 = vld [vmem:[#allocation8 + $0x70] sm:$0xff]
    %v1863 = vld [vmem:[#allocation8 + $0x78] sm:$0xff]
    %v1864 = vld [vmem:[#allocation8 + $0x80] sm:$0xff]
    %v1865 = vld [vmem:[#allocation8 + $0x88] sm:$0xff]
    %v1866 = vld [vmem:[#allocation8 + $0x90] sm:$0xff]
    %v1867 = vld [vmem:[#allocation8 + $0x98] sm:$0xff]
    %v1868 = vld [vmem:[#allocation8 + $0xa0] sm:$0xff]
    %v1869 = vld [vmem:[#allocation8 + $0xa8] sm:$0xff]
    %v1870 = vld [vmem:[#allocation8 + $0xb0] sm:$0xff]
    %v1871 = vld [vmem:[#allocation8 + $0xb8] sm:$0xff]
    %v1872 = vld [vmem:[#allocation8 + $0xc0] sm:$0xff]
    %v1873 = vld [vmem:[#allocation8 + $0xc8] sm:$0xff]
    %v1874 = vld [vmem:[#allocation8 + $0xd0] sm:$0xff]
    %v1875 = vld [vmem:[#allocation8 + $0xd8] sm:$0xff]
    %v1876 = vld [vmem:[#allocation8 + $0xe0] sm:$0xff]
    %v1877 = vld [vmem:[#allocation8 + $0xe8] sm:$0xff]
    %v1878 = vld [vmem:[#allocation8 + $0xf0] sm:$0xff]
    %v1879 = vld [vmem:[#allocation8 + $0xf8] sm:$0xff]
    %v1880 = vld [vmem:[#allocation8 + $0x100] sm:$0xff]
    %v1881 = vld [vmem:[#allocation8 + $0x108] sm:$0xff]
    %v1882 = vld [vmem:[#allocation8 + $0x110] sm:$0xff]
    %v1883 = vld [vmem:[#allocation8 + $0x118] sm:$0xff]
    %v1884 = vld [vmem:[#allocation8 + $0x120] sm:$0xff]
    %v1885 = vld [vmem:[#allocation8 + $0x128] sm:$0xff]
    %v1886 = vld [vmem:[#allocation8 + $0x130] sm:$0xff]
    %v1887 = vld [vmem:[#allocation8 + $0x138] sm:$0xff]
    %v1888 = vld [vmem:[#allocation8 + $0x140] sm:$0xff]
    %v1889 = vld [vmem:[#allocation8 + $0x148] sm:$0xff]
    %v1890 = vld [vmem:[#allocation8 + $0x150] sm:$0xff]
    %v1891 = vld [vmem:[#allocation8 + $0x158] sm:$0xff]
    %v1892 = vld [vmem:[#allocation8 + $0x160] sm:$0xff]
    %v1893 = vld [vmem:[#allocation8 + $0x168] sm:$0xff]
    %v1894 = vld [vmem:[#allocation8 + $0x170] sm:$0xff]
    %v1895 = vld [vmem:[#allocation8 + $0x178] sm:$0xff]
    %1896 = vmatprep.subr.mxu0 %v1894
    %1897 = vmatpush1.msra.mxu0 %v1893
    %1898 = vmatprep.subr.mxu0 %v1891
    %1899 = vmatpush1.msra.mxu0 %v1890
    %1900 = vmatprep.subr.mxu0 %v1888
    %1901 = vmatpush1.msra.mxu0 %v1887
    %1902 = vmatprep.subr.mxu0 %v1885
    %1903 = vmatpush1.msra.mxu0 %v1884
    %1904 = vmatprep.subr.mxu0 %v1882
    %1905 = vmatpush1.msra.mxu0 %v1881
    %1906 = vmatprep.subr.mxu0 %v1879
    %1907 = vmatpush1.msra.mxu0 %v1878
    %1908 = vmatprep.subr.mxu0 %v1876
    %1909 = vmatpush1.msra.mxu0 %v1875
    %1910 = vmatprep.subr.mxu0 %v1873
    %1911 = vmatpush1.msra.mxu0 %v1872
    %1912 = vmatprep.subr.mxu0 %v1870
    %1913 = vmatpush1.msra.mxu0 %v1869
    %1914 = vmatprep.subr.mxu0 %v1867
    %1915 = vmatpush1.msra.mxu0 %v1866
    %1916 = vmatprep.subr.mxu0 %v1864
    %1917 = vmatpush1.msra.mxu0 %v1863
    %1918 = vmatprep.subr.mxu0 %v1861
    %1919 = vmatpush1.msra.mxu0 %v1860
    %1920 = vmatprep.subr.mxu0 %v1858
    %1921 = vmatpush1.msra.mxu0 %v1857
    %1922 = vmatprep.subr.mxu0 %v1855
    %1923 = vmatpush1.msra.mxu0 %v1854
    %1924 = vmatprep.subr.mxu0 %v1852
    %1925 = vmatpush1.msra.mxu0 %v1851
    %1926 = vmatprep.subr.mxu0 %v1849
    %1927 = vmatpush1.msra.mxu0 %v1848
    %1928 = vmatprep.subr.mxu0 0.0
    %1929 = vmatpush2.msra.mxu0 0.0
    %1930 = vmatprep.subr.mxu0 0.0
    %1931 = vmatpush2.msra.mxu0 0.0
    %1932 = vmatprep.subr.mxu0 0.0
    %1933 = vmatpush2.msra.mxu0 0.0
    %1934 = vmatprep.subr.mxu0 0.0
    %1935 = vmatpush2.msra.mxu0 0.0
    %1936 = vmatprep.subr.mxu0 0.0
    %1937 = vmatpush2.msra.mxu0 0.0
    %1938 = vmatprep.subr.mxu0 0.0
    %1939 = vmatpush2.msra.mxu0 0.0
    %1940 = vmatprep.subr.mxu0 0.0
    %1941 = vmatpush2.msra.mxu0 0.0
    %1942 = vmatprep.subr.mxu0 0.0
    %1943 = vmatpush2.msra.mxu0 0.0
    %1944 = vmatprep.subr.mxu0 0.0
    %1945 = vmatpush2.msra.mxu0 0.0
    %1946 = vmatprep.subr.mxu0 0.0
    %1947 = vmatpush2.msra.mxu0 0.0
    %1948 = vmatprep.subr.mxu0 0.0
    %1949 = vmatpush2.msra.mxu0 0.0
    %1950 = vmatprep.subr.mxu0 0.0
    %1951 = vmatpush2.msra.mxu0 0.0
    %1952 = vmatprep.subr.mxu0 0.0
    %1953 = vmatpush2.msra.mxu0 0.0
    %1954 = vmatprep.subr.mxu0 0.0
    %1955 = vmatpush2.msra.mxu0 0.0
    %1956 = vmatprep.subr.mxu0 0.0
    %1957 = vmatpush2.msra.mxu0 0.0
    %1958 = vmatprep.subr.mxu0 0.0
    %1959 = vmatpush2.msra.mxu0 0.0
    %1960 = vmatprep.mubr.f32.mxu0 0.0
    %1961 = vmatmul.mubr.f32.gmra.mxu0 %v1847
    %v1962 = vpop.f32.mrf.mxu0
    %v1963 = vadd.f32 0.0, %v1962
    %v1964 = vpop.f32.mrf.mxu0
    %v1965 = vadd.f32 0.0, %v1964
    %1966 = vdwg.mxu0
    %1967 = vmatprep.subr.mxu0 0.0
    %1968 = vmatpush1.msra.mxu0 %v1895
    %1969 = vmatprep.subr.mxu0 0.0
    %1970 = vmatpush1.msra.mxu0 %v1892
    %1971 = vmatprep.subr.mxu0 0.0
    %1972 = vmatpush1.msra.mxu0 %v1889
    %1973 = vmatprep.subr.mxu0 0.0
    %1974 = vmatpush1.msra.mxu0 %v1886
    %1975 = vmatprep.subr.mxu0 0.0
    %1976 = vmatpush1.msra.mxu0 %v1883
    %1977 = vmatprep.subr.mxu0 0.0
    %1978 = vmatpush1.msra.mxu0 %v1880
    %1979 = vmatprep.subr.mxu0 0.0
    %1980 = vmatpush1.msra.mxu0 %v1877
    %1981 = vmatprep.subr.mxu0 0.0
    %1982 = vmatpush1.msra.mxu0 %v1874
    %1983 = vmatprep.subr.mxu0 0.0
    %1984 = vmatpush1.msra.mxu0 %v1871
    %1985 = vmatprep.subr.mxu0 0.0
    %1986 = vmatpush1.msra.mxu0 %v1868
    %1987 = vmatprep.subr.mxu0 0.0
    %1988 = vmatpush1.msra.mxu0 %v1865
    %1989 = vmatprep.subr.mxu0 0.0
    %1990 = vmatpush1.msra.mxu0 %v1862
    %1991 = vmatprep.subr.mxu0 0.0
    %1992 = vmatpush1.msra.mxu0 %v1859
    %1993 = vmatprep.subr.mxu0 0.0
    %1994 = vmatpush1.msra.mxu0 %v1856
    %1995 = vmatprep.subr.mxu0 0.0
    %1996 = vmatpush1.msra.mxu0 %v1853
    %1997 = vmatprep.subr.mxu0 0.0
    %1998 = vmatpush1.msra.mxu0 %v1850
    %1999 = vmatprep.subr.mxu0 0.0
    %2000 = vmatpush2.msra.mxu0 0.0
    %2001 = vmatprep.subr.mxu0 0.0
    %2002 = vmatpush2.msra.mxu0 0.0
    %2003 = vmatprep.subr.mxu0 0.0
    %2004 = vmatpush2.msra.mxu0 0.0
    %2005 = vmatprep.subr.mxu0 0.0
    %2006 = vmatpush2.msra.mxu0 0.0
    %2007 = vmatprep.subr.mxu0 0.0
    %2008 = vmatpush2.msra.mxu0 0.0
    %2009 = vmatprep.subr.mxu0 0.0
    %2010 = vmatpush2.msra.mxu0 0.0
    %2011 = vmatprep.subr.mxu0 0.0
    %2012 = vmatpush2.msra.mxu0 0.0
    %2013 = vmatprep.subr.mxu0 0.0
    %2014 = vmatpush2.msra.mxu0 0.0
    %2015 = vmatprep.subr.mxu0 0.0
    %2016 = vmatpush2.msra.mxu0 0.0
    %2017 = vmatprep.subr.mxu0 0.0
    %2018 = vmatpush2.msra.mxu0 0.0
    %2019 = vmatprep.subr.mxu0 0.0
    %2020 = vmatpush2.msra.mxu0 0.0
    %2021 = vmatprep.subr.mxu0 0.0
    %2022 = vmatpush2.msra.mxu0 0.0
    %2023 = vmatprep.subr.mxu0 0.0
    %2024 = vmatpush2.msra.mxu0 0.0
    %2025 = vmatprep.subr.mxu0 0.0
    %2026 = vmatpush2.msra.mxu0 0.0
    %2027 = vmatprep.subr.mxu0 0.0
    %2028 = vmatpush2.msra.mxu0 0.0
    %2029 = vmatprep.subr.mxu0 0.0
    %2030 = vmatpush2.msra.mxu0 0.0
    %2031 = vmatprep.mubr.f32.mxu0 0.0
    %2032 = vmatmul.mubr.f32.gmra.mxu0 %v1847
    %v2033 = vpop.f32.mrf.mxu0
    %v2034 = vadd.f32 0.0, %v2033
    %v2035 = vpop.f32.mrf.mxu0
    %2036 = vdwg.mxu0
    %v2037 = vld [vmem:[#allocation9] sm:$0xff]
    %v2038 = vld [vmem:[#allocation9 + $0x8] sm:$0xff]
    %v2039 = vld [vmem:[#allocation9 + $0x10] sm:$0xff]
    %v2040 = vld [vmem:[#allocation9 + $0x20] sm:$0xff]
    %v2041 = vld [vmem:[#allocation9 + $0x28] sm:$0xff]
    %v2042 = vld [vmem:[#allocation9 + $0x30] sm:$0xff]
    %v2043 = vld [vmem:[#allocation9 + $0x40] sm:$0xff]
    %v2044 = vld [vmem:[#allocation9 + $0x48] sm:$0xff]
    %v2045 = vld [vmem:[#allocation9 + $0x50] sm:$0xff]
    %v2046 = vld [vmem:[#allocation9 + $0x60] sm:$0xff]
    %v2047 = vld [vmem:[#allocation9 + $0x68] sm:$0xff]
    %v2048 = vld [vmem:[#allocation9 + $0x70] sm:$0xff]
    %v2049 = vld [vmem:[#allocation9 + $0x80] sm:$0xff]
    %v2050 = vld [vmem:[#allocation9 + $0x88] sm:$0xff]
    %v2051 = vld [vmem:[#allocation9 + $0x90] sm:$0xff]
    %v2052 = vld [vmem:[#allocation9 + $0xa0] sm:$0xff]
    %v2053 = vld [vmem:[#allocation9 + $0xa8] sm:$0xff]
    %v2054 = vld [vmem:[#allocation9 + $0xb0] sm:$0xff]
    %v2055 = vld [vmem:[#allocation9 + $0xc0] sm:$0xff]
    %v2056 = vld [vmem:[#allocation9 + $0xc8] sm:$0xff]
    %v2057 = vld [vmem:[#allocation9 + $0xd0] sm:$0xff]
    %v2058 = vld [vmem:[#allocation9 + $0xe0] sm:$0xff]
    %v2059 = vld [vmem:[#allocation9 + $0xe8] sm:$0xff]
    %v2060 = vld [vmem:[#allocation9 + $0xf0] sm:$0xff]
    %v2061 = vld [vmem:[#allocation9 + $0x100] sm:$0xff]
    %v2062 = vld [vmem:[#allocation9 + $0x108] sm:$0xff]
    %v2063 = vld [vmem:[#allocation9 + $0x110] sm:$0xff]
    %v2064 = vld [vmem:[#allocation9 + $0x120] sm:$0xff]
    %v2065 = vld [vmem:[#allocation9 + $0x128] sm:$0xff]
    %v2066 = vld [vmem:[#allocation9 + $0x130] sm:$0xff]
    %v2067 = vld [vmem:[#allocation9 + $0x140] sm:$0xff]
    %v2068 = vld [vmem:[#allocation9 + $0x148] sm:$0xff]
    %v2069 = vld [vmem:[#allocation9 + $0x150] sm:$0xff]
    %v2070 = vld [vmem:[#allocation9 + $0x160] sm:$0xff]
    %v2071 = vld [vmem:[#allocation9 + $0x168] sm:$0xff]
    %v2072 = vld [vmem:[#allocation9 + $0x170] sm:$0xff]
    %v2073 = vld [vmem:[#allocation9 + $0x180] sm:$0xff]
    %v2074 = vld [vmem:[#allocation9 + $0x188] sm:$0xff]
    %v2075 = vld [vmem:[#allocation9 + $0x190] sm:$0xff]
    %v2076 = vld [vmem:[#allocation9 + $0x1a0] sm:$0xff]
    %v2077 = vld [vmem:[#allocation9 + $0x1a8] sm:$0xff]
    %v2078 = vld [vmem:[#allocation9 + $0x1b0] sm:$0xff]
    %v2079 = vld [vmem:[#allocation9 + $0x1c0] sm:$0xff]
    %v2080 = vld [vmem:[#allocation9 + $0x1c8] sm:$0xff]
    %v2081 = vld [vmem:[#allocation9 + $0x1d0] sm:$0xff]
    %v2082 = vld [vmem:[#allocation9 + $0x1e0] sm:$0xff]
    %v2083 = vld [vmem:[#allocation9 + $0x1e8] sm:$0xff]
    %v2084 = vld [vmem:[#allocation9 + $0x1f0] sm:$0xff]
    %2085 = vmatprep.subr.mxu0 %v2083
    %2086 = vmatpush1.msra.mxu0 %v2082
    %2087 = vmatprep.subr.mxu0 %v2080
    %2088 = vmatpush1.msra.mxu0 %v2079
    %2089 = vmatprep.subr.mxu0 %v2077
    %2090 = vmatpush1.msra.mxu0 %v2076
    %2091 = vmatprep.subr.mxu0 %v2074
    %2092 = vmatpush1.msra.mxu0 %v2073
    %2093 = vmatprep.subr.mxu0 %v2071
    %2094 = vmatpush1.msra.mxu0 %v2070
    %2095 = vmatprep.subr.mxu0 %v2068
    %2096 = vmatpush1.msra.mxu0 %v2067
    %2097 = vmatprep.subr.mxu0 %v2065
    %2098 = vmatpush1.msra.mxu0 %v2064
    %2099 = vmatprep.subr.mxu0 %v2062
    %2100 = vmatpush1.msra.mxu0 %v2061
    %2101 = vmatprep.subr.mxu0 %v2059
    %2102 = vmatpush1.msra.mxu0 %v2058
    %2103 = vmatprep.subr.mxu0 %v2056
    %2104 = vmatpush1.msra.mxu0 %v2055
    %2105 = vmatprep.subr.mxu0 %v2053
    %2106 = vmatpush1.msra.mxu0 %v2052
    %2107 = vmatprep.subr.mxu0 %v2050
    %2108 = vmatpush1.msra.mxu0 %v2049
    %2109 = vmatprep.subr.mxu0 %v2047
    %2110 = vmatpush1.msra.mxu0 %v2046
    %2111 = vmatprep.subr.mxu0 %v2044
    %2112 = vmatpush1.msra.mxu0 %v2043
    %2113 = vmatprep.subr.mxu0 %v2041
    %2114 = vmatpush1.msra.mxu0 %v2040
    %2115 = vmatprep.subr.mxu0 %v2038
    %2116 = vmatpush1.msra.mxu0 %v2037
    %2117 = vmatprep.subr.mxu0 0.0
    %2118 = vmatpush2.msra.mxu0 0.0
    %2119 = vmatprep.subr.mxu0 0.0
    %2120 = vmatpush2.msra.mxu0 0.0
    %2121 = vmatprep.subr.mxu0 0.0
    %2122 = vmatpush2.msra.mxu0 0.0
    %2123 = vmatprep.subr.mxu0 0.0
    %2124 = vmatpush2.msra.mxu0 0.0
    %2125 = vmatprep.subr.mxu0 0.0
    %2126 = vmatpush2.msra.mxu0 0.0
    %2127 = vmatprep.subr.mxu0 0.0
    %2128 = vmatpush2.msra.mxu0 0.0
    %2129 = vmatprep.subr.mxu0 0.0
    %2130 = vmatpush2.msra.mxu0 0.0
    %2131 = vmatprep.subr.mxu0 0.0
    %2132 = vmatpush2.msra.mxu0 0.0
    %2133 = vmatprep.subr.mxu0 0.0
    %2134 = vmatpush2.msra.mxu0 0.0
    %2135 = vmatprep.subr.mxu0 0.0
    %2136 = vmatpush2.msra.mxu0 0.0
    %2137 = vmatprep.subr.mxu0 0.0
    %2138 = vmatpush2.msra.mxu0 0.0
    %2139 = vmatprep.subr.mxu0 0.0
    %2140 = vmatpush2.msra.mxu0 0.0
    %2141 = vmatprep.subr.mxu0 0.0
    %2142 = vmatpush2.msra.mxu0 0.0
    %2143 = vmatprep.subr.mxu0 0.0
    %2144 = vmatpush2.msra.mxu0 0.0
    %2145 = vmatprep.subr.mxu0 0.0
    %2146 = vmatpush2.msra.mxu0 0.0
    %2147 = vmatprep.subr.mxu0 0.0
    %2148 = vmatpush2.msra.mxu0 0.0
    %2149 = vmatprep.mubr.f32.mxu0 0.0
    %2150 = vmatmul.mubr.f32.gmra.mxu0 %v1836
    %v2151 = vpop.f32.mrf.mxu0
    %v2152 = vadd.f32 0.0, %v2151
    %v2153 = vpop.f32.mrf.mxu0
    %v2154 = vadd.f32 0.0, %v2153
    %2155 = vdwg.mxu0
    %2156 = vmatprep.subr.mxu0 0.0
    %2157 = vmatpush1.msra.mxu0 %v2084
    %2158 = vmatprep.subr.mxu0 0.0
    %2159 = vmatpush1.msra.mxu0 %v2081
    %2160 = vmatprep.subr.mxu0 0.0
    %2161 = vmatpush1.msra.mxu0 %v2078
    %2162 = vmatprep.subr.mxu0 0.0
    %2163 = vmatpush1.msra.mxu0 %v2075
    %2164 = vmatprep.subr.mxu0 0.0
    %2165 = vmatpush1.msra.mxu0 %v2072
    %2166 = vmatprep.subr.mxu0 0.0
    %2167 = vmatpush1.msra.mxu0 %v2069
    %2168 = vmatprep.subr.mxu0 0.0
    %2169 = vmatpush1.msra.mxu0 %v2066
    %2170 = vmatprep.subr.mxu0 0.0
    %2171 = vmatpush1.msra.mxu0 %v2063
    %2172 = vmatprep.subr.mxu0 0.0
    %2173 = vmatpush1.msra.mxu0 %v2060
    %2174 = vmatprep.subr.mxu0 0.0
    %2175 = vmatpush1.msra.mxu0 %v2057
    %2176 = vmatprep.subr.mxu0 0.0
    %2177 = vmatpush1.msra.mxu0 %v2054
    %2178 = vmatprep.subr.mxu0 0.0
    %2179 = vmatpush1.msra.mxu0 %v2051
    %2180 = vmatprep.subr.mxu0 0.0
    %2181 = vmatpush1.msra.mxu0 %v2048
    %2182 = vmatprep.subr.mxu0 0.0
    %2183 = vmatpush1.msra.mxu0 %v2045
    %2184 = vmatprep.subr.mxu0 0.0
    %2185 = vmatpush1.msra.mxu0 %v2042
    %2186 = vmatprep.subr.mxu0 0.0
    %2187 = vmatpush1.msra.mxu0 %v2039
    %2188 = vmatprep.subr.mxu0 0.0
    %2189 = vmatpush2.msra.mxu0 0.0
    %2190 = vmatprep.subr.mxu0 0.0
    %2191 = vmatpush2.msra.mxu0 0.0
    %2192 = vmatprep.subr.mxu0 0.0
    %2193 = vmatpush2.msra.mxu0 0.0
    %2194 = vmatprep.subr.mxu0 0.0
    %2195 = vmatpush2.msra.mxu0 0.0
    %2196 = vmatprep.subr.mxu0 0.0
    %2197 = vmatpush2.msra.mxu0 0.0
    %2198 = vmatprep.subr.mxu0 0.0
    %2199 = vmatpush2.msra.mxu0 0.0
    %2200 = vmatprep.subr.mxu0 0.0
    %2201 = vmatpush2.msra.mxu0 0.0
    %2202 = vmatprep.subr.mxu0 0.0
    %2203 = vmatpush2.msra.mxu0 0.0
    %2204 = vmatprep.subr.mxu0 0.0
    %2205 = vmatpush2.msra.mxu0 0.0
    %2206 = vmatprep.subr.mxu0 0.0
    %2207 = vmatpush2.msra.mxu0 0.0
    %2208 = vmatprep.subr.mxu0 0.0
    %2209 = vmatpush2.msra.mxu0 0.0
    %2210 = vmatprep.subr.mxu0 0.0
    %2211 = vmatpush2.msra.mxu0 0.0
    %2212 = vmatprep.subr.mxu0 0.0
    %2213 = vmatpush2.msra.mxu0 0.0
    %2214 = vmatprep.subr.mxu0 0.0
    %2215 = vmatpush2.msra.mxu0 0.0
    %2216 = vmatprep.subr.mxu0 0.0
    %2217 = vmatpush2.msra.mxu0 0.0
    %2218 = vmatprep.subr.mxu0 0.0
    %2219 = vmatpush2.msra.mxu0 0.0
    %2220 = vmatprep.mubr.f32.mxu0 0.0
    %2221 = vmatmul.mubr.f32.gmra.mxu0 %v1836
    %v2222 = vpop.f32.mrf.mxu0
    %v2223 = vadd.f32 0.0, %v2222
    %v2224 = vpop.f32.mrf.mxu0
    %2225 = vdwg.mxu0
    %v2226 = vadd.f32 %v1963, %v2152
    %v2227 = vxor.u32 %v2226, 2147483648
    %v2228 = vmul.f32 %v2227, 1.442695
    %v2229 = vpow.pop %v2228
    %v2230 = vadd.f32 %v2229, 1.0
    %v2231 = vrcp.pop %v2230
    %v2232 = vmul.f32 1.0, %v2231
    %v2233 = vadd.f32 %v1965, %v2154
    %v2234 = vxor.u32 %v2233, 2147483648
    %v2235 = vmul.f32 %v2234, 1.442695
    %v2236 = vpow.pop %v2235
    %v2237 = vadd.f32 %v2236, 1.0
    %v2238 = vrcp.pop %v2237
    %v2239 = vmul.f32 1.0, %v2238
    %v2240 = vadd.f32 %v2223, %v1837
    %v2241 = vmul.f32 %v2232, %v2240
    %v2242 = vadd.f32 %v2034, %v2241
    %v2243 = vtanh.pop %v2242
    %v2244 = vsub.f32 1.0, %v2239
    %v2245 = vmul.f32 %v2244, %v2243
    %v2246 = vmul.f32 %v2239, %v1836
    %v2247 = vadd.f32 %v2245, %v2246
    %v2248 = vld [vmem:[#allocation9] sm:$0xff]
    %v2249 = vld [vmem:[#allocation9 + $0x8] sm:$0xff]
    %v2250 = vld [vmem:[#allocation9 + $0x10] sm:$0xff]
    %v2251 = vld [vmem:[#allocation9 + $0x18] sm:$0xff]
    %v2252 = vld [vmem:[#allocation9 + $0x20] sm:$0xff]
    %v2253 = vld [vmem:[#allocation9 + $0x28] sm:$0xff]
    %v2254 = vld [vmem:[#allocation9 + $0x30] sm:$0xff]
    %v2255 = vld [vmem:[#allocation9 + $0x38] sm:$0xff]
    %v2256 = vld [vmem:[#allocation9 + $0x40] sm:$0xff]
    %v2257 = vld [vmem:[#allocation9 + $0x48] sm:$0xff]
    %v2258 = vld [vmem:[#allocation9 + $0x50] sm:$0xff]
    %v2259 = vld [vmem:[#allocation9 + $0x58] sm:$0xff]
    %v2260 = vld [vmem:[#allocation9 + $0x60] sm:$0xff]
    %v2261 = vld [vmem:[#allocation9 + $0x68] sm:$0xff]
    %v2262 = vld [vmem:[#allocation9 + $0x70] sm:$0xff]
    %v2263 = vld [vmem:[#allocation9 + $0x78] sm:$0xff]
    %v2264 = vld [vmem:[#allocation9 + $0x80] sm:$0xff]
    %v2265 = vld [vmem:[#allocation9 + $0x88] sm:$0xff]
    %v2266 = vld [vmem:[#allocation9 + $0x90] sm:$0xff]
    %v2267 = vld [vmem:[#allocation9 + $0x98] sm:$0xff]
    %v2268 = vld [vmem:[#allocation9 + $0xa0] sm:$0xff]
    %v2269 = vld [vmem:[#allocation9 + $0xa8] sm:$0xff]
    %v2270 = vld [vmem:[#allocation9 + $0xb0] sm:$0xff]
    %v2271 = vld [vmem:[#allocation9 + $0xb8] sm:$0xff]
    %v2272 = vld [vmem:[#allocation9 + $0xc0] sm:$0xff]
    %v2273 = vld [vmem:[#allocation9 + $0xc8] sm:$0xff]
    %v2274 = vld [vmem:[#allocation9 + $0xd0] sm:$0xff]
    %v2275 = vld [vmem:[#allocation9 + $0xd8] sm:$0xff]
    %v2276 = vld [vmem:[#allocation9 + $0xe0] sm:$0xff]
    %v2277 = vld [vmem:[#allocation9 + $0xe8] sm:$0xff]
    %v2278 = vld [vmem:[#allocation9 + $0xf0] sm:$0xff]
    %v2279 = vld [vmem:[#allocation9 + $0xf8] sm:$0xff]
    %v2280 = vld [vmem:[#allocation9 + $0x100] sm:$0xff]
    %v2281 = vld [vmem:[#allocation9 + $0x108] sm:$0xff]
    %v2282 = vld [vmem:[#allocation9 + $0x110] sm:$0xff]
    %v2283 = vld [vmem:[#allocation9 + $0x118] sm:$0xff]
    %v2284 = vld [vmem:[#allocation9 + $0x120] sm:$0xff]
    %v2285 = vld [vmem:[#allocation9 + $0x128] sm:$0xff]
    %v2286 = vld [vmem:[#allocation9 + $0x130] sm:$0xff]
    %v2287 = vld [vmem:[#allocation9 + $0x138] sm:$0xff]
    %v2288 = vld [vmem:[#allocation9 + $0x140] sm:$0xff]
    %v2289 = vld [vmem:[#allocation9 + $0x148] sm:$0xff]
    %v2290 = vld [vmem:[#allocation9 + $0x150] sm:$0xff]
    %v2291 = vld [vmem:[#allocation9 + $0x158] sm:$0xff]
    %v2292 = vld [vmem:[#allocation9 + $0x160] sm:$0xff]
    %v2293 = vld [vmem:[#allocation9 + $0x168] sm:$0xff]
    %v2294 = vld [vmem:[#allocation9 + $0x170] sm:$0xff]
    %v2295 = vld [vmem:[#allocation9 + $0x178] sm:$0xff]
    %v2296 = vld [vmem:[#allocation9 + $0x180] sm:$0xff]
    %v2297 = vld [vmem:[#allocation9 + $0x188] sm:$0xff]
    %v2298 = vld [vmem:[#allocation9 + $0x190] sm:$0xff]
    %v2299 = vld [vmem:[#allocation9 + $0x198] sm:$0xff]
    %v2300 = vld [vmem:[#allocation9 + $0x1a0] sm:$0xff]
    %v2301 = vld [vmem:[#allocation9 + $0x1a8] sm:$0xff]
    %v2302 = vld [vmem:[#allocation9 + $0x1b0] sm:$0xff]
    %v2303 = vld [vmem:[#allocation9 + $0x1b8] sm:$0xff]
    %v2304 = vld [vmem:[#allocation9 + $0x1c0] sm:$0xff]
    %v2305 = vld [vmem:[#allocation9 + $0x1c8] sm:$0xff]
    %v2306 = vld [vmem:[#allocation9 + $0x1d0] sm:$0xff]
    %v2307 = vld [vmem:[#allocation9 + $0x1d8] sm:$0xff]
    %v2308 = vld [vmem:[#allocation9 + $0x1e0] sm:$0xff]
    %v2309 = vld [vmem:[#allocation9 + $0x1e8] sm:$0xff]
    %v2310 = vld [vmem:[#allocation9 + $0x1f0] sm:$0xff]
    %v2311 = vld [vmem:[#allocation9 + $0x1f8] sm:$0xff]
    %2312 = vmatprep.subr.mxu0 %v2309
    %2313 = vmatpush1.msra.mxu0 %v2308
    %2314 = vmatprep.subr.mxu0 %v2305
    %2315 = vmatpush1.msra.mxu0 %v2304
    %2316 = vmatprep.subr.mxu0 %v2301
    %2317 = vmatpush1.msra.mxu0 %v2300
    %2318 = vmatprep.subr.mxu0 %v2297
    %2319 = vmatpush1.msra.mxu0 %v2296
    %2320 = vmatprep.subr.mxu0 %v2293
    %2321 = vmatpush1.msra.mxu0 %v2292
    %2322 = vmatprep.subr.mxu0 %v2289
    %2323 = vmatpush1.msra.mxu0 %v2288
    %2324 = vmatprep.subr.mxu0 %v2285
    %2325 = vmatpush1.msra.mxu0 %v2284
    %2326 = vmatprep.subr.mxu0 %v2281
    %2327 = vmatpush1.msra.mxu0 %v2280
    %2328 = vmatprep.subr.mxu0 %v2277
    %2329 = vmatpush1.msra.mxu0 %v2276
    %2330 = vmatprep.subr.mxu0 %v2273
    %2331 = vmatpush1.msra.mxu0 %v2272
    %2332 = vmatprep.subr.mxu0 %v2269
    %2333 = vmatpush1.msra.mxu0 %v2268
    %2334 = vmatprep.subr.mxu0 %v2265
    %2335 = vmatpush1.msra.mxu0 %v2264
    %2336 = vmatprep.subr.mxu0 %v2261
    %2337 = vmatpush1.msra.mxu0 %v2260
    %2338 = vmatprep.subr.mxu0 %v2257
    %2339 = vmatpush1.msra.mxu0 %v2256
    %2340 = vmatprep.subr.mxu0 %v2253
    %2341 = vmatpush1.msra.mxu0 %v2252
    %2342 = vmatprep.subr.mxu0 %v2249
    %2343 = vmatpush1.msra.mxu0 %v2248
    %2344 = vmatprep.subr.mxu0 0.0
    %2345 = vmatpush2.msra.mxu0 0.0
    %2346 = vmatprep.subr.mxu0 0.0
    %2347 = vmatpush2.msra.mxu0 0.0
    %2348 = vmatprep.subr.mxu0 0.0
    %2349 = vmatpush2.msra.mxu0 0.0
    %2350 = vmatprep.subr.mxu0 0.0
    %2351 = vmatpush2.msra.mxu0 0.0
    %2352 = vmatprep.subr.mxu0 0.0
    %2353 = vmatpush2.msra.mxu0 0.0
    %2354 = vmatprep.subr.mxu0 0.0
    %2355 = vmatpush2.msra.mxu0 0.0
    %2356 = vmatprep.subr.mxu0 0.0
    %2357 = vmatpush2.msra.mxu0 0.0
    %2358 = vmatprep.subr.mxu0 0.0
    %2359 = vmatpush2.msra.mxu0 0.0
    %2360 = vmatprep.subr.mxu0 0.0
    %2361 = vmatpush2.msra.mxu0 0.0
    %2362 = vmatprep.subr.mxu0 0.0
    %2363 = vmatpush2.msra.mxu0 0.0
    %2364 = vmatprep.subr.mxu0 0.0
    %2365 = vmatpush2.msra.mxu0 0.0
    %2366 = vmatprep.subr.mxu0 0.0
    %2367 = vmatpush2.msra.mxu0 0.0
    %2368 = vmatprep.subr.mxu0 0.0
    %2369 = vmatpush2.msra.mxu0 0.0
    %2370 = vmatprep.subr.mxu0 0.0
    %2371 = vmatpush2.msra.mxu0 0.0
    %2372 = vmatprep.subr.mxu0 0.0
    %2373 = vmatpush2.msra.mxu0 0.0
    %2374 = vmatprep.subr.mxu0 0.0
    %2375 = vmatpush2.msra.mxu0 0.0
    %2376 = vmatprep.mubr.f32.mxu0 0.0
    %2377 = vmatmul.mubr.f32.gmra.mxu0 %v2247
    %v2378 = vpop.f32.mrf.mxu0
    %v2379 = vadd.f32 0.0, %v2378
    %v2380 = vpop.f32.mrf.mxu0
    %v2381 = vadd.f32 0.0, %v2380
    %2382 = vdwg.mxu0
    %2383 = vmatprep.subr.mxu0 %v2311
    %2384 = vmatpush1.msra.mxu0 %v2310
    %2385 = vmatprep.subr.mxu0 %v2307
    %2386 = vmatpush1.msra.mxu0 %v2306
    %2387 = vmatprep.subr.mxu0 %v2303
    %2388 = vmatpush1.msra.mxu0 %v2302
    %2389 = vmatprep.subr.mxu0 %v2299
    %2390 = vmatpush1.msra.mxu0 %v2298
    %2391 = vmatprep.subr.mxu0 %v2295
    %2392 = vmatpush1.msra.mxu0 %v2294
    %2393 = vmatprep.subr.mxu0 %v2291
    %2394 = vmatpush1.msra.mxu0 %v2290
    %2395 = vmatprep.subr.mxu0 %v2287
    %2396 = vmatpush1.msra.mxu0 %v2286
    %2397 = vmatprep.subr.mxu0 %v2283
    %2398 = vmatpush1.msra.mxu0 %v2282
    %2399 = vmatprep.subr.mxu0 %v2279
    %2400 = vmatpush1.msra.mxu0 %v2278
    %2401 = vmatprep.subr.mxu0 %v2275
    %2402 = vmatpush1.msra.mxu0 %v2274
    %2403 = vmatprep.subr.mxu0 %v2271
    %2404 = vmatpush1.msra.mxu0 %v2270
    %2405 = vmatprep.subr.mxu0 %v2267
    %2406 = vmatpush1.msra.mxu0 %v2266
    %2407 = vmatprep.subr.mxu0 %v2263
    %2408 = vmatpush1.msra.mxu0 %v2262
    %2409 = vmatprep.subr.mxu0 %v2259
    %2410 = vmatpush1.msra.mxu0 %v2258
    %2411 = vmatprep.subr.mxu0 %v2255
    %2412 = vmatpush1.msra.mxu0 %v2254
    %2413 = vmatprep.subr.mxu0 %v2251
    %2414 = vmatpush1.msra.mxu0 %v2250
    %2415 = vmatprep.subr.mxu0 0.0
    %2416 = vmatpush2.msra.mxu0 0.0
    %2417 = vmatprep.subr.mxu0 0.0
    %2418 = vmatpush2.msra.mxu0 0.0
    %2419 = vmatprep.subr.mxu0 0.0
    %2420 = vmatpush2.msra.mxu0 0.0
    %2421 = vmatprep.subr.mxu0 0.0
    %2422 = vmatpush2.msra.mxu0 0.0
    %2423 = vmatprep.subr.mxu0 0.0
    %2424 = vmatpush2.msra.mxu0 0.0
    %2425 = vmatprep.subr.mxu0 0.0
    %2426 = vmatpush2.msra.mxu0 0.0
    %2427 = vmatprep.subr.mxu0 0.0
    %2428 = vmatpush2.msra.mxu0 0.0
    %2429 = vmatprep.subr.mxu0 0.0
    %2430 = vmatpush2.msra.mxu0 0.0
    %2431 = vmatprep.subr.mxu0 0.0
    %2432 = vmatpush2.msra.mxu0 0.0
    %2433 = vmatprep.subr.mxu0 0.0
    %2434 = vmatpush2.msra.mxu0 0.0
    %2435 = vmatprep.subr.mxu0 0.0
    %2436 = vmatpush2.msra.mxu0 0.0
    %2437 = vmatprep.subr.mxu0 0.0
    %2438 = vmatpush2.msra.mxu0 0.0
    %2439 = vmatprep.subr.mxu0 0.0
    %2440 = vmatpush2.msra.mxu0 0.0
    %2441 = vmatprep.subr.mxu0 0.0
    %2442 = vmatpush2.msra.mxu0 0.0
    %2443 = vmatprep.subr.mxu0 0.0
    %2444 = vmatpush2.msra.mxu0 0.0
    %2445 = vmatprep.subr.mxu0 0.0
    %2446 = vmatpush2.msra.mxu0 0.0
    %2447 = vmatprep.mubr.f32.mxu0 0.0
    %2448 = vmatmul.mubr.f32.gmra.mxu0 %v2247
    %v2449 = vpop.f32.mrf.mxu0
    %v2450 = vadd.f32 0.0, %v2449
    %v2451 = vpop.f32.mrf.mxu0
    %v2452 = vadd.f32 0.0, %v2451
    %2453 = vdwg.mxu0
    %v2454 = vadd.f32 %v2452, %v1838
    %2455 = vst [vmem:[#allocation11] sm:$0xff] %v2454
    %v2456 = vsub.f32 %v2454, %v1840
    %2457 = vmax.xlane.f32.xlu0 %v2456
    %v2458 = vpop.xlane.xlu0 %2457
    %vm2459 = vcmp.eq.f32.partialorder %v2456, %v2458
    %v2460 = vsel %vm2459, 1, 0
    %v2461 = vcvt.s32.f32 %v2460
    %v2462 = vld [vmem:[#allocation8] sm:$0xff]
    %v2463 = vld [vmem:[#allocation8 + $0x8] sm:$0xff]
    %v2464 = vld [vmem:[#allocation8 + $0x10] sm:$0xff]
    %v2465 = vld [vmem:[#allocation8 + $0x18] sm:$0xff]
    %v2466 = vld [vmem:[#allocation8 + $0x20] sm:$0xff]
    %v2467 = vld [vmem:[#allocation8 + $0x28] sm:$0xff]
    %v2468 = vld [vmem:[#allocation8 + $0x30] sm:$0xff]
    %v2469 = vld [vmem:[#allocation8 + $0x38] sm:$0xff]
    %v2470 = vld [vmem:[#allocation8 + $0x40] sm:$0xff]
    %v2471 = vld [vmem:[#allocation8 + $0x48] sm:$0xff]
    %v2472 = vld [vmem:[#allocation8 + $0x50] sm:$0xff]
    %v2473 = vld [vmem:[#allocation8 + $0x58] sm:$0xff]
    %v2474 = vld [vmem:[#allocation8 + $0x60] sm:$0xff]
    %v2475 = vld [vmem:[#allocation8 + $0x68] sm:$0xff]
    %v2476 = vld [vmem:[#allocation8 + $0x70] sm:$0xff]
    %v2477 = vld [vmem:[#allocation8 + $0x78] sm:$0xff]
    %v2478 = vld [vmem:[#allocation8 + $0x80] sm:$0xff]
    %v2479 = vld [vmem:[#allocation8 + $0x88] sm:$0xff]
    %v2480 = vld [vmem:[#allocation8 + $0x90] sm:$0xff]
    %v2481 = vld [vmem:[#allocation8 + $0x98] sm:$0xff]
    %v2482 = vld [vmem:[#allocation8 + $0xa0] sm:$0xff]
    %v2483 = vld [vmem:[#allocation8 + $0xa8] sm:$0xff]
    %v2484 = vld [vmem:[#allocation8 + $0xb0] sm:$0xff]
    %v2485 = vld [vmem:[#allocation8 + $0xb8] sm:$0xff]
    %v2486 = vld [vmem:[#allocation8 + $0xc0] sm:$0xff]
    %v2487 = vld [vmem:[#allocation8 + $0xc8] sm:$0xff]
    %v2488 = vld [vmem:[#allocation8 + $0xd0] sm:$0xff]
    %v2489 = vld [vmem:[#allocation8 + $0xd8] sm:$0xff]
    %v2490 = vld [vmem:[#allocation8 + $0xe0] sm:$0xff]
    %v2491 = vld [vmem:[#allocation8 + $0xe8] sm:$0xff]
    %v2492 = vld [vmem:[#allocation8 + $0xf0] sm:$0xff]
    %v2493 = vld [vmem:[#allocation8 + $0xf8] sm:$0xff]
    %v2494 = vld [vmem:[#allocation8 + $0x100] sm:$0xff]
    %v2495 = vld [vmem:[#allocation8 + $0x108] sm:$0xff]
    %v2496 = vld [vmem:[#allocation8 + $0x110] sm:$0xff]
    %v2497 = vld [vmem:[#allocation8 + $0x118] sm:$0xff]
    %v2498 = vld [vmem:[#allocation8 + $0x120] sm:$0xff]
    %v2499 = vld [vmem:[#allocation8 + $0x128] sm:$0xff]
    %v2500 = vld [vmem:[#allocation8 + $0x130] sm:$0xff]
    %v2501 = vld [vmem:[#allocation8 + $0x138] sm:$0xff]
    %v2502 = vld [vmem:[#allocation8 + $0x140] sm:$0xff]
    %v2503 = vld [vmem:[#allocation8 + $0x148] sm:$0xff]
    %v2504 = vld [vmem:[#allocation8 + $0x150] sm:$0xff]
    %v2505 = vld [vmem:[#allocation8 + $0x158] sm:$0xff]
    %v2506 = vld [vmem:[#allocation8 + $0x160] sm:$0xff]
    %v2507 = vld [vmem:[#allocation8 + $0x168] sm:$0xff]
    %v2508 = vld [vmem:[#allocation8 + $0x170] sm:$0xff]
    %v2509 = vld [vmem:[#allocation8 + $0x178] sm:$0xff]
    %2510 = vmatprep.subr.mxu0 %v2508
    %2511 = vmatpush1.msra.mxu0 %v2507
    %2512 = vmatprep.subr.mxu0 %v2505
    %2513 = vmatpush1.msra.mxu0 %v2504
    %2514 = vmatprep.subr.mxu0 %v2502
    %2515 = vmatpush1.msra.mxu0 %v2501
    %2516 = vmatprep.subr.mxu0 %v2499
    %2517 = vmatpush1.msra.mxu0 %v2498
    %2518 = vmatprep.subr.mxu0 %v2496
    %2519 = vmatpush1.msra.mxu0 %v2495
    %2520 = vmatprep.subr.mxu0 %v2493
    %2521 = vmatpush1.msra.mxu0 %v2492
    %2522 = vmatprep.subr.mxu0 %v2490
    %2523 = vmatpush1.msra.mxu0 %v2489
    %2524 = vmatprep.subr.mxu0 %v2487
    %2525 = vmatpush1.msra.mxu0 %v2486
    %2526 = vmatprep.subr.mxu0 %v2484
    %2527 = vmatpush1.msra.mxu0 %v2483
    %2528 = vmatprep.subr.mxu0 %v2481
    %2529 = vmatpush1.msra.mxu0 %v2480
    %2530 = vmatprep.subr.mxu0 %v2478
    %2531 = vmatpush1.msra.mxu0 %v2477
    %2532 = vmatprep.subr.mxu0 %v2475
    %2533 = vmatpush1.msra.mxu0 %v2474
    %2534 = vmatprep.subr.mxu0 %v2472
    %2535 = vmatpush1.msra.mxu0 %v2471
    %2536 = vmatprep.subr.mxu0 %v2469
    %2537 = vmatpush1.msra.mxu0 %v2468
    %2538 = vmatprep.subr.mxu0 %v2466
    %2539 = vmatpush1.msra.mxu0 %v2465
    %2540 = vmatprep.subr.mxu0 %v2463
    %2541 = vmatpush1.msra.mxu0 %v2462
    %2542 = vmatprep.subr.mxu0 0.0
    %2543 = vmatpush2.msra.mxu0 0.0
    %2544 = vmatprep.subr.mxu0 0.0
    %2545 = vmatpush2.msra.mxu0 0.0
    %2546 = vmatprep.subr.mxu0 0.0
    %2547 = vmatpush2.msra.mxu0 0.0
    %2548 = vmatprep.subr.mxu0 0.0
    %2549 = vmatpush2.msra.mxu0 0.0
    %2550 = vmatprep.subr.mxu0 0.0
    %2551 = vmatpush2.msra.mxu0 0.0
    %2552 = vmatprep.subr.mxu0 0.0
    %2553 = vmatpush2.msra.mxu0 0.0
    %2554 = vmatprep.subr.mxu0 0.0
    %2555 = vmatpush2.msra.mxu0 0.0
    %2556 = vmatprep.subr.mxu0 0.0
    %2557 = vmatpush2.msra.mxu0 0.0
    %2558 = vmatprep.subr.mxu0 0.0
    %2559 = vmatpush2.msra.mxu0 0.0
    %2560 = vmatprep.subr.mxu0 0.0
    %2561 = vmatpush2.msra.mxu0 0.0
    %2562 = vmatprep.subr.mxu0 0.0
    %2563 = vmatpush2.msra.mxu0 0.0
    %2564 = vmatprep.subr.mxu0 0.0
    %2565 = vmatpush2.msra.mxu0 0.0
    %2566 = vmatprep.subr.mxu0 0.0
    %2567 = vmatpush2.msra.mxu0 0.0
    %2568 = vmatprep.subr.mxu0 0.0
    %2569 = vmatpush2.msra.mxu0 0.0
    %2570 = vmatprep.subr.mxu0 0.0
    %2571 = vmatpush2.msra.mxu0 0.0
    %2572 = vmatprep.subr.mxu0 0.0
    %2573 = vmatpush2.msra.mxu0 0.0
    %2574 = vmatprep.mubr.f32.mxu0 0.0
    %2575 = vmatmul.mubr.f32.gmra.mxu0 %v2461
    %v2576 = vpop.f32.mrf.mxu0
    %v2577 = vadd.f32 0.0, %v2576
    %v2578 = vpop.f32.mrf.mxu0
    %v2579 = vadd.f32 0.0, %v2578
    %2580 = vdwg.mxu0
    %2581 = vmatprep.subr.mxu0 0.0
    %2582 = vmatpush1.msra.mxu0 %v2509
    %2583 = vmatprep.subr.mxu0 0.0
    %2584 = vmatpush1.msra.mxu0 %v2506
    %2585 = vmatprep.subr.mxu0 0.0
    %2586 = vmatpush1.msra.mxu0 %v2503
    %2587 = vmatprep.subr.mxu0 0.0
    %2588 = vmatpush1.msra.mxu0 %v2500
    %2589 = vmatprep.subr.mxu0 0.0
    %2590 = vmatpush1.msra.mxu0 %v2497
    %2591 = vmatprep.subr.mxu0 0.0
    %2592 = vmatpush1.msra.mxu0 %v2494
    %2593 = vmatprep.subr.mxu0 0.0
    %2594 = vmatpush1.msra.mxu0 %v2491
    %2595 = vmatprep.subr.mxu0 0.0
    %2596 = vmatpush1.msra.mxu0 %v2488
    %2597 = vmatprep.subr.mxu0 0.0
    %2598 = vmatpush1.msra.mxu0 %v2485
    %2599 = vmatprep.subr.mxu0 0.0
    %2600 = vmatpush1.msra.mxu0 %v2482
    %2601 = vmatprep.subr.mxu0 0.0
    %2602 = vmatpush1.msra.mxu0 %v2479
    %2603 = vmatprep.subr.mxu0 0.0
    %2604 = vmatpush1.msra.mxu0 %v2476
    %2605 = vmatprep.subr.mxu0 0.0
    %2606 = vmatpush1.msra.mxu0 %v2473
    %2607 = vmatprep.subr.mxu0 0.0
    %2608 = vmatpush1.msra.mxu0 %v2470
    %2609 = vmatprep.subr.mxu0 0.0
    %2610 = vmatpush1.msra.mxu0 %v2467
    %2611 = vmatprep.subr.mxu0 0.0
    %2612 = vmatpush1.msra.mxu0 %v2464
    %2613 = vmatprep.subr.mxu0 0.0
    %2614 = vmatpush2.msra.mxu0 0.0
    %2615 = vmatprep.subr.mxu0 0.0
    %2616 = vmatpush2.msra.mxu0 0.0
    %2617 = vmatprep.subr.mxu0 0.0
    %2618 = vmatpush2.msra.mxu0 0.0
    %2619 = vmatprep.subr.mxu0 0.0
    %2620 = vmatpush2.msra.mxu0 0.0
    %2621 = vmatprep.subr.mxu0 0.0
    %2622 = vmatpush2.msra.mxu0 0.0
    %2623 = vmatprep.subr.mxu0 0.0
    %2624 = vmatpush2.msra.mxu0 0.0
    %2625 = vmatprep.subr.mxu0 0.0
    %2626 = vmatpush2.msra.mxu0 0.0
    %2627 = vmatprep.subr.mxu0 0.0
    %2628 = vmatpush2.msra.mxu0 0.0
    %2629 = vmatprep.subr.mxu0 0.0
    %2630 = vmatpush2.msra.mxu0 0.0
    %2631 = vmatprep.subr.mxu0 0.0
    %2632 = vmatpush2.msra.mxu0 0.0
    %2633 = vmatprep.subr.mxu0 0.0
    %2634 = vmatpush2.msra.mxu0 0.0
    %2635 = vmatprep.subr.mxu0 0.0
    %2636 = vmatpush2.msra.mxu0 0.0
    %2637 = vmatprep.subr.mxu0 0.0
    %2638 = vmatpush2.msra.mxu0 0.0
    %2639 = vmatprep.subr.mxu0 0.0
    %2640 = vmatpush2.msra.mxu0 0.0
    %2641 = vmatprep.subr.mxu0 0.0
    %2642 = vmatpush2.msra.mxu0 0.0
    %2643 = vmatprep.subr.mxu0 0.0
    %2644 = vmatpush2.msra.mxu0 0.0
    %2645 = vmatprep.mubr.f32.mxu0 0.0
    %2646 = vmatmul.mubr.f32.gmra.mxu0 %v2461
    %v2647 = vpop.f32.mrf.mxu0
    %v2648 = vadd.f32 0.0, %v2647
    %v2649 = vpop.f32.mrf.mxu0
    %2650 = vdwg.mxu0
    %v2651 = vadd.f32 %v2577, %v2379
    %v2652 = vxor.u32 %v2651, 2147483648
    %v2653 = vmul.f32 %v2652, 1.442695
    %v2654 = vpow.pop %v2653
    %v2655 = vadd.f32 %v2654, 1.0
    %v2656 = vrcp.pop %v2655
    %v2657 = vmul.f32 1.0, %v2656
    %v2658 = vadd.f32 %v2579, %v2381
    %v2659 = vxor.u32 %v2658, 2147483648
    %v2660 = vmul.f32 %v2659, 1.442695
    %v2661 = vpow.pop %v2660
    %v2662 = vadd.f32 %v2661, 1.0
    %v2663 = vrcp.pop %v2662
    %v2664 = vmul.f32 1.0, %v2663
    %v2665 = vadd.f32 %v2450, %v1837
    %v2666 = vmul.f32 %v2657, %v2665
    %v2667 = vadd.f32 %v2648, %v2666
    %v2668 = vtanh.pop %v2667
    %v2669 = vsub.f32 1.0, %v2664
    %v2670 = vmul.f32 %v2669, %v2668
    %v2671 = vmul.f32 %v2664, %v2247
    %v2672 = vadd.f32 %v2670, %v2671
    %v2673 = vld [vmem:[#allocation9] sm:$0xff]
    %v2674 = vld [vmem:[#allocation9 + $0x8] sm:$0xff]
    %v2675 = vld [vmem:[#allocation9 + $0x10] sm:$0xff]
    %v2676 = vld [vmem:[#allocation9 + $0x18] sm:$0xff]
    %v2677 = vld [vmem:[#allocation9 + $0x20] sm:$0xff]
    %v2678 = vld [vmem:[#allocation9 + $0x28] sm:$0xff]
    %v2679 = vld [vmem:[#allocation9 + $0x30] sm:$0xff]
    %v2680 = vld [vmem:[#allocation9 + $0x38] sm:$0xff]
    %v2681 = vld [vmem:[#allocation9 + $0x40] sm:$0xff]
    %v2682 = vld [vmem:[#allocation9 + $0x48] sm:$0xff]
    %v2683 = vld [vmem:[#allocation9 + $0x50] sm:$0xff]
    %v2684 = vld [vmem:[#allocation9 + $0x58] sm:$0xff]
    %v2685 = vld [vmem:[#allocation9 + $0x60] sm:$0xff]
    %v2686 = vld [vmem:[#allocation9 + $0x68] sm:$0xff]
    %v2687 = vld [vmem:[#allocation9 + $0x70] sm:$0xff]
    %v2688 = vld [vmem:[#allocation9 + $0x78] sm:$0xff]
    %v2689 = vld [vmem:[#allocation9 + $0x80] sm:$0xff]
    %v2690 = vld [vmem:[#allocation9 + $0x88] sm:$0xff]
    %v2691 = vld [vmem:[#allocation9 + $0x90] sm:$0xff]
    %v2692 = vld [vmem:[#allocation9 + $0x98] sm:$0xff]
    %v2693 = vld [vmem:[#allocation9 + $0xa0] sm:$0xff]
    %v2694 = vld [vmem:[#allocation9 + $0xa8] sm:$0xff]
    %v2695 = vld [vmem:[#allocation9 + $0xb0] sm:$0xff]
    %v2696 = vld [vmem:[#allocation9 + $0xb8] sm:$0xff]
    %v2697 = vld [vmem:[#allocation9 + $0xc0] sm:$0xff]
    %v2698 = vld [vmem:[#allocation9 + $0xc8] sm:$0xff]
    %v2699 = vld [vmem:[#allocation9 + $0xd0] sm:$0xff]
    %v2700 = vld [vmem:[#allocation9 + $0xd8] sm:$0xff]
    %v2701 = vld [vmem:[#allocation9 + $0xe0] sm:$0xff]
    %v2702 = vld [vmem:[#allocation9 + $0xe8] sm:$0xff]
    %v2703 = vld [vmem:[#allocation9 + $0xf0] sm:$0xff]
    %v2704 = vld [vmem:[#allocation9 + $0xf8] sm:$0xff]
    %v2705 = vld [vmem:[#allocation9 + $0x100] sm:$0xff]
    %v2706 = vld [vmem:[#allocation9 + $0x108] sm:$0xff]
    %v2707 = vld [vmem:[#allocation9 + $0x110] sm:$0xff]
    %v2708 = vld [vmem:[#allocation9 + $0x118] sm:$0xff]
    %v2709 = vld [vmem:[#allocation9 + $0x120] sm:$0xff]
    %v2710 = vld [vmem:[#allocation9 + $0x128] sm:$0xff]
    %v2711 = vld [vmem:[#allocation9 + $0x130] sm:$0xff]
    %v2712 = vld [vmem:[#allocation9 + $0x138] sm:$0xff]
    %v2713 = vld [vmem:[#allocation9 + $0x140] sm:$0xff]
    %v2714 = vld [vmem:[#allocation9 + $0x148] sm:$0xff]
    %v2715 = vld [vmem:[#allocation9 + $0x150] sm:$0xff]
    %v2716 = vld [vmem:[#allocation9 + $0x158] sm:$0xff]
    %v2717 = vld [vmem:[#allocation9 + $0x160] sm:$0xff]
    %v2718 = vld [vmem:[#allocation9 + $0x168] sm:$0xff]
    %v2719 = vld [vmem:[#allocation9 + $0x170] sm:$0xff]
    %v2720 = vld [vmem:[#allocation9 + $0x178] sm:$0xff]
    %v2721 = vld [vmem:[#allocation9 + $0x180] sm:$0xff]
    %v2722 = vld [vmem:[#allocation9 + $0x188] sm:$0xff]
    %v2723 = vld [vmem:[#allocation9 + $0x190] sm:$0xff]
    %v2724 = vld [vmem:[#allocation9 + $0x198] sm:$0xff]
    %v2725 = vld [vmem:[#allocation9 + $0x1a0] sm:$0xff]
    %v2726 = vld [vmem:[#allocation9 + $0x1a8] sm:$0xff]
    %v2727 = vld [vmem:[#allocation9 + $0x1b0] sm:$0xff]
    %v2728 = vld [vmem:[#allocation9 + $0x1b8] sm:$0xff]
    %v2729 = vld [vmem:[#allocation9 + $0x1c0] sm:$0xff]
    %v2730 = vld [vmem:[#allocation9 + $0x1c8] sm:$0xff]
    %v2731 = vld [vmem:[#allocation9 + $0x1d0] sm:$0xff]
    %v2732 = vld [vmem:[#allocation9 + $0x1d8] sm:$0xff]
    %v2733 = vld [vmem:[#allocation9 + $0x1e0] sm:$0xff]
    %v2734 = vld [vmem:[#allocation9 + $0x1e8] sm:$0xff]
    %v2735 = vld [vmem:[#allocation9 + $0x1f0] sm:$0xff]
    %v2736 = vld [vmem:[#allocation9 + $0x1f8] sm:$0xff]
    %2737 = vmatprep.subr.mxu0 %v2734
    %2738 = vmatpush1.msra.mxu0 %v2733
    %2739 = vmatprep.subr.mxu0 %v2730
    %2740 = vmatpush1.msra.mxu0 %v2729
    %2741 = vmatprep.subr.mxu0 %v2726
    %2742 = vmatpush1.msra.mxu0 %v2725
    %2743 = vmatprep.subr.mxu0 %v2722
    %2744 = vmatpush1.msra.mxu0 %v2721
    %2745 = vmatprep.subr.mxu0 %v2718
    %2746 = vmatpush1.msra.mxu0 %v2717
    %2747 = vmatprep.subr.mxu0 %v2714
    %2748 = vmatpush1.msra.mxu0 %v2713
    %2749 = vmatprep.subr.mxu0 %v2710
    %2750 = vmatpush1.msra.mxu0 %v2709
    %2751 = vmatprep.subr.mxu0 %v2706
    %2752 = vmatpush1.msra.mxu0 %v2705
    %2753 = vmatprep.subr.mxu0 %v2702
    %2754 = vmatpush1.msra.mxu0 %v2701
    %2755 = vmatprep.subr.mxu0 %v2698
    %2756 = vmatpush1.msra.mxu0 %v2697
    %2757 = vmatprep.subr.mxu0 %v2694
    %2758 = vmatpush1.msra.mxu0 %v2693
    %2759 = vmatprep.subr.mxu0 %v2690
    %2760 = vmatpush1.msra.mxu0 %v2689
    %2761 = vmatprep.subr.mxu0 %v2686
    %2762 = vmatpush1.msra.mxu0 %v2685
    %2763 = vmatprep.subr.mxu0 %v2682
    %2764 = vmatpush1.msra.mxu0 %v2681
    %2765 = vmatprep.subr.mxu0 %v2678
    %2766 = vmatpush1.msra.mxu0 %v2677
    %2767 = vmatprep.subr.mxu0 %v2674
    %2768 = vmatpush1.msra.mxu0 %v2673
    %2769 = vmatprep.subr.mxu0 0.0
    %2770 = vmatpush2.msra.mxu0 0.0
    %2771 = vmatprep.subr.mxu0 0.0
    %2772 = vmatpush2.msra.mxu0 0.0
    %2773 = vmatprep.subr.mxu0 0.0
    %2774 = vmatpush2.msra.mxu0 0.0
    %2775 = vmatprep.subr.mxu0 0.0
    %2776 = vmatpush2.msra.mxu0 0.0
    %2777 = vmatprep.subr.mxu0 0.0
    %2778 = vmatpush2.msra.mxu0 0.0
    %2779 = vmatprep.subr.mxu0 0.0
    %2780 = vmatpush2.msra.mxu0 0.0
    %2781 = vmatprep.subr.mxu0 0.0
    %2782 = vmatpush2.msra.mxu0 0.0
    %2783 = vmatprep.subr.mxu0 0.0
    %2784 = vmatpush2.msra.mxu0 0.0
    %2785 = vmatprep.subr.mxu0 0.0
    %2786 = vmatpush2.msra.mxu0 0.0
    %2787 = vmatprep.subr.mxu0 0.0
    %2788 = vmatpush2.msra.mxu0 0.0
    %2789 = vmatprep.subr.mxu0 0.0
    %2790 = vmatpush2.msra.mxu0 0.0
    %2791 = vmatprep.subr.mxu0 0.0
    %2792 = vmatpush2.msra.mxu0 0.0
    %2793 = vmatprep.subr.mxu0 0.0
    %2794 = vmatpush2.msra.mxu0 0.0
    %2795 = vmatprep.subr.mxu0 0.0
    %2796 = vmatpush2.msra.mxu0 0.0
    %2797 = vmatprep.subr.mxu0 0.0
    %2798 = vmatpush2.msra.mxu0 0.0
    %2799 = vmatprep.subr.mxu0 0.0
    %2800 = vmatpush2.msra.mxu0 0.0
    %2801 = vmatprep.mubr.f32.mxu0 0.0
    %2802 = vmatmul.mubr.f32.gmra.mxu0 %v2672
    %v2803 = vpop.f32.mrf.mxu0
    %v2804 = vadd.f32 0.0, %v2803
    %v2805 = vpop.f32.mrf.mxu0
    %v2806 = vadd.f32 0.0, %v2805
    %2807 = vdwg.mxu0
    %2808 = vmatprep.subr.mxu0 %v2736
    %2809 = vmatpush1.msra.mxu0 %v2735
    %2810 = vmatprep.subr.mxu0 %v2732
    %2811 = vmatpush1.msra.mxu0 %v2731
    %2812 = vmatprep.subr.mxu0 %v2728
    %2813 = vmatpush1.msra.mxu0 %v2727
    %2814 = vmatprep.subr.mxu0 %v2724
    %2815 = vmatpush1.msra.mxu0 %v2723
    %2816 = vmatprep.subr.mxu0 %v2720
    %2817 = vmatpush1.msra.mxu0 %v2719
    %2818 = vmatprep.subr.mxu0 %v2716
    %2819 = vmatpush1.msra.mxu0 %v2715
    %2820 = vmatprep.subr.mxu0 %v2712
    %2821 = vmatpush1.msra.mxu0 %v2711
    %2822 = vmatprep.subr.mxu0 %v2708
    %2823 = vmatpush1.msra.mxu0 %v2707
    %2824 = vmatprep.subr.mxu0 %v2704
    %2825 = vmatpush1.msra.mxu0 %v2703
    %2826 = vmatprep.subr.mxu0 %v2700
    %2827 = vmatpush1.msra.mxu0 %v2699
    %2828 = vmatprep.subr.mxu0 %v2696
    %2829 = vmatpush1.msra.mxu0 %v2695
    %2830 = vmatprep.subr.mxu0 %v2692
    %2831 = vmatpush1.msra.mxu0 %v2691
    %2832 = vmatprep.subr.mxu0 %v2688
    %2833 = vmatpush1.msra.mxu0 %v2687
    %2834 = vmatprep.subr.mxu0 %v2684
    %2835 = vmatpush1.msra.mxu0 %v2683
    %2836 = vmatprep.subr.mxu0 %v2680
    %2837 = vmatpush1.msra.mxu0 %v2679
    %2838 = vmatprep.subr.mxu0 %v2676
    %2839 = vmatpush1.msra.mxu0 %v2675
    %2840 = vmatprep.subr.mxu0 0.0
    %2841 = vmatpush2.msra.mxu0 0.0
    %2842 = vmatprep.subr.mxu0 0.0
    %2843 = vmatpush2.msra.mxu0 0.0
    %2844 = vmatprep.subr.mxu0 0.0
    %2845 = vmatpush2.msra.mxu0 0.0
    %2846 = vmatprep.subr.mxu0 0.0
    %2847 = vmatpush2.msra.mxu0 0.0
    %2848 = vmatprep.subr.mxu0 0.0
    %2849 = vmatpush2.msra.mxu0 0.0
    %2850 = vmatprep.subr.mxu0 0.0
    %2851 = vmatpush2.msra.mxu0 0.0
    %2852 = vmatprep.subr.mxu0 0.0
    %2853 = vmatpush2.msra.mxu0 0.0
    %2854 = vmatprep.subr.mxu0 0.0
    %2855 = vmatpush2.msra.mxu0 0.0
    %2856 = vmatprep.subr.mxu0 0.0
    %2857 = vmatpush2.msra.mxu0 0.0
    %2858 = vmatprep.subr.mxu0 0.0
    %2859 = vmatpush2.msra.mxu0 0.0
    %2860 = vmatprep.subr.mxu0 0.0
    %2861 = vmatpush2.msra.mxu0 0.0
    %2862 = vmatprep.subr.mxu0 0.0
    %2863 = vmatpush2.msra.mxu0 0.0
    %2864 = vmatprep.subr.mxu0 0.0
    %2865 = vmatpush2.msra.mxu0 0.0
    %2866 = vmatprep.subr.mxu0 0.0
    %2867 = vmatpush2.msra.mxu0 0.0
    %2868 = vmatprep.subr.mxu0 0.0
    %2869 = vmatpush2.msra.mxu0 0.0
    %2870 = vmatprep.subr.mxu0 0.0
    %2871 = vmatpush2.msra.mxu0 0.0
    %2872 = vmatprep.mubr.f32.mxu0 0.0
    %2873 = vmatmul.mubr.f32.gmra.mxu0 %v2672
    %v2874 = vpop.f32.mrf.mxu0
    %v2875 = vadd.f32 0.0, %v2874
    %v2876 = vpop.f32.mrf.mxu0
    %v2877 = vadd.f32 0.0, %v2876
    %2878 = vdwg.mxu0
    %v2879 = vadd.f32 %v2877, %v1838
    %s2880 = scalar_lea.vmem [#allocation11], 8
    %2881 = vst [vmem:[%s2880] sm:$0xff] %v2879
    %v2882 = vsub.f32 %v2879, %v1840
    %2883 = vmax.xlane.f32.xlu0 %v2882
    %v2884 = vpop.xlane.xlu0 %2883
    %vm2885 = vcmp.eq.f32.partialorder %v2882, %v2884
    %v2886 = vsel %vm2885, 1, 0
    %v2887 = vcvt.s32.f32 %v2886
    %v2888 = vld [vmem:[#allocation8] sm:$0xff]
    %v2889 = vld [vmem:[#allocation8 + $0x8] sm:$0xff]
    %v2890 = vld [vmem:[#allocation8 + $0x10] sm:$0xff]
    %v2891 = vld [vmem:[#allocation8 + $0x18] sm:$0xff]
    %v2892 = vld [vmem:[#allocation8 + $0x20] sm:$0xff]
    %v2893 = vld [vmem:[#allocation8 + $0x28] sm:$0xff]
    %v2894 = vld [vmem:[#allocation8 + $0x30] sm:$0xff]
    %v2895 = vld [vmem:[#allocation8 + $0x38] sm:$0xff]
    %v2896 = vld [vmem:[#allocation8 + $0x40] sm:$0xff]
    %v2897 = vld [vmem:[#allocation8 + $0x48] sm:$0xff]
    %v2898 = vld [vmem:[#allocation8 + $0x50] sm:$0xff]
    %v2899 = vld [vmem:[#allocation8 + $0x58] sm:$0xff]
    %v2900 = vld [vmem:[#allocation8 + $0x60] sm:$0xff]
    %v2901 = vld [vmem:[#allocation8 + $0x68] sm:$0xff]
    %v2902 = vld [vmem:[#allocation8 + $0x70] sm:$0xff]
    %v2903 = vld [vmem:[#allocation8 + $0x78] sm:$0xff]
    %v2904 = vld [vmem:[#allocation8 + $0x80] sm:$0xff]
    %v2905 = vld [vmem:[#allocation8 + $0x88] sm:$0xff]
    %v2906 = vld [vmem:[#allocation8 + $0x90] sm:$0xff]
    %v2907 = vld [vmem:[#allocation8 + $0x98] sm:$0xff]
    %v2908 = vld [vmem:[#allocation8 + $0xa0] sm:$0xff]
    %v2909 = vld [vmem:[#allocation8 + $0xa8] sm:$0xff]
    %v2910 = vld [vmem:[#allocation8 + $0xb0] sm:$0xff]
    %v2911 = vld [vmem:[#allocation8 + $0xb8] sm:$0xff]
    %v2912 = vld [vmem:[#allocation8 + $0xc0] sm:$0xff]
    %v2913 = vld [vmem:[#allocation8 + $0xc8] sm:$0xff]
    %v2914 = vld [vmem:[#allocation8 + $0xd0] sm:$0xff]
    %v2915 = vld [vmem:[#allocation8 + $0xd8] sm:$0xff]
    %v2916 = vld [vmem:[#allocation8 + $0xe0] sm:$0xff]
    %v2917 = vld [vmem:[#allocation8 + $0xe8] sm:$0xff]
    %v2918 = vld [vmem:[#allocation8 + $0xf0] sm:$0xff]
    %v2919 = vld [vmem:[#allocation8 + $0xf8] sm:$0xff]
    %v2920 = vld [vmem:[#allocation8 + $0x100] sm:$0xff]
    %v2921 = vld [vmem:[#allocation8 + $0x108] sm:$0xff]
    %v2922 = vld [vmem:[#allocation8 + $0x110] sm:$0xff]
    %v2923 = vld [vmem:[#allocation8 + $0x118] sm:$0xff]
    %v2924 = vld [vmem:[#allocation8 + $0x120] sm:$0xff]
    %v2925 = vld [vmem:[#allocation8 + $0x128] sm:$0xff]
    %v2926 = vld [vmem:[#allocation8 + $0x130] sm:$0xff]
    %v2927 = vld [vmem:[#allocation8 + $0x138] sm:$0xff]
    %v2928 = vld [vmem:[#allocation8 + $0x140] sm:$0xff]
    %v2929 = vld [vmem:[#allocation8 + $0x148] sm:$0xff]
    %v2930 = vld [vmem:[#allocation8 + $0x150] sm:$0xff]
    %v2931 = vld [vmem:[#allocation8 + $0x158] sm:$0xff]
    %v2932 = vld [vmem:[#allocation8 + $0x160] sm:$0xff]
    %v2933 = vld [vmem:[#allocation8 + $0x168] sm:$0xff]
    %v2934 = vld [vmem:[#allocation8 + $0x170] sm:$0xff]
    %v2935 = vld [vmem:[#allocation8 + $0x178] sm:$0xff]
    %2936 = vmatprep.subr.mxu0 %v2934
    %2937 = vmatpush1.msra.mxu0 %v2933
    %2938 = vmatprep.subr.mxu0 %v2931
    %2939 = vmatpush1.msra.mxu0 %v2930
    %2940 = vmatprep.subr.mxu0 %v2928
    %2941 = vmatpush1.msra.mxu0 %v2927
    %2942 = vmatprep.subr.mxu0 %v2925
    %2943 = vmatpush1.msra.mxu0 %v2924
    %2944 = vmatprep.subr.mxu0 %v2922
    %2945 = vmatpush1.msra.mxu0 %v2921
    %2946 = vmatprep.subr.mxu0 %v2919
    %2947 = vmatpush1.msra.mxu0 %v2918
    %2948 = vmatprep.subr.mxu0 %v2916
    %2949 = vmatpush1.msra.mxu0 %v2915
    %2950 = vmatprep.subr.mxu0 %v2913
    %2951 = vmatpush1.msra.mxu0 %v2912
    %2952 = vmatprep.subr.mxu0 %v2910
    %2953 = vmatpush1.msra.mxu0 %v2909
    %2954 = vmatprep.subr.mxu0 %v2907
    %2955 = vmatpush1.msra.mxu0 %v2906
    %2956 = vmatprep.subr.mxu0 %v2904
    %2957 = vmatpush1.msra.mxu0 %v2903
    %2958 = vmatprep.subr.mxu0 %v2901
    %2959 = vmatpush1.msra.mxu0 %v2900
    %2960 = vmatprep.subr.mxu0 %v2898
    %2961 = vmatpush1.msra.mxu0 %v2897
    %2962 = vmatprep.subr.mxu0 %v2895
    %2963 = vmatpush1.msra.mxu0 %v2894
    %2964 = vmatprep.subr.mxu0 %v2892
    %2965 = vmatpush1.msra.mxu0 %v2891
    %2966 = vmatprep.subr.mxu0 %v2889
    %2967 = vmatpush1.msra.mxu0 %v2888
    %2968 = vmatprep.subr.mxu0 0.0
    %2969 = vmatpush2.msra.mxu0 0.0
    %2970 = vmatprep.subr.mxu0 0.0
    %2971 = vmatpush2.msra.mxu0 0.0
    %2972 = vmatprep.subr.mxu0 0.0
    %2973 = vmatpush2.msra.mxu0 0.0
    %2974 = vmatprep.subr.mxu0 0.0
    %2975 = vmatpush2.msra.mxu0 0.0
    %2976 = vmatprep.subr.mxu0 0.0
    %2977 = vmatpush2.msra.mxu0 0.0
    %2978 = vmatprep.subr.mxu0 0.0
    %2979 = vmatpush2.msra.mxu0 0.0
    %2980 = vmatprep.subr.mxu0 0.0
    %2981 = vmatpush2.msra.mxu0 0.0
    %2982 = vmatprep.subr.mxu0 0.0
    %2983 = vmatpush2.msra.mxu0 0.0
    %2984 = vmatprep.subr.mxu0 0.0
    %2985 = vmatpush2.msra.mxu0 0.0
    %2986 = vmatprep.subr.mxu0 0.0
    %2987 = vmatpush2.msra.mxu0 0.0
    %2988 = vmatprep.subr.mxu0 0.0
    %2989 = vmatpush2.msra.mxu0 0.0
    %2990 = vmatprep.subr.mxu0 0.0
    %2991 = vmatpush2.msra.mxu0 0.0
    %2992 = vmatprep.subr.mxu0 0.0
    %2993 = vmatpush2.msra.mxu0 0.0
    %2994 = vmatprep.subr.mxu0 0.0
    %2995 = vmatpush2.msra.mxu0 0.0
    %2996 = vmatprep.subr.mxu0 0.0
    %2997 = vmatpush2.msra.mxu0 0.0
    %2998 = vmatprep.subr.mxu0 0.0
    %2999 = vmatpush2.msra.mxu0 0.0
    %3000 = vmatprep.mubr.f32.mxu0 0.0
    %3001 = vmatmul.mubr.f32.gmra.mxu0 %v2887
    %v3002 = vpop.f32.mrf.mxu0
    %v3003 = vadd.f32 0.0, %v3002
    %v3004 = vpop.f32.mrf.mxu0
    %v3005 = vadd.f32 0.0, %v3004
    %3006 = vdwg.mxu0
    %3007 = vmatprep.subr.mxu0 0.0
    %3008 = vmatpush1.msra.mxu0 %v2935
    %3009 = vmatprep.subr.mxu0 0.0
    %3010 = vmatpush1.msra.mxu0 %v2932
    %3011 = vmatprep.subr.mxu0 0.0
    %3012 = vmatpush1.msra.mxu0 %v2929
    %3013 = vmatprep.subr.mxu0 0.0
    %3014 = vmatpush1.msra.mxu0 %v2926
    %3015 = vmatprep.subr.mxu0 0.0
    %3016 = vmatpush1.msra.mxu0 %v2923
    %3017 = vmatprep.subr.mxu0 0.0
    %3018 = vmatpush1.msra.mxu0 %v2920
    %3019 = vmatprep.subr.mxu0 0.0
    %3020 = vmatpush1.msra.mxu0 %v2917
    %3021 = vmatprep.subr.mxu0 0.0
    %3022 = vmatpush1.msra.mxu0 %v2914
    %3023 = vmatprep.subr.mxu0 0.0
    %3024 = vmatpush1.msra.mxu0 %v2911
    %3025 = vmatprep.subr.mxu0 0.0
    %3026 = vmatpush1.msra.mxu0 %v2908
    %3027 = vmatprep.subr.mxu0 0.0
    %3028 = vmatpush1.msra.mxu0 %v2905
    %3029 = vmatprep.subr.mxu0 0.0
    %3030 = vmatpush1.msra.mxu0 %v2902
    %3031 = vmatprep.subr.mxu0 0.0
    %3032 = vmatpush1.msra.mxu0 %v2899
    %3033 = vmatprep.subr.mxu0 0.0
    %3034 = vmatpush1.msra.mxu0 %v2896
    %3035 = vmatprep.subr.mxu0 0.0
    %3036 = vmatpush1.msra.mxu0 %v2893
    %3037 = vmatprep.subr.mxu0 0.0
    %3038 = vmatpush1.msra.mxu0 %v2890
    %3039 = vmatprep.subr.mxu0 0.0
    %3040 = vmatpush2.msra.mxu0 0.0
    %3041 = vmatprep.subr.mxu0 0.0
    %3042 = vmatpush2.msra.mxu0 0.0
    %3043 = vmatprep.subr.mxu0 0.0
    %3044 = vmatpush2.msra.mxu0 0.0
    %3045 = vmatprep.subr.mxu0 0.0
    %3046 = vmatpush2.msra.mxu0 0.0
    %3047 = vmatprep.subr.mxu0 0.0
    %3048 = vmatpush2.msra.mxu0 0.0
    %3049 = vmatprep.subr.mxu0 0.0
    %3050 = vmatpush2.msra.mxu0 0.0
    %3051 = vmatprep.subr.mxu0 0.0
    %3052 = vmatpush2.msra.mxu0 0.0
    %3053 = vmatprep.subr.mxu0 0.0
    %3054 = vmatpush2.msra.mxu0 0.0
    %3055 = vmatprep.subr.mxu0 0.0
    %3056 = vmatpush2.msra.mxu0 0.0
    %3057 = vmatprep.subr.mxu0 0.0
    %3058 = vmatpush2.msra.mxu0 0.0
    %3059 = vmatprep.subr.mxu0 0.0
    %3060 = vmatpush2.msra.mxu0 0.0
    %3061 = vmatprep.subr.mxu0 0.0
    %3062 = vmatpush2.msra.mxu0 0.0
    %3063 = vmatprep.subr.mxu0 0.0
    %3064 = vmatpush2.msra.mxu0 0.0
    %3065 = vmatprep.subr.mxu0 0.0
    %3066 = vmatpush2.msra.mxu0 0.0
    %3067 = vmatprep.subr.mxu0 0.0
    %3068 = vmatpush2.msra.mxu0 0.0
    %3069 = vmatprep.subr.mxu0 0.0
    %3070 = vmatpush2.msra.mxu0 0.0
    %3071 = vmatprep.mubr.f32.mxu0 0.0
    %3072 = vmatmul.mubr.f32.gmra.mxu0 %v2887
    %v3073 = vpop.f32.mrf.mxu0
    %v3074 = vadd.f32 0.0, %v3073
    %v3075 = vpop.f32.mrf.mxu0
    %3076 = vdwg.mxu0
    %v3077 = vadd.f32 %v3003, %v2804
    %v3078 = vxor.u32 %v3077, 2147483648
    %v3079 = vmul.f32 %v3078, 1.442695
    %v3080 = vpow.pop %v3079
    %v3081 = vadd.f32 %v3080, 1.0
    %v3082 = vrcp.pop %v3081
    %v3083 = vmul.f32 1.0, %v3082
    %v3084 = vadd.f32 %v3005, %v2806
    %v3085 = vxor.u32 %v3084, 2147483648
    %v3086 = vmul.f32 %v3085, 1.442695
    %v3087 = vpow.pop %v3086
    %v3088 = vadd.f32 %v3087, 1.0
    %v3089 = vrcp.pop %v3088
    %v3090 = vmul.f32 1.0, %v3089
    %v3091 = vadd.f32 %v2875, %v1837
    %v3092 = vmul.f32 %v3083, %v3091
    %v3093 = vadd.f32 %v3074, %v3092
    %v3094 = vtanh.pop %v3093
    %v3095 = vsub.f32 1.0, %v3090
    %v3096 = vmul.f32 %v3095, %v3094
    %v3097 = vmul.f32 %v3090, %v2672
    %v3098 = vadd.f32 %v3096, %v3097
    %v3099 = vld [vmem:[#allocation9] sm:$0xff]
    %v3100 = vld [vmem:[#allocation9 + $0x8] sm:$0xff]
    %v3101 = vld [vmem:[#allocation9 + $0x10] sm:$0xff]
    %v3102 = vld [vmem:[#allocation9 + $0x18] sm:$0xff]
    %v3103 = vld [vmem:[#allocation9 + $0x20] sm:$0xff]
    %v3104 = vld [vmem:[#allocation9 + $0x28] sm:$0xff]
    %v3105 = vld [vmem:[#allocation9 + $0x30] sm:$0xff]
    %v3106 = vld [vmem:[#allocation9 + $0x38] sm:$0xff]
    %v3107 = vld [vmem:[#allocation9 + $0x40] sm:$0xff]
    %v3108 = vld [vmem:[#allocation9 + $0x48] sm:$0xff]
    %v3109 = vld [vmem:[#allocation9 + $0x50] sm:$0xff]
    %v3110 = vld [vmem:[#allocation9 + $0x58] sm:$0xff]
    %v3111 = vld [vmem:[#allocation9 + $0x60] sm:$0xff]
    %v3112 = vld [vmem:[#allocation9 + $0x68] sm:$0xff]
    %v3113 = vld [vmem:[#allocation9 + $0x70] sm:$0xff]
    %v3114 = vld [vmem:[#allocation9 + $0x78] sm:$0xff]
    %v3115 = vld [vmem:[#allocation9 + $0x80] sm:$0xff]
    %v3116 = vld [vmem:[#allocation9 + $0x88] sm:$0xff]
    %v3117 = vld [vmem:[#allocation9 + $0x90] sm:$0xff]
    %v3118 = vld [vmem:[#allocation9 + $0x98] sm:$0xff]
    %v3119 = vld [vmem:[#allocation9 + $0xa0] sm:$0xff]
    %v3120 = vld [vmem:[#allocation9 + $0xa8] sm:$0xff]
    %v3121 = vld [vmem:[#allocation9 + $0xb0] sm:$0xff]
    %v3122 = vld [vmem:[#allocation9 + $0xb8] sm:$0xff]
    %v3123 = vld [vmem:[#allocation9 + $0xc0] sm:$0xff]
    %v3124 = vld [vmem:[#allocation9 + $0xc8] sm:$0xff]
    %v3125 = vld [vmem:[#allocation9 + $0xd0] sm:$0xff]
    %v3126 = vld [vmem:[#allocation9 + $0xd8] sm:$0xff]
    %v3127 = vld [vmem:[#allocation9 + $0xe0] sm:$0xff]
    %v3128 = vld [vmem:[#allocation9 + $0xe8] sm:$0xff]
    %v3129 = vld [vmem:[#allocation9 + $0xf0] sm:$0xff]
    %v3130 = vld [vmem:[#allocation9 + $0xf8] sm:$0xff]
    %v3131 = vld [vmem:[#allocation9 + $0x100] sm:$0xff]
    %v3132 = vld [vmem:[#allocation9 + $0x108] sm:$0xff]
    %v3133 = vld [vmem:[#allocation9 + $0x110] sm:$0xff]
    %v3134 = vld [vmem:[#allocation9 + $0x118] sm:$0xff]
    %v3135 = vld [vmem:[#allocation9 + $0x120] sm:$0xff]
    %v3136 = vld [vmem:[#allocation9 + $0x128] sm:$0xff]
    %v3137 = vld [vmem:[#allocation9 + $0x130] sm:$0xff]
    %v3138 = vld [vmem:[#allocation9 + $0x138] sm:$0xff]
    %v3139 = vld [vmem:[#allocation9 + $0x140] sm:$0xff]
    %v3140 = vld [vmem:[#allocation9 + $0x148] sm:$0xff]
    %v3141 = vld [vmem:[#allocation9 + $0x150] sm:$0xff]
    %v3142 = vld [vmem:[#allocation9 + $0x158] sm:$0xff]
    %v3143 = vld [vmem:[#allocation9 + $0x160] sm:$0xff]
    %v3144 = vld [vmem:[#allocation9 + $0x168] sm:$0xff]
    %v3145 = vld [vmem:[#allocation9 + $0x170] sm:$0xff]
    %v3146 = vld [vmem:[#allocation9 + $0x178] sm:$0xff]
    %v3147 = vld [vmem:[#allocation9 + $0x180] sm:$0xff]
    %v3148 = vld [vmem:[#allocation9 + $0x188] sm:$0xff]
    %v3149 = vld [vmem:[#allocation9 + $0x190] sm:$0xff]
    %v3150 = vld [vmem:[#allocation9 + $0x198] sm:$0xff]
    %v3151 = vld [vmem:[#allocation9 + $0x1a0] sm:$0xff]
    %v3152 = vld [vmem:[#allocation9 + $0x1a8] sm:$0xff]
    %v3153 = vld [vmem:[#allocation9 + $0x1b0] sm:$0xff]
    %v3154 = vld [vmem:[#allocation9 + $0x1b8] sm:$0xff]
    %v3155 = vld [vmem:[#allocation9 + $0x1c0] sm:$0xff]
    %v3156 = vld [vmem:[#allocation9 + $0x1c8] sm:$0xff]
    %v3157 = vld [vmem:[#allocation9 + $0x1d0] sm:$0xff]
    %v3158 = vld [vmem:[#allocation9 + $0x1d8] sm:$0xff]
    %v3159 = vld [vmem:[#allocation9 + $0x1e0] sm:$0xff]
    %v3160 = vld [vmem:[#allocation9 + $0x1e8] sm:$0xff]
    %v3161 = vld [vmem:[#allocation9 + $0x1f0] sm:$0xff]
    %v3162 = vld [vmem:[#allocation9 + $0x1f8] sm:$0xff]
    %3163 = vmatprep.subr.mxu0 %v3160
    %3164 = vmatpush1.msra.mxu0 %v3159
    %3165 = vmatprep.subr.mxu0 %v3156
    %3166 = vmatpush1.msra.mxu0 %v3155
    %3167 = vmatprep.subr.mxu0 %v3152
    %3168 = vmatpush1.msra.mxu0 %v3151
    %3169 = vmatprep.subr.mxu0 %v3148
    %3170 = vmatpush1.msra.mxu0 %v3147
    %3171 = vmatprep.subr.mxu0 %v3144
    %3172 = vmatpush1.msra.mxu0 %v3143
    %3173 = vmatprep.subr.mxu0 %v3140
    %3174 = vmatpush1.msra.mxu0 %v3139
    %3175 = vmatprep.subr.mxu0 %v3136
    %3176 = vmatpush1.msra.mxu0 %v3135
    %3177 = vmatprep.subr.mxu0 %v3132
    %3178 = vmatpush1.msra.mxu0 %v3131
    %3179 = vmatprep.subr.mxu0 %v3128
    %3180 = vmatpush1.msra.mxu0 %v3127
    %3181 = vmatprep.subr.mxu0 %v3124
    %3182 = vmatpush1.msra.mxu0 %v3123
    %3183 = vmatprep.subr.mxu0 %v3120
    %3184 = vmatpush1.msra.mxu0 %v3119
    %3185 = vmatprep.subr.mxu0 %v3116
    %3186 = vmatpush1.msra.mxu0 %v3115
    %3187 = vmatprep.subr.mxu0 %v3112
    %3188 = vmatpush1.msra.mxu0 %v3111
    %3189 = vmatprep.subr.mxu0 %v3108
    %3190 = vmatpush1.msra.mxu0 %v3107
    %3191 = vmatprep.subr.mxu0 %v3104
    %3192 = vmatpush1.msra.mxu0 %v3103
    %3193 = vmatprep.subr.mxu0 %v3100
    %3194 = vmatpush1.msra.mxu0 %v3099
    %3195 = vmatprep.subr.mxu0 0.0
    %3196 = vmatpush2.msra.mxu0 0.0
    %3197 = vmatprep.subr.mxu0 0.0
    %3198 = vmatpush2.msra.mxu0 0.0
    %3199 = vmatprep.subr.mxu0 0.0
    %3200 = vmatpush2.msra.mxu0 0.0
    %3201 = vmatprep.subr.mxu0 0.0
    %3202 = vmatpush2.msra.mxu0 0.0
    %3203 = vmatprep.subr.mxu0 0.0
    %3204 = vmatpush2.msra.mxu0 0.0
    %3205 = vmatprep.subr.mxu0 0.0
    %3206 = vmatpush2.msra.mxu0 0.0
    %3207 = vmatprep.subr.mxu0 0.0
    %3208 = vmatpush2.msra.mxu0 0.0
    %3209 = vmatprep.subr.mxu0 0.0
    %3210 = vmatpush2.msra.mxu0 0.0
    %3211 = vmatprep.subr.mxu0 0.0
    %3212 = vmatpush2.msra.mxu0 0.0
    %3213 = vmatprep.subr.mxu0 0.0
    %3214 = vmatpush2.msra.mxu0 0.0
    %3215 = vmatprep.subr.mxu0 0.0
    %3216 = vmatpush2.msra.mxu0 0.0
    %3217 = vmatprep.subr.mxu0 0.0
    %3218 = vmatpush2.msra.mxu0 0.0
    %3219 = vmatprep.subr.mxu0 0.0
    %3220 = vmatpush2.msra.mxu0 0.0
    %3221 = vmatprep.subr.mxu0 0.0
    %3222 = vmatpush2.msra.mxu0 0.0
    %3223 = vmatprep.subr.mxu0 0.0
    %3224 = vmatpush2.msra.mxu0 0.0
    %3225 = vmatprep.subr.mxu0 0.0
    %3226 = vmatpush2.msra.mxu0 0.0
    %3227 = vmatprep.mubr.f32.mxu0 0.0
    %3228 = vmatmul.mubr.f32.gmra.mxu0 %v3098
    %v3229 = vpop.f32.mrf.mxu0
    %v3230 = vadd.f32 0.0, %v3229
    %v3231 = vpop.f32.mrf.mxu0
    %v3232 = vadd.f32 0.0, %v3231
    %3233 = vdwg.mxu0
    %3234 = vmatprep.subr.mxu0 %v3162
    %3235 = vmatpush1.msra.mxu0 %v3161
    %3236 = vmatprep.subr.mxu0 %v3158
    %3237 = vmatpush1.msra.mxu0 %v3157
    %3238 = vmatprep.subr.mxu0 %v3154
    %3239 = vmatpush1.msra.mxu0 %v3153
    %3240 = vmatprep.subr.mxu0 %v3150
    %3241 = vmatpush1.msra.mxu0 %v3149
    %3242 = vmatprep.subr.mxu0 %v3146
    %3243 = vmatpush1.msra.mxu0 %v3145
    %3244 = vmatprep.subr.mxu0 %v3142
    %3245 = vmatpush1.msra.mxu0 %v3141
    %3246 = vmatprep.subr.mxu0 %v3138
    %3247 = vmatpush1.msra.mxu0 %v3137
    %3248 = vmatprep.subr.mxu0 %v3134
    %3249 = vmatpush1.msra.mxu0 %v3133
    %3250 = vmatprep.subr.mxu0 %v3130
    %3251 = vmatpush1.msra.mxu0 %v3129
    %3252 = vmatprep.subr.mxu0 %v3126
    %3253 = vmatpush1.msra.mxu0 %v3125
    %3254 = vmatprep.subr.mxu0 %v3122
    %3255 = vmatpush1.msra.mxu0 %v3121
    %3256 = vmatprep.subr.mxu0 %v3118
    %3257 = vmatpush1.msra.mxu0 %v3117
    %3258 = vmatprep.subr.mxu0 %v3114
    %3259 = vmatpush1.msra.mxu0 %v3113
    %3260 = vmatprep.subr.mxu0 %v3110
    %3261 = vmatpush1.msra.mxu0 %v3109
    %3262 = vmatprep.subr.mxu0 %v3106
    %3263 = vmatpush1.msra.mxu0 %v3105
    %3264 = vmatprep.subr.mxu0 %v3102
    %3265 = vmatpush1.msra.mxu0 %v3101
    %3266 = vmatprep.subr.mxu0 0.0
    %3267 = vmatpush2.msra.mxu0 0.0
    %3268 = vmatprep.subr.mxu0 0.0
    %3269 = vmatpush2.msra.mxu0 0.0
    %3270 = vmatprep.subr.mxu0 0.0
    %3271 = vmatpush2.msra.mxu0 0.0
    %3272 = vmatprep.subr.mxu0 0.0
    %3273 = vmatpush2.msra.mxu0 0.0
    %3274 = vmatprep.subr.mxu0 0.0
    %3275 = vmatpush2.msra.mxu0 0.0
    %3276 = vmatprep.subr.mxu0 0.0
    %3277 = vmatpush2.msra.mxu0 0.0
    %3278 = vmatprep.subr.mxu0 0.0
    %3279 = vmatpush2.msra.mxu0 0.0
    %3280 = vmatprep.subr.mxu0 0.0
    %3281 = vmatpush2.msra.mxu0 0.0
    %3282 = vmatprep.subr.mxu0 0.0
    %3283 = vmatpush2.msra.mxu0 0.0
    %3284 = vmatprep.subr.mxu0 0.0
    %3285 = vmatpush2.msra.mxu0 0.0
    %3286 = vmatprep.subr.mxu0 0.0
    %3287 = vmatpush2.msra.mxu0 0.0
    %3288 = vmatprep.subr.mxu0 0.0
    %3289 = vmatpush2.msra.mxu0 0.0
    %3290 = vmatprep.subr.mxu0 0.0
    %3291 = vmatpush2.msra.mxu0 0.0
    %3292 = vmatprep.subr.mxu0 0.0
    %3293 = vmatpush2.msra.mxu0 0.0
    %3294 = vmatprep.subr.mxu0 0.0
    %3295 = vmatpush2.msra.mxu0 0.0
    %3296 = vmatprep.subr.mxu0 0.0
    %3297 = vmatpush2.msra.mxu0 0.0
    %3298 = vmatprep.mubr.f32.mxu0 0.0
    %3299 = vmatmul.mubr.f32.gmra.mxu0 %v3098
    %v3300 = vpop.f32.mrf.mxu0
    %v3301 = vadd.f32 0.0, %v3300
    %v3302 = vpop.f32.mrf.mxu0
    %v3303 = vadd.f32 0.0, %v3302
    %3304 = vdwg.mxu0
    %v3305 = vadd.f32 %v3303, %v1838
    %s3306 = scalar_lea.vmem [#allocation11], 16
    %3307 = vst [vmem:[%s3306] sm:$0xff] %v3305
    %v3308 = vsub.f32 %v3305, %v1840
    %3309 = vmax.xlane.f32.xlu0 %v3308
    %v3310 = vpop.xlane.xlu0 %3309
    %vm3311 = vcmp.eq.f32.partialorder %v3308, %v3310
    %v3312 = vsel %vm3311, 1, 0
    %v3313 = vcvt.s32.f32 %v3312
    %v3314 = vld [vmem:[#allocation8] sm:$0xff]
    %v3315 = vld [vmem:[#allocation8 + $0x8] sm:$0xff]
    %v3316 = vld [vmem:[#allocation8 + $0x10] sm:$0xff]
    %v3317 = vld [vmem:[#allocation8 + $0x18] sm:$0xff]
    %v3318 = vld [vmem:[#allocation8 + $0x20] sm:$0xff]
    %v3319 = vld [vmem:[#allocation8 + $0x28] sm:$0xff]
    %v3320 = vld [vmem:[#allocation8 + $0x30] sm:$0xff]
    %v3321 = vld [vmem:[#allocation8 + $0x38] sm:$0xff]
    %v3322 = vld [vmem:[#allocation8 + $0x40] sm:$0xff]
    %v3323 = vld [vmem:[#allocation8 + $0x48] sm:$0xff]
    %v3324 = vld [vmem:[#allocation8 + $0x50] sm:$0xff]
    %v3325 = vld [vmem:[#allocation8 + $0x58] sm:$0xff]
    %v3326 = vld [vmem:[#allocation8 + $0x60] sm:$0xff]
    %v3327 = vld [vmem:[#allocation8 + $0x68] sm:$0xff]
    %v3328 = vld [vmem:[#allocation8 + $0x70] sm:$0xff]
    %v3329 = vld [vmem:[#allocation8 + $0x78] sm:$0xff]
    %v3330 = vld [vmem:[#allocation8 + $0x80] sm:$0xff]
    %v3331 = vld [vmem:[#allocation8 + $0x88] sm:$0xff]
    %v3332 = vld [vmem:[#allocation8 + $0x90] sm:$0xff]
    %v3333 = vld [vmem:[#allocation8 + $0x98] sm:$0xff]
    %v3334 = vld [vmem:[#allocation8 + $0xa0] sm:$0xff]
    %v3335 = vld [vmem:[#allocation8 + $0xa8] sm:$0xff]
    %v3336 = vld [vmem:[#allocation8 + $0xb0] sm:$0xff]
    %v3337 = vld [vmem:[#allocation8 + $0xb8] sm:$0xff]
    %v3338 = vld [vmem:[#allocation8 + $0xc0] sm:$0xff]
    %v3339 = vld [vmem:[#allocation8 + $0xc8] sm:$0xff]
    %v3340 = vld [vmem:[#allocation8 + $0xd0] sm:$0xff]
    %v3341 = vld [vmem:[#allocation8 + $0xd8] sm:$0xff]
    %v3342 = vld [vmem:[#allocation8 + $0xe0] sm:$0xff]
    %v3343 = vld [vmem:[#allocation8 + $0xe8] sm:$0xff]
    %v3344 = vld [vmem:[#allocation8 + $0xf0] sm:$0xff]
    %v3345 = vld [vmem:[#allocation8 + $0xf8] sm:$0xff]
    %v3346 = vld [vmem:[#allocation8 + $0x100] sm:$0xff]
    %v3347 = vld [vmem:[#allocation8 + $0x108] sm:$0xff]
    %v3348 = vld [vmem:[#allocation8 + $0x110] sm:$0xff]
    %v3349 = vld [vmem:[#allocation8 + $0x118] sm:$0xff]
    %v3350 = vld [vmem:[#allocation8 + $0x120] sm:$0xff]
    %v3351 = vld [vmem:[#allocation8 + $0x128] sm:$0xff]
    %v3352 = vld [vmem:[#allocation8 + $0x130] sm:$0xff]
    %v3353 = vld [vmem:[#allocation8 + $0x138] sm:$0xff]
    %v3354 = vld [vmem:[#allocation8 + $0x140] sm:$0xff]
    %v3355 = vld [vmem:[#allocation8 + $0x148] sm:$0xff]
    %v3356 = vld [vmem:[#allocation8 + $0x150] sm:$0xff]
    %v3357 = vld [vmem:[#allocation8 + $0x158] sm:$0xff]
    %v3358 = vld [vmem:[#allocation8 + $0x160] sm:$0xff]
    %v3359 = vld [vmem:[#allocation8 + $0x168] sm:$0xff]
    %v3360 = vld [vmem:[#allocation8 + $0x170] sm:$0xff]
    %v3361 = vld [vmem:[#allocation8 + $0x178] sm:$0xff]
    %3362 = vmatprep.subr.mxu0 %v3360
    %3363 = vmatpush1.msra.mxu0 %v3359
    %3364 = vmatprep.subr.mxu0 %v3357
    %3365 = vmatpush1.msra.mxu0 %v3356
    %3366 = vmatprep.subr.mxu0 %v3354
    %3367 = vmatpush1.msra.mxu0 %v3353
    %3368 = vmatprep.subr.mxu0 %v3351
    %3369 = vmatpush1.msra.mxu0 %v3350
    %3370 = vmatprep.subr.mxu0 %v3348
    %3371 = vmatpush1.msra.mxu0 %v3347
    %3372 = vmatprep.subr.mxu0 %v3345
    %3373 = vmatpush1.msra.mxu0 %v3344
    %3374 = vmatprep.subr.mxu0 %v3342
    %3375 = vmatpush1.msra.mxu0 %v3341
    %3376 = vmatprep.subr.mxu0 %v3339
    %3377 = vmatpush1.msra.mxu0 %v3338
    %3378 = vmatprep.subr.mxu0 %v3336
    %3379 = vmatpush1.msra.mxu0 %v3335
    %3380 = vmatprep.subr.mxu0 %v3333
    %3381 = vmatpush1.msra.mxu0 %v3332
    %3382 = vmatprep.subr.mxu0 %v3330
    %3383 = vmatpush1.msra.mxu0 %v3329
    %3384 = vmatprep.subr.mxu0 %v3327
    %3385 = vmatpush1.msra.mxu0 %v3326
    %3386 = vmatprep.subr.mxu0 %v3324
    %3387 = vmatpush1.msra.mxu0 %v3323
    %3388 = vmatprep.subr.mxu0 %v3321
    %3389 = vmatpush1.msra.mxu0 %v3320
    %3390 = vmatprep.subr.mxu0 %v3318
    %3391 = vmatpush1.msra.mxu0 %v3317
    %3392 = vmatprep.subr.mxu0 %v3315
    %3393 = vmatpush1.msra.mxu0 %v3314
    %3394 = vmatprep.subr.mxu0 0.0
    %3395 = vmatpush2.msra.mxu0 0.0
    %3396 = vmatprep.subr.mxu0 0.0
    %3397 = vmatpush2.msra.mxu0 0.0
    %3398 = vmatprep.subr.mxu0 0.0
    %3399 = vmatpush2.msra.mxu0 0.0
    %3400 = vmatprep.subr.mxu0 0.0
    %3401 = vmatpush2.msra.mxu0 0.0
    %3402 = vmatprep.subr.mxu0 0.0
    %3403 = vmatpush2.msra.mxu0 0.0
    %3404 = vmatprep.subr.mxu0 0.0
    %3405 = vmatpush2.msra.mxu0 0.0
    %3406 = vmatprep.subr.mxu0 0.0
    %3407 = vmatpush2.msra.mxu0 0.0
    %3408 = vmatprep.subr.mxu0 0.0
    %3409 = vmatpush2.msra.mxu0 0.0
    %3410 = vmatprep.subr.mxu0 0.0
    %3411 = vmatpush2.msra.mxu0 0.0
    %3412 = vmatprep.subr.mxu0 0.0
    %3413 = vmatpush2.msra.mxu0 0.0
    %3414 = vmatprep.subr.mxu0 0.0
    %3415 = vmatpush2.msra.mxu0 0.0
    %3416 = vmatprep.subr.mxu0 0.0
    %3417 = vmatpush2.msra.mxu0 0.0
    %3418 = vmatprep.subr.mxu0 0.0
    %3419 = vmatpush2.msra.mxu0 0.0
    %3420 = vmatprep.subr.mxu0 0.0
    %3421 = vmatpush2.msra.mxu0 0.0
    %3422 = vmatprep.subr.mxu0 0.0
    %3423 = vmatpush2.msra.mxu0 0.0
    %3424 = vmatprep.subr.mxu0 0.0
    %3425 = vmatpush2.msra.mxu0 0.0
    %3426 = vmatprep.mubr.f32.mxu0 0.0
    %3427 = vmatmul.mubr.f32.gmra.mxu0 %v3313
    %v3428 = vpop.f32.mrf.mxu0
    %v3429 = vadd.f32 0.0, %v3428
    %v3430 = vpop.f32.mrf.mxu0
    %v3431 = vadd.f32 0.0, %v3430
    %3432 = vdwg.mxu0
    %3433 = vmatprep.subr.mxu0 0.0
    %3434 = vmatpush1.msra.mxu0 %v3361
    %3435 = vmatprep.subr.mxu0 0.0
    %3436 = vmatpush1.msra.mxu0 %v3358
    %3437 = vmatprep.subr.mxu0 0.0
    %3438 = vmatpush1.msra.mxu0 %v3355
    %3439 = vmatprep.subr.mxu0 0.0
    %3440 = vmatpush1.msra.mxu0 %v3352
    %3441 = vmatprep.subr.mxu0 0.0
    %3442 = vmatpush1.msra.mxu0 %v3349
    %3443 = vmatprep.subr.mxu0 0.0
    %3444 = vmatpush1.msra.mxu0 %v3346
    %3445 = vmatprep.subr.mxu0 0.0
    %3446 = vmatpush1.msra.mxu0 %v3343
    %3447 = vmatprep.subr.mxu0 0.0
    %3448 = vmatpush1.msra.mxu0 %v3340
    %3449 = vmatprep.subr.mxu0 0.0
    %3450 = vmatpush1.msra.mxu0 %v3337
    %3451 = vmatprep.subr.mxu0 0.0
    %3452 = vmatpush1.msra.mxu0 %v3334
    %3453 = vmatprep.subr.mxu0 0.0
    %3454 = vmatpush1.msra.mxu0 %v3331
    %3455 = vmatprep.subr.mxu0 0.0
    %3456 = vmatpush1.msra.mxu0 %v3328
    %3457 = vmatprep.subr.mxu0 0.0
    %3458 = vmatpush1.msra.mxu0 %v3325
    %3459 = vmatprep.subr.mxu0 0.0
    %3460 = vmatpush1.msra.mxu0 %v3322
    %3461 = vmatprep.subr.mxu0 0.0
    %3462 = vmatpush1.msra.mxu0 %v3319
    %3463 = vmatprep.subr.mxu0 0.0
    %3464 = vmatpush1.msra.mxu0 %v3316
    %3465 = vmatprep.subr.mxu0 0.0
    %3466 = vmatpush2.msra.mxu0 0.0
    %3467 = vmatprep.subr.mxu0 0.0
    %3468 = vmatpush2.msra.mxu0 0.0
    %3469 = vmatprep.subr.mxu0 0.0
    %3470 = vmatpush2.msra.mxu0 0.0
    %3471 = vmatprep.subr.mxu0 0.0
    %3472 = vmatpush2.msra.mxu0 0.0
    %3473 = vmatprep.subr.mxu0 0.0
    %3474 = vmatpush2.msra.mxu0 0.0
    %3475 = vmatprep.subr.mxu0 0.0
    %3476 = vmatpush2.msra.mxu0 0.0
    %3477 = vmatprep.subr.mxu0 0.0
    %3478 = vmatpush2.msra.mxu0 0.0
    %3479 = vmatprep.subr.mxu0 0.0
    %3480 = vmatpush2.msra.mxu0 0.0
    %3481 = vmatprep.subr.mxu0 0.0
    %3482 = vmatpush2.msra.mxu0 0.0
    %3483 = vmatprep.subr.mxu0 0.0
    %3484 = vmatpush2.msra.mxu0 0.0
    %3485 = vmatprep.subr.mxu0 0.0
    %3486 = vmatpush2.msra.mxu0 0.0
    %3487 = vmatprep.subr.mxu0 0.0
    %3488 = vmatpush2.msra.mxu0 0.0
    %3489 = vmatprep.subr.mxu0 0.0
    %3490 = vmatpush2.msra.mxu0 0.0
    %3491 = vmatprep.subr.mxu0 0.0
    %3492 = vmatpush2.msra.mxu0 0.0
    %3493 = vmatprep.subr.mxu0 0.0
    %3494 = vmatpush2.msra.mxu0 0.0
    %3495 = vmatprep.subr.mxu0 0.0
    %3496 = vmatpush2.msra.mxu0 0.0
    %3497 = vmatprep.mubr.f32.mxu0 0.0
    %3498 = vmatmul.mubr.f32.gmra.mxu0 %v3313
    %v3499 = vpop.f32.mrf.mxu0
    %v3500 = vadd.f32 0.0, %v3499
    %v3501 = vpop.f32.mrf.mxu0
    %3502 = vdwg.mxu0
    %v3503 = vadd.f32 %v3429, %v3230
    %v3504 = vxor.u32 %v3503, 2147483648
    %v3505 = vmul.f32 %v3504, 1.442695
    %v3506 = vpow.pop %v3505
    %v3507 = vadd.f32 %v3506, 1.0
    %v3508 = vrcp.pop %v3507
    %v3509 = vmul.f32 1.0, %v3508
    %v3510 = vadd.f32 %v3431, %v3232
    %v3511 = vxor.u32 %v3510, 2147483648
    %v3512 = vmul.f32 %v3511, 1.442695
    %v3513 = vpow.pop %v3512
    %v3514 = vadd.f32 %v3513, 1.0
    %v3515 = vrcp.pop %v3514
    %v3516 = vmul.f32 1.0, %v3515
    %v3517 = vadd.f32 %v3301, %v1837
    %v3518 = vmul.f32 %v3509, %v3517
    %v3519 = vadd.f32 %v3500, %v3518
    %v3520 = vtanh.pop %v3519
    %v3521 = vsub.f32 1.0, %v3516
    %v3522 = vmul.f32 %v3521, %v3520
    %v3523 = vmul.f32 %v3516, %v3098
    %v3524 = vadd.f32 %v3522, %v3523
    %v3525 = vld [vmem:[#allocation9] sm:$0xff]
    %v3526 = vld [vmem:[#allocation9 + $0x8] sm:$0xff]
    %v3527 = vld [vmem:[#allocation9 + $0x10] sm:$0xff]
    %v3528 = vld [vmem:[#allocation9 + $0x18] sm:$0xff]
    %v3529 = vld [vmem:[#allocation9 + $0x20] sm:$0xff]
    %v3530 = vld [vmem:[#allocation9 + $0x28] sm:$0xff]
    %v3531 = vld [vmem:[#allocation9 + $0x30] sm:$0xff]
    %v3532 = vld [vmem:[#allocation9 + $0x38] sm:$0xff]
    %v3533 = vld [vmem:[#allocation9 + $0x40] sm:$0xff]
    %v3534 = vld [vmem:[#allocation9 + $0x48] sm:$0xff]
    %v3535 = vld [vmem:[#allocation9 + $0x50] sm:$0xff]
    %v3536 = vld [vmem:[#allocation9 + $0x58] sm:$0xff]
    %v3537 = vld [vmem:[#allocation9 + $0x60] sm:$0xff]
    %v3538 = vld [vmem:[#allocation9 + $0x68] sm:$0xff]
    %v3539 = vld [vmem:[#allocation9 + $0x70] sm:$0xff]
    %v3540 = vld [vmem:[#allocation9 + $0x78] sm:$0xff]
    %v3541 = vld [vmem:[#allocation9 + $0x80] sm:$0xff]
    %v3542 = vld [vmem:[#allocation9 + $0x88] sm:$0xff]
    %v3543 = vld [vmem:[#allocation9 + $0x90] sm:$0xff]
    %v3544 = vld [vmem:[#allocation9 + $0x98] sm:$0xff]
    %v3545 = vld [vmem:[#allocation9 + $0xa0] sm:$0xff]
    %v3546 = vld [vmem:[#allocation9 + $0xa8] sm:$0xff]
    %v3547 = vld [vmem:[#allocation9 + $0xb0] sm:$0xff]
    %v3548 = vld [vmem:[#allocation9 + $0xb8] sm:$0xff]
    %v3549 = vld [vmem:[#allocation9 + $0xc0] sm:$0xff]
    %v3550 = vld [vmem:[#allocation9 + $0xc8] sm:$0xff]
    %v3551 = vld [vmem:[#allocation9 + $0xd0] sm:$0xff]
    %v3552 = vld [vmem:[#allocation9 + $0xd8] sm:$0xff]
    %v3553 = vld [vmem:[#allocation9 + $0xe0] sm:$0xff]
    %v3554 = vld [vmem:[#allocation9 + $0xe8] sm:$0xff]
    %v3555 = vld [vmem:[#allocation9 + $0xf0] sm:$0xff]
    %v3556 = vld [vmem:[#allocation9 + $0xf8] sm:$0xff]
    %v3557 = vld [vmem:[#allocation9 + $0x100] sm:$0xff]
    %v3558 = vld [vmem:[#allocation9 + $0x108] sm:$0xff]
    %v3559 = vld [vmem:[#allocation9 + $0x110] sm:$0xff]
    %v3560 = vld [vmem:[#allocation9 + $0x118] sm:$0xff]
    %v3561 = vld [vmem:[#allocation9 + $0x120] sm:$0xff]
    %v3562 = vld [vmem:[#allocation9 + $0x128] sm:$0xff]
    %v3563 = vld [vmem:[#allocation9 + $0x130] sm:$0xff]
    %v3564 = vld [vmem:[#allocation9 + $0x138] sm:$0xff]
    %v3565 = vld [vmem:[#allocation9 + $0x140] sm:$0xff]
    %v3566 = vld [vmem:[#allocation9 + $0x148] sm:$0xff]
    %v3567 = vld [vmem:[#allocation9 + $0x150] sm:$0xff]
    %v3568 = vld [vmem:[#allocation9 + $0x158] sm:$0xff]
    %v3569 = vld [vmem:[#allocation9 + $0x160] sm:$0xff]
    %v3570 = vld [vmem:[#allocation9 + $0x168] sm:$0xff]
    %v3571 = vld [vmem:[#allocation9 + $0x170] sm:$0xff]
    %v3572 = vld [vmem:[#allocation9 + $0x178] sm:$0xff]
    %v3573 = vld [vmem:[#allocation9 + $0x180] sm:$0xff]
    %v3574 = vld [vmem:[#allocation9 + $0x188] sm:$0xff]
    %v3575 = vld [vmem:[#allocation9 + $0x190] sm:$0xff]
    %v3576 = vld [vmem:[#allocation9 + $0x198] sm:$0xff]
    %v3577 = vld [vmem:[#allocation9 + $0x1a0] sm:$0xff]
    %v3578 = vld [vmem:[#allocation9 + $0x1a8] sm:$0xff]
    %v3579 = vld [vmem:[#allocation9 + $0x1b0] sm:$0xff]
    %v3580 = vld [vmem:[#allocation9 + $0x1b8] sm:$0xff]
    %v3581 = vld [vmem:[#allocation9 + $0x1c0] sm:$0xff]
    %v3582 = vld [vmem:[#allocation9 + $0x1c8] sm:$0xff]
    %v3583 = vld [vmem:[#allocation9 + $0x1d0] sm:$0xff]
    %v3584 = vld [vmem:[#allocation9 + $0x1d8] sm:$0xff]
    %v3585 = vld [vmem:[#allocation9 + $0x1e0] sm:$0xff]
    %v3586 = vld [vmem:[#allocation9 + $0x1e8] sm:$0xff]
    %v3587 = vld [vmem:[#allocation9 + $0x1f0] sm:$0xff]
    %v3588 = vld [vmem:[#allocation9 + $0x1f8] sm:$0xff]
    %3589 = vmatprep.subr.mxu0 %v3586
    %3590 = vmatpush1.msra.mxu0 %v3585
    %3591 = vmatprep.subr.mxu0 %v3582
    %3592 = vmatpush1.msra.mxu0 %v3581
    %3593 = vmatprep.subr.mxu0 %v3578
    %3594 = vmatpush1.msra.mxu0 %v3577
    %3595 = vmatprep.subr.mxu0 %v3574
    %3596 = vmatpush1.msra.mxu0 %v3573
    %3597 = vmatprep.subr.mxu0 %v3570
    %3598 = vmatpush1.msra.mxu0 %v3569
    %3599 = vmatprep.subr.mxu0 %v3566
    %3600 = vmatpush1.msra.mxu0 %v3565
    %3601 = vmatprep.subr.mxu0 %v3562
    %3602 = vmatpush1.msra.mxu0 %v3561
    %3603 = vmatprep.subr.mxu0 %v3558
    %3604 = vmatpush1.msra.mxu0 %v3557
    %3605 = vmatprep.subr.mxu0 %v3554
    %3606 = vmatpush1.msra.mxu0 %v3553
    %3607 = vmatprep.subr.mxu0 %v3550
    %3608 = vmatpush1.msra.mxu0 %v3549
    %3609 = vmatprep.subr.mxu0 %v3546
    %3610 = vmatpush1.msra.mxu0 %v3545
    %3611 = vmatprep.subr.mxu0 %v3542
    %3612 = vmatpush1.msra.mxu0 %v3541
    %3613 = vmatprep.subr.mxu0 %v3538
    %3614 = vmatpush1.msra.mxu0 %v3537
    %3615 = vmatprep.subr.mxu0 %v3534
    %3616 = vmatpush1.msra.mxu0 %v3533
    %3617 = vmatprep.subr.mxu0 %v3530
    %3618 = vmatpush1.msra.mxu0 %v3529
    %3619 = vmatprep.subr.mxu0 %v3526
    %3620 = vmatpush1.msra.mxu0 %v3525
    %3621 = vmatprep.subr.mxu0 0.0
    %3622 = vmatpush2.msra.mxu0 0.0
    %3623 = vmatprep.subr.mxu0 0.0
    %3624 = vmatpush2.msra.mxu0 0.0
    %3625 = vmatprep.subr.mxu0 0.0
    %3626 = vmatpush2.msra.mxu0 0.0
    %3627 = vmatprep.subr.mxu0 0.0
    %3628 = vmatpush2.msra.mxu0 0.0
    %3629 = vmatprep.subr.mxu0 0.0
    %3630 = vmatpush2.msra.mxu0 0.0
    %3631 = vmatprep.subr.mxu0 0.0
    %3632 = vmatpush2.msra.mxu0 0.0
    %3633 = vmatprep.subr.mxu0 0.0
    %3634 = vmatpush2.msra.mxu0 0.0
    %3635 = vmatprep.subr.mxu0 0.0
    %3636 = vmatpush2.msra.mxu0 0.0
    %3637 = vmatprep.subr.mxu0 0.0
    %3638 = vmatpush2.msra.mxu0 0.0
    %3639 = vmatprep.subr.mxu0 0.0
    %3640 = vmatpush2.msra.mxu0 0.0
    %3641 = vmatprep.subr.mxu0 0.0
    %3642 = vmatpush2.msra.mxu0 0.0
    %3643 = vmatprep.subr.mxu0 0.0
    %3644 = vmatpush2.msra.mxu0 0.0
    %3645 = vmatprep.subr.mxu0 0.0
    %3646 = vmatpush2.msra.mxu0 0.0
    %3647 = vmatprep.subr.mxu0 0.0
    %3648 = vmatpush2.msra.mxu0 0.0
    %3649 = vmatprep.subr.mxu0 0.0
    %3650 = vmatpush2.msra.mxu0 0.0
    %3651 = vmatprep.subr.mxu0 0.0
    %3652 = vmatpush2.msra.mxu0 0.0
    %3653 = vmatprep.mubr.f32.mxu0 0.0
    %3654 = vmatmul.mubr.f32.gmra.mxu0 %v3524
    %v3655 = vpop.f32.mrf.mxu0
    %v3656 = vadd.f32 0.0, %v3655
    %v3657 = vpop.f32.mrf.mxu0
    %v3658 = vadd.f32 0.0, %v3657
    %3659 = vdwg.mxu0
    %3660 = vmatprep.subr.mxu0 %v3588
    %3661 = vmatpush1.msra.mxu0 %v3587
    %3662 = vmatprep.subr.mxu0 %v3584
    %3663 = vmatpush1.msra.mxu0 %v3583
    %3664 = vmatprep.subr.mxu0 %v3580
    %3665 = vmatpush1.msra.mxu0 %v3579
    %3666 = vmatprep.subr.mxu0 %v3576
    %3667 = vmatpush1.msra.mxu0 %v3575
    %3668 = vmatprep.subr.mxu0 %v3572
    %3669 = vmatpush1.msra.mxu0 %v3571
    %3670 = vmatprep.subr.mxu0 %v3568
    %3671 = vmatpush1.msra.mxu0 %v3567
    %3672 = vmatprep.subr.mxu0 %v3564
    %3673 = vmatpush1.msra.mxu0 %v3563
    %3674 = vmatprep.subr.mxu0 %v3560
    %3675 = vmatpush1.msra.mxu0 %v3559
    %3676 = vmatprep.subr.mxu0 %v3556
    %3677 = vmatpush1.msra.mxu0 %v3555
    %3678 = vmatprep.subr.mxu0 %v3552
    %3679 = vmatpush1.msra.mxu0 %v3551
    %3680 = vmatprep.subr.mxu0 %v3548
    %3681 = vmatpush1.msra.mxu0 %v3547
    %3682 = vmatprep.subr.mxu0 %v3544
    %3683 = vmatpush1.msra.mxu0 %v3543
    %3684 = vmatprep.subr.mxu0 %v3540
    %3685 = vmatpush1.msra.mxu0 %v3539
    %3686 = vmatprep.subr.mxu0 %v3536
    %3687 = vmatpush1.msra.mxu0 %v3535
    %3688 = vmatprep.subr.mxu0 %v3532
    %3689 = vmatpush1.msra.mxu0 %v3531
    %3690 = vmatprep.subr.mxu0 %v3528
    %3691 = vmatpush1.msra.mxu0 %v3527
    %3692 = vmatprep.subr.mxu0 0.0
    %3693 = vmatpush2.msra.mxu0 0.0
    %3694 = vmatprep.subr.mxu0 0.0
    %3695 = vmatpush2.msra.mxu0 0.0
    %3696 = vmatprep.subr.mxu0 0.0
    %3697 = vmatpush2.msra.mxu0 0.0
    %3698 = vmatprep.subr.mxu0 0.0
    %3699 = vmatpush2.msra.mxu0 0.0
    %3700 = vmatprep.subr.mxu0 0.0
    %3701 = vmatpush2.msra.mxu0 0.0
    %3702 = vmatprep.subr.mxu0 0.0
    %3703 = vmatpush2.msra.mxu0 0.0
    %3704 = vmatprep.subr.mxu0 0.0
    %3705 = vmatpush2.msra.mxu0 0.0
    %3706 = vmatprep.subr.mxu0 0.0
    %3707 = vmatpush2.msra.mxu0 0.0
    %3708 = vmatprep.subr.mxu0 0.0
    %3709 = vmatpush2.msra.mxu0 0.0
    %3710 = vmatprep.subr.mxu0 0.0
    %3711 = vmatpush2.msra.mxu0 0.0
    %3712 = vmatprep.subr.mxu0 0.0
    %3713 = vmatpush2.msra.mxu0 0.0
    %3714 = vmatprep.subr.mxu0 0.0
    %3715 = vmatpush2.msra.mxu0 0.0
    %3716 = vmatprep.subr.mxu0 0.0
    %3717 = vmatpush2.msra.mxu0 0.0
    %3718 = vmatprep.subr.mxu0 0.0
    %3719 = vmatpush2.msra.mxu0 0.0
    %3720 = vmatprep.subr.mxu0 0.0
    %3721 = vmatpush2.msra.mxu0 0.0
    %3722 = vmatprep.subr.mxu0 0.0
    %3723 = vmatpush2.msra.mxu0 0.0
    %3724 = vmatprep.mubr.f32.mxu0 0.0
    %3725 = vmatmul.mubr.f32.gmra.mxu0 %v3524
    %v3726 = vpop.f32.mrf.mxu0
    %v3727 = vadd.f32 0.0, %v3726
    %v3728 = vpop.f32.mrf.mxu0
    %v3729 = vadd.f32 0.0, %v3728
    %3730 = vdwg.mxu0
    %v3731 = vadd.f32 %v3729, %v1838
    %s3732 = scalar_lea.vmem [#allocation11], 24
    %3733 = vst [vmem:[%s3732] sm:$0xff] %v3731
    %v3734 = vsub.f32 %v3731, %v1840
    %3735 = vmax.xlane.f32.xlu0 %v3734
    %v3736 = vpop.xlane.xlu0 %3735
    %vm3737 = vcmp.eq.f32.partialorder %v3734, %v3736
    %v3738 = vsel %vm3737, 1, 0
    %v3739 = vcvt.s32.f32 %v3738
    %v3740 = vld [vmem:[#allocation8] sm:$0xff]
    %v3741 = vld [vmem:[#allocation8 + $0x8] sm:$0xff]
    %v3742 = vld [vmem:[#allocation8 + $0x10] sm:$0xff]
    %v3743 = vld [vmem:[#allocation8 + $0x18] sm:$0xff]
    %v3744 = vld [vmem:[#allocation8 + $0x20] sm:$0xff]
    %v3745 = vld [vmem:[#allocation8 + $0x28] sm:$0xff]
    %v3746 = vld [vmem:[#allocation8 + $0x30] sm:$0xff]
    %v3747 = vld [vmem:[#allocation8 + $0x38] sm:$0xff]
    %v3748 = vld [vmem:[#allocation8 + $0x40] sm:$0xff]
    %v3749 = vld [vmem:[#allocation8 + $0x48] sm:$0xff]
    %v3750 = vld [vmem:[#allocation8 + $0x50] sm:$0xff]
    %v3751 = vld [vmem:[#allocation8 + $0x58] sm:$0xff]
    %v3752 = vld [vmem:[#allocation8 + $0x60] sm:$0xff]
    %v3753 = vld [vmem:[#allocation8 + $0x68] sm:$0xff]
    %v3754 = vld [vmem:[#allocation8 + $0x70] sm:$0xff]
    %v3755 = vld [vmem:[#allocation8 + $0x78] sm:$0xff]
    %v3756 = vld [vmem:[#allocation8 + $0x80] sm:$0xff]
    %v3757 = vld [vmem:[#allocation8 + $0x88] sm:$0xff]
    %v3758 = vld [vmem:[#allocation8 + $0x90] sm:$0xff]
    %v3759 = vld [vmem:[#allocation8 + $0x98] sm:$0xff]
    %v3760 = vld [vmem:[#allocation8 + $0xa0] sm:$0xff]
    %v3761 = vld [vmem:[#allocation8 + $0xa8] sm:$0xff]
    %v3762 = vld [vmem:[#allocation8 + $0xb0] sm:$0xff]
    %v3763 = vld [vmem:[#allocation8 + $0xb8] sm:$0xff]
    %v3764 = vld [vmem:[#allocation8 + $0xc0] sm:$0xff]
    %v3765 = vld [vmem:[#allocation8 + $0xc8] sm:$0xff]
    %v3766 = vld [vmem:[#allocation8 + $0xd0] sm:$0xff]
    %v3767 = vld [vmem:[#allocation8 + $0xd8] sm:$0xff]
    %v3768 = vld [vmem:[#allocation8 + $0xe0] sm:$0xff]
    %v3769 = vld [vmem:[#allocation8 + $0xe8] sm:$0xff]
    %v3770 = vld [vmem:[#allocation8 + $0xf0] sm:$0xff]
    %v3771 = vld [vmem:[#allocation8 + $0xf8] sm:$0xff]
    %v3772 = vld [vmem:[#allocation8 + $0x100] sm:$0xff]
    %v3773 = vld [vmem:[#allocation8 + $0x108] sm:$0xff]
    %v3774 = vld [vmem:[#allocation8 + $0x110] sm:$0xff]
    %v3775 = vld [vmem:[#allocation8 + $0x118] sm:$0xff]
    %v3776 = vld [vmem:[#allocation8 + $0x120] sm:$0xff]
    %v3777 = vld [vmem:[#allocation8 + $0x128] sm:$0xff]
    %v3778 = vld [vmem:[#allocation8 + $0x130] sm:$0xff]
    %v3779 = vld [vmem:[#allocation8 + $0x138] sm:$0xff]
    %v3780 = vld [vmem:[#allocation8 + $0x140] sm:$0xff]
    %v3781 = vld [vmem:[#allocation8 + $0x148] sm:$0xff]
    %v3782 = vld [vmem:[#allocation8 + $0x150] sm:$0xff]
    %v3783 = vld [vmem:[#allocation8 + $0x158] sm:$0xff]
    %v3784 = vld [vmem:[#allocation8 + $0x160] sm:$0xff]
    %v3785 = vld [vmem:[#allocation8 + $0x168] sm:$0xff]
    %v3786 = vld [vmem:[#allocation8 + $0x170] sm:$0xff]
    %v3787 = vld [vmem:[#allocation8 + $0x178] sm:$0xff]
    %3788 = vmatprep.subr.mxu0 %v3786
    %3789 = vmatpush1.msra.mxu0 %v3785
    %3790 = vmatprep.subr.mxu0 %v3783
    %3791 = vmatpush1.msra.mxu0 %v3782
    %3792 = vmatprep.subr.mxu0 %v3780
    %3793 = vmatpush1.msra.mxu0 %v3779
    %3794 = vmatprep.subr.mxu0 %v3777
    %3795 = vmatpush1.msra.mxu0 %v3776
    %3796 = vmatprep.subr.mxu0 %v3774
    %3797 = vmatpush1.msra.mxu0 %v3773
    %3798 = vmatprep.subr.mxu0 %v3771
    %3799 = vmatpush1.msra.mxu0 %v3770
    %3800 = vmatprep.subr.mxu0 %v3768
    %3801 = vmatpush1.msra.mxu0 %v3767
    %3802 = vmatprep.subr.mxu0 %v3765
    %3803 = vmatpush1.msra.mxu0 %v3764
    %3804 = vmatprep.subr.mxu0 %v3762
    %3805 = vmatpush1.msra.mxu0 %v3761
    %3806 = vmatprep.subr.mxu0 %v3759
    %3807 = vmatpush1.msra.mxu0 %v3758
    %3808 = vmatprep.subr.mxu0 %v3756
    %3809 = vmatpush1.msra.mxu0 %v3755
    %3810 = vmatprep.subr.mxu0 %v3753
    %3811 = vmatpush1.msra.mxu0 %v3752
    %3812 = vmatprep.subr.mxu0 %v3750
    %3813 = vmatpush1.msra.mxu0 %v3749
    %3814 = vmatprep.subr.mxu0 %v3747
    %3815 = vmatpush1.msra.mxu0 %v3746
    %3816 = vmatprep.subr.mxu0 %v3744
    %3817 = vmatpush1.msra.mxu0 %v3743
    %3818 = vmatprep.subr.mxu0 %v3741
    %3819 = vmatpush1.msra.mxu0 %v3740
    %3820 = vmatprep.subr.mxu0 0.0
    %3821 = vmatpush2.msra.mxu0 0.0
    %3822 = vmatprep.subr.mxu0 0.0
    %3823 = vmatpush2.msra.mxu0 0.0
    %3824 = vmatprep.subr.mxu0 0.0
    %3825 = vmatpush2.msra.mxu0 0.0
    %3826 = vmatprep.subr.mxu0 0.0
    %3827 = vmatpush2.msra.mxu0 0.0
    %3828 = vmatprep.subr.mxu0 0.0
    %3829 = vmatpush2.msra.mxu0 0.0
    %3830 = vmatprep.subr.mxu0 0.0
    %3831 = vmatpush2.msra.mxu0 0.0
    %3832 = vmatprep.subr.mxu0 0.0
    %3833 = vmatpush2.msra.mxu0 0.0
    %3834 = vmatprep.subr.mxu0 0.0
    %3835 = vmatpush2.msra.mxu0 0.0
    %3836 = vmatprep.subr.mxu0 0.0
    %3837 = vmatpush2.msra.mxu0 0.0
    %3838 = vmatprep.subr.mxu0 0.0
    %3839 = vmatpush2.msra.mxu0 0.0
    %3840 = vmatprep.subr.mxu0 0.0
    %3841 = vmatpush2.msra.mxu0 0.0
    %3842 = vmatprep.subr.mxu0 0.0
    %3843 = vmatpush2.msra.mxu0 0.0
    %3844 = vmatprep.subr.mxu0 0.0
    %3845 = vmatpush2.msra.mxu0 0.0
    %3846 = vmatprep.subr.mxu0 0.0
    %3847 = vmatpush2.msra.mxu0 0.0
    %3848 = vmatprep.subr.mxu0 0.0
    %3849 = vmatpush2.msra.mxu0 0.0
    %3850 = vmatprep.subr.mxu0 0.0
    %3851 = vmatpush2.msra.mxu0 0.0
    %3852 = vmatprep.mubr.f32.mxu0 0.0
    %3853 = vmatmul.mubr.f32.gmra.mxu0 %v3739
    %v3854 = vpop.f32.mrf.mxu0
    %v3855 = vadd.f32 0.0, %v3854
    %v3856 = vpop.f32.mrf.mxu0
    %v3857 = vadd.f32 0.0, %v3856
    %3858 = vdwg.mxu0
    %3859 = vmatprep.subr.mxu0 0.0
    %3860 = vmatpush1.msra.mxu0 %v3787
    %3861 = vmatprep.subr.mxu0 0.0
    %3862 = vmatpush1.msra.mxu0 %v3784
    %3863 = vmatprep.subr.mxu0 0.0
    %3864 = vmatpush1.msra.mxu0 %v3781
    %3865 = vmatprep.subr.mxu0 0.0
    %3866 = vmatpush1.msra.mxu0 %v3778
    %3867 = vmatprep.subr.mxu0 0.0
    %3868 = vmatpush1.msra.mxu0 %v3775
    %3869 = vmatprep.subr.mxu0 0.0
    %3870 = vmatpush1.msra.mxu0 %v3772
    %3871 = vmatprep.subr.mxu0 0.0
    %3872 = vmatpush1.msra.mxu0 %v3769
    %3873 = vmatprep.subr.mxu0 0.0
    %3874 = vmatpush1.msra.mxu0 %v3766
    %3875 = vmatprep.subr.mxu0 0.0
    %3876 = vmatpush1.msra.mxu0 %v3763
    %3877 = vmatprep.subr.mxu0 0.0
    %3878 = vmatpush1.msra.mxu0 %v3760
    %3879 = vmatprep.subr.mxu0 0.0
    %3880 = vmatpush1.msra.mxu0 %v3757
    %3881 = vmatprep.subr.mxu0 0.0
    %3882 = vmatpush1.msra.mxu0 %v3754
    %3883 = vmatprep.subr.mxu0 0.0
    %3884 = vmatpush1.msra.mxu0 %v3751
    %3885 = vmatprep.subr.mxu0 0.0
    %3886 = vmatpush1.msra.mxu0 %v3748
    %3887 = vmatprep.subr.mxu0 0.0
    %3888 = vmatpush1.msra.mxu0 %v3745
    %3889 = vmatprep.subr.mxu0 0.0
    %3890 = vmatpush1.msra.mxu0 %v3742
    %3891 = vmatprep.subr.mxu0 0.0
    %3892 = vmatpush2.msra.mxu0 0.0
    %3893 = vmatprep.subr.mxu0 0.0
    %3894 = vmatpush2.msra.mxu0 0.0
    %3895 = vmatprep.subr.mxu0 0.0
    %3896 = vmatpush2.msra.mxu0 0.0
    %3897 = vmatprep.subr.mxu0 0.0
    %3898 = vmatpush2.msra.mxu0 0.0
    %3899 = vmatprep.subr.mxu0 0.0
    %3900 = vmatpush2.msra.mxu0 0.0
    %3901 = vmatprep.subr.mxu0 0.0
    %3902 = vmatpush2.msra.mxu0 0.0
    %3903 = vmatprep.subr.mxu0 0.0
    %3904 = vmatpush2.msra.mxu0 0.0
    %3905 = vmatprep.subr.mxu0 0.0
    %3906 = vmatpush2.msra.mxu0 0.0
    %3907 = vmatprep.subr.mxu0 0.0
    %3908 = vmatpush2.msra.mxu0 0.0
    %3909 = vmatprep.subr.mxu0 0.0
    %3910 = vmatpush2.msra.mxu0 0.0
    %3911 = vmatprep.subr.mxu0 0.0
    %3912 = vmatpush2.msra.mxu0 0.0
    %3913 = vmatprep.subr.mxu0 0.0
    %3914 = vmatpush2.msra.mxu0 0.0
    %3915 = vmatprep.subr.mxu0 0.0
    %3916 = vmatpush2.msra.mxu0 0.0
    %3917 = vmatprep.subr.mxu0 0.0
    %3918 = vmatpush2.msra.mxu0 0.0
    %3919 = vmatprep.subr.mxu0 0.0
    %3920 = vmatpush2.msra.mxu0 0.0
    %3921 = vmatprep.subr.mxu0 0.0
    %3922 = vmatpush2.msra.mxu0 0.0
    %3923 = vmatprep.mubr.f32.mxu0 0.0
    %3924 = vmatmul.mubr.f32.gmra.mxu0 %v3739
    %v3925 = vpop.f32.mrf.mxu0
    %v3926 = vadd.f32 0.0, %v3925
    %v3927 = vpop.f32.mrf.mxu0
    %3928 = vdwg.mxu0
    %v3929 = vadd.f32 %v3855, %v3656
    %v3930 = vxor.u32 %v3929, 2147483648
    %v3931 = vmul.f32 %v3930, 1.442695
    %v3932 = vpow.pop %v3931
    %v3933 = vadd.f32 %v3932, 1.0
    %v3934 = vrcp.pop %v3933
    %v3935 = vmul.f32 1.0, %v3934
    %v3936 = vadd.f32 %v3857, %v3658
    %v3937 = vxor.u32 %v3936, 2147483648
    %v3938 = vmul.f32 %v3937, 1.442695
    %v3939 = vpow.pop %v3938
    %v3940 = vadd.f32 %v3939, 1.0
    %v3941 = vrcp.pop %v3940
    %v3942 = vmul.f32 1.0, %v3941
    %v3943 = vadd.f32 %v3727, %v1837
    %v3944 = vmul.f32 %v3935, %v3943
    %v3945 = vadd.f32 %v3926, %v3944
    %v3946 = vtanh.pop %v3945
    %v3947 = vsub.f32 1.0, %v3942
    %v3948 = vmul.f32 %v3947, %v3946
    %v3949 = vmul.f32 %v3942, %v3524
    %v3950 = vadd.f32 %v3948, %v3949
    %v3951 = vld [vmem:[#allocation9] sm:$0xff]
    %v3952 = vld [vmem:[#allocation9 + $0x8] sm:$0xff]
    %v3953 = vld [vmem:[#allocation9 + $0x10] sm:$0xff]
    %v3954 = vld [vmem:[#allocation9 + $0x18] sm:$0xff]
    %v3955 = vld [vmem:[#allocation9 + $0x20] sm:$0xff]
    %v3956 = vld [vmem:[#allocation9 + $0x28] sm:$0xff]
    %v3957 = vld [vmem:[#allocation9 + $0x30] sm:$0xff]
    %v3958 = vld [vmem:[#allocation9 + $0x38] sm:$0xff]
    %v3959 = vld [vmem:[#allocation9 + $0x40] sm:$0xff]
    %v3960 = vld [vmem:[#allocation9 + $0x48] sm:$0xff]
    %v3961 = vld [vmem:[#allocation9 + $0x50] sm:$0xff]
    %v3962 = vld [vmem:[#allocation9 + $0x58] sm:$0xff]
    %v3963 = vld [vmem:[#allocation9 + $0x60] sm:$0xff]
    %v3964 = vld [vmem:[#allocation9 + $0x68] sm:$0xff]
    %v3965 = vld [vmem:[#allocation9 + $0x70] sm:$0xff]
    %v3966 = vld [vmem:[#allocation9 + $0x78] sm:$0xff]
    %v3967 = vld [vmem:[#allocation9 + $0x80] sm:$0xff]
    %v3968 = vld [vmem:[#allocation9 + $0x88] sm:$0xff]
    %v3969 = vld [vmem:[#allocation9 + $0x90] sm:$0xff]
    %v3970 = vld [vmem:[#allocation9 + $0x98] sm:$0xff]
    %v3971 = vld [vmem:[#allocation9 + $0xa0] sm:$0xff]
    %v3972 = vld [vmem:[#allocation9 + $0xa8] sm:$0xff]
    %v3973 = vld [vmem:[#allocation9 + $0xb0] sm:$0xff]
    %v3974 = vld [vmem:[#allocation9 + $0xb8] sm:$0xff]
    %v3975 = vld [vmem:[#allocation9 + $0xc0] sm:$0xff]
    %v3976 = vld [vmem:[#allocation9 + $0xc8] sm:$0xff]
    %v3977 = vld [vmem:[#allocation9 + $0xd0] sm:$0xff]
    %v3978 = vld [vmem:[#allocation9 + $0xd8] sm:$0xff]
    %v3979 = vld [vmem:[#allocation9 + $0xe0] sm:$0xff]
    %v3980 = vld [vmem:[#allocation9 + $0xe8] sm:$0xff]
    %v3981 = vld [vmem:[#allocation9 + $0xf0] sm:$0xff]
    %v3982 = vld [vmem:[#allocation9 + $0xf8] sm:$0xff]
    %v3983 = vld [vmem:[#allocation9 + $0x100] sm:$0xff]
    %v3984 = vld [vmem:[#allocation9 + $0x108] sm:$0xff]
    %v3985 = vld [vmem:[#allocation9 + $0x110] sm:$0xff]
    %v3986 = vld [vmem:[#allocation9 + $0x118] sm:$0xff]
    %v3987 = vld [vmem:[#allocation9 + $0x120] sm:$0xff]
    %v3988 = vld [vmem:[#allocation9 + $0x128] sm:$0xff]
    %v3989 = vld [vmem:[#allocation9 + $0x130] sm:$0xff]
    %v3990 = vld [vmem:[#allocation9 + $0x138] sm:$0xff]
    %v3991 = vld [vmem:[#allocation9 + $0x140] sm:$0xff]
    %v3992 = vld [vmem:[#allocation9 + $0x148] sm:$0xff]
    %v3993 = vld [vmem:[#allocation9 + $0x150] sm:$0xff]
    %v3994 = vld [vmem:[#allocation9 + $0x158] sm:$0xff]
    %v3995 = vld [vmem:[#allocation9 + $0x160] sm:$0xff]
    %v3996 = vld [vmem:[#allocation9 + $0x168] sm:$0xff]
    %v3997 = vld [vmem:[#allocation9 + $0x170] sm:$0xff]
    %v3998 = vld [vmem:[#allocation9 + $0x178] sm:$0xff]
    %v3999 = vld [vmem:[#allocation9 + $0x180] sm:$0xff]
    %v4000 = vld [vmem:[#allocation9 + $0x188] sm:$0xff]
    %v4001 = vld [vmem:[#allocation9 + $0x190] sm:$0xff]
    %v4002 = vld [vmem:[#allocation9 + $0x198] sm:$0xff]
    %v4003 = vld [vmem:[#allocation9 + $0x1a0] sm:$0xff]
    %v4004 = vld [vmem:[#allocation9 + $0x1a8] sm:$0xff]
    %v4005 = vld [vmem:[#allocation9 + $0x1b0] sm:$0xff]
    %v4006 = vld [vmem:[#allocation9 + $0x1b8] sm:$0xff]
    %v4007 = vld [vmem:[#allocation9 + $0x1c0] sm:$0xff]
    %v4008 = vld [vmem:[#allocation9 + $0x1c8] sm:$0xff]
    %v4009 = vld [vmem:[#allocation9 + $0x1d0] sm:$0xff]
    %v4010 = vld [vmem:[#allocation9 + $0x1d8] sm:$0xff]
    %v4011 = vld [vmem:[#allocation9 + $0x1e0] sm:$0xff]
    %v4012 = vld [vmem:[#allocation9 + $0x1e8] sm:$0xff]
    %v4013 = vld [vmem:[#allocation9 + $0x1f0] sm:$0xff]
    %v4014 = vld [vmem:[#allocation9 + $0x1f8] sm:$0xff]
    %4015 = vmatprep.subr.mxu0 %v4012
    %4016 = vmatpush1.msra.mxu0 %v4011
    %4017 = vmatprep.subr.mxu0 %v4008
    %4018 = vmatpush1.msra.mxu0 %v4007
    %4019 = vmatprep.subr.mxu0 %v4004
    %4020 = vmatpush1.msra.mxu0 %v4003
    %4021 = vmatprep.subr.mxu0 %v4000
    %4022 = vmatpush1.msra.mxu0 %v3999
    %4023 = vmatprep.subr.mxu0 %v3996
    %4024 = vmatpush1.msra.mxu0 %v3995
    %4025 = vmatprep.subr.mxu0 %v3992
    %4026 = vmatpush1.msra.mxu0 %v3991
    %4027 = vmatprep.subr.mxu0 %v3988
    %4028 = vmatpush1.msra.mxu0 %v3987
    %4029 = vmatprep.subr.mxu0 %v3984
    %4030 = vmatpush1.msra.mxu0 %v3983
    %4031 = vmatprep.subr.mxu0 %v3980
    %4032 = vmatpush1.msra.mxu0 %v3979
    %4033 = vmatprep.subr.mxu0 %v3976
    %4034 = vmatpush1.msra.mxu0 %v3975
    %4035 = vmatprep.subr.mxu0 %v3972
    %4036 = vmatpush1.msra.mxu0 %v3971
    %4037 = vmatprep.subr.mxu0 %v3968
    %4038 = vmatpush1.msra.mxu0 %v3967
    %4039 = vmatprep.subr.mxu0 %v3964
    %4040 = vmatpush1.msra.mxu0 %v3963
    %4041 = vmatprep.subr.mxu0 %v3960
    %4042 = vmatpush1.msra.mxu0 %v3959
    %4043 = vmatprep.subr.mxu0 %v3956
    %4044 = vmatpush1.msra.mxu0 %v3955
    %4045 = vmatprep.subr.mxu0 %v3952
    %4046 = vmatpush1.msra.mxu0 %v3951
    %4047 = vmatprep.subr.mxu0 0.0
    %4048 = vmatpush2.msra.mxu0 0.0
    %4049 = vmatprep.subr.mxu0 0.0
    %4050 = vmatpush2.msra.mxu0 0.0
    %4051 = vmatprep.subr.mxu0 0.0
    %4052 = vmatpush2.msra.mxu0 0.0
    %4053 = vmatprep.subr.mxu0 0.0
    %4054 = vmatpush2.msra.mxu0 0.0
    %4055 = vmatprep.subr.mxu0 0.0
    %4056 = vmatpush2.msra.mxu0 0.0
    %4057 = vmatprep.subr.mxu0 0.0
    %4058 = vmatpush2.msra.mxu0 0.0
    %4059 = vmatprep.subr.mxu0 0.0
    %4060 = vmatpush2.msra.mxu0 0.0
    %4061 = vmatprep.subr.mxu0 0.0
    %4062 = vmatpush2.msra.mxu0 0.0
    %4063 = vmatprep.subr.mxu0 0.0
    %4064 = vmatpush2.msra.mxu0 0.0
    %4065 = vmatprep.subr.mxu0 0.0
    %4066 = vmatpush2.msra.mxu0 0.0
    %4067 = vmatprep.subr.mxu0 0.0
    %4068 = vmatpush2.msra.mxu0 0.0
    %4069 = vmatprep.subr.mxu0 0.0
    %4070 = vmatpush2.msra.mxu0 0.0
    %4071 = vmatprep.subr.mxu0 0.0
    %4072 = vmatpush2.msra.mxu0 0.0
    %4073 = vmatprep.subr.mxu0 0.0
    %4074 = vmatpush2.msra.mxu0 0.0
    %4075 = vmatprep.subr.mxu0 0.0
    %4076 = vmatpush2.msra.mxu0 0.0
    %4077 = vmatprep.subr.mxu0 0.0
    %4078 = vmatpush2.msra.mxu0 0.0
    %4079 = vmatprep.mubr.f32.mxu0 0.0
    %4080 = vmatmul.mubr.f32.gmra.mxu0 %v3950
    %v4081 = vpop.f32.mrf.mxu0
    %v4082 = vadd.f32 0.0, %v4081
    %v4083 = vpop.f32.mrf.mxu0
    %v4084 = vadd.f32 0.0, %v4083
    %4085 = vdwg.mxu0
    %4086 = vmatprep.subr.mxu0 %v4014
    %4087 = vmatpush1.msra.mxu0 %v4013
    %4088 = vmatprep.subr.mxu0 %v4010
    %4089 = vmatpush1.msra.mxu0 %v4009
    %4090 = vmatprep.subr.mxu0 %v4006
    %4091 = vmatpush1.msra.mxu0 %v4005
    %4092 = vmatprep.subr.mxu0 %v4002
    %4093 = vmatpush1.msra.mxu0 %v4001
    %4094 = vmatprep.subr.mxu0 %v3998
    %4095 = vmatpush1.msra.mxu0 %v3997
    %4096 = vmatprep.subr.mxu0 %v3994
    %4097 = vmatpush1.msra.mxu0 %v3993
    %4098 = vmatprep.subr.mxu0 %v3990
    %4099 = vmatpush1.msra.mxu0 %v3989
    %4100 = vmatprep.subr.mxu0 %v3986
    %4101 = vmatpush1.msra.mxu0 %v3985
    %4102 = vmatprep.subr.mxu0 %v3982
    %4103 = vmatpush1.msra.mxu0 %v3981
    %4104 = vmatprep.subr.mxu0 %v3978
    %4105 = vmatpush1.msra.mxu0 %v3977
    %4106 = vmatprep.subr.mxu0 %v3974
    %4107 = vmatpush1.msra.mxu0 %v3973
    %4108 = vmatprep.subr.mxu0 %v3970
    %4109 = vmatpush1.msra.mxu0 %v3969
    %4110 = vmatprep.subr.mxu0 %v3966
    %4111 = vmatpush1.msra.mxu0 %v3965
    %4112 = vmatprep.subr.mxu0 %v3962
    %4113 = vmatpush1.msra.mxu0 %v3961
    %4114 = vmatprep.subr.mxu0 %v3958
    %4115 = vmatpush1.msra.mxu0 %v3957
    %4116 = vmatprep.subr.mxu0 %v3954
    %4117 = vmatpush1.msra.mxu0 %v3953
    %4118 = vmatprep.subr.mxu0 0.0
    %4119 = vmatpush2.msra.mxu0 0.0
    %4120 = vmatprep.subr.mxu0 0.0
    %4121 = vmatpush2.msra.mxu0 0.0
    %4122 = vmatprep.subr.mxu0 0.0
    %4123 = vmatpush2.msra.mxu0 0.0
    %4124 = vmatprep.subr.mxu0 0.0
    %4125 = vmatpush2.msra.mxu0 0.0
    %4126 = vmatprep.subr.mxu0 0.0
    %4127 = vmatpush2.msra.mxu0 0.0
    %4128 = vmatprep.subr.mxu0 0.0
    %4129 = vmatpush2.msra.mxu0 0.0
    %4130 = vmatprep.subr.mxu0 0.0
    %4131 = vmatpush2.msra.mxu0 0.0
    %4132 = vmatprep.subr.mxu0 0.0
    %4133 = vmatpush2.msra.mxu0 0.0
    %4134 = vmatprep.subr.mxu0 0.0
    %4135 = vmatpush2.msra.mxu0 0.0
    %4136 = vmatprep.subr.mxu0 0.0
    %4137 = vmatpush2.msra.mxu0 0.0
    %4138 = vmatprep.subr.mxu0 0.0
    %4139 = vmatpush2.msra.mxu0 0.0
    %4140 = vmatprep.subr.mxu0 0.0
    %4141 = vmatpush2.msra.mxu0 0.0
    %4142 = vmatprep.subr.mxu0 0.0
    %4143 = vmatpush2.msra.mxu0 0.0
    %4144 = vmatprep.subr.mxu0 0.0
    %4145 = vmatpush2.msra.mxu0 0.0
    %4146 = vmatprep.subr.mxu0 0.0
    %4147 = vmatpush2.msra.mxu0 0.0
    %4148 = vmatprep.subr.mxu0 0.0
    %4149 = vmatpush2.msra.mxu0 0.0
    %4150 = vmatprep.mubr.f32.mxu0 0.0
    %4151 = vmatmul.mubr.f32.gmra.mxu0 %v3950
    %v4152 = vpop.f32.mrf.mxu0
    %v4153 = vadd.f32 0.0, %v4152
    %v4154 = vpop.f32.mrf.mxu0
    %v4155 = vadd.f32 0.0, %v4154
    %4156 = vdwg.mxu0
    %v4157 = vadd.f32 %v4155, %v1838
    %s4158 = scalar_lea.vmem [#allocation11], 32
    %4159 = vst [vmem:[%s4158] sm:$0xff] %v4157
    %v4160 = vsub.f32 %v4157, %v1840
    %4161 = vmax.xlane.f32.xlu0 %v4160
    %v4162 = vpop.xlane.xlu0 %4161
    %vm4163 = vcmp.eq.f32.partialorder %v4160, %v4162
    %v4164 = vsel %vm4163, 1, 0
    %v4165 = vcvt.s32.f32 %v4164
    %v4166 = vld [vmem:[#allocation8] sm:$0xff]
    %v4167 = vld [vmem:[#allocation8 + $0x8] sm:$0xff]
    %v4168 = vld [vmem:[#allocation8 + $0x10] sm:$0xff]
    %v4169 = vld [vmem:[#allocation8 + $0x18] sm:$0xff]
    %v4170 = vld [vmem:[#allocation8 + $0x20] sm:$0xff]
    %v4171 = vld [vmem:[#allocation8 + $0x28] sm:$0xff]
    %v4172 = vld [vmem:[#allocation8 + $0x30] sm:$0xff]
    %v4173 = vld [vmem:[#allocation8 + $0x38] sm:$0xff]
    %v4174 = vld [vmem:[#allocation8 + $0x40] sm:$0xff]
    %v4175 = vld [vmem:[#allocation8 + $0x48] sm:$0xff]
    %v4176 = vld [vmem:[#allocation8 + $0x50] sm:$0xff]
    %v4177 = vld [vmem:[#allocation8 + $0x58] sm:$0xff]
    %v4178 = vld [vmem:[#allocation8 + $0x60] sm:$0xff]
    %v4179 = vld [vmem:[#allocation8 + $0x68] sm:$0xff]
    %v4180 = vld [vmem:[#allocation8 + $0x70] sm:$0xff]
    %v4181 = vld [vmem:[#allocation8 + $0x78] sm:$0xff]
    %v4182 = vld [vmem:[#allocation8 + $0x80] sm:$0xff]
    %v4183 = vld [vmem:[#allocation8 + $0x88] sm:$0xff]
    %v4184 = vld [vmem:[#allocation8 + $0x90] sm:$0xff]
    %v4185 = vld [vmem:[#allocation8 + $0x98] sm:$0xff]
    %v4186 = vld [vmem:[#allocation8 + $0xa0] sm:$0xff]
    %v4187 = vld [vmem:[#allocation8 + $0xa8] sm:$0xff]
    %v4188 = vld [vmem:[#allocation8 + $0xb0] sm:$0xff]
    %v4189 = vld [vmem:[#allocation8 + $0xb8] sm:$0xff]
    %v4190 = vld [vmem:[#allocation8 + $0xc0] sm:$0xff]
    %v4191 = vld [vmem:[#allocation8 + $0xc8] sm:$0xff]
    %v4192 = vld [vmem:[#allocation8 + $0xd0] sm:$0xff]
    %v4193 = vld [vmem:[#allocation8 + $0xd8] sm:$0xff]
    %v4194 = vld [vmem:[#allocation8 + $0xe0] sm:$0xff]
    %v4195 = vld [vmem:[#allocation8 + $0xe8] sm:$0xff]
    %v4196 = vld [vmem:[#allocation8 + $0xf0] sm:$0xff]
    %v4197 = vld [vmem:[#allocation8 + $0xf8] sm:$0xff]
    %v4198 = vld [vmem:[#allocation8 + $0x100] sm:$0xff]
    %v4199 = vld [vmem:[#allocation8 + $0x108] sm:$0xff]
    %v4200 = vld [vmem:[#allocation8 + $0x110] sm:$0xff]
    %v4201 = vld [vmem:[#allocation8 + $0x118] sm:$0xff]
    %v4202 = vld [vmem:[#allocation8 + $0x120] sm:$0xff]
    %v4203 = vld [vmem:[#allocation8 + $0x128] sm:$0xff]
    %v4204 = vld [vmem:[#allocation8 + $0x130] sm:$0xff]
    %v4205 = vld [vmem:[#allocation8 + $0x138] sm:$0xff]
    %v4206 = vld [vmem:[#allocation8 + $0x140] sm:$0xff]
    %v4207 = vld [vmem:[#allocation8 + $0x148] sm:$0xff]
    %v4208 = vld [vmem:[#allocation8 + $0x150] sm:$0xff]
    %v4209 = vld [vmem:[#allocation8 + $0x158] sm:$0xff]
    %v4210 = vld [vmem:[#allocation8 + $0x160] sm:$0xff]
    %v4211 = vld [vmem:[#allocation8 + $0x168] sm:$0xff]
    %v4212 = vld [vmem:[#allocation8 + $0x170] sm:$0xff]
    %v4213 = vld [vmem:[#allocation8 + $0x178] sm:$0xff]
    %4214 = vmatprep.subr.mxu0 %v4212
    %4215 = vmatpush1.msra.mxu0 %v4211
    %4216 = vmatprep.subr.mxu0 %v4209
    %4217 = vmatpush1.msra.mxu0 %v4208
    %4218 = vmatprep.subr.mxu0 %v4206
    %4219 = vmatpush1.msra.mxu0 %v4205
    %4220 = vmatprep.subr.mxu0 %v4203
    %4221 = vmatpush1.msra.mxu0 %v4202
    %4222 = vmatprep.subr.mxu0 %v4200
    %4223 = vmatpush1.msra.mxu0 %v4199
    %4224 = vmatprep.subr.mxu0 %v4197
    %4225 = vmatpush1.msra.mxu0 %v4196
    %4226 = vmatprep.subr.mxu0 %v4194
    %4227 = vmatpush1.msra.mxu0 %v4193
    %4228 = vmatprep.subr.mxu0 %v4191
    %4229 = vmatpush1.msra.mxu0 %v4190
    %4230 = vmatprep.subr.mxu0 %v4188
    %4231 = vmatpush1.msra.mxu0 %v4187
    %4232 = vmatprep.subr.mxu0 %v4185
    %4233 = vmatpush1.msra.mxu0 %v4184
    %4234 = vmatprep.subr.mxu0 %v4182
    %4235 = vmatpush1.msra.mxu0 %v4181
    %4236 = vmatprep.subr.mxu0 %v4179
    %4237 = vmatpush1.msra.mxu0 %v4178
    %4238 = vmatprep.subr.mxu0 %v4176
    %4239 = vmatpush1.msra.mxu0 %v4175
    %4240 = vmatprep.subr.mxu0 %v4173
    %4241 = vmatpush1.msra.mxu0 %v4172
    %4242 = vmatprep.subr.mxu0 %v4170
    %4243 = vmatpush1.msra.mxu0 %v4169
    %4244 = vmatprep.subr.mxu0 %v4167
    %4245 = vmatpush1.msra.mxu0 %v4166
    %4246 = vmatprep.subr.mxu0 0.0
    %4247 = vmatpush2.msra.mxu0 0.0
    %4248 = vmatprep.subr.mxu0 0.0
    %4249 = vmatpush2.msra.mxu0 0.0
    %4250 = vmatprep.subr.mxu0 0.0
    %4251 = vmatpush2.msra.mxu0 0.0
    %4252 = vmatprep.subr.mxu0 0.0
    %4253 = vmatpush2.msra.mxu0 0.0
    %4254 = vmatprep.subr.mxu0 0.0
    %4255 = vmatpush2.msra.mxu0 0.0
    %4256 = vmatprep.subr.mxu0 0.0
    %4257 = vmatpush2.msra.mxu0 0.0
    %4258 = vmatprep.subr.mxu0 0.0
    %4259 = vmatpush2.msra.mxu0 0.0
    %4260 = vmatprep.subr.mxu0 0.0
    %4261 = vmatpush2.msra.mxu0 0.0
    %4262 = vmatprep.subr.mxu0 0.0
    %4263 = vmatpush2.msra.mxu0 0.0
    %4264 = vmatprep.subr.mxu0 0.0
    %4265 = vmatpush2.msra.mxu0 0.0
    %4266 = vmatprep.subr.mxu0 0.0
    %4267 = vmatpush2.msra.mxu0 0.0
    %4268 = vmatprep.subr.mxu0 0.0
    %4269 = vmatpush2.msra.mxu0 0.0
    %4270 = vmatprep.subr.mxu0 0.0
    %4271 = vmatpush2.msra.mxu0 0.0
    %4272 = vmatprep.subr.mxu0 0.0
    %4273 = vmatpush2.msra.mxu0 0.0
    %4274 = vmatprep.subr.mxu0 0.0
    %4275 = vmatpush2.msra.mxu0 0.0
    %4276 = vmatprep.subr.mxu0 0.0
    %4277 = vmatpush2.msra.mxu0 0.0
    %4278 = vmatprep.mubr.f32.mxu0 0.0
    %4279 = vmatmul.mubr.f32.gmra.mxu0 %v4165
    %v4280 = vpop.f32.mrf.mxu0
    %v4281 = vadd.f32 0.0, %v4280
    %v4282 = vpop.f32.mrf.mxu0
    %v4283 = vadd.f32 0.0, %v4282
    %4284 = vdwg.mxu0
    %4285 = vmatprep.subr.mxu0 0.0
    %4286 = vmatpush1.msra.mxu0 %v4213
    %4287 = vmatprep.subr.mxu0 0.0
    %4288 = vmatpush1.msra.mxu0 %v4210
    %4289 = vmatprep.subr.mxu0 0.0
    %4290 = vmatpush1.msra.mxu0 %v4207
    %4291 = vmatprep.subr.mxu0 0.0
    %4292 = vmatpush1.msra.mxu0 %v4204
    %4293 = vmatprep.subr.mxu0 0.0
    %4294 = vmatpush1.msra.mxu0 %v4201
    %4295 = vmatprep.subr.mxu0 0.0
    %4296 = vmatpush1.msra.mxu0 %v4198
    %4297 = vmatprep.subr.mxu0 0.0
    %4298 = vmatpush1.msra.mxu0 %v4195
    %4299 = vmatprep.subr.mxu0 0.0
    %4300 = vmatpush1.msra.mxu0 %v4192
    %4301 = vmatprep.subr.mxu0 0.0
    %4302 = vmatpush1.msra.mxu0 %v4189
    %4303 = vmatprep.subr.mxu0 0.0
    %4304 = vmatpush1.msra.mxu0 %v4186
    %4305 = vmatprep.subr.mxu0 0.0
    %4306 = vmatpush1.msra.mxu0 %v4183
    %4307 = vmatprep.subr.mxu0 0.0
    %4308 = vmatpush1.msra.mxu0 %v4180
    %4309 = vmatprep.subr.mxu0 0.0
    %4310 = vmatpush1.msra.mxu0 %v4177
    %4311 = vmatprep.subr.mxu0 0.0
    %4312 = vmatpush1.msra.mxu0 %v4174
    %4313 = vmatprep.subr.mxu0 0.0
    %4314 = vmatpush1.msra.mxu0 %v4171
    %4315 = vmatprep.subr.mxu0 0.0
    %4316 = vmatpush1.msra.mxu0 %v4168
    %4317 = vmatprep.subr.mxu0 0.0
    %4318 = vmatpush2.msra.mxu0 0.0
    %4319 = vmatprep.subr.mxu0 0.0
    %4320 = vmatpush2.msra.mxu0 0.0
    %4321 = vmatprep.subr.mxu0 0.0
    %4322 = vmatpush2.msra.mxu0 0.0
    %4323 = vmatprep.subr.mxu0 0.0
    %4324 = vmatpush2.msra.mxu0 0.0
    %4325 = vmatprep.subr.mxu0 0.0
    %4326 = vmatpush2.msra.mxu0 0.0
    %4327 = vmatprep.subr.mxu0 0.0
    %4328 = vmatpush2.msra.mxu0 0.0
    %4329 = vmatprep.subr.mxu0 0.0
    %4330 = vmatpush2.msra.mxu0 0.0
    %4331 = vmatprep.subr.mxu0 0.0
    %4332 = vmatpush2.msra.mxu0 0.0
    %4333 = vmatprep.subr.mxu0 0.0
    %4334 = vmatpush2.msra.mxu0 0.0
    %4335 = vmatprep.subr.mxu0 0.0
    %4336 = vmatpush2.msra.mxu0 0.0
    %4337 = vmatprep.subr.mxu0 0.0
    %4338 = vmatpush2.msra.mxu0 0.0
    %4339 = vmatprep.subr.mxu0 0.0
    %4340 = vmatpush2.msra.mxu0 0.0
    %4341 = vmatprep.subr.mxu0 0.0
    %4342 = vmatpush2.msra.mxu0 0.0
    %4343 = vmatprep.subr.mxu0 0.0
    %4344 = vmatpush2.msra.mxu0 0.0
    %4345 = vmatprep.subr.mxu0 0.0
    %4346 = vmatpush2.msra.mxu0 0.0
    %4347 = vmatprep.subr.mxu0 0.0
    %4348 = vmatpush2.msra.mxu0 0.0
    %4349 = vmatprep.mubr.f32.mxu0 0.0
    %4350 = vmatmul.mubr.f32.gmra.mxu0 %v4165
    %v4351 = vpop.f32.mrf.mxu0
    %v4352 = vadd.f32 0.0, %v4351
    %v4353 = vpop.f32.mrf.mxu0
    %4354 = vdwg.mxu0
    %v4355 = vadd.f32 %v4281, %v4082
    %v4356 = vxor.u32 %v4355, 2147483648
    %v4357 = vmul.f32 %v4356, 1.442695
    %v4358 = vpow.pop %v4357
    %v4359 = vadd.f32 %v4358, 1.0
    %v4360 = vrcp.pop %v4359
    %v4361 = vmul.f32 1.0, %v4360
    %v4362 = vadd.f32 %v4283, %v4084
    %v4363 = vxor.u32 %v4362, 2147483648
    %v4364 = vmul.f32 %v4363, 1.442695
    %v4365 = vpow.pop %v4364
    %v4366 = vadd.f32 %v4365, 1.0
    %v4367 = vrcp.pop %v4366
    %v4368 = vmul.f32 1.0, %v4367
    %v4369 = vadd.f32 %v4153, %v1837
    %v4370 = vmul.f32 %v4361, %v4369
    %v4371 = vadd.f32 %v4352, %v4370
    %v4372 = vtanh.pop %v4371
    %v4373 = vsub.f32 1.0, %v4368
    %v4374 = vmul.f32 %v4373, %v4372
    %v4375 = vmul.f32 %v4368, %v3950
    %v4376 = vadd.f32 %v4374, %v4375
    %v4377 = vld [vmem:[#allocation9] sm:$0xff]
    %v4378 = vld [vmem:[#allocation9 + $0x8] sm:$0xff]
    %v4379 = vld [vmem:[#allocation9 + $0x10] sm:$0xff]
    %v4380 = vld [vmem:[#allocation9 + $0x18] sm:$0xff]
    %v4381 = vld [vmem:[#allocation9 + $0x20] sm:$0xff]
    %v4382 = vld [vmem:[#allocation9 + $0x28] sm:$0xff]
    %v4383 = vld [vmem:[#allocation9 + $0x30] sm:$0xff]
    %v4384 = vld [vmem:[#allocation9 + $0x38] sm:$0xff]
    %v4385 = vld [vmem:[#allocation9 + $0x40] sm:$0xff]
    %v4386 = vld [vmem:[#allocation9 + $0x48] sm:$0xff]
    %v4387 = vld [vmem:[#allocation9 + $0x50] sm:$0xff]
    %v4388 = vld [vmem:[#allocation9 + $0x58] sm:$0xff]
    %v4389 = vld [vmem:[#allocation9 + $0x60] sm:$0xff]
    %v4390 = vld [vmem:[#allocation9 + $0x68] sm:$0xff]
    %v4391 = vld [vmem:[#allocation9 + $0x70] sm:$0xff]
    %v4392 = vld [vmem:[#allocation9 + $0x78] sm:$0xff]
    %v4393 = vld [vmem:[#allocation9 + $0x80] sm:$0xff]
    %v4394 = vld [vmem:[#allocation9 + $0x88] sm:$0xff]
    %v4395 = vld [vmem:[#allocation9 + $0x90] sm:$0xff]
    %v4396 = vld [vmem:[#allocation9 + $0x98] sm:$0xff]
    %v4397 = vld [vmem:[#allocation9 + $0xa0] sm:$0xff]
    %v4398 = vld [vmem:[#allocation9 + $0xa8] sm:$0xff]
    %v4399 = vld [vmem:[#allocation9 + $0xb0] sm:$0xff]
    %v4400 = vld [vmem:[#allocation9 + $0xb8] sm:$0xff]
    %v4401 = vld [vmem:[#allocation9 + $0xc0] sm:$0xff]
    %v4402 = vld [vmem:[#allocation9 + $0xc8] sm:$0xff]
    %v4403 = vld [vmem:[#allocation9 + $0xd0] sm:$0xff]
    %v4404 = vld [vmem:[#allocation9 + $0xd8] sm:$0xff]
    %v4405 = vld [vmem:[#allocation9 + $0xe0] sm:$0xff]
    %v4406 = vld [vmem:[#allocation9 + $0xe8] sm:$0xff]
    %v4407 = vld [vmem:[#allocation9 + $0xf0] sm:$0xff]
    %v4408 = vld [vmem:[#allocation9 + $0xf8] sm:$0xff]
    %v4409 = vld [vmem:[#allocation9 + $0x100] sm:$0xff]
    %v4410 = vld [vmem:[#allocation9 + $0x108] sm:$0xff]
    %v4411 = vld [vmem:[#allocation9 + $0x110] sm:$0xff]
    %v4412 = vld [vmem:[#allocation9 + $0x118] sm:$0xff]
    %v4413 = vld [vmem:[#allocation9 + $0x120] sm:$0xff]
    %v4414 = vld [vmem:[#allocation9 + $0x128] sm:$0xff]
    %v4415 = vld [vmem:[#allocation9 + $0x130] sm:$0xff]
    %v4416 = vld [vmem:[#allocation9 + $0x138] sm:$0xff]
    %v4417 = vld [vmem:[#allocation9 + $0x140] sm:$0xff]
    %v4418 = vld [vmem:[#allocation9 + $0x148] sm:$0xff]
    %v4419 = vld [vmem:[#allocation9 + $0x150] sm:$0xff]
    %v4420 = vld [vmem:[#allocation9 + $0x158] sm:$0xff]
    %v4421 = vld [vmem:[#allocation9 + $0x160] sm:$0xff]
    %v4422 = vld [vmem:[#allocation9 + $0x168] sm:$0xff]
    %v4423 = vld [vmem:[#allocation9 + $0x170] sm:$0xff]
    %v4424 = vld [vmem:[#allocation9 + $0x178] sm:$0xff]
    %v4425 = vld [vmem:[#allocation9 + $0x180] sm:$0xff]
    %v4426 = vld [vmem:[#allocation9 + $0x188] sm:$0xff]
    %v4427 = vld [vmem:[#allocation9 + $0x190] sm:$0xff]
    %v4428 = vld [vmem:[#allocation9 + $0x198] sm:$0xff]
    %v4429 = vld [vmem:[#allocation9 + $0x1a0] sm:$0xff]
    %v4430 = vld [vmem:[#allocation9 + $0x1a8] sm:$0xff]
    %v4431 = vld [vmem:[#allocation9 + $0x1b0] sm:$0xff]
    %v4432 = vld [vmem:[#allocation9 + $0x1b8] sm:$0xff]
    %v4433 = vld [vmem:[#allocation9 + $0x1c0] sm:$0xff]
    %v4434 = vld [vmem:[#allocation9 + $0x1c8] sm:$0xff]
    %v4435 = vld [vmem:[#allocation9 + $0x1d0] sm:$0xff]
    %v4436 = vld [vmem:[#allocation9 + $0x1d8] sm:$0xff]
    %v4437 = vld [vmem:[#allocation9 + $0x1e0] sm:$0xff]
    %v4438 = vld [vmem:[#allocation9 + $0x1e8] sm:$0xff]
    %v4439 = vld [vmem:[#allocation9 + $0x1f0] sm:$0xff]
    %v4440 = vld [vmem:[#allocation9 + $0x1f8] sm:$0xff]
    %4441 = vmatprep.subr.mxu0 %v4438
    %4442 = vmatpush1.msra.mxu0 %v4437
    %4443 = vmatprep.subr.mxu0 %v4434
    %4444 = vmatpush1.msra.mxu0 %v4433
    %4445 = vmatprep.subr.mxu0 %v4430
    %4446 = vmatpush1.msra.mxu0 %v4429
    %4447 = vmatprep.subr.mxu0 %v4426
    %4448 = vmatpush1.msra.mxu0 %v4425
    %4449 = vmatprep.subr.mxu0 %v4422
    %4450 = vmatpush1.msra.mxu0 %v4421
    %4451 = vmatprep.subr.mxu0 %v4418
    %4452 = vmatpush1.msra.mxu0 %v4417
    %4453 = vmatprep.subr.mxu0 %v4414
    %4454 = vmatpush1.msra.mxu0 %v4413
    %4455 = vmatprep.subr.mxu0 %v4410
    %4456 = vmatpush1.msra.mxu0 %v4409
    %4457 = vmatprep.subr.mxu0 %v4406
    %4458 = vmatpush1.msra.mxu0 %v4405
    %4459 = vmatprep.subr.mxu0 %v4402
    %4460 = vmatpush1.msra.mxu0 %v4401
    %4461 = vmatprep.subr.mxu0 %v4398
    %4462 = vmatpush1.msra.mxu0 %v4397
    %4463 = vmatprep.subr.mxu0 %v4394
    %4464 = vmatpush1.msra.mxu0 %v4393
    %4465 = vmatprep.subr.mxu0 %v4390
    %4466 = vmatpush1.msra.mxu0 %v4389
    %4467 = vmatprep.subr.mxu0 %v4386
    %4468 = vmatpush1.msra.mxu0 %v4385
    %4469 = vmatprep.subr.mxu0 %v4382
    %4470 = vmatpush1.msra.mxu0 %v4381
    %4471 = vmatprep.subr.mxu0 %v4378
    %4472 = vmatpush1.msra.mxu0 %v4377
    %4473 = vmatprep.subr.mxu0 0.0
    %4474 = vmatpush2.msra.mxu0 0.0
    %4475 = vmatprep.subr.mxu0 0.0
    %4476 = vmatpush2.msra.mxu0 0.0
    %4477 = vmatprep.subr.mxu0 0.0
    %4478 = vmatpush2.msra.mxu0 0.0
    %4479 = vmatprep.subr.mxu0 0.0
    %4480 = vmatpush2.msra.mxu0 0.0
    %4481 = vmatprep.subr.mxu0 0.0
    %4482 = vmatpush2.msra.mxu0 0.0
    %4483 = vmatprep.subr.mxu0 0.0
    %4484 = vmatpush2.msra.mxu0 0.0
    %4485 = vmatprep.subr.mxu0 0.0
    %4486 = vmatpush2.msra.mxu0 0.0
    %4487 = vmatprep.subr.mxu0 0.0
    %4488 = vmatpush2.msra.mxu0 0.0
    %4489 = vmatprep.subr.mxu0 0.0
    %4490 = vmatpush2.msra.mxu0 0.0
    %4491 = vmatprep.subr.mxu0 0.0
    %4492 = vmatpush2.msra.mxu0 0.0
    %4493 = vmatprep.subr.mxu0 0.0
    %4494 = vmatpush2.msra.mxu0 0.0
    %4495 = vmatprep.subr.mxu0 0.0
    %4496 = vmatpush2.msra.mxu0 0.0
    %4497 = vmatprep.subr.mxu0 0.0
    %4498 = vmatpush2.msra.mxu0 0.0
    %4499 = vmatprep.subr.mxu0 0.0
    %4500 = vmatpush2.msra.mxu0 0.0
    %4501 = vmatprep.subr.mxu0 0.0
    %4502 = vmatpush2.msra.mxu0 0.0
    %4503 = vmatprep.subr.mxu0 0.0
    %4504 = vmatpush2.msra.mxu0 0.0
    %4505 = vmatprep.mubr.f32.mxu0 0.0
    %4506 = vmatmul.mubr.f32.gmra.mxu0 %v4376
    %v4507 = vpop.f32.mrf.mxu0
    %v4508 = vadd.f32 0.0, %v4507
    %v4509 = vpop.f32.mrf.mxu0
    %v4510 = vadd.f32 0.0, %v4509
    %4511 = vdwg.mxu0
    %4512 = vmatprep.subr.mxu0 %v4440
    %4513 = vmatpush1.msra.mxu0 %v4439
    %4514 = vmatprep.subr.mxu0 %v4436
    %4515 = vmatpush1.msra.mxu0 %v4435
    %4516 = vmatprep.subr.mxu0 %v4432
    %4517 = vmatpush1.msra.mxu0 %v4431
    %4518 = vmatprep.subr.mxu0 %v4428
    %4519 = vmatpush1.msra.mxu0 %v4427
    %4520 = vmatprep.subr.mxu0 %v4424
    %4521 = vmatpush1.msra.mxu0 %v4423
    %4522 = vmatprep.subr.mxu0 %v4420
    %4523 = vmatpush1.msra.mxu0 %v4419
    %4524 = vmatprep.subr.mxu0 %v4416
    %4525 = vmatpush1.msra.mxu0 %v4415
    %4526 = vmatprep.subr.mxu0 %v4412
    %4527 = vmatpush1.msra.mxu0 %v4411
    %4528 = vmatprep.subr.mxu0 %v4408
    %4529 = vmatpush1.msra.mxu0 %v4407
    %4530 = vmatprep.subr.mxu0 %v4404
    %4531 = vmatpush1.msra.mxu0 %v4403
    %4532 = vmatprep.subr.mxu0 %v4400
    %4533 = vmatpush1.msra.mxu0 %v4399
    %4534 = vmatprep.subr.mxu0 %v4396
    %4535 = vmatpush1.msra.mxu0 %v4395
    %4536 = vmatprep.subr.mxu0 %v4392
    %4537 = vmatpush1.msra.mxu0 %v4391
    %4538 = vmatprep.subr.mxu0 %v4388
    %4539 = vmatpush1.msra.mxu0 %v4387
    %4540 = vmatprep.subr.mxu0 %v4384
    %4541 = vmatpush1.msra.mxu0 %v4383
    %4542 = vmatprep.subr.mxu0 %v4380
    %4543 = vmatpush1.msra.mxu0 %v4379
    %4544 = vmatprep.subr.mxu0 0.0
    %4545 = vmatpush2.msra.mxu0 0.0
    %4546 = vmatprep.subr.mxu0 0.0
    %4547 = vmatpush2.msra.mxu0 0.0
    %4548 = vmatprep.subr.mxu0 0.0
    %4549 = vmatpush2.msra.mxu0 0.0
    %4550 = vmatprep.subr.mxu0 0.0
    %4551 = vmatpush2.msra.mxu0 0.0
    %4552 = vmatprep.subr.mxu0 0.0
    %4553 = vmatpush2.msra.mxu0 0.0
    %4554 = vmatprep.subr.mxu0 0.0
    %4555 = vmatpush2.msra.mxu0 0.0
    %4556 = vmatprep.subr.mxu0 0.0
    %4557 = vmatpush2.msra.mxu0 0.0
    %4558 = vmatprep.subr.mxu0 0.0
    %4559 = vmatpush2.msra.mxu0 0.0
    %4560 = vmatprep.subr.mxu0 0.0
    %4561 = vmatpush2.msra.mxu0 0.0
    %4562 = vmatprep.subr.mxu0 0.0
    %4563 = vmatpush2.msra.mxu0 0.0
    %4564 = vmatprep.subr.mxu0 0.0
    %4565 = vmatpush2.msra.mxu0 0.0
    %4566 = vmatprep.subr.mxu0 0.0
    %4567 = vmatpush2.msra.mxu0 0.0
    %4568 = vmatprep.subr.mxu0 0.0
    %4569 = vmatpush2.msra.mxu0 0.0
    %4570 = vmatprep.subr.mxu0 0.0
    %4571 = vmatpush2.msra.mxu0 0.0
    %4572 = vmatprep.subr.mxu0 0.0
    %4573 = vmatpush2.msra.mxu0 0.0
    %4574 = vmatprep.subr.mxu0 0.0
    %4575 = vmatpush2.msra.mxu0 0.0
    %4576 = vmatprep.mubr.f32.mxu0 0.0
    %4577 = vmatmul.mubr.f32.gmra.mxu0 %v4376
    %v4578 = vpop.f32.mrf.mxu0
    %v4579 = vadd.f32 0.0, %v4578
    %v4580 = vpop.f32.mrf.mxu0
    %v4581 = vadd.f32 0.0, %v4580
    %4582 = vdwg.mxu0
    %v4583 = vadd.f32 %v4581, %v1838
    %s4584 = scalar_lea.vmem [#allocation11], 40
    %4585 = vst [vmem:[%s4584] sm:$0xff] %v4583
    %v4586 = vsub.f32 %v4583, %v1840
    %4587 = vmax.xlane.f32.xlu0 %v4586
    %v4588 = vpop.xlane.xlu0 %4587
    %vm4589 = vcmp.eq.f32.partialorder %v4586, %v4588
    %v4590 = vsel %vm4589, 1, 0
    %v4591 = vcvt.s32.f32 %v4590
    %v4592 = vld [vmem:[#allocation8] sm:$0xff]
    %v4593 = vld [vmem:[#allocation8 + $0x8] sm:$0xff]
    %v4594 = vld [vmem:[#allocation8 + $0x10] sm:$0xff]
    %v4595 = vld [vmem:[#allocation8 + $0x18] sm:$0xff]
    %v4596 = vld [vmem:[#allocation8 + $0x20] sm:$0xff]
    %v4597 = vld [vmem:[#allocation8 + $0x28] sm:$0xff]
    %v4598 = vld [vmem:[#allocation8 + $0x30] sm:$0xff]
    %v4599 = vld [vmem:[#allocation8 + $0x38] sm:$0xff]
    %v4600 = vld [vmem:[#allocation8 + $0x40] sm:$0xff]
    %v4601 = vld [vmem:[#allocation8 + $0x48] sm:$0xff]
    %v4602 = vld [vmem:[#allocation8 + $0x50] sm:$0xff]
    %v4603 = vld [vmem:[#allocation8 + $0x58] sm:$0xff]
    %v4604 = vld [vmem:[#allocation8 + $0x60] sm:$0xff]
    %v4605 = vld [vmem:[#allocation8 + $0x68] sm:$0xff]
    %v4606 = vld [vmem:[#allocation8 + $0x70] sm:$0xff]
    %v4607 = vld [vmem:[#allocation8 + $0x78] sm:$0xff]
    %v4608 = vld [vmem:[#allocation8 + $0x80] sm:$0xff]
    %v4609 = vld [vmem:[#allocation8 + $0x88] sm:$0xff]
    %v4610 = vld [vmem:[#allocation8 + $0x90] sm:$0xff]
    %v4611 = vld [vmem:[#allocation8 + $0x98] sm:$0xff]
    %v4612 = vld [vmem:[#allocation8 + $0xa0] sm:$0xff]
    %v4613 = vld [vmem:[#allocation8 + $0xa8] sm:$0xff]
    %v4614 = vld [vmem:[#allocation8 + $0xb0] sm:$0xff]
    %v4615 = vld [vmem:[#allocation8 + $0xb8] sm:$0xff]
    %v4616 = vld [vmem:[#allocation8 + $0xc0] sm:$0xff]
    %v4617 = vld [vmem:[#allocation8 + $0xc8] sm:$0xff]
    %v4618 = vld [vmem:[#allocation8 + $0xd0] sm:$0xff]
    %v4619 = vld [vmem:[#allocation8 + $0xd8] sm:$0xff]
    %v4620 = vld [vmem:[#allocation8 + $0xe0] sm:$0xff]
    %v4621 = vld [vmem:[#allocation8 + $0xe8] sm:$0xff]
    %v4622 = vld [vmem:[#allocation8 + $0xf0] sm:$0xff]
    %v4623 = vld [vmem:[#allocation8 + $0xf8] sm:$0xff]
    %v4624 = vld [vmem:[#allocation8 + $0x100] sm:$0xff]
    %v4625 = vld [vmem:[#allocation8 + $0x108] sm:$0xff]
    %v4626 = vld [vmem:[#allocation8 + $0x110] sm:$0xff]
    %v4627 = vld [vmem:[#allocation8 + $0x118] sm:$0xff]
    %v4628 = vld [vmem:[#allocation8 + $0x120] sm:$0xff]
    %v4629 = vld [vmem:[#allocation8 + $0x128] sm:$0xff]
    %v4630 = vld [vmem:[#allocation8 + $0x130] sm:$0xff]
    %v4631 = vld [vmem:[#allocation8 + $0x138] sm:$0xff]
    %v4632 = vld [vmem:[#allocation8 + $0x140] sm:$0xff]
    %v4633 = vld [vmem:[#allocation8 + $0x148] sm:$0xff]
    %v4634 = vld [vmem:[#allocation8 + $0x150] sm:$0xff]
    %v4635 = vld [vmem:[#allocation8 + $0x158] sm:$0xff]
    %v4636 = vld [vmem:[#allocation8 + $0x160] sm:$0xff]
    %v4637 = vld [vmem:[#allocation8 + $0x168] sm:$0xff]
    %v4638 = vld [vmem:[#allocation8 + $0x170] sm:$0xff]
    %v4639 = vld [vmem:[#allocation8 + $0x178] sm:$0xff]
    %4640 = vmatprep.subr.mxu0 %v4638
    %4641 = vmatpush1.msra.mxu0 %v4637
    %4642 = vmatprep.subr.mxu0 %v4635
    %4643 = vmatpush1.msra.mxu0 %v4634
    %4644 = vmatprep.subr.mxu0 %v4632
    %4645 = vmatpush1.msra.mxu0 %v4631
    %4646 = vmatprep.subr.mxu0 %v4629
    %4647 = vmatpush1.msra.mxu0 %v4628
    %4648 = vmatprep.subr.mxu0 %v4626
    %4649 = vmatpush1.msra.mxu0 %v4625
    %4650 = vmatprep.subr.mxu0 %v4623
    %4651 = vmatpush1.msra.mxu0 %v4622
    %4652 = vmatprep.subr.mxu0 %v4620
    %4653 = vmatpush1.msra.mxu0 %v4619
    %4654 = vmatprep.subr.mxu0 %v4617
    %4655 = vmatpush1.msra.mxu0 %v4616
    %4656 = vmatprep.subr.mxu0 %v4614
    %4657 = vmatpush1.msra.mxu0 %v4613
    %4658 = vmatprep.subr.mxu0 %v4611
    %4659 = vmatpush1.msra.mxu0 %v4610
    %4660 = vmatprep.subr.mxu0 %v4608
    %4661 = vmatpush1.msra.mxu0 %v4607
    %4662 = vmatprep.subr.mxu0 %v4605
    %4663 = vmatpush1.msra.mxu0 %v4604
    %4664 = vmatprep.subr.mxu0 %v4602
    %4665 = vmatpush1.msra.mxu0 %v4601
    %4666 = vmatprep.subr.mxu0 %v4599
    %4667 = vmatpush1.msra.mxu0 %v4598
    %4668 = vmatprep.subr.mxu0 %v4596
    %4669 = vmatpush1.msra.mxu0 %v4595
    %4670 = vmatprep.subr.mxu0 %v4593
    %4671 = vmatpush1.msra.mxu0 %v4592
    %4672 = vmatprep.subr.mxu0 0.0
    %4673 = vmatpush2.msra.mxu0 0.0
    %4674 = vmatprep.subr.mxu0 0.0
    %4675 = vmatpush2.msra.mxu0 0.0
    %4676 = vmatprep.subr.mxu0 0.0
    %4677 = vmatpush2.msra.mxu0 0.0
    %4678 = vmatprep.subr.mxu0 0.0
    %4679 = vmatpush2.msra.mxu0 0.0
    %4680 = vmatprep.subr.mxu0 0.0
    %4681 = vmatpush2.msra.mxu0 0.0
    %4682 = vmatprep.subr.mxu0 0.0
    %4683 = vmatpush2.msra.mxu0 0.0
    %4684 = vmatprep.subr.mxu0 0.0
    %4685 = vmatpush2.msra.mxu0 0.0
    %4686 = vmatprep.subr.mxu0 0.0
    %4687 = vmatpush2.msra.mxu0 0.0
    %4688 = vmatprep.subr.mxu0 0.0
    %4689 = vmatpush2.msra.mxu0 0.0
    %4690 = vmatprep.subr.mxu0 0.0
    %4691 = vmatpush2.msra.mxu0 0.0
    %4692 = vmatprep.subr.mxu0 0.0
    %4693 = vmatpush2.msra.mxu0 0.0
    %4694 = vmatprep.subr.mxu0 0.0
    %4695 = vmatpush2.msra.mxu0 0.0
    %4696 = vmatprep.subr.mxu0 0.0
    %4697 = vmatpush2.msra.mxu0 0.0
    %4698 = vmatprep.subr.mxu0 0.0
    %4699 = vmatpush2.msra.mxu0 0.0
    %4700 = vmatprep.subr.mxu0 0.0
    %4701 = vmatpush2.msra.mxu0 0.0
    %4702 = vmatprep.subr.mxu0 0.0
    %4703 = vmatpush2.msra.mxu0 0.0
    %4704 = vmatprep.mubr.f32.mxu0 0.0
    %4705 = vmatmul.mubr.f32.gmra.mxu0 %v4591
    %v4706 = vpop.f32.mrf.mxu0
    %v4707 = vadd.f32 0.0, %v4706
    %v4708 = vpop.f32.mrf.mxu0
    %v4709 = vadd.f32 0.0, %v4708
    %4710 = vdwg.mxu0
    %4711 = vmatprep.subr.mxu0 0.0
    %4712 = vmatpush1.msra.mxu0 %v4639
    %4713 = vmatprep.subr.mxu0 0.0
    %4714 = vmatpush1.msra.mxu0 %v4636
    %4715 = vmatprep.subr.mxu0 0.0
    %4716 = vmatpush1.msra.mxu0 %v4633
    %4717 = vmatprep.subr.mxu0 0.0
    %4718 = vmatpush1.msra.mxu0 %v4630
    %4719 = vmatprep.subr.mxu0 0.0
    %4720 = vmatpush1.msra.mxu0 %v4627
    %4721 = vmatprep.subr.mxu0 0.0
    %4722 = vmatpush1.msra.mxu0 %v4624
    %4723 = vmatprep.subr.mxu0 0.0
    %4724 = vmatpush1.msra.mxu0 %v4621
    %4725 = vmatprep.subr.mxu0 0.0
    %4726 = vmatpush1.msra.mxu0 %v4618
    %4727 = vmatprep.subr.mxu0 0.0
    %4728 = vmatpush1.msra.mxu0 %v4615
    %4729 = vmatprep.subr.mxu0 0.0
    %4730 = vmatpush1.msra.mxu0 %v4612
    %4731 = vmatprep.subr.mxu0 0.0
    %4732 = vmatpush1.msra.mxu0 %v4609
    %4733 = vmatprep.subr.mxu0 0.0
    %4734 = vmatpush1.msra.mxu0 %v4606
    %4735 = vmatprep.subr.mxu0 0.0
    %4736 = vmatpush1.msra.mxu0 %v4603
    %4737 = vmatprep.subr.mxu0 0.0
    %4738 = vmatpush1.msra.mxu0 %v4600
    %4739 = vmatprep.subr.mxu0 0.0
    %4740 = vmatpush1.msra.mxu0 %v4597
    %4741 = vmatprep.subr.mxu0 0.0
    %4742 = vmatpush1.msra.mxu0 %v4594
    %4743 = vmatprep.subr.mxu0 0.0
    %4744 = vmatpush2.msra.mxu0 0.0
    %4745 = vmatprep.subr.mxu0 0.0
    %4746 = vmatpush2.msra.mxu0 0.0
    %4747 = vmatprep.subr.mxu0 0.0
    %4748 = vmatpush2.msra.mxu0 0.0
    %4749 = vmatprep.subr.mxu0 0.0
    %4750 = vmatpush2.msra.mxu0 0.0
    %4751 = vmatprep.subr.mxu0 0.0
    %4752 = vmatpush2.msra.mxu0 0.0
    %4753 = vmatprep.subr.mxu0 0.0
    %4754 = vmatpush2.msra.mxu0 0.0
    %4755 = vmatprep.subr.mxu0 0.0
    %4756 = vmatpush2.msra.mxu0 0.0
    %4757 = vmatprep.subr.mxu0 0.0
    %4758 = vmatpush2.msra.mxu0 0.0
    %4759 = vmatprep.subr.mxu0 0.0
    %4760 = vmatpush2.msra.mxu0 0.0
    %4761 = vmatprep.subr.mxu0 0.0
    %4762 = vmatpush2.msra.mxu0 0.0
    %4763 = vmatprep.subr.mxu0 0.0
    %4764 = vmatpush2.msra.mxu0 0.0
    %4765 = vmatprep.subr.mxu0 0.0
    %4766 = vmatpush2.msra.mxu0 0.0
    %4767 = vmatprep.subr.mxu0 0.0
    %4768 = vmatpush2.msra.mxu0 0.0
    %4769 = vmatprep.subr.mxu0 0.0
    %4770 = vmatpush2.msra.mxu0 0.0
    %4771 = vmatprep.subr.mxu0 0.0
    %4772 = vmatpush2.msra.mxu0 0.0
    %4773 = vmatprep.subr.mxu0 0.0
    %4774 = vmatpush2.msra.mxu0 0.0
    %4775 = vmatprep.mubr.f32.mxu0 0.0
    %4776 = vmatmul.mubr.f32.gmra.mxu0 %v4591
    %v4777 = vpop.f32.mrf.mxu0
    %v4778 = vadd.f32 0.0, %v4777
    %v4779 = vpop.f32.mrf.mxu0
    %4780 = vdwg.mxu0
    %v4781 = vadd.f32 %v4707, %v4508
    %v4782 = vxor.u32 %v4781, 2147483648
    %v4783 = vmul.f32 %v4782, 1.442695
    %v4784 = vpow.pop %v4783
    %v4785 = vadd.f32 %v4784, 1.0
    %v4786 = vrcp.pop %v4785
    %v4787 = vmul.f32 1.0, %v4786
    %v4788 = vadd.f32 %v4709, %v4510
    %v4789 = vxor.u32 %v4788, 2147483648
    %v4790 = vmul.f32 %v4789, 1.442695
    %v4791 = vpow.pop %v4790
    %v4792 = vadd.f32 %v4791, 1.0
    %v4793 = vrcp.pop %v4792
    %v4794 = vmul.f32 1.0, %v4793
    %v4795 = vadd.f32 %v4579, %v1837
    %v4796 = vmul.f32 %v4787, %v4795
    %v4797 = vadd.f32 %v4778, %v4796
    %v4798 = vtanh.pop %v4797
    %v4799 = vsub.f32 1.0, %v4794
    %v4800 = vmul.f32 %v4799, %v4798
    %v4801 = vmul.f32 %v4794, %v4376
    %v4802 = vadd.f32 %v4800, %v4801
    %v4803 = vld [vmem:[#allocation9] sm:$0xff]
    %v4804 = vld [vmem:[#allocation9 + $0x8] sm:$0xff]
    %v4805 = vld [vmem:[#allocation9 + $0x10] sm:$0xff]
    %v4806 = vld [vmem:[#allocation9 + $0x18] sm:$0xff]
    %v4807 = vld [vmem:[#allocation9 + $0x20] sm:$0xff]
    %v4808 = vld [vmem:[#allocation9 + $0x28] sm:$0xff]
    %v4809 = vld [vmem:[#allocation9 + $0x30] sm:$0xff]
    %v4810 = vld [vmem:[#allocation9 + $0x38] sm:$0xff]
    %v4811 = vld [vmem:[#allocation9 + $0x40] sm:$0xff]
    %v4812 = vld [vmem:[#allocation9 + $0x48] sm:$0xff]
    %v4813 = vld [vmem:[#allocation9 + $0x50] sm:$0xff]
    %v4814 = vld [vmem:[#allocation9 + $0x58] sm:$0xff]
    %v4815 = vld [vmem:[#allocation9 + $0x60] sm:$0xff]
    %v4816 = vld [vmem:[#allocation9 + $0x68] sm:$0xff]
    %v4817 = vld [vmem:[#allocation9 + $0x70] sm:$0xff]
    %v4818 = vld [vmem:[#allocation9 + $0x78] sm:$0xff]
    %v4819 = vld [vmem:[#allocation9 + $0x80] sm:$0xff]
    %v4820 = vld [vmem:[#allocation9 + $0x88] sm:$0xff]
    %v4821 = vld [vmem:[#allocation9 + $0x90] sm:$0xff]
    %v4822 = vld [vmem:[#allocation9 + $0x98] sm:$0xff]
    %v4823 = vld [vmem:[#allocation9 + $0xa0] sm:$0xff]
    %v4824 = vld [vmem:[#allocation9 + $0xa8] sm:$0xff]
    %v4825 = vld [vmem:[#allocation9 + $0xb0] sm:$0xff]
    %v4826 = vld [vmem:[#allocation9 + $0xb8] sm:$0xff]
    %v4827 = vld [vmem:[#allocation9 + $0xc0] sm:$0xff]
    %v4828 = vld [vmem:[#allocation9 + $0xc8] sm:$0xff]
    %v4829 = vld [vmem:[#allocation9 + $0xd0] sm:$0xff]
    %v4830 = vld [vmem:[#allocation9 + $0xd8] sm:$0xff]
    %v4831 = vld [vmem:[#allocation9 + $0xe0] sm:$0xff]
    %v4832 = vld [vmem:[#allocation9 + $0xe8] sm:$0xff]
    %v4833 = vld [vmem:[#allocation9 + $0xf0] sm:$0xff]
    %v4834 = vld [vmem:[#allocation9 + $0xf8] sm:$0xff]
    %v4835 = vld [vmem:[#allocation9 + $0x100] sm:$0xff]
    %v4836 = vld [vmem:[#allocation9 + $0x108] sm:$0xff]
    %v4837 = vld [vmem:[#allocation9 + $0x110] sm:$0xff]
    %v4838 = vld [vmem:[#allocation9 + $0x118] sm:$0xff]
    %v4839 = vld [vmem:[#allocation9 + $0x120] sm:$0xff]
    %v4840 = vld [vmem:[#allocation9 + $0x128] sm:$0xff]
    %v4841 = vld [vmem:[#allocation9 + $0x130] sm:$0xff]
    %v4842 = vld [vmem:[#allocation9 + $0x138] sm:$0xff]
    %v4843 = vld [vmem:[#allocation9 + $0x140] sm:$0xff]
    %v4844 = vld [vmem:[#allocation9 + $0x148] sm:$0xff]
    %v4845 = vld [vmem:[#allocation9 + $0x150] sm:$0xff]
    %v4846 = vld [vmem:[#allocation9 + $0x158] sm:$0xff]
    %v4847 = vld [vmem:[#allocation9 + $0x160] sm:$0xff]
    %v4848 = vld [vmem:[#allocation9 + $0x168] sm:$0xff]
    %v4849 = vld [vmem:[#allocation9 + $0x170] sm:$0xff]
    %v4850 = vld [vmem:[#allocation9 + $0x178] sm:$0xff]
    %v4851 = vld [vmem:[#allocation9 + $0x180] sm:$0xff]
    %v4852 = vld [vmem:[#allocation9 + $0x188] sm:$0xff]
    %v4853 = vld [vmem:[#allocation9 + $0x190] sm:$0xff]
    %v4854 = vld [vmem:[#allocation9 + $0x198] sm:$0xff]
    %v4855 = vld [vmem:[#allocation9 + $0x1a0] sm:$0xff]
    %v4856 = vld [vmem:[#allocation9 + $0x1a8] sm:$0xff]
    %v4857 = vld [vmem:[#allocation9 + $0x1b0] sm:$0xff]
    %v4858 = vld [vmem:[#allocation9 + $0x1b8] sm:$0xff]
    %v4859 = vld [vmem:[#allocation9 + $0x1c0] sm:$0xff]
    %v4860 = vld [vmem:[#allocation9 + $0x1c8] sm:$0xff]
    %v4861 = vld [vmem:[#allocation9 + $0x1d0] sm:$0xff]
    %v4862 = vld [vmem:[#allocation9 + $0x1d8] sm:$0xff]
    %v4863 = vld [vmem:[#allocation9 + $0x1e0] sm:$0xff]
    %v4864 = vld [vmem:[#allocation9 + $0x1e8] sm:$0xff]
    %v4865 = vld [vmem:[#allocation9 + $0x1f0] sm:$0xff]
    %v4866 = vld [vmem:[#allocation9 + $0x1f8] sm:$0xff]
    %4867 = vmatprep.subr.mxu0 %v4864
    %4868 = vmatpush1.msra.mxu0 %v4863
    %4869 = vmatprep.subr.mxu0 %v4860
    %4870 = vmatpush1.msra.mxu0 %v4859
    %4871 = vmatprep.subr.mxu0 %v4856
    %4872 = vmatpush1.msra.mxu0 %v4855
    %4873 = vmatprep.subr.mxu0 %v4852
    %4874 = vmatpush1.msra.mxu0 %v4851
    %4875 = vmatprep.subr.mxu0 %v4848
    %4876 = vmatpush1.msra.mxu0 %v4847
    %4877 = vmatprep.subr.mxu0 %v4844
    %4878 = vmatpush1.msra.mxu0 %v4843
    %4879 = vmatprep.subr.mxu0 %v4840
    %4880 = vmatpush1.msra.mxu0 %v4839
    %4881 = vmatprep.subr.mxu0 %v4836
    %4882 = vmatpush1.msra.mxu0 %v4835
    %4883 = vmatprep.subr.mxu0 %v4832
    %4884 = vmatpush1.msra.mxu0 %v4831
    %4885 = vmatprep.subr.mxu0 %v4828
    %4886 = vmatpush1.msra.mxu0 %v4827
    %4887 = vmatprep.subr.mxu0 %v4824
    %4888 = vmatpush1.msra.mxu0 %v4823
    %4889 = vmatprep.subr.mxu0 %v4820
    %4890 = vmatpush1.msra.mxu0 %v4819
    %4891 = vmatprep.subr.mxu0 %v4816
    %4892 = vmatpush1.msra.mxu0 %v4815
    %4893 = vmatprep.subr.mxu0 %v4812
    %4894 = vmatpush1.msra.mxu0 %v4811
    %4895 = vmatprep.subr.mxu0 %v4808
    %4896 = vmatpush1.msra.mxu0 %v4807
    %4897 = vmatprep.subr.mxu0 %v4804
    %4898 = vmatpush1.msra.mxu0 %v4803
    %4899 = vmatprep.subr.mxu0 0.0
    %4900 = vmatpush2.msra.mxu0 0.0
    %4901 = vmatprep.subr.mxu0 0.0
    %4902 = vmatpush2.msra.mxu0 0.0
    %4903 = vmatprep.subr.mxu0 0.0
    %4904 = vmatpush2.msra.mxu0 0.0
    %4905 = vmatprep.subr.mxu0 0.0
    %4906 = vmatpush2.msra.mxu0 0.0
    %4907 = vmatprep.subr.mxu0 0.0
    %4908 = vmatpush2.msra.mxu0 0.0
    %4909 = vmatprep.subr.mxu0 0.0
    %4910 = vmatpush2.msra.mxu0 0.0
    %4911 = vmatprep.subr.mxu0 0.0
    %4912 = vmatpush2.msra.mxu0 0.0
    %4913 = vmatprep.subr.mxu0 0.0
    %4914 = vmatpush2.msra.mxu0 0.0
    %4915 = vmatprep.subr.mxu0 0.0
    %4916 = vmatpush2.msra.mxu0 0.0
    %4917 = vmatprep.subr.mxu0 0.0
    %4918 = vmatpush2.msra.mxu0 0.0
    %4919 = vmatprep.subr.mxu0 0.0
    %4920 = vmatpush2.msra.mxu0 0.0
    %4921 = vmatprep.subr.mxu0 0.0
    %4922 = vmatpush2.msra.mxu0 0.0
    %4923 = vmatprep.subr.mxu0 0.0
    %4924 = vmatpush2.msra.mxu0 0.0
    %4925 = vmatprep.subr.mxu0 0.0
    %4926 = vmatpush2.msra.mxu0 0.0
    %4927 = vmatprep.subr.mxu0 0.0
    %4928 = vmatpush2.msra.mxu0 0.0
    %4929 = vmatprep.subr.mxu0 0.0
    %4930 = vmatpush2.msra.mxu0 0.0
    %4931 = vmatprep.mubr.f32.mxu0 0.0
    %4932 = vmatmul.mubr.f32.gmra.mxu0 %v4802
    %v4933 = vpop.f32.mrf.mxu0
    %v4934 = vadd.f32 0.0, %v4933
    %v4935 = vpop.f32.mrf.mxu0
    %v4936 = vadd.f32 0.0, %v4935
    %4937 = vdwg.mxu0
    %4938 = vmatprep.subr.mxu0 %v4866
    %4939 = vmatpush1.msra.mxu0 %v4865
    %4940 = vmatprep.subr.mxu0 %v4862
    %4941 = vmatpush1.msra.mxu0 %v4861
    %4942 = vmatprep.subr.mxu0 %v4858
    %4943 = vmatpush1.msra.mxu0 %v4857
    %4944 = vmatprep.subr.mxu0 %v4854
    %4945 = vmatpush1.msra.mxu0 %v4853
    %4946 = vmatprep.subr.mxu0 %v4850
    %4947 = vmatpush1.msra.mxu0 %v4849
    %4948 = vmatprep.subr.mxu0 %v4846
    %4949 = vmatpush1.msra.mxu0 %v4845
    %4950 = vmatprep.subr.mxu0 %v4842
    %4951 = vmatpush1.msra.mxu0 %v4841
    %4952 = vmatprep.subr.mxu0 %v4838
    %4953 = vmatpush1.msra.mxu0 %v4837
    %4954 = vmatprep.subr.mxu0 %v4834
    %4955 = vmatpush1.msra.mxu0 %v4833
    %4956 = vmatprep.subr.mxu0 %v4830
    %4957 = vmatpush1.msra.mxu0 %v4829
    %4958 = vmatprep.subr.mxu0 %v4826
    %4959 = vmatpush1.msra.mxu0 %v4825
    %4960 = vmatprep.subr.mxu0 %v4822
    %4961 = vmatpush1.msra.mxu0 %v4821
    %4962 = vmatprep.subr.mxu0 %v4818
    %4963 = vmatpush1.msra.mxu0 %v4817
    %4964 = vmatprep.subr.mxu0 %v4814
    %4965 = vmatpush1.msra.mxu0 %v4813
    %4966 = vmatprep.subr.mxu0 %v4810
    %4967 = vmatpush1.msra.mxu0 %v4809
    %4968 = vmatprep.subr.mxu0 %v4806
    %4969 = vmatpush1.msra.mxu0 %v4805
    %4970 = vmatprep.subr.mxu0 0.0
    %4971 = vmatpush2.msra.mxu0 0.0
    %4972 = vmatprep.subr.mxu0 0.0
    %4973 = vmatpush2.msra.mxu0 0.0
    %4974 = vmatprep.subr.mxu0 0.0
    %4975 = vmatpush2.msra.mxu0 0.0
    %4976 = vmatprep.subr.mxu0 0.0
    %4977 = vmatpush2.msra.mxu0 0.0
    %4978 = vmatprep.subr.mxu0 0.0
    %4979 = vmatpush2.msra.mxu0 0.0
    %4980 = vmatprep.subr.mxu0 0.0
    %4981 = vmatpush2.msra.mxu0 0.0
    %4982 = vmatprep.subr.mxu0 0.0
    %4983 = vmatpush2.msra.mxu0 0.0
    %4984 = vmatprep.subr.mxu0 0.0
    %4985 = vmatpush2.msra.mxu0 0.0
    %4986 = vmatprep.subr.mxu0 0.0
    %4987 = vmatpush2.msra.mxu0 0.0
    %4988 = vmatprep.subr.mxu0 0.0
    %4989 = vmatpush2.msra.mxu0 0.0
    %4990 = vmatprep.subr.mxu0 0.0
    %4991 = vmatpush2.msra.mxu0 0.0
    %4992 = vmatprep.subr.mxu0 0.0
    %4993 = vmatpush2.msra.mxu0 0.0
    %4994 = vmatprep.subr.mxu0 0.0
    %4995 = vmatpush2.msra.mxu0 0.0
    %4996 = vmatprep.subr.mxu0 0.0
    %4997 = vmatpush2.msra.mxu0 0.0
    %4998 = vmatprep.subr.mxu0 0.0
    %4999 = vmatpush2.msra.mxu0 0.0
    %5000 = vmatprep.subr.mxu0 0.0
    %5001 = vmatpush2.msra.mxu0 0.0
    %5002 = vmatprep.mubr.f32.mxu0 0.0
    %5003 = vmatmul.mubr.f32.gmra.mxu0 %v4802
    %v5004 = vpop.f32.mrf.mxu0
    %v5005 = vadd.f32 0.0, %v5004
    %v5006 = vpop.f32.mrf.mxu0
    %v5007 = vadd.f32 0.0, %v5006
    %5008 = vdwg.mxu0
    %v5009 = vadd.f32 %v5007, %v1838
    %s5010 = scalar_lea.vmem [#allocation11], 48
    %5011 = vst [vmem:[%s5010] sm:$0xff] %v5009
    %v5012 = vsub.f32 %v5009, %v1840
    %5013 = vmax.xlane.f32.xlu0 %v5012
    %v5014 = vpop.xlane.xlu0 %5013
    %vm5015 = vcmp.eq.f32.partialorder %v5012, %v5014
    %v5016 = vsel %vm5015, 1, 0
    %v5017 = vcvt.s32.f32 %v5016
    %v5018 = vld [vmem:[#allocation8] sm:$0xff]
    %v5019 = vld [vmem:[#allocation8 + $0x8] sm:$0xff]
    %v5020 = vld [vmem:[#allocation8 + $0x10] sm:$0xff]
    %v5021 = vld [vmem:[#allocation8 + $0x18] sm:$0xff]
    %v5022 = vld [vmem:[#allocation8 + $0x20] sm:$0xff]
    %v5023 = vld [vmem:[#allocation8 + $0x28] sm:$0xff]
    %v5024 = vld [vmem:[#allocation8 + $0x30] sm:$0xff]
    %v5025 = vld [vmem:[#allocation8 + $0x38] sm:$0xff]
    %v5026 = vld [vmem:[#allocation8 + $0x40] sm:$0xff]
    %v5027 = vld [vmem:[#allocation8 + $0x48] sm:$0xff]
    %v5028 = vld [vmem:[#allocation8 + $0x50] sm:$0xff]
    %v5029 = vld [vmem:[#allocation8 + $0x58] sm:$0xff]
    %v5030 = vld [vmem:[#allocation8 + $0x60] sm:$0xff]
    %v5031 = vld [vmem:[#allocation8 + $0x68] sm:$0xff]
    %v5032 = vld [vmem:[#allocation8 + $0x70] sm:$0xff]
    %v5033 = vld [vmem:[#allocation8 + $0x78] sm:$0xff]
    %v5034 = vld [vmem:[#allocation8 + $0x80] sm:$0xff]
    %v5035 = vld [vmem:[#allocation8 + $0x88] sm:$0xff]
    %v5036 = vld [vmem:[#allocation8 + $0x90] sm:$0xff]
    %v5037 = vld [vmem:[#allocation8 + $0x98] sm:$0xff]
    %v5038 = vld [vmem:[#allocation8 + $0xa0] sm:$0xff]
    %v5039 = vld [vmem:[#allocation8 + $0xa8] sm:$0xff]
    %v5040 = vld [vmem:[#allocation8 + $0xb0] sm:$0xff]
    %v5041 = vld [vmem:[#allocation8 + $0xb8] sm:$0xff]
    %v5042 = vld [vmem:[#allocation8 + $0xc0] sm:$0xff]
    %v5043 = vld [vmem:[#allocation8 + $0xc8] sm:$0xff]
    %v5044 = vld [vmem:[#allocation8 + $0xd0] sm:$0xff]
    %v5045 = vld [vmem:[#allocation8 + $0xd8] sm:$0xff]
    %v5046 = vld [vmem:[#allocation8 + $0xe0] sm:$0xff]
    %v5047 = vld [vmem:[#allocation8 + $0xe8] sm:$0xff]
    %v5048 = vld [vmem:[#allocation8 + $0xf0] sm:$0xff]
    %v5049 = vld [vmem:[#allocation8 + $0xf8] sm:$0xff]
    %v5050 = vld [vmem:[#allocation8 + $0x100] sm:$0xff]
    %v5051 = vld [vmem:[#allocation8 + $0x108] sm:$0xff]
    %v5052 = vld [vmem:[#allocation8 + $0x110] sm:$0xff]
    %v5053 = vld [vmem:[#allocation8 + $0x118] sm:$0xff]
    %v5054 = vld [vmem:[#allocation8 + $0x120] sm:$0xff]
    %v5055 = vld [vmem:[#allocation8 + $0x128] sm:$0xff]
    %v5056 = vld [vmem:[#allocation8 + $0x130] sm:$0xff]
    %v5057 = vld [vmem:[#allocation8 + $0x138] sm:$0xff]
    %v5058 = vld [vmem:[#allocation8 + $0x140] sm:$0xff]
    %v5059 = vld [vmem:[#allocation8 + $0x148] sm:$0xff]
    %v5060 = vld [vmem:[#allocation8 + $0x150] sm:$0xff]
    %v5061 = vld [vmem:[#allocation8 + $0x158] sm:$0xff]
    %v5062 = vld [vmem:[#allocation8 + $0x160] sm:$0xff]
    %v5063 = vld [vmem:[#allocation8 + $0x168] sm:$0xff]
    %v5064 = vld [vmem:[#allocation8 + $0x170] sm:$0xff]
    %v5065 = vld [vmem:[#allocation8 + $0x178] sm:$0xff]
    %5066 = vmatprep.subr.mxu0 %v5064
    %5067 = vmatpush1.msra.mxu0 %v5063
    %5068 = vmatprep.subr.mxu0 %v5061
    %5069 = vmatpush1.msra.mxu0 %v5060
    %5070 = vmatprep.subr.mxu0 %v5058
    %5071 = vmatpush1.msra.mxu0 %v5057
    %5072 = vmatprep.subr.mxu0 %v5055
    %5073 = vmatpush1.msra.mxu0 %v5054
    %5074 = vmatprep.subr.mxu0 %v5052
    %5075 = vmatpush1.msra.mxu0 %v5051
    %5076 = vmatprep.subr.mxu0 %v5049
    %5077 = vmatpush1.msra.mxu0 %v5048
    %5078 = vmatprep.subr.mxu0 %v5046
    %5079 = vmatpush1.msra.mxu0 %v5045
    %5080 = vmatprep.subr.mxu0 %v5043
    %5081 = vmatpush1.msra.mxu0 %v5042
    %5082 = vmatprep.subr.mxu0 %v5040
    %5083 = vmatpush1.msra.mxu0 %v5039
    %5084 = vmatprep.subr.mxu0 %v5037
    %5085 = vmatpush1.msra.mxu0 %v5036
    %5086 = vmatprep.subr.mxu0 %v5034
    %5087 = vmatpush1.msra.mxu0 %v5033
    %5088 = vmatprep.subr.mxu0 %v5031
    %5089 = vmatpush1.msra.mxu0 %v5030
    %5090 = vmatprep.subr.mxu0 %v5028
    %5091 = vmatpush1.msra.mxu0 %v5027
    %5092 = vmatprep.subr.mxu0 %v5025
    %5093 = vmatpush1.msra.mxu0 %v5024
    %5094 = vmatprep.subr.mxu0 %v5022
    %5095 = vmatpush1.msra.mxu0 %v5021
    %5096 = vmatprep.subr.mxu0 %v5019
    %5097 = vmatpush1.msra.mxu0 %v5018
    %5098 = vmatprep.subr.mxu0 0.0
    %5099 = vmatpush2.msra.mxu0 0.0
    %5100 = vmatprep.subr.mxu0 0.0
    %5101 = vmatpush2.msra.mxu0 0.0
    %5102 = vmatprep.subr.mxu0 0.0
    %5103 = vmatpush2.msra.mxu0 0.0
    %5104 = vmatprep.subr.mxu0 0.0
    %5105 = vmatpush2.msra.mxu0 0.0
    %5106 = vmatprep.subr.mxu0 0.0
    %5107 = vmatpush2.msra.mxu0 0.0
    %5108 = vmatprep.subr.mxu0 0.0
    %5109 = vmatpush2.msra.mxu0 0.0
    %5110 = vmatprep.subr.mxu0 0.0
    %5111 = vmatpush2.msra.mxu0 0.0
    %5112 = vmatprep.subr.mxu0 0.0
    %5113 = vmatpush2.msra.mxu0 0.0
    %5114 = vmatprep.subr.mxu0 0.0
    %5115 = vmatpush2.msra.mxu0 0.0
    %5116 = vmatprep.subr.mxu0 0.0
    %5117 = vmatpush2.msra.mxu0 0.0
    %5118 = vmatprep.subr.mxu0 0.0
    %5119 = vmatpush2.msra.mxu0 0.0
    %5120 = vmatprep.subr.mxu0 0.0
    %5121 = vmatpush2.msra.mxu0 0.0
    %5122 = vmatprep.subr.mxu0 0.0
    %5123 = vmatpush2.msra.mxu0 0.0
    %5124 = vmatprep.subr.mxu0 0.0
    %5125 = vmatpush2.msra.mxu0 0.0
    %5126 = vmatprep.subr.mxu0 0.0
    %5127 = vmatpush2.msra.mxu0 0.0
    %5128 = vmatprep.subr.mxu0 0.0
    %5129 = vmatpush2.msra.mxu0 0.0
    %5130 = vmatprep.mubr.f32.mxu0 0.0
    %5131 = vmatmul.mubr.f32.gmra.mxu0 %v5017
    %v5132 = vpop.f32.mrf.mxu0
    %v5133 = vadd.f32 0.0, %v5132
    %v5134 = vpop.f32.mrf.mxu0
    %v5135 = vadd.f32 0.0, %v5134
    %5136 = vdwg.mxu0
    %5137 = vmatprep.subr.mxu0 0.0
    %5138 = vmatpush1.msra.mxu0 %v5065
    %5139 = vmatprep.subr.mxu0 0.0
    %5140 = vmatpush1.msra.mxu0 %v5062
    %5141 = vmatprep.subr.mxu0 0.0
    %5142 = vmatpush1.msra.mxu0 %v5059
    %5143 = vmatprep.subr.mxu0 0.0
    %5144 = vmatpush1.msra.mxu0 %v5056
    %5145 = vmatprep.subr.mxu0 0.0
    %5146 = vmatpush1.msra.mxu0 %v5053
    %5147 = vmatprep.subr.mxu0 0.0
    %5148 = vmatpush1.msra.mxu0 %v5050
    %5149 = vmatprep.subr.mxu0 0.0
    %5150 = vmatpush1.msra.mxu0 %v5047
    %5151 = vmatprep.subr.mxu0 0.0
    %5152 = vmatpush1.msra.mxu0 %v5044
    %5153 = vmatprep.subr.mxu0 0.0
    %5154 = vmatpush1.msra.mxu0 %v5041
    %5155 = vmatprep.subr.mxu0 0.0
    %5156 = vmatpush1.msra.mxu0 %v5038
    %5157 = vmatprep.subr.mxu0 0.0
    %5158 = vmatpush1.msra.mxu0 %v5035
    %5159 = vmatprep.subr.mxu0 0.0
    %5160 = vmatpush1.msra.mxu0 %v5032
    %5161 = vmatprep.subr.mxu0 0.0
    %5162 = vmatpush1.msra.mxu0 %v5029
    %5163 = vmatprep.subr.mxu0 0.0
    %5164 = vmatpush1.msra.mxu0 %v5026
    %5165 = vmatprep.subr.mxu0 0.0
    %5166 = vmatpush1.msra.mxu0 %v5023
    %5167 = vmatprep.subr.mxu0 0.0
    %5168 = vmatpush1.msra.mxu0 %v5020
    %5169 = vmatprep.subr.mxu0 0.0
    %5170 = vmatpush2.msra.mxu0 0.0
    %5171 = vmatprep.subr.mxu0 0.0
    %5172 = vmatpush2.msra.mxu0 0.0
    %5173 = vmatprep.subr.mxu0 0.0
    %5174 = vmatpush2.msra.mxu0 0.0
    %5175 = vmatprep.subr.mxu0 0.0
    %5176 = vmatpush2.msra.mxu0 0.0
    %5177 = vmatprep.subr.mxu0 0.0
    %5178 = vmatpush2.msra.mxu0 0.0
    %5179 = vmatprep.subr.mxu0 0.0
    %5180 = vmatpush2.msra.mxu0 0.0
    %5181 = vmatprep.subr.mxu0 0.0
    %5182 = vmatpush2.msra.mxu0 0.0
    %5183 = vmatprep.subr.mxu0 0.0
    %5184 = vmatpush2.msra.mxu0 0.0
    %5185 = vmatprep.subr.mxu0 0.0
    %5186 = vmatpush2.msra.mxu0 0.0
    %5187 = vmatprep.subr.mxu0 0.0
    %5188 = vmatpush2.msra.mxu0 0.0
    %5189 = vmatprep.subr.mxu0 0.0
    %5190 = vmatpush2.msra.mxu0 0.0
    %5191 = vmatprep.subr.mxu0 0.0
    %5192 = vmatpush2.msra.mxu0 0.0
    %5193 = vmatprep.subr.mxu0 0.0
    %5194 = vmatpush2.msra.mxu0 0.0
    %5195 = vmatprep.subr.mxu0 0.0
    %5196 = vmatpush2.msra.mxu0 0.0
    %5197 = vmatprep.subr.mxu0 0.0
    %5198 = vmatpush2.msra.mxu0 0.0
    %5199 = vmatprep.subr.mxu0 0.0
    %5200 = vmatpush2.msra.mxu0 0.0
    %5201 = vmatprep.mubr.f32.mxu0 0.0
    %5202 = vmatmul.mubr.f32.gmra.mxu0 %v5017
    %v5203 = vpop.f32.mrf.mxu0
    %v5204 = vadd.f32 0.0, %v5203
    %v5205 = vpop.f32.mrf.mxu0
    %5206 = vdwg.mxu0
    %v5207 = vadd.f32 %v5133, %v4934
    %v5208 = vxor.u32 %v5207, 2147483648
    %v5209 = vmul.f32 %v5208, 1.442695
    %v5210 = vpow.pop %v5209
    %v5211 = vadd.f32 %v5210, 1.0
    %v5212 = vrcp.pop %v5211
    %v5213 = vmul.f32 1.0, %v5212
    %v5214 = vadd.f32 %v5135, %v4936
    %v5215 = vxor.u32 %v5214, 2147483648
    %v5216 = vmul.f32 %v5215, 1.442695
    %v5217 = vpow.pop %v5216
    %v5218 = vadd.f32 %v5217, 1.0
    %v5219 = vrcp.pop %v5218
    %v5220 = vmul.f32 1.0, %v5219
    %v5221 = vadd.f32 %v5005, %v1837
    %v5222 = vmul.f32 %v5213, %v5221
    %v5223 = vadd.f32 %v5204, %v5222
    %v5224 = vtanh.pop %v5223
    %v5225 = vsub.f32 1.0, %v5220
    %v5226 = vmul.f32 %v5225, %v5224
    %v5227 = vmul.f32 %v5220, %v4802
    %v5228 = vadd.f32 %v5226, %v5227
    %v5229 = vld [vmem:[#allocation9 + $0x10] sm:$0xff]
    %v5230 = vld [vmem:[#allocation9 + $0x18] sm:$0xff]
    %v5231 = vld [vmem:[#allocation9 + $0x30] sm:$0xff]
    %v5232 = vld [vmem:[#allocation9 + $0x38] sm:$0xff]
    %v5233 = vld [vmem:[#allocation9 + $0x50] sm:$0xff]
    %v5234 = vld [vmem:[#allocation9 + $0x58] sm:$0xff]
    %v5235 = vld [vmem:[#allocation9 + $0x70] sm:$0xff]
    %v5236 = vld [vmem:[#allocation9 + $0x78] sm:$0xff]
    %v5237 = vld [vmem:[#allocation9 + $0x90] sm:$0xff]
    %v5238 = vld [vmem:[#allocation9 + $0x98] sm:$0xff]
    %v5239 = vld [vmem:[#allocation9 + $0xb0] sm:$0xff]
    %v5240 = vld [vmem:[#allocation9 + $0xb8] sm:$0xff]
    %v5241 = vld [vmem:[#allocation9 + $0xd0] sm:$0xff]
    %v5242 = vld [vmem:[#allocation9 + $0xd8] sm:$0xff]
    %v5243 = vld [vmem:[#allocation9 + $0xf0] sm:$0xff]
    %v5244 = vld [vmem:[#allocation9 + $0xf8] sm:$0xff]
    %v5245 = vld [vmem:[#allocation9 + $0x110] sm:$0xff]
    %v5246 = vld [vmem:[#allocation9 + $0x118] sm:$0xff]
    %v5247 = vld [vmem:[#allocation9 + $0x130] sm:$0xff]
    %v5248 = vld [vmem:[#allocation9 + $0x138] sm:$0xff]
    %v5249 = vld [vmem:[#allocation9 + $0x150] sm:$0xff]
    %v5250 = vld [vmem:[#allocation9 + $0x158] sm:$0xff]
    %v5251 = vld [vmem:[#allocation9 + $0x170] sm:$0xff]
    %v5252 = vld [vmem:[#allocation9 + $0x178] sm:$0xff]
    %v5253 = vld [vmem:[#allocation9 + $0x190] sm:$0xff]
    %v5254 = vld [vmem:[#allocation9 + $0x198] sm:$0xff]
    %v5255 = vld [vmem:[#allocation9 + $0x1b0] sm:$0xff]
    %v5256 = vld [vmem:[#allocation9 + $0x1b8] sm:$0xff]
    %v5257 = vld [vmem:[#allocation9 + $0x1d0] sm:$0xff]
    %v5258 = vld [vmem:[#allocation9 + $0x1d8] sm:$0xff]
    %v5259 = vld [vmem:[#allocation9 + $0x1f0] sm:$0xff]
    %v5260 = vld [vmem:[#allocation9 + $0x1f8] sm:$0xff]
    %5261 = vmatprep.subr.mxu0 %v5260
    %5262 = vmatpush1.msra.mxu0 %v5259
    %5263 = vmatprep.subr.mxu0 %v5258
    %5264 = vmatpush1.msra.mxu0 %v5257
    %5265 = vmatprep.subr.mxu0 %v5256
    %5266 = vmatpush1.msra.mxu0 %v5255
    %5267 = vmatprep.subr.mxu0 %v5254
    %5268 = vmatpush1.msra.mxu0 %v5253
    %5269 = vmatprep.subr.mxu0 %v5252
    %5270 = vmatpush1.msra.mxu0 %v5251
    %5271 = vmatprep.subr.mxu0 %v5250
    %5272 = vmatpush1.msra.mxu0 %v5249
    %5273 = vmatprep.subr.mxu0 %v5248
    %5274 = vmatpush1.msra.mxu0 %v5247
    %5275 = vmatprep.subr.mxu0 %v5246
    %5276 = vmatpush1.msra.mxu0 %v5245
    %5277 = vmatprep.subr.mxu0 %v5244
    %5278 = vmatpush1.msra.mxu0 %v5243
    %5279 = vmatprep.subr.mxu0 %v5242
    %5280 = vmatpush1.msra.mxu0 %v5241
    %5281 = vmatprep.subr.mxu0 %v5240
    %5282 = vmatpush1.msra.mxu0 %v5239
    %5283 = vmatprep.subr.mxu0 %v5238
    %5284 = vmatpush1.msra.mxu0 %v5237
    %5285 = vmatprep.subr.mxu0 %v5236
    %5286 = vmatpush1.msra.mxu0 %v5235
    %5287 = vmatprep.subr.mxu0 %v5234
    %5288 = vmatpush1.msra.mxu0 %v5233
    %5289 = vmatprep.subr.mxu0 %v5232
    %5290 = vmatpush1.msra.mxu0 %v5231
    %5291 = vmatprep.subr.mxu0 %v5230
    %5292 = vmatpush1.msra.mxu0 %v5229
    %5293 = vmatprep.subr.mxu0 0.0
    %5294 = vmatpush2.msra.mxu0 0.0
    %5295 = vmatprep.subr.mxu0 0.0
    %5296 = vmatpush2.msra.mxu0 0.0
    %5297 = vmatprep.subr.mxu0 0.0
    %5298 = vmatpush2.msra.mxu0 0.0
    %5299 = vmatprep.subr.mxu0 0.0
    %5300 = vmatpush2.msra.mxu0 0.0
    %5301 = vmatprep.subr.mxu0 0.0
    %5302 = vmatpush2.msra.mxu0 0.0
    %5303 = vmatprep.subr.mxu0 0.0
    %5304 = vmatpush2.msra.mxu0 0.0
    %5305 = vmatprep.subr.mxu0 0.0
    %5306 = vmatpush2.msra.mxu0 0.0
    %5307 = vmatprep.subr.mxu0 0.0
    %5308 = vmatpush2.msra.mxu0 0.0
    %5309 = vmatprep.subr.mxu0 0.0
    %5310 = vmatpush2.msra.mxu0 0.0
    %5311 = vmatprep.subr.mxu0 0.0
    %5312 = vmatpush2.msra.mxu0 0.0
    %5313 = vmatprep.subr.mxu0 0.0
    %5314 = vmatpush2.msra.mxu0 0.0
    %5315 = vmatprep.subr.mxu0 0.0
    %5316 = vmatpush2.msra.mxu0 0.0
    %5317 = vmatprep.subr.mxu0 0.0
    %5318 = vmatpush2.msra.mxu0 0.0
    %5319 = vmatprep.subr.mxu0 0.0
    %5320 = vmatpush2.msra.mxu0 0.0
    %5321 = vmatprep.subr.mxu0 0.0
    %5322 = vmatpush2.msra.mxu0 0.0
    %5323 = vmatprep.subr.mxu0 0.0
    %5324 = vmatpush2.msra.mxu0 0.0
    %5325 = vmatprep.mubr.f32.mxu0 0.0
    %5326 = vmatmul.mubr.f32.gmra.mxu0 %v5228
    %v5327 = vpop.f32.mrf.mxu0
    %v5328 = vpop.f32.mrf.mxu0
    %v5329 = vadd.f32 0.0, %v5328
    %5330 = vdwg.mxu0
    %v5331 = vadd.f32 %v5329, %v1838
    %s5332 = scalar_lea.vmem [#allocation11], 56
    %5333 = vst [vmem:[%s5332] sm:$0xff] %v5331
    // Predicated region
    $region54: #{tpu_custom_call.1} parent=1 // pred_check
      _
    $region55: #{tpu_custom_call.1} parent=1 // pred_check_branch
      %5335 = sbr.rel (0) target = $region57
    $region56: #{tpu_custom_call.1} parent=1 // pred_region
      %s5337 = ssub.s32 1024, 1024
      %5338 = vsyncadd [#allocation5], %s5337
      %s5339 = sshll.u32 [#allocation11], 4
      %s5340 = int_to_ptr.vmem [resolvable:$true] %s5339
      %5345 = dma.vmem_to_hbm [thread:$0]  %s5340, 1024, %s9, [#allocation5], 128, 128, 8
    $region57: #{tpu_custom_call.1} parent=1 // pred_fallthru
      _
    // Predicated region
    $region58: #{tpu_custom_call.1} parent=1 // pred_check
      _
    $region59: #{tpu_custom_call.1} parent=1 // pred_check_branch
      %5347 = sbr.rel (0) target = $region61
    $region60: #{tpu_custom_call.1} parent=1 // pred_region
      %5348 = dma.done [#allocation5], 1024
    $region61: #{tpu_custom_call.1} parent=1 // pred_fallthru
      _
    %5349 = vsyncpa [#allocation4], 1
    %5350 = vsyncpa [#allocation7], 1
    %5351 = vsyncpa [#allocation10], 1
    %5352 = vsyncpa [#allocation5], 1

</llo_original>
